<compile_context>
chip_gen: v7x
topology: tpu7x:2x2x1
jax: 0.10.0
libtpu: 0.0.40
codegen_flags: <defaults>
</compile_context>

<pallas_src>
import functools

import jax
import jax.numpy as jnp
from jax.experimental import pallas as pl
from jax.experimental.pallas import tpu as pltpu

EPS = 1e-5
LANE = 128


def _round_up(v, m):
    return (v + m - 1) // m * m


def _pad_last(a, c):
    pad = c - a.shape[-1]
    if pad == 0:
        return a
    return jnp.pad(a, [(0, 0)] * (a.ndim - 1) + [(0, pad)])


# --------------------------------------------------------------------------
# Kernel 1: [pre-affine + ReLU (= previous stage's BN+ReLU)] -> 3x3 conv
#           + per-tile partial BatchNorm statistics.
# --------------------------------------------------------------------------
def conv_stage_kernel(x_ref, w_ref, scale_ref, shift_ref, z_ref, stats_ref,
                      xpad_ref, *, pre_affine, compute_dtype):
    Hp, Wp, Cpi = xpad_ref.shape
    H, W = Hp - 2, Wp - 2
    TCo = z_ref.shape[-1]

    # Fused BN-apply + ReLU of the previous stage; skipped entirely for
    # stage 1 (identity affine would be dead VPU work).
    x = x_ref[0].astype(jnp.float32)
    if pre_affine:
        x = x * scale_ref[...] + shift_ref[...]
        x = jnp.maximum(x, 0.0)

    # Zero-bordered VMEM scratch: conv zero-padding built in-kernel, no
    # wrapper-side jnp.pad HBM round trip.  Only the 4 thin border strips are
    # zeroed; the interior is fully overwritten below (saves a full-tile
    # memset's worth of VMEM store traffic every grid step).
    zrow = jnp.zeros((1, Wp, Cpi), xpad_ref.dtype)
    zcol = jnp.zeros((Hp, 1, Cpi), xpad_ref.dtype)
    xpad_ref[0:1, :, :] = zrow
    xpad_ref[H + 1:H + 2, :, :] = zrow
    xpad_ref[:, 0:1, :] = zcol
    xpad_ref[:, W + 1:W + 2, :] = zcol
    xpad_ref[1:H + 1, 1:W + 1, :] = x.astype(xpad_ref.dtype)

    # 3x3 conv (stride 1, pad 1) as 9 accumulated (H*W, Cpi) @ (Cpi, TCo) MXU
    # matmuls.  Channel padding makes K = Cpi = 128 per tap; the scratch ref is
    # sliced per tap so the padded tile is never fully live in vregs.
    acc = jnp.zeros((H * W, TCo), jnp.float32)
    for dy in range(3):
        for dx in range(3):
            patch = xpad_ref[dy:dy + H, dx:dx + W, :].reshape(H * W, Cpi)
            acc += jnp.dot(patch.astype(compute_dtype), w_ref[dy, dx],
                           preferred_element_type=jnp.float32)
    # NOTE: conv bias intentionally omitted — exactly cancelled by the
    # training-mode BN mean subtraction.

    # Per-tile partial BN statistics (f32), reduced in the wrapper so batch
    # statistics stay exact under tiling (and exact even when z is stored bf16).
    stats_ref[0] = jnp.concatenate(
        [jnp.sum(acc, axis=0, keepdims=True),
         jnp.sum(acc * acc, axis=0, keepdims=True)], axis=0)

    z_ref[0] = acc.reshape(H, W, TCo).astype(z_ref.dtype)


def _conv_stage(x, w, scale_in, shift_in, *, pre_affine, compute_dtype,
                z_dtype):
    N, H, W, Cpi = x.shape
    Cpo = w.shape[-1]
    TCo = LANE
    nco = Cpo // TCo

    flops = 2 * N * H * W * 9 * Cpi * Cpo
    bytes_accessed = int(
        x.size * x.dtype.itemsize
        + w.size * w.dtype.itemsize
        + N * H * W * Cpo * jnp.dtype(z_dtype).itemsize
        + N * 2 * Cpo * 4)

    kernel = functools.partial(conv_stage_kernel, pre_affine=pre_affine,
                               compute_dtype=compute_dtype)
    return pl.pallas_call(
        kernel,
        out_shape=(jax.ShapeDtypeStruct((N, H, W, Cpo), z_dtype),
                   jax.ShapeDtypeStruct((N, 2, Cpo), jnp.float32)),
        grid_spec=pltpu.PrefetchScalarGridSpec(
            num_scalar_prefetch=0,
            grid=(N, nco),
            in_specs=[
                pl.BlockSpec((1, H, W, Cpi), lambda n, co: (n, 0, 0, 0)),
                pl.BlockSpec((3, 3, Cpi, TCo), lambda n, co: (0, 0, 0, co)),
                pl.BlockSpec((1, Cpi), lambda n, co: (0, 0)),
                pl.BlockSpec((1, Cpi), lambda n, co: (0, 0)),
            ],
            out_specs=(
                pl.BlockSpec((1, H, W, TCo), lambda n, co: (n, 0, 0, co)),
                pl.BlockSpec((1, 2, TCo), lambda n, co: (n, 0, co)),
            ),
            scratch_shapes=[pltpu.VMEM((H + 2, W + 2, Cpi), jnp.float32)],
        ),
        compiler_params=pltpu.CompilerParams(
            # Every grid point writes distinct output blocks -> both axes are
            # safe to shard across TensorCores (v7x megacore).
            dimension_semantics=("parallel", "parallel"),
            # Per-step footprint (double-buffered blocks + scratch) is a few
            # MiB — explicit budget, well within v7x's scoped VMEM.
            vmem_limit_bytes=32 * 1024 * 1024,
        ),
        cost_estimate=pl.CostEstimate(flops=flops, transcendentals=0,
                                      bytes_accessed=bytes_accessed),
    )(x, w, scale_in, shift_in)


# --------------------------------------------------------------------------
# Kernel 2: final BN-apply + ReLU, dropping the channel padding on store
# (keeps HBM write bytes at Cout, not Cpo).
# --------------------------------------------------------------------------
def affine_relu_kernel(z_ref, scale_ref, shift_ref, o_ref):
    Cout = o_ref.shape[-1]
    y = z_ref[0].astype(jnp.float32) * scale_ref[...] + shift_ref[...]
    y = jnp.maximum(y, 0.0)
    o_ref[0] = y[:, :, :Cout].astype(o_ref.dtype)


def _affine_relu(z, scale, shift, cout):
    N, H, W, Cpo = z.shape
    return pl.pallas_call(
        affine_relu_kernel,
        out_shape=jax.ShapeDtypeStruct((N, H, W, cout), jnp.float32),
        grid_spec=pltpu.PrefetchScalarGridSpec(
            num_scalar_prefetch=0,
            grid=(N,),
            in_specs=[
                pl.BlockSpec((1, H, W, Cpo), lambda n: (n, 0, 0, 0)),
                pl.BlockSpec((1, Cpo), lambda n: (0, 0)),
                pl.BlockSpec((1, Cpo), lambda n: (0, 0)),
            ],
            out_specs=pl.BlockSpec((1, H, W, cout), lambda n: (n, 0, 0, 0)),
        ),
        compiler_params=pltpu.CompilerParams(
            dimension_semantics=("parallel",),
            vmem_limit_bytes=32 * 1024 * 1024,
        ),
    )(z, scale, shift)


# --------------------------------------------------------------------------
# Glue: reduce per-tile partials into exact training-mode BN scale/shift.
# --------------------------------------------------------------------------
def _bn_fold(stats, gamma_p, beta_p, count):
    s = jnp.sum(stats, axis=0)                         # (2, Cpad), f32
    mean = s[0] / count
    var = jnp.maximum(s[1] / count - mean * mean, 0.0)  # biased (training-mode)
    scale = gamma_p * jax.lax.rsqrt(var + EPS)
    shift = beta_p - mean * scale
    return scale.reshape(1, -1), shift.reshape(1, -1)


def double_conv(x_nchw, params, *, compute_dtype=jnp.float32):
    """Forward of DoubleConv. x_nchw: (N, Cin, H, W) float32 (PyTorch layout).

    compute_dtype=jnp.bfloat16 uses bf16 MXU operands and bf16 intermediates
    (v6e/v7x fast path) with f32 accumulation / f32 BN statistics;
    jnp.float32 keeps full-precision semantics throughout.
    """
    N, Cin, H, W = x_nchw.shape
    Cout = params["w1"].shape[-1]
    Cpi = _round_up(Cin, LANE)    # padded input channels of conv1
    Cpo = _round_up(Cout, LANE)   # padded channels of conv1/conv2 outputs

    # NCHW -> NHWC (lane dim = channels), zero-pad channels to full 128 lanes.
    x = _pad_last(jnp.transpose(x_nchw, (0, 2, 3, 1)), Cpi)

    # Weights are HWIO (3, 3, Cin, Cout); pad both channel dims with zeros.
    w1 = _pad_last(jnp.pad(params["w1"], ((0, 0), (0, 0), (0, Cpi - Cin), (0, 0))),
                   Cpo).astype(compute_dtype)
    w2 = _pad_last(jnp.pad(params["w2"], ((0, 0), (0, 0), (0, Cpo - Cout), (0, 0))),
                   Cpo).astype(compute_dtype)
    # Pad gamma/beta with zeros so padded channels map to exactly zero.
    gamma = _pad_last(params["gamma"], Cpo)
    beta = _pad_last(params["beta"], Cpo)
    # params["b1"] / params["b2"] are intentionally unused (cancelled by BN).

    count = float(N * H * W)
    ones_in = jnp.ones((1, Cpi), jnp.float32)
    zeros_in = jnp.zeros((1, Cpi), jnp.float32)

    # Intermediates in compute_dtype: f32 path unchanged (exact), bf16 path
    # halves HBM traffic on z1/z2 (stats still from the f32 accumulator).
    z_dtype = compute_dtype

    # Stage 1: conv1 + partial BN stats (no pre-affine).
    z1, stats1 = _conv_stage(x, w1, ones_in, zeros_in, pre_affine=False,
                             compute_dtype=compute_dtype, z_dtype=z_dtype)
    scale1, shift1 = _bn_fold(stats1, gamma, beta, count)

    # Stage 2: (BN1 + ReLU fused as pre-affine) -> conv2 + partial BN stats.
    z2, stats2 = _conv_stage(z1, w2, scale1, shift1, pre_affine=True,
                             compute_dtype=compute_dtype, z_dtype=z_dtype)
    scale2, shift2 = _bn_fold(stats2, gamma, beta, count)

    # Stage 3: BN2 + ReLU, drop channel padding.
    y = _affine_relu(z2, scale2, shift2, Cout)

    return jnp.transpose(y, (0, 3, 1, 2))  # NHWC -> NCHW


# --------------------------------------------------------------------------
# Pure-JAX reference (matches the PyTorch module's training-mode forward,
# including the conv biases — which the kernels provably do not need).
# --------------------------------------------------------------------------
def reference_double_conv(x, params):
    def conv(x, w, b):
        out = jax.lax.conv_general_dilated(
            x, w, window_strides=(1, 1), padding=((1, 1), (1, 1)),
            dimension_numbers=("NCHW", "HWIO", "NCHW"),
            precision=jax.lax.Precision.HIGHEST)
        return out + b.reshape(1, -1, 1, 1)

    def bn_relu(z, gamma, beta):
        mean = jnp.mean(z, axis=(0, 2, 3), keepdims=True)
        var = jnp.mean((z - mean) ** 2, axis=(0, 2, 3), keepdims=True)
        y = (z - mean) * jax.lax.rsqrt(var + EPS)
        y = y * gamma.reshape(1, -1, 1, 1) + beta.reshape(1, -1, 1, 1)
        return jnp.maximum(y, 0.0)

    z = bn_relu(conv(x, params["w1"], params["b1"]), params["gamma"], params["beta"])
    z = bn_relu(conv(z, params["w2"], params["b2"]), params["gamma"], params["beta"])
    return z


if __name__ == "__main__":
    N, Cin, Cout, H, W = 2, 4, 8, 16, 16
    key = jax.random.PRNGKey(0)
    k1, k2, k3, k4, k5, k6, k7 = jax.random.split(key, 7)

    bound1 = 1.0 / (Cin * 9) ** 0.5
    bound2 = 1.0 / (Cout * 9) ** 0.5
    params = dict(
        w1=jax.random.uniform(k1, (3, 3, Cin, Cout), jnp.float32, -bound1, bound1),
        b1=jax.random.uniform(k2, (Cout,), jnp.float32, -bound1, bound1),
        w2=jax.random.uniform(k3, (3, 3, Cout, Cout), jnp.float32, -bound2, bound2),
        b2=jax.random.uniform(k4, (Cout,), jnp.float32, -bound2, bound2),
        gamma=jax.random.uniform(k5, (Cout,), jnp.float32, 0.5, 1.5),
        beta=0.1 * jax.random.normal(k6, (Cout,), jnp.float32),
    )
    x = jax.random.normal(k7, (N, Cin, H, W), jnp.float32)

    ref = reference_double_conv(x, params)

    # f32-operand path (exact-precision semantics).
    run_f32 = jax.jit(functools.partial(double_conv, compute_dtype=jnp.float32))
    out = run_f32(x, params)
    jax.block_until_ready(out)
    assert out.shape == (N, Cout, H, W)
    assert bool(jnp.all(out >= 0.0))  # ReLU output
    err = float(jnp.max(jnp.abs(out - ref)))
    assert err < 5e-2, f"f32 path mismatch vs reference: max|diff|={err}"

    # bf16 MXU-operand path (v6e/v7x fast path, f32 accumulation, bf16
    # intermediates — looser tolerance accounts for bf16 storage rounding).
    run_bf16 = jax.jit(functools.partial(double_conv, compute_dtype=jnp.bfloat16))
    out_bf16 = run_bf16(x, params)
    jax.block_until_ready(out_bf16)
    err_bf16 = float(jnp.max(jnp.abs(out_bf16 - ref)))
    assert err_bf16 < 2e-1, f"bf16 path mismatch vs reference: max|diff|={err_bf16}"

    print("KERNEL_OK")
</pallas_src>

<mosaic_0001>
module attributes {stable_mosaic.version = 11 : i64} {
  func.func @affine_relu_kernel(%arg0: i32, %arg1: memref<1x16x16x128xf32, #tpu.memory_space<vmem>>, %arg2: memref<1x128xf32, #tpu.memory_space<vmem>>, %arg3: memref<1x128xf32, #tpu.memory_space<vmem>>, %arg4: memref<1x16x16x8xf32, #tpu.memory_space<vmem>>) attributes {dimension_semantics = [#tpu.dimension_semantics<parallel>], iteration_bounds = array<i64: 2>, scalar_prefetch = 0 : i64, scratch_operands = 0 : i64, tpu.core_type = #tpu.core_type<tc>, window_params = [{transform_indices = @transform_0, window_bounds = array<i64: 1, 16, 16, 128>}, {pipeline_mode = #tpu.pipeline_mode<synchronous>, transform_indices = @transform_1, window_bounds = array<i64: 1, 128>}, {pipeline_mode = #tpu.pipeline_mode<synchronous>, transform_indices = @transform_2, window_bounds = array<i64: 1, 128>}, {transform_indices = @transform_3, window_bounds = array<i64: 1, 16, 16, 8>}]} {
    %c0 = arith.constant 0 : index
    %c0_0 = arith.constant 0 : index
    %c0_1 = arith.constant 0 : index
    %c0_2 = arith.constant 0 : index
    %0 = vector.load %arg1[%c0, %c0_0, %c0_1, %c0_2] : memref<1x16x16x128xf32, #tpu.memory_space<vmem>>, vector<1x16x16x128xf32>
    %1 = vector.shape_cast %0 : vector<1x16x16x128xf32> to vector<16x16x128xf32>
    %c0_3 = arith.constant 0 : index
    %c0_4 = arith.constant 0 : index
    %2 = vector.load %arg2[%c0_3, %c0_4] : memref<1x128xf32, #tpu.memory_space<vmem>>, vector<1x128xf32>
    %3 = vector.shape_cast %2 : vector<1x128xf32> to vector<1x1x128xf32>
    %4 = vector.broadcast %3 : vector<1x1x128xf32> to vector<16x16x128xf32>
    %5 = arith.mulf %1, %4 : vector<16x16x128xf32>
    %c0_5 = arith.constant 0 : index
    %c0_6 = arith.constant 0 : index
    %6 = vector.load %arg3[%c0_5, %c0_6] : memref<1x128xf32, #tpu.memory_space<vmem>>, vector<1x128xf32>
    %7 = vector.shape_cast %6 : vector<1x128xf32> to vector<1x1x128xf32>
    %8 = vector.broadcast %7 : vector<1x1x128xf32> to vector<16x16x128xf32>
    %9 = arith.addf %5, %8 : vector<16x16x128xf32>
    %cst = arith.constant 0.000000e+00 : f32
    %10 = vector.broadcast %cst : f32 to vector<16x16x128xf32>
    %11 = arith.maximumf %9, %10 : vector<16x16x128xf32>
    %12 = vector.extract_strided_slice %11 {offsets = [0, 0, 0], sizes = [16, 16, 8], strides = [1, 1, 1]} : vector<16x16x128xf32> to vector<16x16x8xf32>
    %c0_7 = arith.constant 0 : index
    %c0_8 = arith.constant 0 : index
    %c0_9 = arith.constant 0 : index
    %c0_10 = arith.constant 0 : index
    %13 = vector.load %arg4[%c0_7, %c0_8, %c0_9, %c0_10] : memref<1x16x16x8xf32, #tpu.memory_space<vmem>>, vector<1x16x16x8xf32>
    %14 = vector.shape_cast %13 : vector<1x16x16x8xf32> to vector<16x16x8xf32>
    %15 = vector.shape_cast %12 : vector<16x16x8xf32> to vector<1x16x16x8xf32>
    tpu.vector_store %arg4[%c0_7, %c0_8, %c0_9, %c0_10], %15 {strides = array<i32>} : memref<1x16x16x8xf32, #tpu.memory_space<vmem>>, vector<1x16x16x8xf32>,
    return
  }
  func.func @transform_0(%arg0: i32) -> (i32, i32, i32, i32) {
    %c0_i32 = arith.constant 0 : i32
    %c0_i32_0 = arith.constant 0 : i32
    %c0_i32_1 = arith.constant 0 : i32
    %c0_i32_2 = arith.constant 0 : i32
    return %arg0, %c0_i32, %c0_i32_0, %c0_i32_1 : i32, i32, i32, i32
  }
  func.func @transform_1(%arg0: i32) -> (i32, i32) {
    %c0_i32 = arith.constant 0 : i32
    %c0_i32_0 = arith.constant 0 : i32
    %c0_i32_1 = arith.constant 0 : i32
    return %c0_i32, %c0_i32_0 : i32, i32
  }
  func.func @transform_2(%arg0: i32) -> (i32, i32) {
    %c0_i32 = arith.constant 0 : i32
    %c0_i32_0 = arith.constant 0 : i32
    %c0_i32_1 = arith.constant 0 : i32
    return %c0_i32, %c0_i32_0 : i32, i32
  }
  func.func @transform_3(%arg0: i32) -> (i32, i32, i32, i32) {
    %c0_i32 = arith.constant 0 : i32
    %c0_i32_0 = arith.constant 0 : i32
    %c0_i32_1 = arith.constant 0 : i32
    %c0_i32_2 = arith.constant 0 : i32
    return %arg0, %c0_i32, %c0_i32_0, %c0_i32_1 : i32, i32, i32, i32
  }
}

module attributes {stable_mosaic.version = 11 : i64} {
  func.func @conv_stage_kernel(%arg0: i32, %arg1: i32, %arg2: memref<1x16x16x128xf32, #tpu.memory_space<vmem>>, %arg3: memref<3x3x128x128xf32, #tpu.memory_space<vmem>>, %arg4: memref<1x128xf32, #tpu.memory_space<vmem>>, %arg5: memref<1x128xf32, #tpu.memory_space<vmem>>, %arg6: memref<1x16x16x128xf32, #tpu.memory_space<vmem>>, %arg7: memref<1x2x128xf32, #tpu.memory_space<vmem>>, %arg8: memref<18x18x128xf32, #tpu.memory_space<vmem>>) attributes {dimension_semantics = [#tpu.dimension_semantics<parallel>, #tpu.dimension_semantics<parallel>], iteration_bounds = array<i64: 2, 1>, scalar_prefetch = 0 : i64, scratch_operands = 1 : i64, tpu.core_type = #tpu.core_type<tc>, window_params = [{transform_indices = @transform_0, window_bounds = array<i64: 1, 16, 16, 128>}, {transform_indices = @transform_1, window_bounds = array<i64: 3, 3, 128, 128>}, {pipeline_mode = #tpu.pipeline_mode<synchronous>, transform_indices = @transform_2, window_bounds = array<i64: 1, 128>}, {pipeline_mode = #tpu.pipeline_mode<synchronous>, transform_indices = @transform_3, window_bounds = array<i64: 1, 128>}, {transform_indices = @transform_4, window_bounds = array<i64: 1, 16, 16, 128>}, {transform_indices = @transform_5, window_bounds = array<i64: 1, 2, 128>}]} {
    %c0 = arith.constant 0 : index
    %c0_0 = arith.constant 0 : index
    %c0_1 = arith.constant 0 : index
    %c0_2 = arith.constant 0 : index
    %0 = vector.load %arg2[%c0, %c0_0, %c0_1, %c0_2] : memref<1x16x16x128xf32, #tpu.memory_space<vmem>>, vector<1x16x16x128xf32>
    %1 = vector.shape_cast %0 : vector<1x16x16x128xf32> to vector<16x16x128xf32>
    %c0_3 = arith.constant 0 : index
    %c0_4 = arith.constant 0 : index
    %2 = vector.load %arg4[%c0_3, %c0_4] : memref<1x128xf32, #tpu.memory_space<vmem>>, vector<1x128xf32>
    %3 = vector.shape_cast %2 : vector<1x128xf32> to vector<1x1x128xf32>
    %4 = vector.broadcast %3 : vector<1x1x128xf32> to vector<16x16x128xf32>
    %5 = arith.mulf %1, %4 : vector<16x16x128xf32>
    %c0_5 = arith.constant 0 : index
    %c0_6 = arith.constant 0 : index
    %6 = vector.load %arg5[%c0_5, %c0_6] : memref<1x128xf32, #tpu.memory_space<vmem>>, vector<1x128xf32>
    %7 = vector.shape_cast %6 : vector<1x128xf32> to vector<1x1x128xf32>
    %8 = vector.broadcast %7 : vector<1x1x128xf32> to vector<16x16x128xf32>
    %9 = arith.addf %5, %8 : vector<16x16x128xf32>
    %cst = arith.constant 0.000000e+00 : f32
    %10 = vector.broadcast %cst : f32 to vector<16x16x128xf32>
    %11 = arith.maximumf %9, %10 : vector<16x16x128xf32>
    %cst_7 = arith.constant 0.000000e+00 : f32
    %12 = vector.broadcast %cst_7 : f32 to vector<1x18x128xf32>
    %cst_8 = arith.constant 0.000000e+00 : f32
    %13 = vector.broadcast %cst_8 : f32 to vector<18x1x128xf32>
    %c0_9 = arith.constant 0 : index
    %c0_10 = arith.constant 0 : index
    %c0_11 = arith.constant 0 : index
    %14 = vector.load %arg8[%c0_9, %c0_10, %c0_11] : memref<18x18x128xf32, #tpu.memory_space<vmem>>, vector<1x18x128xf32>
    tpu.vector_store %arg8[%c0_9, %c0_10, %c0_11], %12 {strides = array<i32>} : memref<18x18x128xf32, #tpu.memory_space<vmem>>, vector<1x18x128xf32>,
    %c17 = arith.constant 17 : index
    %c0_12 = arith.constant 0 : index
    %c0_13 = arith.constant 0 : index
    %15 = vector.load %arg8[%c17, %c0_12, %c0_13] : memref<18x18x128xf32, #tpu.memory_space<vmem>>, vector<1x18x128xf32>
    tpu.vector_store %arg8[%c17, %c0_12, %c0_13], %12 {strides = array<i32>} : memref<18x18x128xf32, #tpu.memory_space<vmem>>, vector<1x18x128xf32>,
    %c0_14 = arith.constant 0 : index
    %c0_15 = arith.constant 0 : index
    %c0_16 = arith.constant 0 : index
    %16 = vector.load %arg8[%c0_14, %c0_15, %c0_16] : memref<18x18x128xf32, #tpu.memory_space<vmem>>, vector<18x1x128xf32>
    tpu.vector_store %arg8[%c0_14, %c0_15, %c0_16], %13 {strides = array<i32>} : memref<18x18x128xf32, #tpu.memory_space<vmem>>, vector<18x1x128xf32>,
    %c0_17 = arith.constant 0 : index
    %c17_18 = arith.constant 17 : index
    %c0_19 = arith.constant 0 : index
    %17 = vector.load %arg8[%c0_17, %c17_18, %c0_19] : memref<18x18x128xf32, #tpu.memory_space<vmem>>, vector<18x1x128xf32>
    tpu.vector_store %arg8[%c0_17, %c17_18, %c0_19], %13 {strides = array<i32>} : memref<18x18x128xf32, #tpu.memory_space<vmem>>, vector<18x1x128xf32>,
    %c1 = arith.constant 1 : index
    %c1_20 = arith.constant 1 : index
    %c0_21 = arith.constant 0 : index
    %18 = vector.load %arg8[%c1, %c1_20, %c0_21] : memref<18x18x128xf32, #tpu.memory_space<vmem>>, vector<16x16x128xf32>
    tpu.vector_store %arg8[%c1, %c1_20, %c0_21], %11 {strides = array<i32>} : memref<18x18x128xf32, #tpu.memory_space<vmem>>, vector<16x16x128xf32>,
    %cst_22 = arith.constant 0.000000e+00 : f32
    %19 = vector.broadcast %cst_22 : f32 to vector<256x128xf32>
    %c0_23 = arith.constant 0 : index
    %c0_24 = arith.constant 0 : index
    %c0_25 = arith.constant 0 : index
    %20 = vector.load %arg8[%c0_23, %c0_24, %c0_25] : memref<18x18x128xf32, #tpu.memory_space<vmem>>, vector<16x16x128xf32>
    %21 = vector.shape_cast %20 : vector<16x16x128xf32> to vector<256x128xf32>
    %c0_26 = arith.constant 0 : index
    %c0_27 = arith.constant 0 : index
    %c0_28 = arith.constant 0 : index
    %c0_29 = arith.constant 0 : index
    %22 = vector.load %arg3[%c0_26, %c0_27, %c0_28, %c0_29] : memref<3x3x128x128xf32, #tpu.memory_space<vmem>>, vector<1x1x128x128xf32>
    %23 = vector.shape_cast %22 : vector<1x1x128x128xf32> to vector<128x128xf32>
    %cst_30 = arith.constant dense<0.000000e+00> : vector<256x128xf32>
    %24 = tpu.matmul %21, %23, %cst_30 {dimension_numbers = #tpu.dot_dimension_numbers<[1], [0], [0], [1], [0, 0, 1, 1], [], []>} : vector<256x128xf32>, vector<128x128xf32>, vector<256x128xf32> -> vector<256x128xf32>
    %25 = arith.addf %19, %24 : vector<256x128xf32>
    %c0_31 = arith.constant 0 : index
    %c1_32 = arith.constant 1 : index
    %c0_33 = arith.constant 0 : index
    %26 = vector.load %arg8[%c0_31, %c1_32, %c0_33] : memref<18x18x128xf32, #tpu.memory_space<vmem>>, vector<16x16x128xf32>
    %27 = vector.shape_cast %26 : vector<16x16x128xf32> to vector<256x128xf32>
    %c0_34 = arith.constant 0 : index
    %c1_35 = arith.constant 1 : index
    %c0_36 = arith.constant 0 : index
    %c0_37 = arith.constant 0 : index
    %28 = vector.load %arg3[%c0_34, %c1_35, %c0_36, %c0_37] : memref<3x3x128x128xf32, #tpu.memory_space<vmem>>, vector<1x1x128x128xf32>
    %29 = vector.shape_cast %28 : vector<1x1x128x128xf32> to vector<128x128xf32>
    %cst_38 = arith.constant dense<0.000000e+00> : vector<256x128xf32>
    %30 = tpu.matmul %27, %29, %cst_38 {dimension_numbers = #tpu.dot_dimension_numbers<[1], [0], [0], [1], [0, 0, 1, 1], [], []>} : vector<256x128xf32>, vector<128x128xf32>, vector<256x128xf32> -> vector<256x128xf32>
    %31 = arith.addf %25, %30 : vector<256x128xf32>
    %c0_39 = arith.constant 0 : index
    %c2 = arith.constant 2 : index
    %c0_40 = arith.constant 0 : index
    %32 = vector.load %arg8[%c0_39, %c2, %c0_40] : memref<18x18x128xf32, #tpu.memory_space<vmem>>, vector<16x16x128xf32>
    %33 = vector.shape_cast %32 : vector<16x16x128xf32> to vector<256x128xf32>
    %c0_41 = arith.constant 0 : index
    %c2_42 = arith.constant 2 : index
    %c0_43 = arith.constant 0 : index
    %c0_44 = arith.constant 0 : index
    %34 = vector.load %arg3[%c0_41, %c2_42, %c0_43, %c0_44] : memref<3x3x128x128xf32, #tpu.memory_space<vmem>>, vector<1x1x128x128xf32>
    %35 = vector.shape_cast %34 : vector<1x1x128x128xf32> to vector<128x128xf32>
    %cst_45 = arith.constant dense<0.000000e+00> : vector<256x128xf32>
    %36 = tpu.matmul %33, %35, %cst_45 {dimension_numbers = #tpu.dot_dimension_numbers<[1], [0], [0], [1], [0, 0, 1, 1], [], []>} : vector<256x128xf32>, vector<128x128xf32>, vector<256x128xf32> -> vector<256x128xf32>
    %37 = arith.addf %31, %36 : vector<256x128xf32>
    %c1_46 = arith.constant 1 : index
    %c0_47 = arith.constant 0 : index
    %c0_48 = arith.constant 0 : index
    %38 = vector.load %arg8[%c1_46, %c0_47, %c0_48] : memref<18x18x128xf32, #tpu.memory_space<vmem>>, vector<16x16x128xf32>
    %39 = vector.shape_cast %38 : vector<16x16x128xf32> to vector<256x128xf32>
    %c1_49 = arith.constant 1 : index
    %c0_50 = arith.constant 0 : index
    %c0_51 = arith.constant 0 : index
    %c0_52 = arith.constant 0 : index
    %40 = vector.load %arg3[%c1_49, %c0_50, %c0_51, %c0_52] : memref<3x3x128x128xf32, #tpu.memory_space<vmem>>, vector<1x1x128x128xf32>
    %41 = vector.shape_cast %40 : vector<1x1x128x128xf32> to vector<128x128xf32>
    %cst_53 = arith.constant dense<0.000000e+00> : vector<256x128xf32>
    %42 = tpu.matmul %39, %41, %cst_53 {dimension_numbers = #tpu.dot_dimension_numbers<[1], [0], [0], [1], [0, 0, 1, 1], [], []>} : vector<256x128xf32>, vector<128x128xf32>, vector<256x128xf32> -> vector<256x128xf32>
    %43 = arith.addf %37, %42 : vector<256x128xf32>
    %c1_54 = arith.constant 1 : index
    %c1_55 = arith.constant 1 : index
    %c0_56 = arith.constant 0 : index
    %44 = vector.load %arg8[%c1_54, %c1_55, %c0_56] : memref<18x18x128xf32, #tpu.memory_space<vmem>>, vector<16x16x128xf32>
    %45 = vector.shape_cast %44 : vector<16x16x128xf32> to vector<256x128xf32>
    %c1_57 = arith.constant 1 : index
    %c1_58 = arith.constant 1 : index
    %c0_59 = arith.constant 0 : index
    %c0_60 = arith.constant 0 : index
    %46 = vector.load %arg3[%c1_57, %c1_58, %c0_59, %c0_60] : memref<3x3x128x128xf32, #tpu.memory_space<vmem>>, vector<1x1x128x128xf32>
    %47 = vector.shape_cast %46 : vector<1x1x128x128xf32> to vector<128x128xf32>
    %cst_61 = arith.constant dense<0.000000e+00> : vector<256x128xf32>
    %48 = tpu.matmul %45, %47, %cst_61 {dimension_numbers = #tpu.dot_dimension_numbers<[1], [0], [0], [1], [0, 0, 1, 1], [], []>} : vector<256x128xf32>, vector<128x128xf32>, vector<256x128xf32> -> vector<256x128xf32>
    %49 = arith.addf %43, %48 : vector<256x128xf32>
    %c1_62 = arith.constant 1 : index
    %c2_63 = arith.constant 2 : index
    %c0_64 = arith.constant 0 : index
    %50 = vector.load %arg8[%c1_62, %c2_63, %c0_64] : memref<18x18x128xf32, #tpu.memory_space<vmem>>, vector<16x16x128xf32>
    %51 = vector.shape_cast %50 : vector<16x16x128xf32> to vector<256x128xf32>
    %c1_65 = arith.constant 1 : index
    %c2_66 = arith.constant 2 : index
    %c0_67 = arith.constant 0 : index
    %c0_68 = arith.constant 0 : index
    %52 = vector.load %arg3[%c1_65, %c2_66, %c0_67, %c0_68] : memref<3x3x128x128xf32, #tpu.memory_space<vmem>>, vector<1x1x128x128xf32>
    %53 = vector.shape_cast %52 : vector<1x1x128x128xf32> to vector<128x128xf32>
    %cst_69 = arith.constant dense<0.000000e+00> : vector<256x128xf32>
    %54 = tpu.matmul %51, %53, %cst_69 {dimension_numbers = #tpu.dot_dimension_numbers<[1], [0], [0], [1], [0, 0, 1, 1], [], []>} : vector<256x128xf32>, vector<128x128xf32>, vector<256x128xf32> -> vector<256x128xf32>
    %55 = arith.addf %49, %54 : vector<256x128xf32>
    %c2_70 = arith.constant 2 : index
    %c0_71 = arith.constant 0 : index
    %c0_72 = arith.constant 0 : index
    %56 = vector.load %arg8[%c2_70, %c0_71, %c0_72] : memref<18x18x128xf32, #tpu.memory_space<vmem>>, vector<16x16x128xf32>
    %57 = vector.shape_cast %56 : vector<16x16x128xf32> to vector<256x128xf32>
    %c2_73 = arith.constant 2 : index
    %c0_74 = arith.constant 0 : index
    %c0_75 = arith.constant 0 : index
    %c0_76 = arith.constant 0 : index
    %58 = vector.load %arg3[%c2_73, %c0_74, %c0_75, %c0_76] : memref<3x3x128x128xf32, #tpu.memory_space<vmem>>, vector<1x1x128x128xf32>
    %59 = vector.shape_cast %58 : vector<1x1x128x128xf32> to vector<128x128xf32>
    %cst_77 = arith.constant dense<0.000000e+00> : vector<256x128xf32>
    %60 = tpu.matmul %57, %59, %cst_77 {dimension_numbers = #tpu.dot_dimension_numbers<[1], [0], [0], [1], [0, 0, 1, 1], [], []>} : vector<256x128xf32>, vector<128x128xf32>, vector<256x128xf32> -> vector<256x128xf32>
    %61 = arith.addf %55, %60 : vector<256x128xf32>
    %c2_78 = arith.constant 2 : index
    %c1_79 = arith.constant 1 : index
    %c0_80 = arith.constant 0 : index
    %62 = vector.load %arg8[%c2_78, %c1_79, %c0_80] : memref<18x18x128xf32, #tpu.memory_space<vmem>>, vector<16x16x128xf32>
    %63 = vector.shape_cast %62 : vector<16x16x128xf32> to vector<256x128xf32>
    %c2_81 = arith.constant 2 : index
    %c1_82 = arith.constant 1 : index
    %c0_83 = arith.constant 0 : index
    %c0_84 = arith.constant 0 : index
    %64 = vector.load %arg3[%c2_81, %c1_82, %c0_83, %c0_84] : memref<3x3x128x128xf32, #tpu.memory_space<vmem>>, vector<1x1x128x128xf32>
    %65 = vector.shape_cast %64 : vector<1x1x128x128xf32> to vector<128x128xf32>
    %cst_85 = arith.constant dense<0.000000e+00> : vector<256x128xf32>
    %66 = tpu.matmul %63, %65, %cst_85 {dimension_numbers = #tpu.dot_dimension_numbers<[1], [0], [0], [1], [0, 0, 1, 1], [], []>} : vector<256x128xf32>, vector<128x128xf32>, vector<256x128xf32> -> vector<256x128xf32>
    %67 = arith.addf %61, %66 : vector<256x128xf32>
    %c2_86 = arith.constant 2 : index
    %c2_87 = arith.constant 2 : index
    %c0_88 = arith.constant 0 : index
    %68 = vector.load %arg8[%c2_86, %c2_87, %c0_88] : memref<18x18x128xf32, #tpu.memory_space<vmem>>, vector<16x16x128xf32>
    %69 = vector.shape_cast %68 : vector<16x16x128xf32> to vector<256x128xf32>
    %c2_89 = arith.constant 2 : index
    %c2_90 = arith.constant 2 : index
    %c0_91 = arith.constant 0 : index
    %c0_92 = arith.constant 0 : index
    %70 = vector.load %arg3[%c2_89, %c2_90, %c0_91, %c0_92] : memref<3x3x128x128xf32, #tpu.memory_space<vmem>>, vector<1x1x128x128xf32>
    %71 = vector.shape_cast %70 : vector<1x1x128x128xf32> to vector<128x128xf32>
    %cst_93 = arith.constant dense<0.000000e+00> : vector<256x128xf32>
    %72 = tpu.matmul %69, %71, %cst_93 {dimension_numbers = #tpu.dot_dimension_numbers<[1], [0], [0], [1], [0, 0, 1, 1], [], []>} : vector<256x128xf32>, vector<128x128xf32>, vector<256x128xf32> -> vector<256x128xf32>
    %73 = arith.addf %67, %72 : vector<256x128xf32>
    %cst_94 = arith.constant dense<0.000000e+00> : vector<128xf32>
    %74 = vector.multi_reduction <add>, %73, %cst_94 [0] : vector<256x128xf32> to vector<128xf32>
    %75 = vector.shape_cast %74 : vector<128xf32> to vector<1x128xf32>
    %76 = arith.mulf %73, %73 : vector<256x128xf32>
    %cst_95 = arith.constant dense<0.000000e+00> : vector<128xf32>
    %77 = vector.multi_reduction <add>, %76, %cst_95 [0] : vector<256x128xf32> to vector<128xf32>
    %78 = vector.shape_cast %77 : vector<128xf32> to vector<1x128xf32>
    %79 = tpu.concatenate %75, %78 in 0 : vector<1x128xf32>, vector<1x128xf32> -> vector<2x128xf32>
    %c0_96 = arith.constant 0 : index
    %c0_97 = arith.constant 0 : index
    %c0_98 = arith.constant 0 : index
    %80 = vector.load %arg7[%c0_96, %c0_97, %c0_98] : memref<1x2x128xf32, #tpu.memory_space<vmem>>, vector<1x2x128xf32>
    %81 = vector.shape_cast %80 : vector<1x2x128xf32> to vector<2x128xf32>
    %82 = vector.shape_cast %79 : vector<2x128xf32> to vector<1x2x128xf32>
    tpu.vector_store %arg7[%c0_96, %c0_97, %c0_98], %82 {strides = array<i32>} : memref<1x2x128xf32, #tpu.memory_space<vmem>>, vector<1x2x128xf32>,
    %83 = vector.shape_cast %73 : vector<256x128xf32> to vector<16x16x128xf32>
    %c0_99 = arith.constant 0 : index
    %c0_100 = arith.constant 0 : index
    %c0_101 = arith.constant 0 : index
    %c0_102 = arith.constant 0 : index
    %84 = vector.load %arg6[%c0_99, %c0_100, %c0_101, %c0_102] : memref<1x16x16x128xf32, #tpu.memory_space<vmem>>, vector<1x16x16x128xf32>
    %85 = vector.shape_cast %84 : vector<1x16x16x128xf32> to vector<16x16x128xf32>
    %86 = vector.shape_cast %83 : vector<16x16x128xf32> to vector<1x16x16x128xf32>
    tpu.vector_store %arg6[%c0_99, %c0_100, %c0_101, %c0_102], %86 {strides = array<i32>} : memref<1x16x16x128xf32, #tpu.memory_space<vmem>>, vector<1x16x16x128xf32>,
    return
  }
  func.func @transform_0(%arg0: i32, %arg1: i32) -> (i32, i32, i32, i32) {
    %c0_i32 = arith.constant 0 : i32
    %c0_i32_0 = arith.constant 0 : i32
    %c0_i32_1 = arith.constant 0 : i32
    %c0_i32_2 = arith.constant 0 : i32
    return %arg0, %c0_i32, %c0_i32_0, %c0_i32_1 : i32, i32, i32, i32
  }
  func.func @transform_1(%arg0: i32, %arg1: i32) -> (i32, i32, i32, i32) {
    %c0_i32 = arith.constant 0 : i32
    %c0_i32_0 = arith.constant 0 : i32
    %c0_i32_1 = arith.constant 0 : i32
    %c0_i32_2 = arith.constant 0 : i32
    return %c0_i32, %c0_i32_0, %c0_i32_1, %arg1 : i32, i32, i32, i32
  }
  func.func @transform_2(%arg0: i32, %arg1: i32) -> (i32, i32) {
    %c0_i32 = arith.constant 0 : i32
    %c0_i32_0 = arith.constant 0 : i32
    %c0_i32_1 = arith.constant 0 : i32
    return %c0_i32, %c0_i32_0 : i32, i32
  }
  func.func @transform_3(%arg0: i32, %arg1: i32) -> (i32, i32) {
    %c0_i32 = arith.constant 0 : i32
    %c0_i32_0 = arith.constant 0 : i32
    %c0_i32_1 = arith.constant 0 : i32
    return %c0_i32, %c0_i32_0 : i32, i32
  }
  func.func @transform_4(%arg0: i32, %arg1: i32) -> (i32, i32, i32, i32) {
    %c0_i32 = arith.constant 0 : i32
    %c0_i32_0 = arith.constant 0 : i32
    %c0_i32_1 = arith.constant 0 : i32
    return %arg0, %c0_i32, %c0_i32_0, %arg1 : i32, i32, i32, i32
  }
  func.func @transform_5(%arg0: i32, %arg1: i32) -> (i32, i32, i32) {
    %c0_i32 = arith.constant 0 : i32
    %c0_i32_0 = arith.constant 0 : i32
    return %arg0, %c0_i32, %arg1 : i32, i32, i32
  }
}

module attributes {stable_mosaic.version = 11 : i64} {
  func.func @conv_stage_kernel(%arg0: i32, %arg1: i32, %arg2: memref<1x16x16x128xf32, #tpu.memory_space<vmem>>, %arg3: memref<3x3x128x128xf32, #tpu.memory_space<vmem>>, %arg4: memref<1x128xf32, #tpu.memory_space<vmem>>, %arg5: memref<1x128xf32, #tpu.memory_space<vmem>>, %arg6: memref<1x16x16x128xf32, #tpu.memory_space<vmem>>, %arg7: memref<1x2x128xf32, #tpu.memory_space<vmem>>, %arg8: memref<18x18x128xf32, #tpu.memory_space<vmem>>) attributes {dimension_semantics = [#tpu.dimension_semantics<parallel>, #tpu.dimension_semantics<parallel>], iteration_bounds = array<i64: 2, 1>, scalar_prefetch = 0 : i64, scratch_operands = 1 : i64, tpu.core_type = #tpu.core_type<tc>, window_params = [{transform_indices = @transform_0, window_bounds = array<i64: 1, 16, 16, 128>}, {transform_indices = @transform_1, window_bounds = array<i64: 3, 3, 128, 128>}, {pipeline_mode = #tpu.pipeline_mode<synchronous>, transform_indices = @transform_2, window_bounds = array<i64: 1, 128>}, {pipeline_mode = #tpu.pipeline_mode<synchronous>, transform_indices = @transform_3, window_bounds = array<i64: 1, 128>}, {transform_indices = @transform_4, window_bounds = array<i64: 1, 16, 16, 128>}, {transform_indices = @transform_5, window_bounds = array<i64: 1, 2, 128>}]} {
    %c0 = arith.constant 0 : index
    %c0_0 = arith.constant 0 : index
    %c0_1 = arith.constant 0 : index
    %c0_2 = arith.constant 0 : index
    %0 = vector.load %arg2[%c0, %c0_0, %c0_1, %c0_2] : memref<1x16x16x128xf32, #tpu.memory_space<vmem>>, vector<1x16x16x128xf32>
    %1 = vector.shape_cast %0 : vector<1x16x16x128xf32> to vector<16x16x128xf32>
    %cst = arith.constant 0.000000e+00 : f32
    %2 = vector.broadcast %cst : f32 to vector<1x18x128xf32>
    %cst_3 = arith.constant 0.000000e+00 : f32
    %3 = vector.broadcast %cst_3 : f32 to vector<18x1x128xf32>
    %c0_4 = arith.constant 0 : index
    %c0_5 = arith.constant 0 : index
    %c0_6 = arith.constant 0 : index
    %4 = vector.load %arg8[%c0_4, %c0_5, %c0_6] : memref<18x18x128xf32, #tpu.memory_space<vmem>>, vector<1x18x128xf32>
    tpu.vector_store %arg8[%c0_4, %c0_5, %c0_6], %2 {strides = array<i32>} : memref<18x18x128xf32, #tpu.memory_space<vmem>>, vector<1x18x128xf32>,
    %c17 = arith.constant 17 : index
    %c0_7 = arith.constant 0 : index
    %c0_8 = arith.constant 0 : index
    %5 = vector.load %arg8[%c17, %c0_7, %c0_8] : memref<18x18x128xf32, #tpu.memory_space<vmem>>, vector<1x18x128xf32>
    tpu.vector_store %arg8[%c17, %c0_7, %c0_8], %2 {strides = array<i32>} : memref<18x18x128xf32, #tpu.memory_space<vmem>>, vector<1x18x128xf32>,
    %c0_9 = arith.constant 0 : index
    %c0_10 = arith.constant 0 : index
    %c0_11 = arith.constant 0 : index
    %6 = vector.load %arg8[%c0_9, %c0_10, %c0_11] : memref<18x18x128xf32, #tpu.memory_space<vmem>>, vector<18x1x128xf32>
    tpu.vector_store %arg8[%c0_9, %c0_10, %c0_11], %3 {strides = array<i32>} : memref<18x18x128xf32, #tpu.memory_space<vmem>>, vector<18x1x128xf32>,
    %c0_12 = arith.constant 0 : index
    %c17_13 = arith.constant 17 : index
    %c0_14 = arith.constant 0 : index
    %7 = vector.load %arg8[%c0_12, %c17_13, %c0_14] : memref<18x18x128xf32, #tpu.memory_space<vmem>>, vector<18x1x128xf32>
    tpu.vector_store %arg8[%c0_12, %c17_13, %c0_14], %3 {strides = array<i32>} : memref<18x18x128xf32, #tpu.memory_space<vmem>>, vector<18x1x128xf32>,
    %c1 = arith.constant 1 : index
    %c1_15 = arith.constant 1 : index
    %c0_16 = arith.constant 0 : index
    %8 = vector.load %arg8[%c1, %c1_15, %c0_16] : memref<18x18x128xf32, #tpu.memory_space<vmem>>, vector<16x16x128xf32>
    tpu.vector_store %arg8[%c1, %c1_15, %c0_16], %1 {strides = array<i32>} : memref<18x18x128xf32, #tpu.memory_space<vmem>>, vector<16x16x128xf32>,
    %cst_17 = arith.constant 0.000000e+00 : f32
    %9 = vector.broadcast %cst_17 : f32 to vector<256x128xf32>
    %c0_18 = arith.constant 0 : index
    %c0_19 = arith.constant 0 : index
    %c0_20 = arith.constant 0 : index
    %10 = vector.load %arg8[%c0_18, %c0_19, %c0_20] : memref<18x18x128xf32, #tpu.memory_space<vmem>>, vector<16x16x128xf32>
    %11 = vector.shape_cast %10 : vector<16x16x128xf32> to vector<256x128xf32>
    %c0_21 = arith.constant 0 : index
    %c0_22 = arith.constant 0 : index
    %c0_23 = arith.constant 0 : index
    %c0_24 = arith.constant 0 : index
    %12 = vector.load %arg3[%c0_21, %c0_22, %c0_23, %c0_24] : memref<3x3x128x128xf32, #tpu.memory_space<vmem>>, vector<1x1x128x128xf32>
    %13 = vector.shape_cast %12 : vector<1x1x128x128xf32> to vector<128x128xf32>
    %cst_25 = arith.constant dense<0.000000e+00> : vector<256x128xf32>
    %14 = tpu.matmul %11, %13, %cst_25 {dimension_numbers = #tpu.dot_dimension_numbers<[1], [0], [0], [1], [0, 0, 1, 1], [], []>} : vector<256x128xf32>, vector<128x128xf32>, vector<256x128xf32> -> vector<256x128xf32>
    %15 = arith.addf %9, %14 : vector<256x128xf32>
    %c0_26 = arith.constant 0 : index
    %c1_27 = arith.constant 1 : index
    %c0_28 = arith.constant 0 : index
    %16 = vector.load %arg8[%c0_26, %c1_27, %c0_28] : memref<18x18x128xf32, #tpu.memory_space<vmem>>, vector<16x16x128xf32>
    %17 = vector.shape_cast %16 : vector<16x16x128xf32> to vector<256x128xf32>
    %c0_29 = arith.constant 0 : index
    %c1_30 = arith.constant 1 : index
    %c0_31 = arith.constant 0 : index
    %c0_32 = arith.constant 0 : index
    %18 = vector.load %arg3[%c0_29, %c1_30, %c0_31, %c0_32] : memref<3x3x128x128xf32, #tpu.memory_space<vmem>>, vector<1x1x128x128xf32>
    %19 = vector.shape_cast %18 : vector<1x1x128x128xf32> to vector<128x128xf32>
    %cst_33 = arith.constant dense<0.000000e+00> : vector<256x128xf32>
    %20 = tpu.matmul %17, %19, %cst_33 {dimension_numbers = #tpu.dot_dimension_numbers<[1], [0], [0], [1], [0, 0, 1, 1], [], []>} : vector<256x128xf32>, vector<128x128xf32>, vector<256x128xf32> -> vector<256x128xf32>
    %21 = arith.addf %15, %20 : vector<256x128xf32>
    %c0_34 = arith.constant 0 : index
    %c2 = arith.constant 2 : index
    %c0_35 = arith.constant 0 : index
    %22 = vector.load %arg8[%c0_34, %c2, %c0_35] : memref<18x18x128xf32, #tpu.memory_space<vmem>>, vector<16x16x128xf32>
    %23 = vector.shape_cast %22 : vector<16x16x128xf32> to vector<256x128xf32>
    %c0_36 = arith.constant 0 : index
    %c2_37 = arith.constant 2 : index
    %c0_38 = arith.constant 0 : index
    %c0_39 = arith.constant 0 : index
    %24 = vector.load %arg3[%c0_36, %c2_37, %c0_38, %c0_39] : memref<3x3x128x128xf32, #tpu.memory_space<vmem>>, vector<1x1x128x128xf32>
    %25 = vector.shape_cast %24 : vector<1x1x128x128xf32> to vector<128x128xf32>
    %cst_40 = arith.constant dense<0.000000e+00> : vector<256x128xf32>
    %26 = tpu.matmul %23, %25, %cst_40 {dimension_numbers = #tpu.dot_dimension_numbers<[1], [0], [0], [1], [0, 0, 1, 1], [], []>} : vector<256x128xf32>, vector<128x128xf32>, vector<256x128xf32> -> vector<256x128xf32>
    %27 = arith.addf %21, %26 : vector<256x128xf32>
    %c1_41 = arith.constant 1 : index
    %c0_42 = arith.constant 0 : index
    %c0_43 = arith.constant 0 : index
    %28 = vector.load %arg8[%c1_41, %c0_42, %c0_43] : memref<18x18x128xf32, #tpu.memory_space<vmem>>, vector<16x16x128xf32>
    %29 = vector.shape_cast %28 : vector<16x16x128xf32> to vector<256x128xf32>
    %c1_44 = arith.constant 1 : index
    %c0_45 = arith.constant 0 : index
    %c0_46 = arith.constant 0 : index
    %c0_47 = arith.constant 0 : index
    %30 = vector.load %arg3[%c1_44, %c0_45, %c0_46, %c0_47] : memref<3x3x128x128xf32, #tpu.memory_space<vmem>>, vector<1x1x128x128xf32>
    %31 = vector.shape_cast %30 : vector<1x1x128x128xf32> to vector<128x128xf32>
    %cst_48 = arith.constant dense<0.000000e+00> : vector<256x128xf32>
    %32 = tpu.matmul %29, %31, %cst_48 {dimension_numbers = #tpu.dot_dimension_numbers<[1], [0], [0], [1], [0, 0, 1, 1], [], []>} : vector<256x128xf32>, vector<128x128xf32>, vector<256x128xf32> -> vector<256x128xf32>
    %33 = arith.addf %27, %32 : vector<256x128xf32>
    %c1_49 = arith.constant 1 : index
    %c1_50 = arith.constant 1 : index
    %c0_51 = arith.constant 0 : index
    %34 = vector.load %arg8[%c1_49, %c1_50, %c0_51] : memref<18x18x128xf32, #tpu.memory_space<vmem>>, vector<16x16x128xf32>
    %35 = vector.shape_cast %34 : vector<16x16x128xf32> to vector<256x128xf32>
    %c1_52 = arith.constant 1 : index
    %c1_53 = arith.constant 1 : index
    %c0_54 = arith.constant 0 : index
    %c0_55 = arith.constant 0 : index
    %36 = vector.load %arg3[%c1_52, %c1_53, %c0_54, %c0_55] : memref<3x3x128x128xf32, #tpu.memory_space<vmem>>, vector<1x1x128x128xf32>
    %37 = vector.shape_cast %36 : vector<1x1x128x128xf32> to vector<128x128xf32>
    %cst_56 = arith.constant dense<0.000000e+00> : vector<256x128xf32>
    %38 = tpu.matmul %35, %37, %cst_56 {dimension_numbers = #tpu.dot_dimension_numbers<[1], [0], [0], [1], [0, 0, 1, 1], [], []>} : vector<256x128xf32>, vector<128x128xf32>, vector<256x128xf32> -> vector<256x128xf32>
    %39 = arith.addf %33, %38 : vector<256x128xf32>
    %c1_57 = arith.constant 1 : index
    %c2_58 = arith.constant 2 : index
    %c0_59 = arith.constant 0 : index
    %40 = vector.load %arg8[%c1_57, %c2_58, %c0_59] : memref<18x18x128xf32, #tpu.memory_space<vmem>>, vector<16x16x128xf32>
    %41 = vector.shape_cast %40 : vector<16x16x128xf32> to vector<256x128xf32>
    %c1_60 = arith.constant 1 : index
    %c2_61 = arith.constant 2 : index
    %c0_62 = arith.constant 0 : index
    %c0_63 = arith.constant 0 : index
    %42 = vector.load %arg3[%c1_60, %c2_61, %c0_62, %c0_63] : memref<3x3x128x128xf32, #tpu.memory_space<vmem>>, vector<1x1x128x128xf32>
    %43 = vector.shape_cast %42 : vector<1x1x128x128xf32> to vector<128x128xf32>
    %cst_64 = arith.constant dense<0.000000e+00> : vector<256x128xf32>
    %44 = tpu.matmul %41, %43, %cst_64 {dimension_numbers = #tpu.dot_dimension_numbers<[1], [0], [0], [1], [0, 0, 1, 1], [], []>} : vector<256x128xf32>, vector<128x128xf32>, vector<256x128xf32> -> vector<256x128xf32>
    %45 = arith.addf %39, %44 : vector<256x128xf32>
    %c2_65 = arith.constant 2 : index
    %c0_66 = arith.constant 0 : index
    %c0_67 = arith.constant 0 : index
    %46 = vector.load %arg8[%c2_65, %c0_66, %c0_67] : memref<18x18x128xf32, #tpu.memory_space<vmem>>, vector<16x16x128xf32>
    %47 = vector.shape_cast %46 : vector<16x16x128xf32> to vector<256x128xf32>
    %c2_68 = arith.constant 2 : index
    %c0_69 = arith.constant 0 : index
    %c0_70 = arith.constant 0 : index
    %c0_71 = arith.constant 0 : index
    %48 = vector.load %arg3[%c2_68, %c0_69, %c0_70, %c0_71] : memref<3x3x128x128xf32, #tpu.memory_space<vmem>>, vector<1x1x128x128xf32>
    %49 = vector.shape_cast %48 : vector<1x1x128x128xf32> to vector<128x128xf32>
    %cst_72 = arith.constant dense<0.000000e+00> : vector<256x128xf32>
    %50 = tpu.matmul %47, %49, %cst_72 {dimension_numbers = #tpu.dot_dimension_numbers<[1], [0], [0], [1], [0, 0, 1, 1], [], []>} : vector<256x128xf32>, vector<128x128xf32>, vector<256x128xf32> -> vector<256x128xf32>
    %51 = arith.addf %45, %50 : vector<256x128xf32>
    %c2_73 = arith.constant 2 : index
    %c1_74 = arith.constant 1 : index
    %c0_75 = arith.constant 0 : index
    %52 = vector.load %arg8[%c2_73, %c1_74, %c0_75] : memref<18x18x128xf32, #tpu.memory_space<vmem>>, vector<16x16x128xf32>
    %53 = vector.shape_cast %52 : vector<16x16x128xf32> to vector<256x128xf32>
    %c2_76 = arith.constant 2 : index
    %c1_77 = arith.constant 1 : index
    %c0_78 = arith.constant 0 : index
    %c0_79 = arith.constant 0 : index
    %54 = vector.load %arg3[%c2_76, %c1_77, %c0_78, %c0_79] : memref<3x3x128x128xf32, #tpu.memory_space<vmem>>, vector<1x1x128x128xf32>
    %55 = vector.shape_cast %54 : vector<1x1x128x128xf32> to vector<128x128xf32>
    %cst_80 = arith.constant dense<0.000000e+00> : vector<256x128xf32>
    %56 = tpu.matmul %53, %55, %cst_80 {dimension_numbers = #tpu.dot_dimension_numbers<[1], [0], [0], [1], [0, 0, 1, 1], [], []>} : vector<256x128xf32>, vector<128x128xf32>, vector<256x128xf32> -> vector<256x128xf32>
    %57 = arith.addf %51, %56 : vector<256x128xf32>
    %c2_81 = arith.constant 2 : index
    %c2_82 = arith.constant 2 : index
    %c0_83 = arith.constant 0 : index
    %58 = vector.load %arg8[%c2_81, %c2_82, %c0_83] : memref<18x18x128xf32, #tpu.memory_space<vmem>>, vector<16x16x128xf32>
    %59 = vector.shape_cast %58 : vector<16x16x128xf32> to vector<256x128xf32>
    %c2_84 = arith.constant 2 : index
    %c2_85 = arith.constant 2 : index
    %c0_86 = arith.constant 0 : index
    %c0_87 = arith.constant 0 : index
    %60 = vector.load %arg3[%c2_84, %c2_85, %c0_86, %c0_87] : memref<3x3x128x128xf32, #tpu.memory_space<vmem>>, vector<1x1x128x128xf32>
    %61 = vector.shape_cast %60 : vector<1x1x128x128xf32> to vector<128x128xf32>
    %cst_88 = arith.constant dense<0.000000e+00> : vector<256x128xf32>
    %62 = tpu.matmul %59, %61, %cst_88 {dimension_numbers = #tpu.dot_dimension_numbers<[1], [0], [0], [1], [0, 0, 1, 1], [], []>} : vector<256x128xf32>, vector<128x128xf32>, vector<256x128xf32> -> vector<256x128xf32>
    %63 = arith.addf %57, %62 : vector<256x128xf32>
    %cst_89 = arith.constant dense<0.000000e+00> : vector<128xf32>
    %64 = vector.multi_reduction <add>, %63, %cst_89 [0] : vector<256x128xf32> to vector<128xf32>
    %65 = vector.shape_cast %64 : vector<128xf32> to vector<1x128xf32>
    %66 = arith.mulf %63, %63 : vector<256x128xf32>
    %cst_90 = arith.constant dense<0.000000e+00> : vector<128xf32>
    %67 = vector.multi_reduction <add>, %66, %cst_90 [0] : vector<256x128xf32> to vector<128xf32>
    %68 = vector.shape_cast %67 : vector<128xf32> to vector<1x128xf32>
    %69 = tpu.concatenate %65, %68 in 0 : vector<1x128xf32>, vector<1x128xf32> -> vector<2x128xf32>
    %c0_91 = arith.constant 0 : index
    %c0_92 = arith.constant 0 : index
    %c0_93 = arith.constant 0 : index
    %70 = vector.load %arg7[%c0_91, %c0_92, %c0_93] : memref<1x2x128xf32, #tpu.memory_space<vmem>>, vector<1x2x128xf32>
    %71 = vector.shape_cast %70 : vector<1x2x128xf32> to vector<2x128xf32>
    %72 = vector.shape_cast %69 : vector<2x128xf32> to vector<1x2x128xf32>
    tpu.vector_store %arg7[%c0_91, %c0_92, %c0_93], %72 {strides = array<i32>} : memref<1x2x128xf32, #tpu.memory_space<vmem>>, vector<1x2x128xf32>,
    %73 = vector.shape_cast %63 : vector<256x128xf32> to vector<16x16x128xf32>
    %c0_94 = arith.constant 0 : index
    %c0_95 = arith.constant 0 : index
    %c0_96 = arith.constant 0 : index
    %c0_97 = arith.constant 0 : index
    %74 = vector.load %arg6[%c0_94, %c0_95, %c0_96, %c0_97] : memref<1x16x16x128xf32, #tpu.memory_space<vmem>>, vector<1x16x16x128xf32>
    %75 = vector.shape_cast %74 : vector<1x16x16x128xf32> to vector<16x16x128xf32>
    %76 = vector.shape_cast %73 : vector<16x16x128xf32> to vector<1x16x16x128xf32>
    tpu.vector_store %arg6[%c0_94, %c0_95, %c0_96, %c0_97], %76 {strides = array<i32>} : memref<1x16x16x128xf32, #tpu.memory_space<vmem>>, vector<1x16x16x128xf32>,
    return
  }
  func.func @transform_0(%arg0: i32, %arg1: i32) -> (i32, i32, i32, i32) {
    %c0_i32 = arith.constant 0 : i32
    %c0_i32_0 = arith.constant 0 : i32
    %c0_i32_1 = arith.constant 0 : i32
    %c0_i32_2 = arith.constant 0 : i32
    return %arg0, %c0_i32, %c0_i32_0, %c0_i32_1 : i32, i32, i32, i32
  }
  func.func @transform_1(%arg0: i32, %arg1: i32) -> (i32, i32, i32, i32) {
    %c0_i32 = arith.constant 0 : i32
    %c0_i32_0 = arith.constant 0 : i32
    %c0_i32_1 = arith.constant 0 : i32
    %c0_i32_2 = arith.constant 0 : i32
    return %c0_i32, %c0_i32_0, %c0_i32_1, %arg1 : i32, i32, i32, i32
  }
  func.func @transform_2(%arg0: i32, %arg1: i32) -> (i32, i32) {
    %c0_i32 = arith.constant 0 : i32
    %c0_i32_0 = arith.constant 0 : i32
    %c0_i32_1 = arith.constant 0 : i32
    return %c0_i32, %c0_i32_0 : i32, i32
  }
  func.func @transform_3(%arg0: i32, %arg1: i32) -> (i32, i32) {
    %c0_i32 = arith.constant 0 : i32
    %c0_i32_0 = arith.constant 0 : i32
    %c0_i32_1 = arith.constant 0 : i32
    return %c0_i32, %c0_i32_0 : i32, i32
  }
  func.func @transform_4(%arg0: i32, %arg1: i32) -> (i32, i32, i32, i32) {
    %c0_i32 = arith.constant 0 : i32
    %c0_i32_0 = arith.constant 0 : i32
    %c0_i32_1 = arith.constant 0 : i32
    return %arg0, %c0_i32, %c0_i32_0, %arg1 : i32, i32, i32, i32
  }
  func.func @transform_5(%arg0: i32, %arg1: i32) -> (i32, i32, i32) {
    %c0_i32 = arith.constant 0 : i32
    %c0_i32_0 = arith.constant 0 : i32
    return %arg0, %c0_i32, %arg1 : i32, i32, i32
  }
}

</mosaic_0001>

<llo_original>
// kernel: double_conv.5
$region0: #{double_conv.5}
  #allocation0 [shape = 'u32[]', space=smem, size = 0x4, offset = 0x4, fixed_abs, tag = 'smem constant byte address 0x4 - core index']
  #allocation1 [shape = 'u32[144,128]{1,0:T(1,128)}', space=vmem, size = 0x12000, scoped, tag = 'internal scratch']
  %s0 = inlined_call_operand.vmem [shape: f32[2,16,16,128], index: 0, kind: input, shape index: {}]
  %s1 = inlined_call_operand.vmem [shape: f32[1,128], index: 1, kind: input, shape index: {}]
  %s2 = inlined_call_operand.vmem [shape: f32[1,128], index: 2, kind: input, shape index: {}]
  %s3 = inlined_call_operand.vmem [shape: f32[2,16,16,8], index: 3, kind: output, shape index: {}]
  %s4 = sld [smem:[#allocation0]]
  $region45: #{double_conv.5} parent=0
    _
  %s6 = ssub.s32 1, %s4
  %s7 = scalar_select 0, %s6, %s4
  loop: start=0, step=1, limit=4
  $region2: #{double_conv.5} parent=0 // loop_pre_header
    _
  $region3: #{double_conv.5} parent=0 // loop_header
    %s9 = sphi 0, %s13
    %p10 = scmp.ge.s32.totalorder %s9, 4
    %s19 = sphi 0, %s21
    %s22 = sphi 0, %s19
    %s23 = sphi 0, %s22
    %s39 = sphi 0, %s23
    %s43 = sphi 0, %s43
    %s45 = sphi 0, %s43
    %s46 = sphi 0, %s45
    %s60 = sphi 0, %s46
    %s64 = sphi 0, %s64
    %s66 = sphi 0, %s64
    %s67 = sphi 0, %s66
    %s81 = sphi 0, %s67
    %s87 = sphi 0, %s89
    %s90 = sphi 0, %s87
    %s91 = sphi 0, %s90
    %s107 = sphi 0, %s91
  $region4: #{double_conv.5} parent=0 // loop_header_branch
    %12 = sbr.rel (%p10) target = $region8
  $region5: #{double_conv.5} parent=0 // loop_body
    %s14 = ssub.s32 %s9, 1
    %s15 = ssub.s32 %s9, 2
    %s16 = sadd.s32 %s9, 1
    %s17 = ssub.s32 %s9, %s16
    %p18 = scmp.eq.s32.totalorder %s17, 0
    %s20 = sadd.s32 %s19, 1
    %s21 = scalar_select %p18, %s19, %s20
    %p24 = pneg %p18
    %p25 = scmp.eq.s32.totalorder %s9, 1
    %p26 = por %p24, %p25
    %p27 = scmp.ne.s32.totalorder %s19, %s22
    %p28 = scmp.eq.s32.totalorder %s9, 0
    %p29 = por %p27, %p28
    %p30 = scmp.ne.s32.totalorder %s19, %s22
    %p31 = scmp.eq.s32.totalorder %s14, 1
    %p32 = por %p30, %p31
    %p33 = scmp.ne.s32.totalorder %s22, %s23
    %p34 = scmp.eq.s32.totalorder %s14, 0
    %p35 = por %p33, %p34
    %p36 = scmp.ne.s32.totalorder %s22, %s23
    %p37 = scmp.eq.s32.totalorder %s15, 1
    %p38 = por %p36, %p37
    %p40 = scmp.ne.s32.totalorder %s23, %s39
    %p41 = scmp.eq.s32.totalorder %s15, 0
    %p42 = por %p40, %p41
    %s44 = sadd.s32 %s43, 1
    %p47 = scmp.eq.s32.totalorder %s9, 1
    %p48 = scmp.ne.s32.totalorder %s43, %s45
    %p49 = scmp.eq.s32.totalorder %s9, 0
    %p50 = por %p48, %p49
    %p51 = scmp.ne.s32.totalorder %s43, %s45
    %p52 = scmp.eq.s32.totalorder %s14, 1
    %p53 = por %p51, %p52
    %p54 = scmp.ne.s32.totalorder %s45, %s46
    %p55 = scmp.eq.s32.totalorder %s14, 0
    %p56 = por %p54, %p55
    %p57 = scmp.ne.s32.totalorder %s45, %s46
    %p58 = scmp.eq.s32.totalorder %s15, 1
    %p59 = por %p57, %p58
    %p61 = scmp.ne.s32.totalorder %s46, %s60
    %p62 = scmp.eq.s32.totalorder %s15, 0
    %p63 = por %p61, %p62
    %s65 = sadd.s32 %s64, 1
    %p68 = scmp.eq.s32.totalorder %s9, 1
    %p69 = scmp.ne.s32.totalorder %s64, %s66
    %p70 = scmp.eq.s32.totalorder %s9, 0
    %p71 = por %p69, %p70
    %p72 = scmp.ne.s32.totalorder %s64, %s66
    %p73 = scmp.eq.s32.totalorder %s14, 1
    %p74 = por %p72, %p73
    %p75 = scmp.ne.s32.totalorder %s66, %s67
    %p76 = scmp.eq.s32.totalorder %s14, 0
    %p77 = por %p75, %p76
    %p78 = scmp.ne.s32.totalorder %s66, %s67
    %p79 = scmp.eq.s32.totalorder %s15, 1
    %p80 = por %p78, %p79
    %p82 = scmp.ne.s32.totalorder %s67, %s81
    %p83 = scmp.eq.s32.totalorder %s15, 0
    %p84 = por %p82, %p83
    %s85 = ssub.s32 %s9, %s16
    %p86 = scmp.eq.s32.totalorder %s85, 0
    %s88 = sadd.s32 %s87, 1
    %s89 = scalar_select %p86, %s87, %s88
    %p92 = pneg %p86
    %p93 = scmp.eq.s32.totalorder %s9, 1
    %p94 = por %p92, %p93
    %p95 = scmp.ne.s32.totalorder %s87, %s90
    %p96 = scmp.eq.s32.totalorder %s9, 0
    %p97 = por %p95, %p96
    %p98 = scmp.ne.s32.totalorder %s87, %s90
    %p99 = scmp.eq.s32.totalorder %s14, 1
    %p100 = por %p98, %p99
    %p101 = scmp.ne.s32.totalorder %s90, %s91
    %p102 = scmp.eq.s32.totalorder %s14, 0
    %p103 = por %p101, %p102
    %p104 = scmp.ne.s32.totalorder %s90, %s91
    %p105 = scmp.eq.s32.totalorder %s15, 1
    %p106 = por %p104, %p105
    %p108 = scmp.ne.s32.totalorder %s91, %s107
    %p109 = scmp.eq.s32.totalorder %s15, 0
    %p110 = por %p108, %p109
    %p111 = scmp.le.s32.totalorder 1, %s9
    %p112 = scmp.lt.s32.totalorder %s9, 3
    %p113 = pnand %p111, %p112
    %p114 = pneg %p113
    // Predicated region
    $region9: #{double_conv.5} parent=5 // pred_check
      _
    $region10: #{double_conv.5} parent=5 // pred_check_branch
      %116 = sbr.rel (%p113) target = $region12
    $region11: #{double_conv.5} parent=5 // pred_region
      %s117 = ssub.s32 %s9, 1
      // Predicated region
      $region13: #{double_conv.5} parent=11 // pred_check
        %p118 = pneg %p56
      $region14: #{double_conv.5} parent=11 // pred_check_branch
        %120 = sbr.rel (%p118) target = $region16
      $region15: #{double_conv.5} parent=11 // pred_region
        _
      $region16: #{double_conv.5} parent=11 // pred_fallthru
        _
      // Predicated region
      $region17: #{double_conv.5} parent=11 // pred_check
        %p121 = pneg %p77
      $region18: #{double_conv.5} parent=11 // pred_check_branch
        %123 = sbr.rel (%p121) target = $region20
      $region19: #{double_conv.5} parent=11 // pred_region
        _
      $region20: #{double_conv.5} parent=11 // pred_fallthru
        _
    $region12: #{double_conv.5} parent=5 // pred_fallthru
      _
    %p124 = scmp.lt.s32.totalorder %s9, 2
    // Predicated region
    $region21: #{double_conv.5} parent=5 // pred_check
      %p125 = pneg %p124
    $region22: #{double_conv.5} parent=5 // pred_check_branch
      %127 = sbr.rel (%p125) target = $region24
    $region23: #{double_conv.5} parent=5 // pred_region
      // Predicated region
      $region25: #{double_conv.5} parent=23 // pred_check
        %p128 = pneg %p29
      $region26: #{double_conv.5} parent=23 // pred_check_branch
        %130 = sbr.rel (%p128) target = $region28
      $region27: #{double_conv.5} parent=23 // pred_region
        %p131 = scmp.lt.s32.totalorder %s9, 1
        %s132 = scalar_select %p131, %s9, 1
        %s133 = smul.addr %s132, 32
        %s134 = smul.addr %s133, 8
        %s135 = scalar_lea.vmem %s0, %s134
      $region28: #{double_conv.5} parent=23 // pred_fallthru
        _
    $region24: #{double_conv.5} parent=5 // pred_fallthru
      _
    %p136 = scmp.le.s32.totalorder 1, %s9
    %p137 = scmp.lt.s32.totalorder %s9, 3
    %p138 = pnand %p136, %p137
    %p139 = pneg %p138
    // Predicated region
    $region29: #{double_conv.5} parent=5 // pred_check
      _
    $region30: #{double_conv.5} parent=5 // pred_check_branch
      %141 = sbr.rel (%p138) target = $region32
    $region31: #{double_conv.5} parent=5 // pred_region
      %s142 = ssub.s32 %s9, 1
      %p143 = scmp.lt.s32.totalorder %s14, 1
      %s144 = scalar_select %p143, %s14, 1
      %s145 = smul.addr %s144, 32
      %s146 = smul.addr %s145, 8
      %s147 = scalar_lea.vmem %s0, %s146
      %p148 = pneg %p35
      %p149 = pneg %p32
      %p150 = pneg %p56
      %p151 = pneg %p53
      %p152 = pneg %p77
      %p153 = pneg %p74
      %p154 = pneg %p103
      %p155 = pneg %p100
      %p156 = scmp.lt.s32.totalorder %s14, 1
      %s157 = scalar_select %p156, %s14, 1
      %s158 = smul.addr %s157, 32
      %s159 = smul.addr %s158, 8
      %s160 = scalar_lea.vmem %s3, %s159
      %p161 = scmp.lt.s32.totalorder %s14, 1
      %s162 = scalar_select %p161, %s14, 1
      %s163 = smul.addr %s162, 32
      %s164 = smul.addr %s163, 8
      %s165 = scalar_lea.vmem %s0, %s164
      %p166 = scmp.lt.s32.totalorder %s14, 1
      %s167 = scalar_select %p166, %s14, 1
      %s168 = smul.addr %s167, 32
      %s169 = smul.addr %s168, 8
      %s170 = scalar_lea.vmem %s3, %s169
      %v171 = vld [vmem:[%s165] sm:$0xff]
      %v172 = vld [vmem:[%s165 + $0x8] sm:$0xff]
      %v173 = vld [vmem:[%s165 + $0x10] sm:$0xff]
      %v174 = vld [vmem:[%s165 + $0x18] sm:$0xff]
      %v175 = vld [vmem:[%s165 + $0x20] sm:$0xff]
      %v176 = vld [vmem:[%s165 + $0x28] sm:$0xff]
      %v177 = vld [vmem:[%s165 + $0x30] sm:$0xff]
      %v178 = vld [vmem:[%s165 + $0x38] sm:$0xff]
      %v179 = vld [vmem:[%s165 + $0x40] sm:$0xff]
      %v180 = vld [vmem:[%s165 + $0x48] sm:$0xff]
      %v181 = vld [vmem:[%s165 + $0x50] sm:$0xff]
      %v182 = vld [vmem:[%s165 + $0x58] sm:$0xff]
      %v183 = vld [vmem:[%s165 + $0x60] sm:$0xff]
      %v184 = vld [vmem:[%s165 + $0x68] sm:$0xff]
      %v185 = vld [vmem:[%s165 + $0x70] sm:$0xff]
      %v186 = vld [vmem:[%s165 + $0x78] sm:$0xff]
      %v187 = vld [vmem:[%s165 + $0x80] sm:$0xff]
      %v188 = vld [vmem:[%s165 + $0x88] sm:$0xff]
      %v189 = vld [vmem:[%s165 + $0x90] sm:$0xff]
      %v190 = vld [vmem:[%s165 + $0x98] sm:$0xff]
      %v191 = vld [vmem:[%s165 + $0xa0] sm:$0xff]
      %v192 = vld [vmem:[%s165 + $0xa8] sm:$0xff]
      %v193 = vld [vmem:[%s165 + $0xb0] sm:$0xff]
      %v194 = vld [vmem:[%s165 + $0xb8] sm:$0xff]
      %v195 = vld [vmem:[%s165 + $0xc0] sm:$0xff]
      %v196 = vld [vmem:[%s165 + $0xc8] sm:$0xff]
      %v197 = vld [vmem:[%s165 + $0xd0] sm:$0xff]
      %v198 = vld [vmem:[%s165 + $0xd8] sm:$0xff]
      %v199 = vld [vmem:[%s165 + $0xe0] sm:$0xff]
      %v200 = vld [vmem:[%s165 + $0xe8] sm:$0xff]
      %v201 = vld [vmem:[%s165 + $0xf0] sm:$0xff]
      %v202 = vld [vmem:[%s165 + $0xf8] sm:$0xff]
      %v203 = vld [vmem:[%s1] sm:$0x1]
      %v205 = vlaneseq
      %v206 = vshrl.u32 %v205, 7
      %v207 = vsub.s32 0, %v206
      %v208 = vrot.slane %v203, %v207
      %v210 = vmul.f32 %v171, %v208
      %v211 = vmul.f32 %v172, %v208
      %v212 = vmul.f32 %v173, %v208
      %v213 = vmul.f32 %v174, %v208
      %v214 = vmul.f32 %v175, %v208
      %v215 = vmul.f32 %v176, %v208
      %v216 = vmul.f32 %v177, %v208
      %v217 = vmul.f32 %v178, %v208
      %v218 = vmul.f32 %v179, %v208
      %v219 = vmul.f32 %v180, %v208
      %v220 = vmul.f32 %v181, %v208
      %v221 = vmul.f32 %v182, %v208
      %v222 = vmul.f32 %v183, %v208
      %v223 = vmul.f32 %v184, %v208
      %v224 = vmul.f32 %v185, %v208
      %v225 = vmul.f32 %v186, %v208
      %v226 = vmul.f32 %v187, %v208
      %v227 = vmul.f32 %v188, %v208
      %v228 = vmul.f32 %v189, %v208
      %v229 = vmul.f32 %v190, %v208
      %v230 = vmul.f32 %v191, %v208
      %v231 = vmul.f32 %v192, %v208
      %v232 = vmul.f32 %v193, %v208
      %v233 = vmul.f32 %v194, %v208
      %v234 = vmul.f32 %v195, %v208
      %v235 = vmul.f32 %v196, %v208
      %v236 = vmul.f32 %v197, %v208
      %v237 = vmul.f32 %v198, %v208
      %v238 = vmul.f32 %v199, %v208
      %v239 = vmul.f32 %v200, %v208
      %v240 = vmul.f32 %v201, %v208
      %v241 = vmul.f32 %v202, %v208
      %v242 = vld [vmem:[%s2] sm:$0x1]
      %v244 = vlaneseq
      %v245 = vshrl.u32 %v244, 7
      %v246 = vsub.s32 0, %v245
      %v247 = vrot.slane %v242, %v246
      %v249 = vadd.f32 %v210, %v247
      %v250 = vadd.f32 %v211, %v247
      %v251 = vadd.f32 %v212, %v247
      %v252 = vadd.f32 %v213, %v247
      %v253 = vadd.f32 %v214, %v247
      %v254 = vadd.f32 %v215, %v247
      %v255 = vadd.f32 %v216, %v247
      %v256 = vadd.f32 %v217, %v247
      %v257 = vadd.f32 %v218, %v247
      %v258 = vadd.f32 %v219, %v247
      %v259 = vadd.f32 %v220, %v247
      %v260 = vadd.f32 %v221, %v247
      %v261 = vadd.f32 %v222, %v247
      %v262 = vadd.f32 %v223, %v247
      %v263 = vadd.f32 %v224, %v247
      %v264 = vadd.f32 %v225, %v247
      %v265 = vadd.f32 %v226, %v247
      %v266 = vadd.f32 %v227, %v247
      %v267 = vadd.f32 %v228, %v247
      %v268 = vadd.f32 %v229, %v247
      %v269 = vadd.f32 %v230, %v247
      %v270 = vadd.f32 %v231, %v247
      %v271 = vadd.f32 %v232, %v247
      %v272 = vadd.f32 %v233, %v247
      %v273 = vadd.f32 %v234, %v247
      %v274 = vadd.f32 %v235, %v247
      %v275 = vadd.f32 %v236, %v247
      %v276 = vadd.f32 %v237, %v247
      %v277 = vadd.f32 %v238, %v247
      %v278 = vadd.f32 %v239, %v247
      %v279 = vadd.f32 %v240, %v247
      %v280 = vadd.f32 %v241, %v247
      %v281 = vmax.f32 %v249, 0.0
      %v282 = vmax.f32 %v250, 0.0
      %v283 = vmax.f32 %v251, 0.0
      %v284 = vmax.f32 %v252, 0.0
      %v285 = vmax.f32 %v253, 0.0
      %v286 = vmax.f32 %v254, 0.0
      %v287 = vmax.f32 %v255, 0.0
      %v288 = vmax.f32 %v256, 0.0
      %v289 = vmax.f32 %v257, 0.0
      %v290 = vmax.f32 %v258, 0.0
      %v291 = vmax.f32 %v259, 0.0
      %v292 = vmax.f32 %v260, 0.0
      %v293 = vmax.f32 %v261, 0.0
      %v294 = vmax.f32 %v262, 0.0
      %v295 = vmax.f32 %v263, 0.0
      %v296 = vmax.f32 %v264, 0.0
      %v297 = vmax.f32 %v265, 0.0
      %v298 = vmax.f32 %v266, 0.0
      %v299 = vmax.f32 %v267, 0.0
      %v300 = vmax.f32 %v268, 0.0
      %v301 = vmax.f32 %v269, 0.0
      %v302 = vmax.f32 %v270, 0.0
      %v303 = vmax.f32 %v271, 0.0
      %v304 = vmax.f32 %v272, 0.0
      %v305 = vmax.f32 %v273, 0.0
      %v306 = vmax.f32 %v274, 0.0
      %v307 = vmax.f32 %v275, 0.0
      %v308 = vmax.f32 %v276, 0.0
      %v309 = vmax.f32 %v277, 0.0
      %v310 = vmax.f32 %v278, 0.0
      %v311 = vmax.f32 %v279, 0.0
      %v312 = vmax.f32 %v280, 0.0
      %vm313 = vcmask 64512
      %314 = vst.msk [vmem:[%s170] sm:$0xff] %vm313, %v281
      %315 = vst.msk [vmem:[%s170 + $0x8] sm:$0xff] %vm313, %v282
      %316 = vst.msk [vmem:[%s170 + $0x10] sm:$0xff] %vm313, %v283
      %317 = vst.msk [vmem:[%s170 + $0x18] sm:$0xff] %vm313, %v284
      %318 = vst.msk [vmem:[%s170 + $0x20] sm:$0xff] %vm313, %v285
      %319 = vst.msk [vmem:[%s170 + $0x28] sm:$0xff] %vm313, %v286
      %320 = vst.msk [vmem:[%s170 + $0x30] sm:$0xff] %vm313, %v287
      %321 = vst.msk [vmem:[%s170 + $0x38] sm:$0xff] %vm313, %v288
      %322 = vst.msk [vmem:[%s170 + $0x40] sm:$0xff] %vm313, %v289
      %323 = vst.msk [vmem:[%s170 + $0x48] sm:$0xff] %vm313, %v290
      %324 = vst.msk [vmem:[%s170 + $0x50] sm:$0xff] %vm313, %v291
      %325 = vst.msk [vmem:[%s170 + $0x58] sm:$0xff] %vm313, %v292
      %326 = vst.msk [vmem:[%s170 + $0x60] sm:$0xff] %vm313, %v293
      %327 = vst.msk [vmem:[%s170 + $0x68] sm:$0xff] %vm313, %v294
      %328 = vst.msk [vmem:[%s170 + $0x70] sm:$0xff] %vm313, %v295
      %329 = vst.msk [vmem:[%s170 + $0x78] sm:$0xff] %vm313, %v296
      %330 = vst.msk [vmem:[%s170 + $0x80] sm:$0xff] %vm313, %v297
      %331 = vst.msk [vmem:[%s170 + $0x88] sm:$0xff] %vm313, %v298
      %332 = vst.msk [vmem:[%s170 + $0x90] sm:$0xff] %vm313, %v299
      %333 = vst.msk [vmem:[%s170 + $0x98] sm:$0xff] %vm313, %v300
      %334 = vst.msk [vmem:[%s170 + $0xa0] sm:$0xff] %vm313, %v301
      %335 = vst.msk [vmem:[%s170 + $0xa8] sm:$0xff] %vm313, %v302
      %336 = vst.msk [vmem:[%s170 + $0xb0] sm:$0xff] %vm313, %v303
      %337 = vst.msk [vmem:[%s170 + $0xb8] sm:$0xff] %vm313, %v304
      %338 = vst.msk [vmem:[%s170 + $0xc0] sm:$0xff] %vm313, %v305
      %339 = vst.msk [vmem:[%s170 + $0xc8] sm:$0xff] %vm313, %v306
      %340 = vst.msk [vmem:[%s170 + $0xd0] sm:$0xff] %vm313, %v307
      %341 = vst.msk [vmem:[%s170 + $0xd8] sm:$0xff] %vm313, %v308
      %342 = vst.msk [vmem:[%s170 + $0xe0] sm:$0xff] %vm313, %v309
      %343 = vst.msk [vmem:[%s170 + $0xe8] sm:$0xff] %vm313, %v310
      %344 = vst.msk [vmem:[%s170 + $0xf0] sm:$0xff] %vm313, %v311
      %345 = vst.msk [vmem:[%s170 + $0xf8] sm:$0xff] %vm313, %v312
      %p346 = scmp.lt.s32.totalorder %s14, 1
      %s347 = scalar_select %p346, %s14, 1
      %s348 = smul.addr %s347, 32
      %s349 = smul.addr %s348, 8
      %s350 = scalar_lea.vmem %s3, %s349
      // Predicated region
      $region33: #{double_conv.5} parent=31 // pred_check
        %p351 = pneg %p100
      $region34: #{double_conv.5} parent=31 // pred_check_branch
        %353 = sbr.rel (%p351) target = $region36
      $region35: #{double_conv.5} parent=31 // pred_region
        _
      $region36: #{double_conv.5} parent=31 // pred_fallthru
        _
    $region32: #{double_conv.5} parent=5 // pred_fallthru
      _
    %p354 = scmp.le.s32.totalorder 2, %s9
    // Predicated region
    $region37: #{double_conv.5} parent=5 // pred_check
      %p355 = pneg %p354
    $region38: #{double_conv.5} parent=5 // pred_check_branch
      %357 = sbr.rel (%p355) target = $region40
    $region39: #{double_conv.5} parent=5 // pred_region
      %s358 = ssub.s32 %s9, 2
      // Predicated region
      $region41: #{double_conv.5} parent=39 // pred_check
        %p359 = pneg %p106
      $region42: #{double_conv.5} parent=39 // pred_check_branch
        %361 = sbr.rel (%p359) target = $region44
      $region43: #{double_conv.5} parent=39 // pred_region
        %p362 = scmp.lt.s32.totalorder %s15, 1
        %s363 = scalar_select %p362, %s15, 1
        %s364 = smul.addr %s363, 32
        %s365 = smul.addr %s364, 8
        %s366 = scalar_lea.vmem %s3, %s365
      $region44: #{double_conv.5} parent=39 // pred_fallthru
        _
    $region40: #{double_conv.5} parent=5 // pred_fallthru
      _
  $region6: #{double_conv.5} parent=0 // loop_footer
    %s13 = sadd.s32 1, %s9
  $region7: #{double_conv.5} parent=0 // loop_footer_branch
    %8 = sbr.rel target = $region3
  $region8: #{double_conv.5} parent=0 // loop_exit
    _

// kernel: double_conv.3
$region0: #{double_conv.3}
  #allocation0 [shape = 'u32[]', space=smem, size = 0x4, offset = 0x4, fixed_abs, tag = 'smem constant byte address 0x4 - core index']
  #allocation1 [shape = 'u32[144,128]{1,0:T(1,128)}', space=vmem, size = 0x12000, scoped, tag = 'internal scratch']
  #allocation2 [shape = 'f32[18,18,128]{2,1,0:T(8,128)}', space=vmem, size = 0x36000, scoped, tag = 'scratch operand']
  %s0 = inlined_call_operand.vmem [shape: f32[2,16,16,128], index: 0, kind: input, shape index: {}]
  %s1 = inlined_call_operand.vmem [shape: f32[3,3,128,128], index: 1, kind: input, shape index: {}]
  %s2 = inlined_call_operand.vmem [shape: f32[1,128], index: 2, kind: input, shape index: {}]
  %s3 = inlined_call_operand.vmem [shape: f32[1,128], index: 3, kind: input, shape index: {}]
  %s4 = inlined_call_operand.vmem [shape: f32[2,16,16,128], index: 4, kind: output, shape index: {0}]
  %s5 = inlined_call_operand.vmem [shape: f32[2,2,128], index: 5, kind: output, shape index: {1}]
  %6 = xla_tuple %s4, %s5
  %s7 = sld [smem:[#allocation0]]
  $region57: #{double_conv.3} parent=0
    _
  %s9 = ssub.s32 1, %s7
  %s10 = scalar_select 0, %s9, %s7
  loop: start=0, step=1, limit=4
  $region2: #{double_conv.3} parent=0 // loop_pre_header
    _
  $region3: #{double_conv.3} parent=0 // loop_header
    %s12 = sphi 0, %s16
    %p13 = scmp.ge.s32.totalorder %s12, 4
    %s19 = sphi 0, %s31
    %s20 = sphi 0, %s27
    %s21 = sphi 0, %s19
    %s22 = sphi 0, %s20
    %s23 = sphi 0, %s21
    %s24 = sphi 0, %s22
    %s34 = sphi 0, %s36
    %s37 = sphi 0, %s34
    %s38 = sphi 0, %s37
    %s54 = sphi 0, %s38
    %s60 = sphi 0, %s62
    %s63 = sphi 0, %s60
    %s64 = sphi 0, %s63
    %s80 = sphi 0, %s64
    %s84 = sphi 0, %s84
    %s86 = sphi 0, %s84
    %s87 = sphi 0, %s86
    %s101 = sphi 0, %s87
    %s105 = sphi 0, %s105
    %s107 = sphi 0, %s105
    %s108 = sphi 0, %s107
    %s122 = sphi 0, %s108
    %s130 = sphi 0, %s132
    %s133 = sphi 0, %s130
    %s134 = sphi 0, %s133
    %s150 = sphi 0, %s134
    %s158 = sphi 0, %s160
    %s161 = sphi 0, %s158
    %s162 = sphi 0, %s161
    %s178 = sphi 0, %s162
  $region4: #{double_conv.3} parent=0 // loop_header_branch
    %15 = sbr.rel (%p13) target = $region8
  $region5: #{double_conv.3} parent=0 // loop_body
    %s17 = ssub.s32 %s12, 1
    %s18 = ssub.s32 %s12, 2
    %s25 = sadd.s32 1, %s20
    %p26 = scmp.ge.s32.totalorder %s25, 1
    %s27 = scalar_select %p26, 0, %s25
    %s28 = sadd.s32 1, %s19
    %s29 = scalar_select %p26, %s28, %s19
    %p30 = scmp.ge.s32.totalorder %s29, 2
    %s31 = scalar_select %p30, 0, %s29
    %s32 = ssub.s32 %s19, %s31
    %p33 = scmp.eq.s32.totalorder %s32, 0
    %s35 = sadd.s32 %s34, 1
    %s36 = scalar_select %p33, %s34, %s35
    %p39 = pneg %p33
    %p40 = scmp.eq.s32.totalorder %s12, 1
    %p41 = por %p39, %p40
    %p42 = scmp.ne.s32.totalorder %s34, %s37
    %p43 = scmp.eq.s32.totalorder %s12, 0
    %p44 = por %p42, %p43
    %p45 = scmp.ne.s32.totalorder %s34, %s37
    %p46 = scmp.eq.s32.totalorder %s17, 1
    %p47 = por %p45, %p46
    %p48 = scmp.ne.s32.totalorder %s37, %s38
    %p49 = scmp.eq.s32.totalorder %s17, 0
    %p50 = por %p48, %p49
    %p51 = scmp.ne.s32.totalorder %s37, %s38
    %p52 = scmp.eq.s32.totalorder %s18, 1
    %p53 = por %p51, %p52
    %p55 = scmp.ne.s32.totalorder %s38, %s54
    %p56 = scmp.eq.s32.totalorder %s18, 0
    %p57 = por %p55, %p56
    %s58 = ssub.s32 %s20, %s27
    %p59 = scmp.eq.s32.totalorder %s58, 0
    %s61 = sadd.s32 %s60, 1
    %s62 = scalar_select %p59, %s60, %s61
    %p65 = pneg %p59
    %p66 = scmp.eq.s32.totalorder %s12, 1
    %p67 = por %p65, %p66
    %p68 = scmp.ne.s32.totalorder %s60, %s63
    %p69 = scmp.eq.s32.totalorder %s12, 0
    %p70 = por %p68, %p69
    %p71 = scmp.ne.s32.totalorder %s60, %s63
    %p72 = scmp.eq.s32.totalorder %s17, 1
    %p73 = por %p71, %p72
    %p74 = scmp.ne.s32.totalorder %s63, %s64
    %p75 = scmp.eq.s32.totalorder %s17, 0
    %p76 = por %p74, %p75
    %p77 = scmp.ne.s32.totalorder %s63, %s64
    %p78 = scmp.eq.s32.totalorder %s18, 1
    %p79 = por %p77, %p78
    %p81 = scmp.ne.s32.totalorder %s64, %s80
    %p82 = scmp.eq.s32.totalorder %s18, 0
    %p83 = por %p81, %p82
    %s85 = sadd.s32 %s84, 1
    %p88 = scmp.eq.s32.totalorder %s12, 1
    %p89 = scmp.ne.s32.totalorder %s84, %s86
    %p90 = scmp.eq.s32.totalorder %s12, 0
    %p91 = por %p89, %p90
    %p92 = scmp.ne.s32.totalorder %s84, %s86
    %p93 = scmp.eq.s32.totalorder %s17, 1
    %p94 = por %p92, %p93
    %p95 = scmp.ne.s32.totalorder %s86, %s87
    %p96 = scmp.eq.s32.totalorder %s17, 0
    %p97 = por %p95, %p96
    %p98 = scmp.ne.s32.totalorder %s86, %s87
    %p99 = scmp.eq.s32.totalorder %s18, 1
    %p100 = por %p98, %p99
    %p102 = scmp.ne.s32.totalorder %s87, %s101
    %p103 = scmp.eq.s32.totalorder %s18, 0
    %p104 = por %p102, %p103
    %s106 = sadd.s32 %s105, 1
    %p109 = scmp.eq.s32.totalorder %s12, 1
    %p110 = scmp.ne.s32.totalorder %s105, %s107
    %p111 = scmp.eq.s32.totalorder %s12, 0
    %p112 = por %p110, %p111
    %p113 = scmp.ne.s32.totalorder %s105, %s107
    %p114 = scmp.eq.s32.totalorder %s17, 1
    %p115 = por %p113, %p114
    %p116 = scmp.ne.s32.totalorder %s107, %s108
    %p117 = scmp.eq.s32.totalorder %s17, 0
    %p118 = por %p116, %p117
    %p119 = scmp.ne.s32.totalorder %s107, %s108
    %p120 = scmp.eq.s32.totalorder %s18, 1
    %p121 = por %p119, %p120
    %p123 = scmp.ne.s32.totalorder %s108, %s122
    %p124 = scmp.eq.s32.totalorder %s18, 0
    %p125 = por %p123, %p124
    %s126 = ssub.s32 %s19, %s31
    %s127 = ssub.s32 %s20, %s27
    %s128 = sor.u32 %s126, %s127
    %p129 = scmp.eq.s32.totalorder %s128, 0
    %s131 = sadd.s32 %s130, 1
    %s132 = scalar_select %p129, %s130, %s131
    %p135 = pneg %p129
    %p136 = scmp.eq.s32.totalorder %s12, 1
    %p137 = por %p135, %p136
    %p138 = scmp.ne.s32.totalorder %s130, %s133
    %p139 = scmp.eq.s32.totalorder %s12, 0
    %p140 = por %p138, %p139
    %p141 = scmp.ne.s32.totalorder %s130, %s133
    %p142 = scmp.eq.s32.totalorder %s17, 1
    %p143 = por %p141, %p142
    %p144 = scmp.ne.s32.totalorder %s133, %s134
    %p145 = scmp.eq.s32.totalorder %s17, 0
    %p146 = por %p144, %p145
    %p147 = scmp.ne.s32.totalorder %s133, %s134
    %p148 = scmp.eq.s32.totalorder %s18, 1
    %p149 = por %p147, %p148
    %p151 = scmp.ne.s32.totalorder %s134, %s150
    %p152 = scmp.eq.s32.totalorder %s18, 0
    %p153 = por %p151, %p152
    %s154 = ssub.s32 %s19, %s31
    %s155 = ssub.s32 %s20, %s27
    %s156 = sor.u32 %s154, %s155
    %p157 = scmp.eq.s32.totalorder %s156, 0
    %s159 = sadd.s32 %s158, 1
    %s160 = scalar_select %p157, %s158, %s159
    %p163 = pneg %p157
    %p164 = scmp.eq.s32.totalorder %s12, 1
    %p165 = por %p163, %p164
    %p166 = scmp.ne.s32.totalorder %s158, %s161
    %p167 = scmp.eq.s32.totalorder %s12, 0
    %p168 = por %p166, %p167
    %p169 = scmp.ne.s32.totalorder %s158, %s161
    %p170 = scmp.eq.s32.totalorder %s17, 1
    %p171 = por %p169, %p170
    %p172 = scmp.ne.s32.totalorder %s161, %s162
    %p173 = scmp.eq.s32.totalorder %s17, 0
    %p174 = por %p172, %p173
    %p175 = scmp.ne.s32.totalorder %s161, %s162
    %p176 = scmp.eq.s32.totalorder %s18, 1
    %p177 = por %p175, %p176
    %p179 = scmp.ne.s32.totalorder %s162, %s178
    %p180 = scmp.eq.s32.totalorder %s18, 0
    %p181 = por %p179, %p180
    %p182 = scmp.le.s32.totalorder 1, %s12
    %p183 = scmp.lt.s32.totalorder %s12, 3
    %p184 = pnand %p182, %p183
    %p185 = pneg %p184
    // Predicated region
    $region9: #{double_conv.3} parent=5 // pred_check
      _
    $region10: #{double_conv.3} parent=5 // pred_check_branch
      %187 = sbr.rel (%p184) target = $region12
    $region11: #{double_conv.3} parent=5 // pred_region
      %s188 = ssub.s32 %s12, 1
      // Predicated region
      $region13: #{double_conv.3} parent=11 // pred_check
        %p189 = pneg %p76
      $region14: #{double_conv.3} parent=11 // pred_check_branch
        %191 = sbr.rel (%p189) target = $region16
      $region15: #{double_conv.3} parent=11 // pred_region
        %p192 = scmp.lt.s32.totalorder %s22, 0
        %s193 = scalar_select %p192, %s22, 0
        %s194 = smul.addr %s193, 8
        %s195 = scalar_lea.vmem %s1, %s194
      $region16: #{double_conv.3} parent=11 // pred_fallthru
        _
      // Predicated region
      $region17: #{double_conv.3} parent=11 // pred_check
        %p196 = pneg %p97
      $region18: #{double_conv.3} parent=11 // pred_check_branch
        %198 = sbr.rel (%p196) target = $region20
      $region19: #{double_conv.3} parent=11 // pred_region
        _
      $region20: #{double_conv.3} parent=11 // pred_fallthru
        _
      // Predicated region
      $region21: #{double_conv.3} parent=11 // pred_check
        %p199 = pneg %p118
      $region22: #{double_conv.3} parent=11 // pred_check_branch
        %201 = sbr.rel (%p199) target = $region24
      $region23: #{double_conv.3} parent=11 // pred_region
        _
      $region24: #{double_conv.3} parent=11 // pred_fallthru
        _
    $region12: #{double_conv.3} parent=5 // pred_fallthru
      _
    %p202 = scmp.lt.s32.totalorder %s12, 2
    // Predicated region
    $region25: #{double_conv.3} parent=5 // pred_check
      %p203 = pneg %p202
    $region26: #{double_conv.3} parent=5 // pred_check_branch
      %205 = sbr.rel (%p203) target = $region28
    $region27: #{double_conv.3} parent=5 // pred_region
      // Predicated region
      $region29: #{double_conv.3} parent=27 // pred_check
        %p206 = pneg %p44
      $region30: #{double_conv.3} parent=27 // pred_check_branch
        %208 = sbr.rel (%p206) target = $region32
      $region31: #{double_conv.3} parent=27 // pred_region
        %p209 = scmp.lt.s32.totalorder %s19, 1
        %s210 = scalar_select %p209, %s19, 1
        %s211 = smul.addr %s210, 32
        %s212 = smul.addr %s211, 8
        %s213 = scalar_lea.vmem %s0, %s212
      $region32: #{double_conv.3} parent=27 // pred_fallthru
        _
    $region28: #{double_conv.3} parent=5 // pred_fallthru
      _
    %p214 = scmp.le.s32.totalorder 1, %s12
    %p215 = scmp.lt.s32.totalorder %s12, 3
    %p216 = pnand %p214, %p215
    %p217 = pneg %p216
    // Predicated region
    $region33: #{double_conv.3} parent=5 // pred_check
      _
    $region34: #{double_conv.3} parent=5 // pred_check_branch
      %219 = sbr.rel (%p216) target = $region36
    $region35: #{double_conv.3} parent=5 // pred_region
      %s220 = ssub.s32 %s12, 1
      %p221 = scmp.lt.s32.totalorder %s21, 1
      %s222 = scalar_select %p221, %s21, 1
      %s223 = smul.addr %s222, 32
      %s224 = smul.addr %s223, 8
      %s225 = scalar_lea.vmem %s0, %s224
      %p226 = pneg %p50
      %p227 = pneg %p47
      %p228 = scmp.lt.s32.totalorder %s22, 0
      %s229 = scalar_select %p228, %s22, 0
      %s230 = smul.addr %s229, 8
      %s231 = scalar_lea.vmem %s1, %s230
      %p232 = pneg %p76
      %p233 = pneg %p73
      %p234 = pneg %p97
      %p235 = pneg %p94
      %p236 = pneg %p118
      %p237 = pneg %p115
      %p238 = pneg %p146
      %p239 = pneg %p143
      %p240 = scmp.lt.s32.totalorder %s21, 1
      %s241 = scalar_select %p240, %s21, 1
      %p242 = scmp.lt.s32.totalorder %s22, 0
      %s243 = scalar_select %p242, %s22, 0
      %s244 = smul.addr %s241, 32
      %s245 = sadd.s32 %s243, %s244
      %s246 = smul.addr %s245, 8
      %s247 = scalar_lea.vmem %s4, %s246
      %p248 = pneg %p174
      %p249 = pneg %p171
      %p250 = scmp.lt.s32.totalorder %s21, 1
      %s251 = scalar_select %p250, %s21, 1
      %p252 = scmp.lt.s32.totalorder %s22, 0
      %s253 = scalar_select %p252, %s22, 0
      %s254 = sadd.s32 %s253, %s251
      %s255 = smul.addr %s254, 2
      %s256 = scalar_lea.vmem %s5, %s255
      %p257 = scmp.lt.s32.totalorder %s21, 1
      %s258 = scalar_select %p257, %s21, 1
      %s259 = smul.addr %s258, 32
      %s260 = smul.addr %s259, 8
      %s261 = scalar_lea.vmem %s0, %s260
      %p262 = scmp.lt.s32.totalorder %s22, 0
      %s263 = scalar_select %p262, %s22, 0
      %s264 = smul.addr %s263, 8
      %s265 = scalar_lea.vmem %s1, %s264
      %p266 = scmp.lt.s32.totalorder %s21, 1
      %s267 = scalar_select %p266, %s21, 1
      %p268 = scmp.lt.s32.totalorder %s22, 0
      %s269 = scalar_select %p268, %s22, 0
      %s270 = smul.addr %s267, 32
      %s271 = sadd.s32 %s269, %s270
      %s272 = smul.addr %s271, 8
      %s273 = scalar_lea.vmem %s4, %s272
      %p274 = scmp.lt.s32.totalorder %s21, 1
      %s275 = scalar_select %p274, %s21, 1
      %p276 = scmp.lt.s32.totalorder %s22, 0
      %s277 = scalar_select %p276, %s22, 0
      %s278 = sadd.s32 %s277, %s275
      %s279 = smul.addr %s278, 2
      %s280 = scalar_lea.vmem %s5, %s279
      %v281 = vld [vmem:[%s261] sm:$0xff]
      %v282 = vld [vmem:[%s261 + $0x8] sm:$0xff]
      %v283 = vld [vmem:[%s261 + $0x10] sm:$0xff]
      %v284 = vld [vmem:[%s261 + $0x18] sm:$0xff]
      %v285 = vld [vmem:[%s261 + $0x20] sm:$0xff]
      %v286 = vld [vmem:[%s261 + $0x28] sm:$0xff]
      %v287 = vld [vmem:[%s261 + $0x30] sm:$0xff]
      %v288 = vld [vmem:[%s261 + $0x38] sm:$0xff]
      %v289 = vld [vmem:[%s261 + $0x40] sm:$0xff]
      %v290 = vld [vmem:[%s261 + $0x48] sm:$0xff]
      %v291 = vld [vmem:[%s261 + $0x50] sm:$0xff]
      %v292 = vld [vmem:[%s261 + $0x58] sm:$0xff]
      %v293 = vld [vmem:[%s261 + $0x60] sm:$0xff]
      %v294 = vld [vmem:[%s261 + $0x68] sm:$0xff]
      %v295 = vld [vmem:[%s261 + $0x70] sm:$0xff]
      %v296 = vld [vmem:[%s261 + $0x78] sm:$0xff]
      %v297 = vld [vmem:[%s261 + $0x80] sm:$0xff]
      %v298 = vld [vmem:[%s261 + $0x88] sm:$0xff]
      %v299 = vld [vmem:[%s261 + $0x90] sm:$0xff]
      %v300 = vld [vmem:[%s261 + $0x98] sm:$0xff]
      %v301 = vld [vmem:[%s261 + $0xa0] sm:$0xff]
      %v302 = vld [vmem:[%s261 + $0xa8] sm:$0xff]
      %v303 = vld [vmem:[%s261 + $0xb0] sm:$0xff]
      %v304 = vld [vmem:[%s261 + $0xb8] sm:$0xff]
      %v305 = vld [vmem:[%s261 + $0xc0] sm:$0xff]
      %v306 = vld [vmem:[%s261 + $0xc8] sm:$0xff]
      %v307 = vld [vmem:[%s261 + $0xd0] sm:$0xff]
      %v308 = vld [vmem:[%s261 + $0xd8] sm:$0xff]
      %v309 = vld [vmem:[%s261 + $0xe0] sm:$0xff]
      %v310 = vld [vmem:[%s261 + $0xe8] sm:$0xff]
      %v311 = vld [vmem:[%s261 + $0xf0] sm:$0xff]
      %v312 = vld [vmem:[%s261 + $0xf8] sm:$0xff]
      %313 = vst [vmem:[#allocation2] sm:$0xff] 0.0
      %314 = vst [vmem:[#allocation2 + $0x8] sm:$0xff] 0.0
      %315 = vst [vmem:[#allocation2 + $0x10] sm:$0x3] 0.0
      %s316 = scalar_lea.vmem [#allocation2], 408
      %317 = vst [vmem:[%s316] sm:$0xff] 0.0
      %318 = vst [vmem:[%s316 + $0x8] sm:$0xff] 0.0
      %319 = vst [vmem:[%s316 + $0x10] sm:$0x3] 0.0
      %320 = vst [vmem:[#allocation2] sm:$0x1] 0.0
      %321 = vst [vmem:[#allocation2 + $0x18] sm:$0x1] 0.0
      %322 = vst [vmem:[#allocation2 + $0x30] sm:$0x1] 0.0
      %323 = vst [vmem:[#allocation2 + $0x48] sm:$0x1] 0.0
      %324 = vst [vmem:[#allocation2 + $0x60] sm:$0x1] 0.0
      %325 = vst [vmem:[#allocation2 + $0x78] sm:$0x1] 0.0
      %326 = vst [vmem:[#allocation2 + $0x90] sm:$0x1] 0.0
      %327 = vst [vmem:[#allocation2 + $0xa8] sm:$0x1] 0.0
      %328 = vst [vmem:[#allocation2 + $0xc0] sm:$0x1] 0.0
      %329 = vst [vmem:[#allocation2 + $0xd8] sm:$0x1] 0.0
      %330 = vst [vmem:[#allocation2 + $0xf0] sm:$0x1] 0.0
      %331 = vst [vmem:[#allocation2 + $0x108] sm:$0x1] 0.0
      %332 = vst [vmem:[#allocation2 + $0x120] sm:$0x1] 0.0
      %333 = vst [vmem:[#allocation2 + $0x138] sm:$0x1] 0.0
      %334 = vst [vmem:[#allocation2 + $0x150] sm:$0x1] 0.0
      %335 = vst [vmem:[#allocation2 + $0x168] sm:$0x1] 0.0
      %336 = vst [vmem:[#allocation2 + $0x180] sm:$0x1] 0.0
      %337 = vst [vmem:[#allocation2 + $0x198] sm:$0x1] 0.0
      %338 = vst [vmem:[#allocation2 + $0x11] sm:$0x1] 0.0
      %339 = vst [vmem:[#allocation2 + $0x29] sm:$0x1] 0.0
      %340 = vst [vmem:[#allocation2 + $0x41] sm:$0x1] 0.0
      %341 = vst [vmem:[#allocation2 + $0x59] sm:$0x1] 0.0
      %342 = vst [vmem:[#allocation2 + $0x71] sm:$0x1] 0.0
      %343 = vst [vmem:[#allocation2 + $0x89] sm:$0x1] 0.0
      %344 = vst [vmem:[#allocation2 + $0xa1] sm:$0x1] 0.0
      %345 = vst [vmem:[#allocation2 + $0xb9] sm:$0x1] 0.0
      %346 = vst [vmem:[#allocation2 + $0xd1] sm:$0x1] 0.0
      %347 = vst [vmem:[#allocation2 + $0xe9] sm:$0x1] 0.0
      %348 = vst [vmem:[#allocation2 + $0x101] sm:$0x1] 0.0
      %349 = vst [vmem:[#allocation2 + $0x119] sm:$0x1] 0.0
      %350 = vst [vmem:[#allocation2 + $0x131] sm:$0x1] 0.0
      %351 = vst [vmem:[#allocation2 + $0x149] sm:$0x1] 0.0
      %352 = vst [vmem:[#allocation2 + $0x161] sm:$0x1] 0.0
      %353 = vst [vmem:[#allocation2 + $0x179] sm:$0x1] 0.0
      %354 = vst [vmem:[#allocation2 + $0x191] sm:$0x1] 0.0
      %355 = vst [vmem:[#allocation2 + $0x1a9] sm:$0x1] 0.0
      %s356 = scalar_lea.vmem [#allocation2], 24
      %357 = vst [vmem:[%s356 + $0x1] sm:$0xff] %v281
      %358 = vst [vmem:[%s356 + $0x9] sm:$0xff] %v282
      %359 = vst [vmem:[%s356 + $0x19] sm:$0xff] %v283
      %360 = vst [vmem:[%s356 + $0x21] sm:$0xff] %v284
      %361 = vst [vmem:[%s356 + $0x31] sm:$0xff] %v285
      %362 = vst [vmem:[%s356 + $0x39] sm:$0xff] %v286
      %363 = vst [vmem:[%s356 + $0x49] sm:$0xff] %v287
      %364 = vst [vmem:[%s356 + $0x51] sm:$0xff] %v288
      %365 = vst [vmem:[%s356 + $0x61] sm:$0xff] %v289
      %366 = vst [vmem:[%s356 + $0x69] sm:$0xff] %v290
      %367 = vst [vmem:[%s356 + $0x79] sm:$0xff] %v291
      %368 = vst [vmem:[%s356 + $0x81] sm:$0xff] %v292
      %369 = vst [vmem:[%s356 + $0x91] sm:$0xff] %v293
      %370 = vst [vmem:[%s356 + $0x99] sm:$0xff] %v294
      %371 = vst [vmem:[%s356 + $0xa9] sm:$0xff] %v295
      %372 = vst [vmem:[%s356 + $0xb1] sm:$0xff] %v296
      %373 = vst [vmem:[%s356 + $0xc1] sm:$0xff] %v297
      %374 = vst [vmem:[%s356 + $0xc9] sm:$0xff] %v298
      %375 = vst [vmem:[%s356 + $0xd9] sm:$0xff] %v299
      %376 = vst [vmem:[%s356 + $0xe1] sm:$0xff] %v300
      %377 = vst [vmem:[%s356 + $0xf1] sm:$0xff] %v301
      %378 = vst [vmem:[%s356 + $0xf9] sm:$0xff] %v302
      %379 = vst [vmem:[%s356 + $0x109] sm:$0xff] %v303
      %380 = vst [vmem:[%s356 + $0x111] sm:$0xff] %v304
      %381 = vst [vmem:[%s356 + $0x121] sm:$0xff] %v305
      %382 = vst [vmem:[%s356 + $0x129] sm:$0xff] %v306
      %383 = vst [vmem:[%s356 + $0x139] sm:$0xff] %v307
      %384 = vst [vmem:[%s356 + $0x141] sm:$0xff] %v308
      %385 = vst [vmem:[%s356 + $0x151] sm:$0xff] %v309
      %386 = vst [vmem:[%s356 + $0x159] sm:$0xff] %v310
      %387 = vst [vmem:[%s356 + $0x169] sm:$0xff] %v311
      %388 = vst [vmem:[%s356 + $0x171] sm:$0xff] %v312
      %v389 = vld [vmem:[#allocation2] sm:$0xff]
      %v390 = vld [vmem:[#allocation2 + $0x8] sm:$0xff]
      %v391 = vld [vmem:[#allocation2 + $0x18] sm:$0xff]
      %v392 = vld [vmem:[#allocation2 + $0x20] sm:$0xff]
      %v393 = vld [vmem:[#allocation2 + $0x30] sm:$0xff]
      %v394 = vld [vmem:[#allocation2 + $0x38] sm:$0xff]
      %v395 = vld [vmem:[#allocation2 + $0x48] sm:$0xff]
      %v396 = vld [vmem:[#allocation2 + $0x50] sm:$0xff]
      %v397 = vld [vmem:[#allocation2 + $0x60] sm:$0xff]
      %v398 = vld [vmem:[#allocation2 + $0x68] sm:$0xff]
      %v399 = vld [vmem:[#allocation2 + $0x78] sm:$0xff]
      %v400 = vld [vmem:[#allocation2 + $0x80] sm:$0xff]
      %v401 = vld [vmem:[#allocation2 + $0x90] sm:$0xff]
      %v402 = vld [vmem:[#allocation2 + $0x98] sm:$0xff]
      %v403 = vld [vmem:[#allocation2 + $0xa8] sm:$0xff]
      %v404 = vld [vmem:[#allocation2 + $0xb0] sm:$0xff]
      %v405 = vld [vmem:[#allocation2 + $0xc0] sm:$0xff]
      %v406 = vld [vmem:[#allocation2 + $0xc8] sm:$0xff]
      %v407 = vld [vmem:[#allocation2 + $0xd8] sm:$0xff]
      %v408 = vld [vmem:[#allocation2 + $0xe0] sm:$0xff]
      %v409 = vld [vmem:[#allocation2 + $0xf0] sm:$0xff]
      %v410 = vld [vmem:[#allocation2 + $0xf8] sm:$0xff]
      %v411 = vld [vmem:[#allocation2 + $0x108] sm:$0xff]
      %v412 = vld [vmem:[#allocation2 + $0x110] sm:$0xff]
      %v413 = vld [vmem:[#allocation2 + $0x120] sm:$0xff]
      %v414 = vld [vmem:[#allocation2 + $0x128] sm:$0xff]
      %v415 = vld [vmem:[#allocation2 + $0x138] sm:$0xff]
      %v416 = vld [vmem:[#allocation2 + $0x140] sm:$0xff]
      %v417 = vld [vmem:[#allocation2 + $0x150] sm:$0xff]
      %v418 = vld [vmem:[#allocation2 + $0x158] sm:$0xff]
      %v419 = vld [vmem:[#allocation2 + $0x168] sm:$0xff]
      %v420 = vld [vmem:[#allocation2 + $0x170] sm:$0xff]
      %v421 = vld [vmem:[%s265] sm:$0xff]
      %v422 = vld [vmem:[%s265 + $0x8] sm:$0xff]
      %v423 = vld [vmem:[%s265 + $0x10] sm:$0xff]
      %v424 = vld [vmem:[%s265 + $0x18] sm:$0xff]
      %v425 = vld [vmem:[%s265 + $0x20] sm:$0xff]
      %v426 = vld [vmem:[%s265 + $0x28] sm:$0xff]
      %v427 = vld [vmem:[%s265 + $0x30] sm:$0xff]
      %v428 = vld [vmem:[%s265 + $0x38] sm:$0xff]
      %v429 = vld [vmem:[%s265 + $0x40] sm:$0xff]
      %v430 = vld [vmem:[%s265 + $0x48] sm:$0xff]
      %v431 = vld [vmem:[%s265 + $0x50] sm:$0xff]
      %v432 = vld [vmem:[%s265 + $0x58] sm:$0xff]
      %v433 = vld [vmem:[%s265 + $0x60] sm:$0xff]
      %v434 = vld [vmem:[%s265 + $0x68] sm:$0xff]
      %v435 = vld [vmem:[%s265 + $0x70] sm:$0xff]
      %v436 = vld [vmem:[%s265 + $0x78] sm:$0xff]
      %v437 = vld [vmem:[#allocation2 + $0x1] sm:$0xff]
      %v438 = vld [vmem:[#allocation2 + $0x9] sm:$0xff]
      %v439 = vld [vmem:[#allocation2 + $0x19] sm:$0xff]
      %v440 = vld [vmem:[#allocation2 + $0x21] sm:$0xff]
      %v441 = vld [vmem:[#allocation2 + $0x31] sm:$0xff]
      %v442 = vld [vmem:[#allocation2 + $0x39] sm:$0xff]
      %v443 = vld [vmem:[#allocation2 + $0x49] sm:$0xff]
      %v444 = vld [vmem:[#allocation2 + $0x51] sm:$0xff]
      %v445 = vld [vmem:[#allocation2 + $0x61] sm:$0xff]
      %v446 = vld [vmem:[#allocation2 + $0x69] sm:$0xff]
      %v447 = vld [vmem:[#allocation2 + $0x79] sm:$0xff]
      %v448 = vld [vmem:[#allocation2 + $0x81] sm:$0xff]
      %v449 = vld [vmem:[#allocation2 + $0x91] sm:$0xff]
      %v450 = vld [vmem:[#allocation2 + $0x99] sm:$0xff]
      %v451 = vld [vmem:[#allocation2 + $0xa9] sm:$0xff]
      %v452 = vld [vmem:[#allocation2 + $0xb1] sm:$0xff]
      %v453 = vld [vmem:[#allocation2 + $0xc1] sm:$0xff]
      %v454 = vld [vmem:[#allocation2 + $0xc9] sm:$0xff]
      %v455 = vld [vmem:[#allocation2 + $0xd9] sm:$0xff]
      %v456 = vld [vmem:[#allocation2 + $0xe1] sm:$0xff]
      %v457 = vld [vmem:[#allocation2 + $0xf1] sm:$0xff]
      %v458 = vld [vmem:[#allocation2 + $0xf9] sm:$0xff]
      %v459 = vld [vmem:[#allocation2 + $0x109] sm:$0xff]
      %v460 = vld [vmem:[#allocation2 + $0x111] sm:$0xff]
      %v461 = vld [vmem:[#allocation2 + $0x121] sm:$0xff]
      %v462 = vld [vmem:[#allocation2 + $0x129] sm:$0xff]
      %v463 = vld [vmem:[#allocation2 + $0x139] sm:$0xff]
      %v464 = vld [vmem:[#allocation2 + $0x141] sm:$0xff]
      %v465 = vld [vmem:[#allocation2 + $0x151] sm:$0xff]
      %v466 = vld [vmem:[#allocation2 + $0x159] sm:$0xff]
      %v467 = vld [vmem:[#allocation2 + $0x169] sm:$0xff]
      %v468 = vld [vmem:[#allocation2 + $0x171] sm:$0xff]
      %s469 = scalar_lea.vmem %s265, 128
      %v470 = vld [vmem:[%s469] sm:$0xff]
      %v471 = vld [vmem:[%s469 + $0x8] sm:$0xff]
      %v472 = vld [vmem:[%s469 + $0x10] sm:$0xff]
      %v473 = vld [vmem:[%s469 + $0x18] sm:$0xff]
      %v474 = vld [vmem:[%s469 + $0x20] sm:$0xff]
      %v475 = vld [vmem:[%s469 + $0x28] sm:$0xff]
      %v476 = vld [vmem:[%s469 + $0x30] sm:$0xff]
      %v477 = vld [vmem:[%s469 + $0x38] sm:$0xff]
      %v478 = vld [vmem:[%s469 + $0x40] sm:$0xff]
      %v479 = vld [vmem:[%s469 + $0x48] sm:$0xff]
      %v480 = vld [vmem:[%s469 + $0x50] sm:$0xff]
      %v481 = vld [vmem:[%s469 + $0x58] sm:$0xff]
      %v482 = vld [vmem:[%s469 + $0x60] sm:$0xff]
      %v483 = vld [vmem:[%s469 + $0x68] sm:$0xff]
      %v484 = vld [vmem:[%s469 + $0x70] sm:$0xff]
      %v485 = vld [vmem:[%s469 + $0x78] sm:$0xff]
      %486 = vmatprep.subr.mxu0 0.0
      %487 = vmatpush1.msra.mxu0 %v470
      %488 = vmatprep.subr.mxu0 0.0
      %489 = vmatpush1.msra.mxu0 %v471
      %490 = vmatprep.subr.mxu0 0.0
      %491 = vmatpush1.msra.mxu0 %v472
      %492 = vmatprep.subr.mxu0 0.0
      %493 = vmatpush1.msra.mxu0 %v473
      %494 = vmatprep.subr.mxu0 0.0
      %495 = vmatpush1.msra.mxu0 %v474
      %496 = vmatprep.subr.mxu0 0.0
      %497 = vmatpush1.msra.mxu0 %v475
      %498 = vmatprep.subr.mxu0 0.0
      %499 = vmatpush1.msra.mxu0 %v476
      %500 = vmatprep.subr.mxu0 0.0
      %501 = vmatpush1.msra.mxu0 %v477
      %502 = vmatprep.subr.mxu0 0.0
      %503 = vmatpush1.msra.mxu0 %v478
      %504 = vmatprep.subr.mxu0 0.0
      %505 = vmatpush1.msra.mxu0 %v479
      %506 = vmatprep.subr.mxu0 0.0
      %507 = vmatpush1.msra.mxu0 %v480
      %508 = vmatprep.subr.mxu0 0.0
      %509 = vmatpush1.msra.mxu0 %v481
      %510 = vmatprep.subr.mxu0 0.0
      %511 = vmatpush1.msra.mxu0 %v482
      %512 = vmatprep.subr.mxu0 0.0
      %513 = vmatpush1.msra.mxu0 %v483
      %514 = vmatprep.subr.mxu0 0.0
      %515 = vmatpush1.msra.mxu0 %v484
      %516 = vmatprep.subr.mxu0 0.0
      %517 = vmatpush1.msra.mxu0 %v485
      %518 = vmatprep.subr.mxu0 0.0
      %519 = vmatpush1.msra.mxu0 0.0
      %520 = vmatprep.subr.mxu0 0.0
      %521 = vmatpush1.msra.mxu0 0.0
      %522 = vmatprep.subr.mxu0 0.0
      %523 = vmatpush1.msra.mxu0 0.0
      %524 = vmatprep.subr.mxu0 0.0
      %525 = vmatpush1.msra.mxu0 0.0
      %526 = vmatprep.subr.mxu0 0.0
      %527 = vmatpush1.msra.mxu0 0.0
      %528 = vmatprep.subr.mxu0 0.0
      %529 = vmatpush1.msra.mxu0 0.0
      %530 = vmatprep.subr.mxu0 0.0
      %531 = vmatpush1.msra.mxu0 0.0
      %532 = vmatprep.subr.mxu0 0.0
      %533 = vmatpush1.msra.mxu0 0.0
      %534 = vmatprep.subr.mxu0 0.0
      %535 = vmatpush1.msra.mxu0 0.0
      %536 = vmatprep.subr.mxu0 0.0
      %537 = vmatpush1.msra.mxu0 0.0
      %538 = vmatprep.subr.mxu0 0.0
      %539 = vmatpush1.msra.mxu0 0.0
      %540 = vmatprep.subr.mxu0 0.0
      %541 = vmatpush1.msra.mxu0 0.0
      %542 = vmatprep.subr.mxu0 0.0
      %543 = vmatpush1.msra.mxu0 0.0
      %544 = vmatprep.subr.mxu0 0.0
      %545 = vmatpush1.msra.mxu0 0.0
      %546 = vmatprep.subr.mxu0 0.0
      %547 = vmatpush1.msra.mxu0 0.0
      %548 = vmatprep.subr.mxu0 0.0
      %549 = vmatpush1.msra.mxu0 0.0
      %550 = vmatprep.mubr.f32.mxu0 0.0
      %551 = vmatmul.mubr.f32.gmra.mrb[0].mxu0 %v437
      %v552 = vpop.f32.mrb[0].mxu0
      %v553 = vadd.f32 0.0, %v552
      %v554 = vpop.f32.mrb[0].mxu0
      %555 = vmatprep.mubr.f32.mxu0 0.0
      %556 = vmatmul.mubr.f32.gmra.mrb[0].mxu0 %v438
      %v557 = vpop.f32.mrb[0].mxu0
      %v558 = vadd.f32 0.0, %v557
      %v559 = vpop.f32.mrb[0].mxu0
      %560 = vmatprep.mubr.f32.mxu0 0.0
      %561 = vmatmul.mubr.f32.gmra.mrb[0].mxu0 %v439
      %v562 = vpop.f32.mrb[0].mxu0
      %v563 = vadd.f32 0.0, %v562
      %v564 = vpop.f32.mrb[0].mxu0
      %565 = vmatprep.mubr.f32.mxu0 0.0
      %566 = vmatmul.mubr.f32.gmra.mrb[0].mxu0 %v440
      %v567 = vpop.f32.mrb[0].mxu0
      %v568 = vadd.f32 0.0, %v567
      %v569 = vpop.f32.mrb[0].mxu0
      %570 = vmatprep.mubr.f32.mxu0 0.0
      %571 = vmatmul.mubr.f32.gmra.mrb[0].mxu0 %v441
      %v572 = vpop.f32.mrb[0].mxu0
      %v573 = vadd.f32 0.0, %v572
      %v574 = vpop.f32.mrb[0].mxu0
      %575 = vmatprep.mubr.f32.mxu0 0.0
      %576 = vmatmul.mubr.f32.gmra.mrb[0].mxu0 %v442
      %v577 = vpop.f32.mrb[0].mxu0
      %v578 = vadd.f32 0.0, %v577
      %v579 = vpop.f32.mrb[0].mxu0
      %580 = vmatprep.mubr.f32.mxu0 0.0
      %581 = vmatmul.mubr.f32.gmra.mrb[0].mxu0 %v443
      %v582 = vpop.f32.mrb[0].mxu0
      %v583 = vadd.f32 0.0, %v582
      %v584 = vpop.f32.mrb[0].mxu0
      %585 = vmatprep.mubr.f32.mxu0 0.0
      %586 = vmatmul.mubr.f32.gmra.mrb[0].mxu0 %v444
      %v587 = vpop.f32.mrb[0].mxu0
      %v588 = vadd.f32 0.0, %v587
      %v589 = vpop.f32.mrb[0].mxu0
      %590 = vmatprep.mubr.f32.mxu0 0.0
      %591 = vmatmul.mubr.f32.gmra.mrb[0].mxu0 %v445
      %v592 = vpop.f32.mrb[0].mxu0
      %v593 = vadd.f32 0.0, %v592
      %v594 = vpop.f32.mrb[0].mxu0
      %595 = vmatprep.mubr.f32.mxu0 0.0
      %596 = vmatmul.mubr.f32.gmra.mrb[0].mxu0 %v446
      %v597 = vpop.f32.mrb[0].mxu0
      %v598 = vadd.f32 0.0, %v597
      %v599 = vpop.f32.mrb[0].mxu0
      %600 = vmatprep.mubr.f32.mxu0 0.0
      %601 = vmatmul.mubr.f32.gmra.mrb[0].mxu0 %v447
      %v602 = vpop.f32.mrb[0].mxu0
      %v603 = vadd.f32 0.0, %v602
      %v604 = vpop.f32.mrb[0].mxu0
      %605 = vmatprep.mubr.f32.mxu0 0.0
      %606 = vmatmul.mubr.f32.gmra.mrb[0].mxu0 %v448
      %v607 = vpop.f32.mrb[0].mxu0
      %v608 = vadd.f32 0.0, %v607
      %v609 = vpop.f32.mrb[0].mxu0
      %610 = vmatprep.mubr.f32.mxu0 0.0
      %611 = vmatmul.mubr.f32.gmra.mrb[0].mxu0 %v449
      %v612 = vpop.f32.mrb[0].mxu0
      %v613 = vadd.f32 0.0, %v612
      %v614 = vpop.f32.mrb[0].mxu0
      %615 = vmatprep.mubr.f32.mxu0 0.0
      %616 = vmatmul.mubr.f32.gmra.mrb[0].mxu0 %v450
      %v617 = vpop.f32.mrb[0].mxu0
      %v618 = vadd.f32 0.0, %v617
      %v619 = vpop.f32.mrb[0].mxu0
      %620 = vmatprep.mubr.f32.mxu0 0.0
      %621 = vmatmul.mubr.f32.gmra.mrb[0].mxu0 %v451
      %v622 = vpop.f32.mrb[0].mxu0
      %v623 = vadd.f32 0.0, %v622
      %v624 = vpop.f32.mrb[0].mxu0
      %625 = vmatprep.mubr.f32.mxu0 0.0
      %626 = vmatmul.mubr.f32.gmra.mrb[0].mxu0 %v452
      %v627 = vpop.f32.mrb[0].mxu0
      %v628 = vadd.f32 0.0, %v627
      %v629 = vpop.f32.mrb[0].mxu0
      %630 = vmatprep.mubr.f32.mxu0 0.0
      %631 = vmatmul.mubr.f32.gmra.mrb[0].mxu0 %v453
      %v632 = vpop.f32.mrb[0].mxu0
      %v633 = vadd.f32 0.0, %v632
      %v634 = vpop.f32.mrb[0].mxu0
      %635 = vmatprep.mubr.f32.mxu0 0.0
      %636 = vmatmul.mubr.f32.gmra.mrb[0].mxu0 %v454
      %v637 = vpop.f32.mrb[0].mxu0
      %v638 = vadd.f32 0.0, %v637
      %v639 = vpop.f32.mrb[0].mxu0
      %640 = vmatprep.mubr.f32.mxu0 0.0
      %641 = vmatmul.mubr.f32.gmra.mrb[0].mxu0 %v455
      %v642 = vpop.f32.mrb[0].mxu0
      %v643 = vadd.f32 0.0, %v642
      %v644 = vpop.f32.mrb[0].mxu0
      %645 = vmatprep.mubr.f32.mxu0 0.0
      %646 = vmatmul.mubr.f32.gmra.mrb[0].mxu0 %v456
      %v647 = vpop.f32.mrb[0].mxu0
      %v648 = vadd.f32 0.0, %v647
      %v649 = vpop.f32.mrb[0].mxu0
      %650 = vmatprep.mubr.f32.mxu0 0.0
      %651 = vmatmul.mubr.f32.gmra.mrb[0].mxu0 %v457
      %v652 = vpop.f32.mrb[0].mxu0
      %v653 = vadd.f32 0.0, %v652
      %v654 = vpop.f32.mrb[0].mxu0
      %655 = vmatprep.mubr.f32.mxu0 0.0
      %656 = vmatmul.mubr.f32.gmra.mrb[0].mxu0 %v458
      %v657 = vpop.f32.mrb[0].mxu0
      %v658 = vadd.f32 0.0, %v657
      %v659 = vpop.f32.mrb[0].mxu0
      %660 = vmatprep.mubr.f32.mxu0 0.0
      %661 = vmatmul.mubr.f32.gmra.mrb[0].mxu0 %v459
      %v662 = vpop.f32.mrb[0].mxu0
      %v663 = vadd.f32 0.0, %v662
      %v664 = vpop.f32.mrb[0].mxu0
      %665 = vmatprep.mubr.f32.mxu0 0.0
      %666 = vmatmul.mubr.f32.gmra.mrb[0].mxu0 %v460
      %v667 = vpop.f32.mrb[0].mxu0
      %v668 = vadd.f32 0.0, %v667
      %v669 = vpop.f32.mrb[0].mxu0
      %670 = vmatprep.mubr.f32.mxu0 0.0
      %671 = vmatmul.mubr.f32.gmra.mrb[0].mxu0 %v461
      %v672 = vpop.f32.mrb[0].mxu0
      %v673 = vadd.f32 0.0, %v672
      %v674 = vpop.f32.mrb[0].mxu0
      %675 = vmatprep.mubr.f32.mxu0 0.0
      %676 = vmatmul.mubr.f32.gmra.mrb[0].mxu0 %v462
      %v677 = vpop.f32.mrb[0].mxu0
      %v678 = vadd.f32 0.0, %v677
      %v679 = vpop.f32.mrb[0].mxu0
      %680 = vmatprep.mubr.f32.mxu0 0.0
      %681 = vmatmul.mubr.f32.gmra.mrb[0].mxu0 %v463
      %v682 = vpop.f32.mrb[0].mxu0
      %v683 = vadd.f32 0.0, %v682
      %v684 = vpop.f32.mrb[0].mxu0
      %685 = vmatprep.mubr.f32.mxu0 0.0
      %686 = vmatmul.mubr.f32.gmra.mrb[0].mxu0 %v464
      %v687 = vpop.f32.mrb[0].mxu0
      %v688 = vadd.f32 0.0, %v687
      %v689 = vpop.f32.mrb[0].mxu0
      %690 = vmatprep.mubr.f32.mxu0 0.0
      %691 = vmatmul.mubr.f32.gmra.mrb[0].mxu0 %v465
      %v692 = vpop.f32.mrb[0].mxu0
      %v693 = vadd.f32 0.0, %v692
      %v694 = vpop.f32.mrb[0].mxu0
      %695 = vmatprep.mubr.f32.mxu0 0.0
      %696 = vmatmul.mubr.f32.gmra.mrb[0].mxu0 %v466
      %v697 = vpop.f32.mrb[0].mxu0
      %v698 = vadd.f32 0.0, %v697
      %v699 = vpop.f32.mrb[0].mxu0
      %700 = vmatprep.mubr.f32.mxu0 0.0
      %701 = vmatmul.mubr.f32.gmra.mrb[0].mxu0 %v467
      %v702 = vpop.f32.mrb[0].mxu0
      %v703 = vadd.f32 0.0, %v702
      %v704 = vpop.f32.mrb[0].mxu0
      %705 = vmatprep.mubr.f32.mxu0 0.0
      %706 = vmatmul.mubr.f32.gmra.mrb[0].mxu0 %v468
      %v707 = vpop.f32.mrb[0].mxu0
      %v708 = vadd.f32 0.0, %v707
      %v709 = vpop.f32.mrb[0].mxu0
      %710 = vdwg.mxu0
      %711 = vmatprep.subr.mxu0 0.0
      %712 = vmatpush1.msra.mxu0 %v421
      %713 = vmatprep.subr.mxu0 0.0
      %714 = vmatpush1.msra.mxu0 %v422
      %715 = vmatprep.subr.mxu0 0.0
      %716 = vmatpush1.msra.mxu0 %v423
      %717 = vmatprep.subr.mxu0 0.0
      %718 = vmatpush1.msra.mxu0 %v424
      %719 = vmatprep.subr.mxu0 0.0
      %720 = vmatpush1.msra.mxu0 %v425
      %721 = vmatprep.subr.mxu0 0.0
      %722 = vmatpush1.msra.mxu0 %v426
      %723 = vmatprep.subr.mxu0 0.0
      %724 = vmatpush1.msra.mxu0 %v427
      %725 = vmatprep.subr.mxu0 0.0
      %726 = vmatpush1.msra.mxu0 %v428
      %727 = vmatprep.subr.mxu0 0.0
      %728 = vmatpush1.msra.mxu0 %v429
      %729 = vmatprep.subr.mxu0 0.0
      %730 = vmatpush1.msra.mxu0 %v430
      %731 = vmatprep.subr.mxu0 0.0
      %732 = vmatpush1.msra.mxu0 %v431
      %733 = vmatprep.subr.mxu0 0.0
      %734 = vmatpush1.msra.mxu0 %v432
      %735 = vmatprep.subr.mxu0 0.0
      %736 = vmatpush1.msra.mxu0 %v433
      %737 = vmatprep.subr.mxu0 0.0
      %738 = vmatpush1.msra.mxu0 %v434
      %739 = vmatprep.subr.mxu0 0.0
      %740 = vmatpush1.msra.mxu0 %v435
      %741 = vmatprep.subr.mxu0 0.0
      %742 = vmatpush1.msra.mxu0 %v436
      %743 = vmatprep.subr.mxu0 0.0
      %744 = vmatpush1.msra.mxu0 0.0
      %745 = vmatprep.subr.mxu0 0.0
      %746 = vmatpush1.msra.mxu0 0.0
      %747 = vmatprep.subr.mxu0 0.0
      %748 = vmatpush1.msra.mxu0 0.0
      %749 = vmatprep.subr.mxu0 0.0
      %750 = vmatpush1.msra.mxu0 0.0
      %751 = vmatprep.subr.mxu0 0.0
      %752 = vmatpush1.msra.mxu0 0.0
      %753 = vmatprep.subr.mxu0 0.0
      %754 = vmatpush1.msra.mxu0 0.0
      %755 = vmatprep.subr.mxu0 0.0
      %756 = vmatpush1.msra.mxu0 0.0
      %757 = vmatprep.subr.mxu0 0.0
      %758 = vmatpush1.msra.mxu0 0.0
      %759 = vmatprep.subr.mxu0 0.0
      %760 = vmatpush1.msra.mxu0 0.0
      %761 = vmatprep.subr.mxu0 0.0
      %762 = vmatpush1.msra.mxu0 0.0
      %763 = vmatprep.subr.mxu0 0.0
      %764 = vmatpush1.msra.mxu0 0.0
      %765 = vmatprep.subr.mxu0 0.0
      %766 = vmatpush1.msra.mxu0 0.0
      %767 = vmatprep.subr.mxu0 0.0
      %768 = vmatpush1.msra.mxu0 0.0
      %769 = vmatprep.subr.mxu0 0.0
      %770 = vmatpush1.msra.mxu0 0.0
      %771 = vmatprep.subr.mxu0 0.0
      %772 = vmatpush1.msra.mxu0 0.0
      %773 = vmatprep.subr.mxu0 0.0
      %774 = vmatpush1.msra.mxu0 0.0
      %775 = vmatprep.mubr.f32.mxu0 0.0
      %776 = vmatmul.mubr.f32.gmra.mrb[0].mxu0 %v389
      %v777 = vpop.f32.mrb[0].mxu0
      %v778 = vadd.f32 %v553, %v777
      %v779 = vpop.f32.mrb[0].mxu0
      %780 = vmatprep.mubr.f32.mxu0 0.0
      %781 = vmatmul.mubr.f32.gmra.mrb[0].mxu0 %v390
      %v782 = vpop.f32.mrb[0].mxu0
      %v783 = vadd.f32 %v558, %v782
      %v784 = vpop.f32.mrb[0].mxu0
      %785 = vmatprep.mubr.f32.mxu0 0.0
      %786 = vmatmul.mubr.f32.gmra.mrb[0].mxu0 %v391
      %v787 = vpop.f32.mrb[0].mxu0
      %v788 = vadd.f32 %v563, %v787
      %v789 = vpop.f32.mrb[0].mxu0
      %790 = vmatprep.mubr.f32.mxu0 0.0
      %791 = vmatmul.mubr.f32.gmra.mrb[0].mxu0 %v392
      %v792 = vpop.f32.mrb[0].mxu0
      %v793 = vadd.f32 %v568, %v792
      %v794 = vpop.f32.mrb[0].mxu0
      %795 = vmatprep.mubr.f32.mxu0 0.0
      %796 = vmatmul.mubr.f32.gmra.mrb[0].mxu0 %v393
      %v797 = vpop.f32.mrb[0].mxu0
      %v798 = vadd.f32 %v573, %v797
      %v799 = vpop.f32.mrb[0].mxu0
      %800 = vmatprep.mubr.f32.mxu0 0.0
      %801 = vmatmul.mubr.f32.gmra.mrb[0].mxu0 %v394
      %v802 = vpop.f32.mrb[0].mxu0
      %v803 = vadd.f32 %v578, %v802
      %v804 = vpop.f32.mrb[0].mxu0
      %805 = vmatprep.mubr.f32.mxu0 0.0
      %806 = vmatmul.mubr.f32.gmra.mrb[0].mxu0 %v395
      %v807 = vpop.f32.mrb[0].mxu0
      %v808 = vadd.f32 %v583, %v807
      %v809 = vpop.f32.mrb[0].mxu0
      %810 = vmatprep.mubr.f32.mxu0 0.0
      %811 = vmatmul.mubr.f32.gmra.mrb[0].mxu0 %v396
      %v812 = vpop.f32.mrb[0].mxu0
      %v813 = vadd.f32 %v588, %v812
      %v814 = vpop.f32.mrb[0].mxu0
      %815 = vmatprep.mubr.f32.mxu0 0.0
      %816 = vmatmul.mubr.f32.gmra.mrb[0].mxu0 %v397
      %v817 = vpop.f32.mrb[0].mxu0
      %v818 = vadd.f32 %v593, %v817
      %v819 = vpop.f32.mrb[0].mxu0
      %820 = vmatprep.mubr.f32.mxu0 0.0
      %821 = vmatmul.mubr.f32.gmra.mrb[0].mxu0 %v398
      %v822 = vpop.f32.mrb[0].mxu0
      %v823 = vadd.f32 %v598, %v822
      %v824 = vpop.f32.mrb[0].mxu0
      %825 = vmatprep.mubr.f32.mxu0 0.0
      %826 = vmatmul.mubr.f32.gmra.mrb[0].mxu0 %v399
      %v827 = vpop.f32.mrb[0].mxu0
      %v828 = vadd.f32 %v603, %v827
      %v829 = vpop.f32.mrb[0].mxu0
      %830 = vmatprep.mubr.f32.mxu0 0.0
      %831 = vmatmul.mubr.f32.gmra.mrb[0].mxu0 %v400
      %v832 = vpop.f32.mrb[0].mxu0
      %v833 = vadd.f32 %v608, %v832
      %v834 = vpop.f32.mrb[0].mxu0
      %835 = vmatprep.mubr.f32.mxu0 0.0
      %836 = vmatmul.mubr.f32.gmra.mrb[0].mxu0 %v401
      %v837 = vpop.f32.mrb[0].mxu0
      %v838 = vadd.f32 %v613, %v837
      %v839 = vpop.f32.mrb[0].mxu0
      %840 = vmatprep.mubr.f32.mxu0 0.0
      %841 = vmatmul.mubr.f32.gmra.mrb[0].mxu0 %v402
      %v842 = vpop.f32.mrb[0].mxu0
      %v843 = vadd.f32 %v618, %v842
      %v844 = vpop.f32.mrb[0].mxu0
      %845 = vmatprep.mubr.f32.mxu0 0.0
      %846 = vmatmul.mubr.f32.gmra.mrb[0].mxu0 %v403
      %v847 = vpop.f32.mrb[0].mxu0
      %v848 = vadd.f32 %v623, %v847
      %v849 = vpop.f32.mrb[0].mxu0
      %850 = vmatprep.mubr.f32.mxu0 0.0
      %851 = vmatmul.mubr.f32.gmra.mrb[0].mxu0 %v404
      %v852 = vpop.f32.mrb[0].mxu0
      %v853 = vadd.f32 %v628, %v852
      %v854 = vpop.f32.mrb[0].mxu0
      %855 = vmatprep.mubr.f32.mxu0 0.0
      %856 = vmatmul.mubr.f32.gmra.mrb[0].mxu0 %v405
      %v857 = vpop.f32.mrb[0].mxu0
      %v858 = vadd.f32 %v633, %v857
      %v859 = vpop.f32.mrb[0].mxu0
      %860 = vmatprep.mubr.f32.mxu0 0.0
      %861 = vmatmul.mubr.f32.gmra.mrb[0].mxu0 %v406
      %v862 = vpop.f32.mrb[0].mxu0
      %v863 = vadd.f32 %v638, %v862
      %v864 = vpop.f32.mrb[0].mxu0
      %865 = vmatprep.mubr.f32.mxu0 0.0
      %866 = vmatmul.mubr.f32.gmra.mrb[0].mxu0 %v407
      %v867 = vpop.f32.mrb[0].mxu0
      %v868 = vadd.f32 %v643, %v867
      %v869 = vpop.f32.mrb[0].mxu0
      %870 = vmatprep.mubr.f32.mxu0 0.0
      %871 = vmatmul.mubr.f32.gmra.mrb[0].mxu0 %v408
      %v872 = vpop.f32.mrb[0].mxu0
      %v873 = vadd.f32 %v648, %v872
      %v874 = vpop.f32.mrb[0].mxu0
      %875 = vmatprep.mubr.f32.mxu0 0.0
      %876 = vmatmul.mubr.f32.gmra.mrb[0].mxu0 %v409
      %v877 = vpop.f32.mrb[0].mxu0
      %v878 = vadd.f32 %v653, %v877
      %v879 = vpop.f32.mrb[0].mxu0
      %880 = vmatprep.mubr.f32.mxu0 0.0
      %881 = vmatmul.mubr.f32.gmra.mrb[0].mxu0 %v410
      %v882 = vpop.f32.mrb[0].mxu0
      %v883 = vadd.f32 %v658, %v882
      %v884 = vpop.f32.mrb[0].mxu0
      %885 = vmatprep.mubr.f32.mxu0 0.0
      %886 = vmatmul.mubr.f32.gmra.mrb[0].mxu0 %v411
      %v887 = vpop.f32.mrb[0].mxu0
      %v888 = vadd.f32 %v663, %v887
      %v889 = vpop.f32.mrb[0].mxu0
      %890 = vmatprep.mubr.f32.mxu0 0.0
      %891 = vmatmul.mubr.f32.gmra.mrb[0].mxu0 %v412
      %v892 = vpop.f32.mrb[0].mxu0
      %v893 = vadd.f32 %v668, %v892
      %v894 = vpop.f32.mrb[0].mxu0
      %895 = vmatprep.mubr.f32.mxu0 0.0
      %896 = vmatmul.mubr.f32.gmra.mrb[0].mxu0 %v413
      %v897 = vpop.f32.mrb[0].mxu0
      %v898 = vadd.f32 %v673, %v897
      %v899 = vpop.f32.mrb[0].mxu0
      %900 = vmatprep.mubr.f32.mxu0 0.0
      %901 = vmatmul.mubr.f32.gmra.mrb[0].mxu0 %v414
      %v902 = vpop.f32.mrb[0].mxu0
      %v903 = vadd.f32 %v678, %v902
      %v904 = vpop.f32.mrb[0].mxu0
      %905 = vmatprep.mubr.f32.mxu0 0.0
      %906 = vmatmul.mubr.f32.gmra.mrb[0].mxu0 %v415
      %v907 = vpop.f32.mrb[0].mxu0
      %v908 = vadd.f32 %v683, %v907
      %v909 = vpop.f32.mrb[0].mxu0
      %910 = vmatprep.mubr.f32.mxu0 0.0
      %911 = vmatmul.mubr.f32.gmra.mrb[0].mxu0 %v416
      %v912 = vpop.f32.mrb[0].mxu0
      %v913 = vadd.f32 %v688, %v912
      %v914 = vpop.f32.mrb[0].mxu0
      %915 = vmatprep.mubr.f32.mxu0 0.0
      %916 = vmatmul.mubr.f32.gmra.mrb[0].mxu0 %v417
      %v917 = vpop.f32.mrb[0].mxu0
      %v918 = vadd.f32 %v693, %v917
      %v919 = vpop.f32.mrb[0].mxu0
      %920 = vmatprep.mubr.f32.mxu0 0.0
      %921 = vmatmul.mubr.f32.gmra.mrb[0].mxu0 %v418
      %v922 = vpop.f32.mrb[0].mxu0
      %v923 = vadd.f32 %v698, %v922
      %v924 = vpop.f32.mrb[0].mxu0
      %925 = vmatprep.mubr.f32.mxu0 0.0
      %926 = vmatmul.mubr.f32.gmra.mrb[0].mxu0 %v419
      %v927 = vpop.f32.mrb[0].mxu0
      %v928 = vadd.f32 %v703, %v927
      %v929 = vpop.f32.mrb[0].mxu0
      %930 = vmatprep.mubr.f32.mxu0 0.0
      %931 = vmatmul.mubr.f32.gmra.mrb[0].mxu0 %v420
      %v932 = vpop.f32.mrb[0].mxu0
      %v933 = vadd.f32 %v708, %v932
      %v934 = vpop.f32.mrb[0].mxu0
      %935 = vdwg.mxu0
      %v936 = vld [vmem:[#allocation2 + $0x2] sm:$0xff]
      %v937 = vld [vmem:[#allocation2 + $0xa] sm:$0xff]
      %v938 = vld [vmem:[#allocation2 + $0x1a] sm:$0xff]
      %v939 = vld [vmem:[#allocation2 + $0x22] sm:$0xff]
      %v940 = vld [vmem:[#allocation2 + $0x32] sm:$0xff]
      %v941 = vld [vmem:[#allocation2 + $0x3a] sm:$0xff]
      %v942 = vld [vmem:[#allocation2 + $0x4a] sm:$0xff]
      %v943 = vld [vmem:[#allocation2 + $0x52] sm:$0xff]
      %v944 = vld [vmem:[#allocation2 + $0x62] sm:$0xff]
      %v945 = vld [vmem:[#allocation2 + $0x6a] sm:$0xff]
      %v946 = vld [vmem:[#allocation2 + $0x7a] sm:$0xff]
      %v947 = vld [vmem:[#allocation2 + $0x82] sm:$0xff]
      %v948 = vld [vmem:[#allocation2 + $0x92] sm:$0xff]
      %v949 = vld [vmem:[#allocation2 + $0x9a] sm:$0xff]
      %v950 = vld [vmem:[#allocation2 + $0xaa] sm:$0xff]
      %v951 = vld [vmem:[#allocation2 + $0xb2] sm:$0xff]
      %v952 = vld [vmem:[#allocation2 + $0xc2] sm:$0xff]
      %v953 = vld [vmem:[#allocation2 + $0xca] sm:$0xff]
      %v954 = vld [vmem:[#allocation2 + $0xda] sm:$0xff]
      %v955 = vld [vmem:[#allocation2 + $0xe2] sm:$0xff]
      %v956 = vld [vmem:[#allocation2 + $0xf2] sm:$0xff]
      %v957 = vld [vmem:[#allocation2 + $0xfa] sm:$0xff]
      %v958 = vld [vmem:[#allocation2 + $0x10a] sm:$0xff]
      %v959 = vld [vmem:[#allocation2 + $0x112] sm:$0xff]
      %v960 = vld [vmem:[#allocation2 + $0x122] sm:$0xff]
      %v961 = vld [vmem:[#allocation2 + $0x12a] sm:$0xff]
      %v962 = vld [vmem:[#allocation2 + $0x13a] sm:$0xff]
      %v963 = vld [vmem:[#allocation2 + $0x142] sm:$0xff]
      %v964 = vld [vmem:[#allocation2 + $0x152] sm:$0xff]
      %v965 = vld [vmem:[#allocation2 + $0x15a] sm:$0xff]
      %v966 = vld [vmem:[#allocation2 + $0x16a] sm:$0xff]
      %v967 = vld [vmem:[#allocation2 + $0x172] sm:$0xff]
      %s968 = scalar_lea.vmem %s265, 256
      %v969 = vld [vmem:[%s968] sm:$0xff]
      %v970 = vld [vmem:[%s968 + $0x8] sm:$0xff]
      %v971 = vld [vmem:[%s968 + $0x10] sm:$0xff]
      %v972 = vld [vmem:[%s968 + $0x18] sm:$0xff]
      %v973 = vld [vmem:[%s968 + $0x20] sm:$0xff]
      %v974 = vld [vmem:[%s968 + $0x28] sm:$0xff]
      %v975 = vld [vmem:[%s968 + $0x30] sm:$0xff]
      %v976 = vld [vmem:[%s968 + $0x38] sm:$0xff]
      %v977 = vld [vmem:[%s968 + $0x40] sm:$0xff]
      %v978 = vld [vmem:[%s968 + $0x48] sm:$0xff]
      %v979 = vld [vmem:[%s968 + $0x50] sm:$0xff]
      %v980 = vld [vmem:[%s968 + $0x58] sm:$0xff]
      %v981 = vld [vmem:[%s968 + $0x60] sm:$0xff]
      %v982 = vld [vmem:[%s968 + $0x68] sm:$0xff]
      %v983 = vld [vmem:[%s968 + $0x70] sm:$0xff]
      %v984 = vld [vmem:[%s968 + $0x78] sm:$0xff]
      %985 = vmatprep.subr.mxu0 0.0
      %986 = vmatpush1.msra.mxu0 %v969
      %987 = vmatprep.subr.mxu0 0.0
      %988 = vmatpush1.msra.mxu0 %v970
      %989 = vmatprep.subr.mxu0 0.0
      %990 = vmatpush1.msra.mxu0 %v971
      %991 = vmatprep.subr.mxu0 0.0
      %992 = vmatpush1.msra.mxu0 %v972
      %993 = vmatprep.subr.mxu0 0.0
      %994 = vmatpush1.msra.mxu0 %v973
      %995 = vmatprep.subr.mxu0 0.0
      %996 = vmatpush1.msra.mxu0 %v974
      %997 = vmatprep.subr.mxu0 0.0
      %998 = vmatpush1.msra.mxu0 %v975
      %999 = vmatprep.subr.mxu0 0.0
      %1000 = vmatpush1.msra.mxu0 %v976
      %1001 = vmatprep.subr.mxu0 0.0
      %1002 = vmatpush1.msra.mxu0 %v977
      %1003 = vmatprep.subr.mxu0 0.0
      %1004 = vmatpush1.msra.mxu0 %v978
      %1005 = vmatprep.subr.mxu0 0.0
      %1006 = vmatpush1.msra.mxu0 %v979
      %1007 = vmatprep.subr.mxu0 0.0
      %1008 = vmatpush1.msra.mxu0 %v980
      %1009 = vmatprep.subr.mxu0 0.0
      %1010 = vmatpush1.msra.mxu0 %v981
      %1011 = vmatprep.subr.mxu0 0.0
      %1012 = vmatpush1.msra.mxu0 %v982
      %1013 = vmatprep.subr.mxu0 0.0
      %1014 = vmatpush1.msra.mxu0 %v983
      %1015 = vmatprep.subr.mxu0 0.0
      %1016 = vmatpush1.msra.mxu0 %v984
      %1017 = vmatprep.subr.mxu0 0.0
      %1018 = vmatpush1.msra.mxu0 0.0
      %1019 = vmatprep.subr.mxu0 0.0
      %1020 = vmatpush1.msra.mxu0 0.0
      %1021 = vmatprep.subr.mxu0 0.0
      %1022 = vmatpush1.msra.mxu0 0.0
      %1023 = vmatprep.subr.mxu0 0.0
      %1024 = vmatpush1.msra.mxu0 0.0
      %1025 = vmatprep.subr.mxu0 0.0
      %1026 = vmatpush1.msra.mxu0 0.0
      %1027 = vmatprep.subr.mxu0 0.0
      %1028 = vmatpush1.msra.mxu0 0.0
      %1029 = vmatprep.subr.mxu0 0.0
      %1030 = vmatpush1.msra.mxu0 0.0
      %1031 = vmatprep.subr.mxu0 0.0
      %1032 = vmatpush1.msra.mxu0 0.0
      %1033 = vmatprep.subr.mxu0 0.0
      %1034 = vmatpush1.msra.mxu0 0.0
      %1035 = vmatprep.subr.mxu0 0.0
      %1036 = vmatpush1.msra.mxu0 0.0
      %1037 = vmatprep.subr.mxu0 0.0
      %1038 = vmatpush1.msra.mxu0 0.0
      %1039 = vmatprep.subr.mxu0 0.0
      %1040 = vmatpush1.msra.mxu0 0.0
      %1041 = vmatprep.subr.mxu0 0.0
      %1042 = vmatpush1.msra.mxu0 0.0
      %1043 = vmatprep.subr.mxu0 0.0
      %1044 = vmatpush1.msra.mxu0 0.0
      %1045 = vmatprep.subr.mxu0 0.0
      %1046 = vmatpush1.msra.mxu0 0.0
      %1047 = vmatprep.subr.mxu0 0.0
      %1048 = vmatpush1.msra.mxu0 0.0
      %1049 = vmatprep.mubr.f32.mxu0 0.0
      %1050 = vmatmul.mubr.f32.gmra.mrb[0].mxu0 %v936
      %v1051 = vpop.f32.mrb[0].mxu0
      %v1052 = vadd.f32 0.0, %v1051
      %v1053 = vpop.f32.mrb[0].mxu0
      %1054 = vmatprep.mubr.f32.mxu0 0.0
      %1055 = vmatmul.mubr.f32.gmra.mrb[0].mxu0 %v937
      %v1056 = vpop.f32.mrb[0].mxu0
      %v1057 = vadd.f32 0.0, %v1056
      %v1058 = vpop.f32.mrb[0].mxu0
      %1059 = vmatprep.mubr.f32.mxu0 0.0
      %1060 = vmatmul.mubr.f32.gmra.mrb[0].mxu0 %v938
      %v1061 = vpop.f32.mrb[0].mxu0
      %v1062 = vadd.f32 0.0, %v1061
      %v1063 = vpop.f32.mrb[0].mxu0
      %1064 = vmatprep.mubr.f32.mxu0 0.0
      %1065 = vmatmul.mubr.f32.gmra.mrb[0].mxu0 %v939
      %v1066 = vpop.f32.mrb[0].mxu0
      %v1067 = vadd.f32 0.0, %v1066
      %v1068 = vpop.f32.mrb[0].mxu0
      %1069 = vmatprep.mubr.f32.mxu0 0.0
      %1070 = vmatmul.mubr.f32.gmra.mrb[0].mxu0 %v940
      %v1071 = vpop.f32.mrb[0].mxu0
      %v1072 = vadd.f32 0.0, %v1071
      %v1073 = vpop.f32.mrb[0].mxu0
      %1074 = vmatprep.mubr.f32.mxu0 0.0
      %1075 = vmatmul.mubr.f32.gmra.mrb[0].mxu0 %v941
      %v1076 = vpop.f32.mrb[0].mxu0
      %v1077 = vadd.f32 0.0, %v1076
      %v1078 = vpop.f32.mrb[0].mxu0
      %1079 = vmatprep.mubr.f32.mxu0 0.0
      %1080 = vmatmul.mubr.f32.gmra.mrb[0].mxu0 %v942
      %v1081 = vpop.f32.mrb[0].mxu0
      %v1082 = vadd.f32 0.0, %v1081
      %v1083 = vpop.f32.mrb[0].mxu0
      %1084 = vmatprep.mubr.f32.mxu0 0.0
      %1085 = vmatmul.mubr.f32.gmra.mrb[0].mxu0 %v943
      %v1086 = vpop.f32.mrb[0].mxu0
      %v1087 = vadd.f32 0.0, %v1086
      %v1088 = vpop.f32.mrb[0].mxu0
      %1089 = vmatprep.mubr.f32.mxu0 0.0
      %1090 = vmatmul.mubr.f32.gmra.mrb[0].mxu0 %v944
      %v1091 = vpop.f32.mrb[0].mxu0
      %v1092 = vadd.f32 0.0, %v1091
      %v1093 = vpop.f32.mrb[0].mxu0
      %1094 = vmatprep.mubr.f32.mxu0 0.0
      %1095 = vmatmul.mubr.f32.gmra.mrb[0].mxu0 %v945
      %v1096 = vpop.f32.mrb[0].mxu0
      %v1097 = vadd.f32 0.0, %v1096
      %v1098 = vpop.f32.mrb[0].mxu0
      %1099 = vmatprep.mubr.f32.mxu0 0.0
      %1100 = vmatmul.mubr.f32.gmra.mrb[0].mxu0 %v946
      %v1101 = vpop.f32.mrb[0].mxu0
      %v1102 = vadd.f32 0.0, %v1101
      %v1103 = vpop.f32.mrb[0].mxu0
      %1104 = vmatprep.mubr.f32.mxu0 0.0
      %1105 = vmatmul.mubr.f32.gmra.mrb[0].mxu0 %v947
      %v1106 = vpop.f32.mrb[0].mxu0
      %v1107 = vadd.f32 0.0, %v1106
      %v1108 = vpop.f32.mrb[0].mxu0
      %1109 = vmatprep.mubr.f32.mxu0 0.0
      %1110 = vmatmul.mubr.f32.gmra.mrb[0].mxu0 %v948
      %v1111 = vpop.f32.mrb[0].mxu0
      %v1112 = vadd.f32 0.0, %v1111
      %v1113 = vpop.f32.mrb[0].mxu0
      %1114 = vmatprep.mubr.f32.mxu0 0.0
      %1115 = vmatmul.mubr.f32.gmra.mrb[0].mxu0 %v949
      %v1116 = vpop.f32.mrb[0].mxu0
      %v1117 = vadd.f32 0.0, %v1116
      %v1118 = vpop.f32.mrb[0].mxu0
      %1119 = vmatprep.mubr.f32.mxu0 0.0
      %1120 = vmatmul.mubr.f32.gmra.mrb[0].mxu0 %v950
      %v1121 = vpop.f32.mrb[0].mxu0
      %v1122 = vadd.f32 0.0, %v1121
      %v1123 = vpop.f32.mrb[0].mxu0
      %1124 = vmatprep.mubr.f32.mxu0 0.0
      %1125 = vmatmul.mubr.f32.gmra.mrb[0].mxu0 %v951
      %v1126 = vpop.f32.mrb[0].mxu0
      %v1127 = vadd.f32 0.0, %v1126
      %v1128 = vpop.f32.mrb[0].mxu0
      %1129 = vmatprep.mubr.f32.mxu0 0.0
      %1130 = vmatmul.mubr.f32.gmra.mrb[0].mxu0 %v952
      %v1131 = vpop.f32.mrb[0].mxu0
      %v1132 = vadd.f32 0.0, %v1131
      %v1133 = vpop.f32.mrb[0].mxu0
      %1134 = vmatprep.mubr.f32.mxu0 0.0
      %1135 = vmatmul.mubr.f32.gmra.mrb[0].mxu0 %v953
      %v1136 = vpop.f32.mrb[0].mxu0
      %v1137 = vadd.f32 0.0, %v1136
      %v1138 = vpop.f32.mrb[0].mxu0
      %1139 = vmatprep.mubr.f32.mxu0 0.0
      %1140 = vmatmul.mubr.f32.gmra.mrb[0].mxu0 %v954
      %v1141 = vpop.f32.mrb[0].mxu0
      %v1142 = vadd.f32 0.0, %v1141
      %v1143 = vpop.f32.mrb[0].mxu0
      %1144 = vmatprep.mubr.f32.mxu0 0.0
      %1145 = vmatmul.mubr.f32.gmra.mrb[0].mxu0 %v955
      %v1146 = vpop.f32.mrb[0].mxu0
      %v1147 = vadd.f32 0.0, %v1146
      %v1148 = vpop.f32.mrb[0].mxu0
      %1149 = vmatprep.mubr.f32.mxu0 0.0
      %1150 = vmatmul.mubr.f32.gmra.mrb[0].mxu0 %v956
      %v1151 = vpop.f32.mrb[0].mxu0
      %v1152 = vadd.f32 0.0, %v1151
      %v1153 = vpop.f32.mrb[0].mxu0
      %1154 = vmatprep.mubr.f32.mxu0 0.0
      %1155 = vmatmul.mubr.f32.gmra.mrb[0].mxu0 %v957
      %v1156 = vpop.f32.mrb[0].mxu0
      %v1157 = vadd.f32 0.0, %v1156
      %v1158 = vpop.f32.mrb[0].mxu0
      %1159 = vmatprep.mubr.f32.mxu0 0.0
      %1160 = vmatmul.mubr.f32.gmra.mrb[0].mxu0 %v958
      %v1161 = vpop.f32.mrb[0].mxu0
      %v1162 = vadd.f32 0.0, %v1161
      %v1163 = vpop.f32.mrb[0].mxu0
      %1164 = vmatprep.mubr.f32.mxu0 0.0
      %1165 = vmatmul.mubr.f32.gmra.mrb[0].mxu0 %v959
      %v1166 = vpop.f32.mrb[0].mxu0
      %v1167 = vadd.f32 0.0, %v1166
      %v1168 = vpop.f32.mrb[0].mxu0
      %1169 = vmatprep.mubr.f32.mxu0 0.0
      %1170 = vmatmul.mubr.f32.gmra.mrb[0].mxu0 %v960
      %v1171 = vpop.f32.mrb[0].mxu0
      %v1172 = vadd.f32 0.0, %v1171
      %v1173 = vpop.f32.mrb[0].mxu0
      %1174 = vmatprep.mubr.f32.mxu0 0.0
      %1175 = vmatmul.mubr.f32.gmra.mrb[0].mxu0 %v961
      %v1176 = vpop.f32.mrb[0].mxu0
      %v1177 = vadd.f32 0.0, %v1176
      %v1178 = vpop.f32.mrb[0].mxu0
      %1179 = vmatprep.mubr.f32.mxu0 0.0
      %1180 = vmatmul.mubr.f32.gmra.mrb[0].mxu0 %v962
      %v1181 = vpop.f32.mrb[0].mxu0
      %v1182 = vadd.f32 0.0, %v1181
      %v1183 = vpop.f32.mrb[0].mxu0
      %1184 = vmatprep.mubr.f32.mxu0 0.0
      %1185 = vmatmul.mubr.f32.gmra.mrb[0].mxu0 %v963
      %v1186 = vpop.f32.mrb[0].mxu0
      %v1187 = vadd.f32 0.0, %v1186
      %v1188 = vpop.f32.mrb[0].mxu0
      %1189 = vmatprep.mubr.f32.mxu0 0.0
      %1190 = vmatmul.mubr.f32.gmra.mrb[0].mxu0 %v964
      %v1191 = vpop.f32.mrb[0].mxu0
      %v1192 = vadd.f32 0.0, %v1191
      %v1193 = vpop.f32.mrb[0].mxu0
      %1194 = vmatprep.mubr.f32.mxu0 0.0
      %1195 = vmatmul.mubr.f32.gmra.mrb[0].mxu0 %v965
      %v1196 = vpop.f32.mrb[0].mxu0
      %v1197 = vadd.f32 0.0, %v1196
      %v1198 = vpop.f32.mrb[0].mxu0
      %1199 = vmatprep.mubr.f32.mxu0 0.0
      %1200 = vmatmul.mubr.f32.gmra.mrb[0].mxu0 %v966
      %v1201 = vpop.f32.mrb[0].mxu0
      %v1202 = vadd.f32 0.0, %v1201
      %v1203 = vpop.f32.mrb[0].mxu0
      %1204 = vmatprep.mubr.f32.mxu0 0.0
      %1205 = vmatmul.mubr.f32.gmra.mrb[0].mxu0 %v967
      %v1206 = vpop.f32.mrb[0].mxu0
      %v1207 = vadd.f32 0.0, %v1206
      %v1208 = vpop.f32.mrb[0].mxu0
      %1209 = vdwg.mxu0
      %v1210 = vadd.f32 %v778, %v1052
      %v1211 = vadd.f32 %v783, %v1057
      %v1212 = vadd.f32 %v788, %v1062
      %v1213 = vadd.f32 %v793, %v1067
      %v1214 = vadd.f32 %v798, %v1072
      %v1215 = vadd.f32 %v803, %v1077
      %v1216 = vadd.f32 %v808, %v1082
      %v1217 = vadd.f32 %v813, %v1087
      %v1218 = vadd.f32 %v818, %v1092
      %v1219 = vadd.f32 %v823, %v1097
      %v1220 = vadd.f32 %v828, %v1102
      %v1221 = vadd.f32 %v833, %v1107
      %v1222 = vadd.f32 %v838, %v1112
      %v1223 = vadd.f32 %v843, %v1117
      %v1224 = vadd.f32 %v848, %v1122
      %v1225 = vadd.f32 %v853, %v1127
      %v1226 = vadd.f32 %v858, %v1132
      %v1227 = vadd.f32 %v863, %v1137
      %v1228 = vadd.f32 %v868, %v1142
      %v1229 = vadd.f32 %v873, %v1147
      %v1230 = vadd.f32 %v878, %v1152
      %v1231 = vadd.f32 %v883, %v1157
      %v1232 = vadd.f32 %v888, %v1162
      %v1233 = vadd.f32 %v893, %v1167
      %v1234 = vadd.f32 %v898, %v1172
      %v1235 = vadd.f32 %v903, %v1177
      %v1236 = vadd.f32 %v908, %v1182
      %v1237 = vadd.f32 %v913, %v1187
      %v1238 = vadd.f32 %v918, %v1192
      %v1239 = vadd.f32 %v923, %v1197
      %v1240 = vadd.f32 %v928, %v1202
      %v1241 = vadd.f32 %v933, %v1207
      %v1242 = vld [vmem:[%s356] sm:$0xff]
      %v1243 = vld [vmem:[%s356 + $0x8] sm:$0xff]
      %v1244 = vld [vmem:[%s356 + $0x18] sm:$0xff]
      %v1245 = vld [vmem:[%s356 + $0x20] sm:$0xff]
      %v1246 = vld [vmem:[%s356 + $0x30] sm:$0xff]
      %v1247 = vld [vmem:[%s356 + $0x38] sm:$0xff]
      %v1248 = vld [vmem:[%s356 + $0x48] sm:$0xff]
      %v1249 = vld [vmem:[%s356 + $0x50] sm:$0xff]
      %v1250 = vld [vmem:[%s356 + $0x60] sm:$0xff]
      %v1251 = vld [vmem:[%s356 + $0x68] sm:$0xff]
      %v1252 = vld [vmem:[%s356 + $0x78] sm:$0xff]
      %v1253 = vld [vmem:[%s356 + $0x80] sm:$0xff]
      %v1254 = vld [vmem:[%s356 + $0x90] sm:$0xff]
      %v1255 = vld [vmem:[%s356 + $0x98] sm:$0xff]
      %v1256 = vld [vmem:[%s356 + $0xa8] sm:$0xff]
      %v1257 = vld [vmem:[%s356 + $0xb0] sm:$0xff]
      %v1258 = vld [vmem:[%s356 + $0xc0] sm:$0xff]
      %v1259 = vld [vmem:[%s356 + $0xc8] sm:$0xff]
      %v1260 = vld [vmem:[%s356 + $0xd8] sm:$0xff]
      %v1261 = vld [vmem:[%s356 + $0xe0] sm:$0xff]
      %v1262 = vld [vmem:[%s356 + $0xf0] sm:$0xff]
      %v1263 = vld [vmem:[%s356 + $0xf8] sm:$0xff]
      %v1264 = vld [vmem:[%s356 + $0x108] sm:$0xff]
      %v1265 = vld [vmem:[%s356 + $0x110] sm:$0xff]
      %v1266 = vld [vmem:[%s356 + $0x120] sm:$0xff]
      %v1267 = vld [vmem:[%s356 + $0x128] sm:$0xff]
      %v1268 = vld [vmem:[%s356 + $0x138] sm:$0xff]
      %v1269 = vld [vmem:[%s356 + $0x140] sm:$0xff]
      %v1270 = vld [vmem:[%s356 + $0x150] sm:$0xff]
      %v1271 = vld [vmem:[%s356 + $0x158] sm:$0xff]
      %v1272 = vld [vmem:[%s356 + $0x168] sm:$0xff]
      %v1273 = vld [vmem:[%s356 + $0x170] sm:$0xff]
      %s1274 = scalar_lea.vmem %s265, 384
      %v1275 = vld [vmem:[%s1274] sm:$0xff]
      %v1276 = vld [vmem:[%s1274 + $0x8] sm:$0xff]
      %v1277 = vld [vmem:[%s1274 + $0x10] sm:$0xff]
      %v1278 = vld [vmem:[%s1274 + $0x18] sm:$0xff]
      %v1279 = vld [vmem:[%s1274 + $0x20] sm:$0xff]
      %v1280 = vld [vmem:[%s1274 + $0x28] sm:$0xff]
      %v1281 = vld [vmem:[%s1274 + $0x30] sm:$0xff]
      %v1282 = vld [vmem:[%s1274 + $0x38] sm:$0xff]
      %v1283 = vld [vmem:[%s1274 + $0x40] sm:$0xff]
      %v1284 = vld [vmem:[%s1274 + $0x48] sm:$0xff]
      %v1285 = vld [vmem:[%s1274 + $0x50] sm:$0xff]
      %v1286 = vld [vmem:[%s1274 + $0x58] sm:$0xff]
      %v1287 = vld [vmem:[%s1274 + $0x60] sm:$0xff]
      %v1288 = vld [vmem:[%s1274 + $0x68] sm:$0xff]
      %v1289 = vld [vmem:[%s1274 + $0x70] sm:$0xff]
      %v1290 = vld [vmem:[%s1274 + $0x78] sm:$0xff]
      %1291 = vmatprep.subr.mxu0 0.0
      %1292 = vmatpush1.msra.mxu0 %v1275
      %1293 = vmatprep.subr.mxu0 0.0
      %1294 = vmatpush1.msra.mxu0 %v1276
      %1295 = vmatprep.subr.mxu0 0.0
      %1296 = vmatpush1.msra.mxu0 %v1277
      %1297 = vmatprep.subr.mxu0 0.0
      %1298 = vmatpush1.msra.mxu0 %v1278
      %1299 = vmatprep.subr.mxu0 0.0
      %1300 = vmatpush1.msra.mxu0 %v1279
      %1301 = vmatprep.subr.mxu0 0.0
      %1302 = vmatpush1.msra.mxu0 %v1280
      %1303 = vmatprep.subr.mxu0 0.0
      %1304 = vmatpush1.msra.mxu0 %v1281
      %1305 = vmatprep.subr.mxu0 0.0
      %1306 = vmatpush1.msra.mxu0 %v1282
      %1307 = vmatprep.subr.mxu0 0.0
      %1308 = vmatpush1.msra.mxu0 %v1283
      %1309 = vmatprep.subr.mxu0 0.0
      %1310 = vmatpush1.msra.mxu0 %v1284
      %1311 = vmatprep.subr.mxu0 0.0
      %1312 = vmatpush1.msra.mxu0 %v1285
      %1313 = vmatprep.subr.mxu0 0.0
      %1314 = vmatpush1.msra.mxu0 %v1286
      %1315 = vmatprep.subr.mxu0 0.0
      %1316 = vmatpush1.msra.mxu0 %v1287
      %1317 = vmatprep.subr.mxu0 0.0
      %1318 = vmatpush1.msra.mxu0 %v1288
      %1319 = vmatprep.subr.mxu0 0.0
      %1320 = vmatpush1.msra.mxu0 %v1289
      %1321 = vmatprep.subr.mxu0 0.0
      %1322 = vmatpush1.msra.mxu0 %v1290
      %1323 = vmatprep.subr.mxu0 0.0
      %1324 = vmatpush1.msra.mxu0 0.0
      %1325 = vmatprep.subr.mxu0 0.0
      %1326 = vmatpush1.msra.mxu0 0.0
      %1327 = vmatprep.subr.mxu0 0.0
      %1328 = vmatpush1.msra.mxu0 0.0
      %1329 = vmatprep.subr.mxu0 0.0
      %1330 = vmatpush1.msra.mxu0 0.0
      %1331 = vmatprep.subr.mxu0 0.0
      %1332 = vmatpush1.msra.mxu0 0.0
      %1333 = vmatprep.subr.mxu0 0.0
      %1334 = vmatpush1.msra.mxu0 0.0
      %1335 = vmatprep.subr.mxu0 0.0
      %1336 = vmatpush1.msra.mxu0 0.0
      %1337 = vmatprep.subr.mxu0 0.0
      %1338 = vmatpush1.msra.mxu0 0.0
      %1339 = vmatprep.subr.mxu0 0.0
      %1340 = vmatpush1.msra.mxu0 0.0
      %1341 = vmatprep.subr.mxu0 0.0
      %1342 = vmatpush1.msra.mxu0 0.0
      %1343 = vmatprep.subr.mxu0 0.0
      %1344 = vmatpush1.msra.mxu0 0.0
      %1345 = vmatprep.subr.mxu0 0.0
      %1346 = vmatpush1.msra.mxu0 0.0
      %1347 = vmatprep.subr.mxu0 0.0
      %1348 = vmatpush1.msra.mxu0 0.0
      %1349 = vmatprep.subr.mxu0 0.0
      %1350 = vmatpush1.msra.mxu0 0.0
      %1351 = vmatprep.subr.mxu0 0.0
      %1352 = vmatpush1.msra.mxu0 0.0
      %1353 = vmatprep.subr.mxu0 0.0
      %1354 = vmatpush1.msra.mxu0 0.0
      %1355 = vmatprep.mubr.f32.mxu0 0.0
      %1356 = vmatmul.mubr.f32.gmra.mrb[0].mxu0 %v1242
      %v1357 = vpop.f32.mrb[0].mxu0
      %v1358 = vadd.f32 0.0, %v1357
      %v1359 = vpop.f32.mrb[0].mxu0
      %1360 = vmatprep.mubr.f32.mxu0 0.0
      %1361 = vmatmul.mubr.f32.gmra.mrb[0].mxu0 %v1243
      %v1362 = vpop.f32.mrb[0].mxu0
      %v1363 = vadd.f32 0.0, %v1362
      %v1364 = vpop.f32.mrb[0].mxu0
      %1365 = vmatprep.mubr.f32.mxu0 0.0
      %1366 = vmatmul.mubr.f32.gmra.mrb[0].mxu0 %v1244
      %v1367 = vpop.f32.mrb[0].mxu0
      %v1368 = vadd.f32 0.0, %v1367
      %v1369 = vpop.f32.mrb[0].mxu0
      %1370 = vmatprep.mubr.f32.mxu0 0.0
      %1371 = vmatmul.mubr.f32.gmra.mrb[0].mxu0 %v1245
      %v1372 = vpop.f32.mrb[0].mxu0
      %v1373 = vadd.f32 0.0, %v1372
      %v1374 = vpop.f32.mrb[0].mxu0
      %1375 = vmatprep.mubr.f32.mxu0 0.0
      %1376 = vmatmul.mubr.f32.gmra.mrb[0].mxu0 %v1246
      %v1377 = vpop.f32.mrb[0].mxu0
      %v1378 = vadd.f32 0.0, %v1377
      %v1379 = vpop.f32.mrb[0].mxu0
      %1380 = vmatprep.mubr.f32.mxu0 0.0
      %1381 = vmatmul.mubr.f32.gmra.mrb[0].mxu0 %v1247
      %v1382 = vpop.f32.mrb[0].mxu0
      %v1383 = vadd.f32 0.0, %v1382
      %v1384 = vpop.f32.mrb[0].mxu0
      %1385 = vmatprep.mubr.f32.mxu0 0.0
      %1386 = vmatmul.mubr.f32.gmra.mrb[0].mxu0 %v1248
      %v1387 = vpop.f32.mrb[0].mxu0
      %v1388 = vadd.f32 0.0, %v1387
      %v1389 = vpop.f32.mrb[0].mxu0
      %1390 = vmatprep.mubr.f32.mxu0 0.0
      %1391 = vmatmul.mubr.f32.gmra.mrb[0].mxu0 %v1249
      %v1392 = vpop.f32.mrb[0].mxu0
      %v1393 = vadd.f32 0.0, %v1392
      %v1394 = vpop.f32.mrb[0].mxu0
      %1395 = vmatprep.mubr.f32.mxu0 0.0
      %1396 = vmatmul.mubr.f32.gmra.mrb[0].mxu0 %v1250
      %v1397 = vpop.f32.mrb[0].mxu0
      %v1398 = vadd.f32 0.0, %v1397
      %v1399 = vpop.f32.mrb[0].mxu0
      %1400 = vmatprep.mubr.f32.mxu0 0.0
      %1401 = vmatmul.mubr.f32.gmra.mrb[0].mxu0 %v1251
      %v1402 = vpop.f32.mrb[0].mxu0
      %v1403 = vadd.f32 0.0, %v1402
      %v1404 = vpop.f32.mrb[0].mxu0
      %1405 = vmatprep.mubr.f32.mxu0 0.0
      %1406 = vmatmul.mubr.f32.gmra.mrb[0].mxu0 %v1252
      %v1407 = vpop.f32.mrb[0].mxu0
      %v1408 = vadd.f32 0.0, %v1407
      %v1409 = vpop.f32.mrb[0].mxu0
      %1410 = vmatprep.mubr.f32.mxu0 0.0
      %1411 = vmatmul.mubr.f32.gmra.mrb[0].mxu0 %v1253
      %v1412 = vpop.f32.mrb[0].mxu0
      %v1413 = vadd.f32 0.0, %v1412
      %v1414 = vpop.f32.mrb[0].mxu0
      %1415 = vmatprep.mubr.f32.mxu0 0.0
      %1416 = vmatmul.mubr.f32.gmra.mrb[0].mxu0 %v1254
      %v1417 = vpop.f32.mrb[0].mxu0
      %v1418 = vadd.f32 0.0, %v1417
      %v1419 = vpop.f32.mrb[0].mxu0
      %1420 = vmatprep.mubr.f32.mxu0 0.0
      %1421 = vmatmul.mubr.f32.gmra.mrb[0].mxu0 %v1255
      %v1422 = vpop.f32.mrb[0].mxu0
      %v1423 = vadd.f32 0.0, %v1422
      %v1424 = vpop.f32.mrb[0].mxu0
      %1425 = vmatprep.mubr.f32.mxu0 0.0
      %1426 = vmatmul.mubr.f32.gmra.mrb[0].mxu0 %v1256
      %v1427 = vpop.f32.mrb[0].mxu0
      %v1428 = vadd.f32 0.0, %v1427
      %v1429 = vpop.f32.mrb[0].mxu0
      %1430 = vmatprep.mubr.f32.mxu0 0.0
      %1431 = vmatmul.mubr.f32.gmra.mrb[0].mxu0 %v1257
      %v1432 = vpop.f32.mrb[0].mxu0
      %v1433 = vadd.f32 0.0, %v1432
      %v1434 = vpop.f32.mrb[0].mxu0
      %1435 = vmatprep.mubr.f32.mxu0 0.0
      %1436 = vmatmul.mubr.f32.gmra.mrb[0].mxu0 %v1258
      %v1437 = vpop.f32.mrb[0].mxu0
      %v1438 = vadd.f32 0.0, %v1437
      %v1439 = vpop.f32.mrb[0].mxu0
      %1440 = vmatprep.mubr.f32.mxu0 0.0
      %1441 = vmatmul.mubr.f32.gmra.mrb[0].mxu0 %v1259
      %v1442 = vpop.f32.mrb[0].mxu0
      %v1443 = vadd.f32 0.0, %v1442
      %v1444 = vpop.f32.mrb[0].mxu0
      %1445 = vmatprep.mubr.f32.mxu0 0.0
      %1446 = vmatmul.mubr.f32.gmra.mrb[0].mxu0 %v1260
      %v1447 = vpop.f32.mrb[0].mxu0
      %v1448 = vadd.f32 0.0, %v1447
      %v1449 = vpop.f32.mrb[0].mxu0
      %1450 = vmatprep.mubr.f32.mxu0 0.0
      %1451 = vmatmul.mubr.f32.gmra.mrb[0].mxu0 %v1261
      %v1452 = vpop.f32.mrb[0].mxu0
      %v1453 = vadd.f32 0.0, %v1452
      %v1454 = vpop.f32.mrb[0].mxu0
      %1455 = vmatprep.mubr.f32.mxu0 0.0
      %1456 = vmatmul.mubr.f32.gmra.mrb[0].mxu0 %v1262
      %v1457 = vpop.f32.mrb[0].mxu0
      %v1458 = vadd.f32 0.0, %v1457
      %v1459 = vpop.f32.mrb[0].mxu0
      %1460 = vmatprep.mubr.f32.mxu0 0.0
      %1461 = vmatmul.mubr.f32.gmra.mrb[0].mxu0 %v1263
      %v1462 = vpop.f32.mrb[0].mxu0
      %v1463 = vadd.f32 0.0, %v1462
      %v1464 = vpop.f32.mrb[0].mxu0
      %1465 = vmatprep.mubr.f32.mxu0 0.0
      %1466 = vmatmul.mubr.f32.gmra.mrb[0].mxu0 %v1264
      %v1467 = vpop.f32.mrb[0].mxu0
      %v1468 = vadd.f32 0.0, %v1467
      %v1469 = vpop.f32.mrb[0].mxu0
      %1470 = vmatprep.mubr.f32.mxu0 0.0
      %1471 = vmatmul.mubr.f32.gmra.mrb[0].mxu0 %v1265
      %v1472 = vpop.f32.mrb[0].mxu0
      %v1473 = vadd.f32 0.0, %v1472
      %v1474 = vpop.f32.mrb[0].mxu0
      %1475 = vmatprep.mubr.f32.mxu0 0.0
      %1476 = vmatmul.mubr.f32.gmra.mrb[0].mxu0 %v1266
      %v1477 = vpop.f32.mrb[0].mxu0
      %v1478 = vadd.f32 0.0, %v1477
      %v1479 = vpop.f32.mrb[0].mxu0
      %1480 = vmatprep.mubr.f32.mxu0 0.0
      %1481 = vmatmul.mubr.f32.gmra.mrb[0].mxu0 %v1267
      %v1482 = vpop.f32.mrb[0].mxu0
      %v1483 = vadd.f32 0.0, %v1482
      %v1484 = vpop.f32.mrb[0].mxu0
      %1485 = vmatprep.mubr.f32.mxu0 0.0
      %1486 = vmatmul.mubr.f32.gmra.mrb[0].mxu0 %v1268
      %v1487 = vpop.f32.mrb[0].mxu0
      %v1488 = vadd.f32 0.0, %v1487
      %v1489 = vpop.f32.mrb[0].mxu0
      %1490 = vmatprep.mubr.f32.mxu0 0.0
      %1491 = vmatmul.mubr.f32.gmra.mrb[0].mxu0 %v1269
      %v1492 = vpop.f32.mrb[0].mxu0
      %v1493 = vadd.f32 0.0, %v1492
      %v1494 = vpop.f32.mrb[0].mxu0
      %1495 = vmatprep.mubr.f32.mxu0 0.0
      %1496 = vmatmul.mubr.f32.gmra.mrb[0].mxu0 %v1270
      %v1497 = vpop.f32.mrb[0].mxu0
      %v1498 = vadd.f32 0.0, %v1497
      %v1499 = vpop.f32.mrb[0].mxu0
      %1500 = vmatprep.mubr.f32.mxu0 0.0
      %1501 = vmatmul.mubr.f32.gmra.mrb[0].mxu0 %v1271
      %v1502 = vpop.f32.mrb[0].mxu0
      %v1503 = vadd.f32 0.0, %v1502
      %v1504 = vpop.f32.mrb[0].mxu0
      %1505 = vmatprep.mubr.f32.mxu0 0.0
      %1506 = vmatmul.mubr.f32.gmra.mrb[0].mxu0 %v1272
      %v1507 = vpop.f32.mrb[0].mxu0
      %v1508 = vadd.f32 0.0, %v1507
      %v1509 = vpop.f32.mrb[0].mxu0
      %1510 = vmatprep.mubr.f32.mxu0 0.0
      %1511 = vmatmul.mubr.f32.gmra.mrb[0].mxu0 %v1273
      %v1512 = vpop.f32.mrb[0].mxu0
      %v1513 = vadd.f32 0.0, %v1512
      %v1514 = vpop.f32.mrb[0].mxu0
      %1515 = vdwg.mxu0
      %v1516 = vadd.f32 %v1210, %v1358
      %v1517 = vadd.f32 %v1211, %v1363
      %v1518 = vadd.f32 %v1212, %v1368
      %v1519 = vadd.f32 %v1213, %v1373
      %v1520 = vadd.f32 %v1214, %v1378
      %v1521 = vadd.f32 %v1215, %v1383
      %v1522 = vadd.f32 %v1216, %v1388
      %v1523 = vadd.f32 %v1217, %v1393
      %v1524 = vadd.f32 %v1218, %v1398
      %v1525 = vadd.f32 %v1219, %v1403
      %v1526 = vadd.f32 %v1220, %v1408
      %v1527 = vadd.f32 %v1221, %v1413
      %v1528 = vadd.f32 %v1222, %v1418
      %v1529 = vadd.f32 %v1223, %v1423
      %v1530 = vadd.f32 %v1224, %v1428
      %v1531 = vadd.f32 %v1225, %v1433
      %v1532 = vadd.f32 %v1226, %v1438
      %v1533 = vadd.f32 %v1227, %v1443
      %v1534 = vadd.f32 %v1228, %v1448
      %v1535 = vadd.f32 %v1229, %v1453
      %v1536 = vadd.f32 %v1230, %v1458
      %v1537 = vadd.f32 %v1231, %v1463
      %v1538 = vadd.f32 %v1232, %v1468
      %v1539 = vadd.f32 %v1233, %v1473
      %v1540 = vadd.f32 %v1234, %v1478
      %v1541 = vadd.f32 %v1235, %v1483
      %v1542 = vadd.f32 %v1236, %v1488
      %v1543 = vadd.f32 %v1237, %v1493
      %v1544 = vadd.f32 %v1238, %v1498
      %v1545 = vadd.f32 %v1239, %v1503
      %v1546 = vadd.f32 %v1240, %v1508
      %v1547 = vadd.f32 %v1241, %v1513
      %v1548 = vld [vmem:[%s356 + $0x1] sm:$0xff]
      %v1549 = vld [vmem:[%s356 + $0x9] sm:$0xff]
      %v1550 = vld [vmem:[%s356 + $0x19] sm:$0xff]
      %v1551 = vld [vmem:[%s356 + $0x21] sm:$0xff]
      %v1552 = vld [vmem:[%s356 + $0x31] sm:$0xff]
      %v1553 = vld [vmem:[%s356 + $0x39] sm:$0xff]
      %v1554 = vld [vmem:[%s356 + $0x49] sm:$0xff]
      %v1555 = vld [vmem:[%s356 + $0x51] sm:$0xff]
      %v1556 = vld [vmem:[%s356 + $0x61] sm:$0xff]
      %v1557 = vld [vmem:[%s356 + $0x69] sm:$0xff]
      %v1558 = vld [vmem:[%s356 + $0x79] sm:$0xff]
      %v1559 = vld [vmem:[%s356 + $0x81] sm:$0xff]
      %v1560 = vld [vmem:[%s356 + $0x91] sm:$0xff]
      %v1561 = vld [vmem:[%s356 + $0x99] sm:$0xff]
      %v1562 = vld [vmem:[%s356 + $0xa9] sm:$0xff]
      %v1563 = vld [vmem:[%s356 + $0xb1] sm:$0xff]
      %v1564 = vld [vmem:[%s356 + $0xc1] sm:$0xff]
      %v1565 = vld [vmem:[%s356 + $0xc9] sm:$0xff]
      %v1566 = vld [vmem:[%s356 + $0xd9] sm:$0xff]
      %v1567 = vld [vmem:[%s356 + $0xe1] sm:$0xff]
      %v1568 = vld [vmem:[%s356 + $0xf1] sm:$0xff]
      %v1569 = vld [vmem:[%s356 + $0xf9] sm:$0xff]
      %v1570 = vld [vmem:[%s356 + $0x109] sm:$0xff]
      %v1571 = vld [vmem:[%s356 + $0x111] sm:$0xff]
      %v1572 = vld [vmem:[%s356 + $0x121] sm:$0xff]
      %v1573 = vld [vmem:[%s356 + $0x129] sm:$0xff]
      %v1574 = vld [vmem:[%s356 + $0x139] sm:$0xff]
      %v1575 = vld [vmem:[%s356 + $0x141] sm:$0xff]
      %v1576 = vld [vmem:[%s356 + $0x151] sm:$0xff]
      %v1577 = vld [vmem:[%s356 + $0x159] sm:$0xff]
      %v1578 = vld [vmem:[%s356 + $0x169] sm:$0xff]
      %v1579 = vld [vmem:[%s356 + $0x171] sm:$0xff]
      %s1580 = scalar_lea.vmem %s265, 512
      %v1581 = vld [vmem:[%s1580] sm:$0xff]
      %v1582 = vld [vmem:[%s1580 + $0x8] sm:$0xff]
      %v1583 = vld [vmem:[%s1580 + $0x10] sm:$0xff]
      %v1584 = vld [vmem:[%s1580 + $0x18] sm:$0xff]
      %v1585 = vld [vmem:[%s1580 + $0x20] sm:$0xff]
      %v1586 = vld [vmem:[%s1580 + $0x28] sm:$0xff]
      %v1587 = vld [vmem:[%s1580 + $0x30] sm:$0xff]
      %v1588 = vld [vmem:[%s1580 + $0x38] sm:$0xff]
      %v1589 = vld [vmem:[%s1580 + $0x40] sm:$0xff]
      %v1590 = vld [vmem:[%s1580 + $0x48] sm:$0xff]
      %v1591 = vld [vmem:[%s1580 + $0x50] sm:$0xff]
      %v1592 = vld [vmem:[%s1580 + $0x58] sm:$0xff]
      %v1593 = vld [vmem:[%s1580 + $0x60] sm:$0xff]
      %v1594 = vld [vmem:[%s1580 + $0x68] sm:$0xff]
      %v1595 = vld [vmem:[%s1580 + $0x70] sm:$0xff]
      %v1596 = vld [vmem:[%s1580 + $0x78] sm:$0xff]
      %1597 = vmatprep.subr.mxu0 0.0
      %1598 = vmatpush1.msra.mxu0 %v1581
      %1599 = vmatprep.subr.mxu0 0.0
      %1600 = vmatpush1.msra.mxu0 %v1582
      %1601 = vmatprep.subr.mxu0 0.0
      %1602 = vmatpush1.msra.mxu0 %v1583
      %1603 = vmatprep.subr.mxu0 0.0
      %1604 = vmatpush1.msra.mxu0 %v1584
      %1605 = vmatprep.subr.mxu0 0.0
      %1606 = vmatpush1.msra.mxu0 %v1585
      %1607 = vmatprep.subr.mxu0 0.0
      %1608 = vmatpush1.msra.mxu0 %v1586
      %1609 = vmatprep.subr.mxu0 0.0
      %1610 = vmatpush1.msra.mxu0 %v1587
      %1611 = vmatprep.subr.mxu0 0.0
      %1612 = vmatpush1.msra.mxu0 %v1588
      %1613 = vmatprep.subr.mxu0 0.0
      %1614 = vmatpush1.msra.mxu0 %v1589
      %1615 = vmatprep.subr.mxu0 0.0
      %1616 = vmatpush1.msra.mxu0 %v1590
      %1617 = vmatprep.subr.mxu0 0.0
      %1618 = vmatpush1.msra.mxu0 %v1591
      %1619 = vmatprep.subr.mxu0 0.0
      %1620 = vmatpush1.msra.mxu0 %v1592
      %1621 = vmatprep.subr.mxu0 0.0
      %1622 = vmatpush1.msra.mxu0 %v1593
      %1623 = vmatprep.subr.mxu0 0.0
      %1624 = vmatpush1.msra.mxu0 %v1594
      %1625 = vmatprep.subr.mxu0 0.0
      %1626 = vmatpush1.msra.mxu0 %v1595
      %1627 = vmatprep.subr.mxu0 0.0
      %1628 = vmatpush1.msra.mxu0 %v1596
      %1629 = vmatprep.subr.mxu0 0.0
      %1630 = vmatpush1.msra.mxu0 0.0
      %1631 = vmatprep.subr.mxu0 0.0
      %1632 = vmatpush1.msra.mxu0 0.0
      %1633 = vmatprep.subr.mxu0 0.0
      %1634 = vmatpush1.msra.mxu0 0.0
      %1635 = vmatprep.subr.mxu0 0.0
      %1636 = vmatpush1.msra.mxu0 0.0
      %1637 = vmatprep.subr.mxu0 0.0
      %1638 = vmatpush1.msra.mxu0 0.0
      %1639 = vmatprep.subr.mxu0 0.0
      %1640 = vmatpush1.msra.mxu0 0.0
      %1641 = vmatprep.subr.mxu0 0.0
      %1642 = vmatpush1.msra.mxu0 0.0
      %1643 = vmatprep.subr.mxu0 0.0
      %1644 = vmatpush1.msra.mxu0 0.0
      %1645 = vmatprep.subr.mxu0 0.0
      %1646 = vmatpush1.msra.mxu0 0.0
      %1647 = vmatprep.subr.mxu0 0.0
      %1648 = vmatpush1.msra.mxu0 0.0
      %1649 = vmatprep.subr.mxu0 0.0
      %1650 = vmatpush1.msra.mxu0 0.0
      %1651 = vmatprep.subr.mxu0 0.0
      %1652 = vmatpush1.msra.mxu0 0.0
      %1653 = vmatprep.subr.mxu0 0.0
      %1654 = vmatpush1.msra.mxu0 0.0
      %1655 = vmatprep.subr.mxu0 0.0
      %1656 = vmatpush1.msra.mxu0 0.0
      %1657 = vmatprep.subr.mxu0 0.0
      %1658 = vmatpush1.msra.mxu0 0.0
      %1659 = vmatprep.subr.mxu0 0.0
      %1660 = vmatpush1.msra.mxu0 0.0
      %1661 = vmatprep.mubr.f32.mxu0 0.0
      %1662 = vmatmul.mubr.f32.gmra.mrb[0].mxu0 %v1548
      %v1663 = vpop.f32.mrb[0].mxu0
      %v1664 = vadd.f32 0.0, %v1663
      %v1665 = vpop.f32.mrb[0].mxu0
      %1666 = vmatprep.mubr.f32.mxu0 0.0
      %1667 = vmatmul.mubr.f32.gmra.mrb[0].mxu0 %v1549
      %v1668 = vpop.f32.mrb[0].mxu0
      %v1669 = vadd.f32 0.0, %v1668
      %v1670 = vpop.f32.mrb[0].mxu0
      %1671 = vmatprep.mubr.f32.mxu0 0.0
      %1672 = vmatmul.mubr.f32.gmra.mrb[0].mxu0 %v1550
      %v1673 = vpop.f32.mrb[0].mxu0
      %v1674 = vadd.f32 0.0, %v1673
      %v1675 = vpop.f32.mrb[0].mxu0
      %1676 = vmatprep.mubr.f32.mxu0 0.0
      %1677 = vmatmul.mubr.f32.gmra.mrb[0].mxu0 %v1551
      %v1678 = vpop.f32.mrb[0].mxu0
      %v1679 = vadd.f32 0.0, %v1678
      %v1680 = vpop.f32.mrb[0].mxu0
      %1681 = vmatprep.mubr.f32.mxu0 0.0
      %1682 = vmatmul.mubr.f32.gmra.mrb[0].mxu0 %v1552
      %v1683 = vpop.f32.mrb[0].mxu0
      %v1684 = vadd.f32 0.0, %v1683
      %v1685 = vpop.f32.mrb[0].mxu0
      %1686 = vmatprep.mubr.f32.mxu0 0.0
      %1687 = vmatmul.mubr.f32.gmra.mrb[0].mxu0 %v1553
      %v1688 = vpop.f32.mrb[0].mxu0
      %v1689 = vadd.f32 0.0, %v1688
      %v1690 = vpop.f32.mrb[0].mxu0
      %1691 = vmatprep.mubr.f32.mxu0 0.0
      %1692 = vmatmul.mubr.f32.gmra.mrb[0].mxu0 %v1554
      %v1693 = vpop.f32.mrb[0].mxu0
      %v1694 = vadd.f32 0.0, %v1693
      %v1695 = vpop.f32.mrb[0].mxu0
      %1696 = vmatprep.mubr.f32.mxu0 0.0
      %1697 = vmatmul.mubr.f32.gmra.mrb[0].mxu0 %v1555
      %v1698 = vpop.f32.mrb[0].mxu0
      %v1699 = vadd.f32 0.0, %v1698
      %v1700 = vpop.f32.mrb[0].mxu0
      %1701 = vmatprep.mubr.f32.mxu0 0.0
      %1702 = vmatmul.mubr.f32.gmra.mrb[0].mxu0 %v1556
      %v1703 = vpop.f32.mrb[0].mxu0
      %v1704 = vadd.f32 0.0, %v1703
      %v1705 = vpop.f32.mrb[0].mxu0
      %1706 = vmatprep.mubr.f32.mxu0 0.0
      %1707 = vmatmul.mubr.f32.gmra.mrb[0].mxu0 %v1557
      %v1708 = vpop.f32.mrb[0].mxu0
      %v1709 = vadd.f32 0.0, %v1708
      %v1710 = vpop.f32.mrb[0].mxu0
      %1711 = vmatprep.mubr.f32.mxu0 0.0
      %1712 = vmatmul.mubr.f32.gmra.mrb[0].mxu0 %v1558
      %v1713 = vpop.f32.mrb[0].mxu0
      %v1714 = vadd.f32 0.0, %v1713
      %v1715 = vpop.f32.mrb[0].mxu0
      %1716 = vmatprep.mubr.f32.mxu0 0.0
      %1717 = vmatmul.mubr.f32.gmra.mrb[0].mxu0 %v1559
      %v1718 = vpop.f32.mrb[0].mxu0
      %v1719 = vadd.f32 0.0, %v1718
      %v1720 = vpop.f32.mrb[0].mxu0
      %1721 = vmatprep.mubr.f32.mxu0 0.0
      %1722 = vmatmul.mubr.f32.gmra.mrb[0].mxu0 %v1560
      %v1723 = vpop.f32.mrb[0].mxu0
      %v1724 = vadd.f32 0.0, %v1723
      %v1725 = vpop.f32.mrb[0].mxu0
      %1726 = vmatprep.mubr.f32.mxu0 0.0
      %1727 = vmatmul.mubr.f32.gmra.mrb[0].mxu0 %v1561
      %v1728 = vpop.f32.mrb[0].mxu0
      %v1729 = vadd.f32 0.0, %v1728
      %v1730 = vpop.f32.mrb[0].mxu0
      %1731 = vmatprep.mubr.f32.mxu0 0.0
      %1732 = vmatmul.mubr.f32.gmra.mrb[0].mxu0 %v1562
      %v1733 = vpop.f32.mrb[0].mxu0
      %v1734 = vadd.f32 0.0, %v1733
      %v1735 = vpop.f32.mrb[0].mxu0
      %1736 = vmatprep.mubr.f32.mxu0 0.0
      %1737 = vmatmul.mubr.f32.gmra.mrb[0].mxu0 %v1563
      %v1738 = vpop.f32.mrb[0].mxu0
      %v1739 = vadd.f32 0.0, %v1738
      %v1740 = vpop.f32.mrb[0].mxu0
      %1741 = vmatprep.mubr.f32.mxu0 0.0
      %1742 = vmatmul.mubr.f32.gmra.mrb[0].mxu0 %v1564
      %v1743 = vpop.f32.mrb[0].mxu0
      %v1744 = vadd.f32 0.0, %v1743
      %v1745 = vpop.f32.mrb[0].mxu0
      %1746 = vmatprep.mubr.f32.mxu0 0.0
      %1747 = vmatmul.mubr.f32.gmra.mrb[0].mxu0 %v1565
      %v1748 = vpop.f32.mrb[0].mxu0
      %v1749 = vadd.f32 0.0, %v1748
      %v1750 = vpop.f32.mrb[0].mxu0
      %1751 = vmatprep.mubr.f32.mxu0 0.0
      %1752 = vmatmul.mubr.f32.gmra.mrb[0].mxu0 %v1566
      %v1753 = vpop.f32.mrb[0].mxu0
      %v1754 = vadd.f32 0.0, %v1753
      %v1755 = vpop.f32.mrb[0].mxu0
      %1756 = vmatprep.mubr.f32.mxu0 0.0
      %1757 = vmatmul.mubr.f32.gmra.mrb[0].mxu0 %v1567
      %v1758 = vpop.f32.mrb[0].mxu0
      %v1759 = vadd.f32 0.0, %v1758
      %v1760 = vpop.f32.mrb[0].mxu0
      %1761 = vmatprep.mubr.f32.mxu0 0.0
      %1762 = vmatmul.mubr.f32.gmra.mrb[0].mxu0 %v1568
      %v1763 = vpop.f32.mrb[0].mxu0
      %v1764 = vadd.f32 0.0, %v1763
      %v1765 = vpop.f32.mrb[0].mxu0
      %1766 = vmatprep.mubr.f32.mxu0 0.0
      %1767 = vmatmul.mubr.f32.gmra.mrb[0].mxu0 %v1569
      %v1768 = vpop.f32.mrb[0].mxu0
      %v1769 = vadd.f32 0.0, %v1768
      %v1770 = vpop.f32.mrb[0].mxu0
      %1771 = vmatprep.mubr.f32.mxu0 0.0
      %1772 = vmatmul.mubr.f32.gmra.mrb[0].mxu0 %v1570
      %v1773 = vpop.f32.mrb[0].mxu0
      %v1774 = vadd.f32 0.0, %v1773
      %v1775 = vpop.f32.mrb[0].mxu0
      %1776 = vmatprep.mubr.f32.mxu0 0.0
      %1777 = vmatmul.mubr.f32.gmra.mrb[0].mxu0 %v1571
      %v1778 = vpop.f32.mrb[0].mxu0
      %v1779 = vadd.f32 0.0, %v1778
      %v1780 = vpop.f32.mrb[0].mxu0
      %1781 = vmatprep.mubr.f32.mxu0 0.0
      %1782 = vmatmul.mubr.f32.gmra.mrb[0].mxu0 %v1572
      %v1783 = vpop.f32.mrb[0].mxu0
      %v1784 = vadd.f32 0.0, %v1783
      %v1785 = vpop.f32.mrb[0].mxu0
      %1786 = vmatprep.mubr.f32.mxu0 0.0
      %1787 = vmatmul.mubr.f32.gmra.mrb[0].mxu0 %v1573
      %v1788 = vpop.f32.mrb[0].mxu0
      %v1789 = vadd.f32 0.0, %v1788
      %v1790 = vpop.f32.mrb[0].mxu0
      %1791 = vmatprep.mubr.f32.mxu0 0.0
      %1792 = vmatmul.mubr.f32.gmra.mrb[0].mxu0 %v1574
      %v1793 = vpop.f32.mrb[0].mxu0
      %v1794 = vadd.f32 0.0, %v1793
      %v1795 = vpop.f32.mrb[0].mxu0
      %1796 = vmatprep.mubr.f32.mxu0 0.0
      %1797 = vmatmul.mubr.f32.gmra.mrb[0].mxu0 %v1575
      %v1798 = vpop.f32.mrb[0].mxu0
      %v1799 = vadd.f32 0.0, %v1798
      %v1800 = vpop.f32.mrb[0].mxu0
      %1801 = vmatprep.mubr.f32.mxu0 0.0
      %1802 = vmatmul.mubr.f32.gmra.mrb[0].mxu0 %v1576
      %v1803 = vpop.f32.mrb[0].mxu0
      %v1804 = vadd.f32 0.0, %v1803
      %v1805 = vpop.f32.mrb[0].mxu0
      %1806 = vmatprep.mubr.f32.mxu0 0.0
      %1807 = vmatmul.mubr.f32.gmra.mrb[0].mxu0 %v1577
      %v1808 = vpop.f32.mrb[0].mxu0
      %v1809 = vadd.f32 0.0, %v1808
      %v1810 = vpop.f32.mrb[0].mxu0
      %1811 = vmatprep.mubr.f32.mxu0 0.0
      %1812 = vmatmul.mubr.f32.gmra.mrb[0].mxu0 %v1578
      %v1813 = vpop.f32.mrb[0].mxu0
      %v1814 = vadd.f32 0.0, %v1813
      %v1815 = vpop.f32.mrb[0].mxu0
      %1816 = vmatprep.mubr.f32.mxu0 0.0
      %1817 = vmatmul.mubr.f32.gmra.mrb[0].mxu0 %v1579
      %v1818 = vpop.f32.mrb[0].mxu0
      %v1819 = vadd.f32 0.0, %v1818
      %v1820 = vpop.f32.mrb[0].mxu0
      %1821 = vdwg.mxu0
      %v1822 = vadd.f32 %v1516, %v1664
      %v1823 = vadd.f32 %v1517, %v1669
      %v1824 = vadd.f32 %v1518, %v1674
      %v1825 = vadd.f32 %v1519, %v1679
      %v1826 = vadd.f32 %v1520, %v1684
      %v1827 = vadd.f32 %v1521, %v1689
      %v1828 = vadd.f32 %v1522, %v1694
      %v1829 = vadd.f32 %v1523, %v1699
      %v1830 = vadd.f32 %v1524, %v1704
      %v1831 = vadd.f32 %v1525, %v1709
      %v1832 = vadd.f32 %v1526, %v1714
      %v1833 = vadd.f32 %v1527, %v1719
      %v1834 = vadd.f32 %v1528, %v1724
      %v1835 = vadd.f32 %v1529, %v1729
      %v1836 = vadd.f32 %v1530, %v1734
      %v1837 = vadd.f32 %v1531, %v1739
      %v1838 = vadd.f32 %v1532, %v1744
      %v1839 = vadd.f32 %v1533, %v1749
      %v1840 = vadd.f32 %v1534, %v1754
      %v1841 = vadd.f32 %v1535, %v1759
      %v1842 = vadd.f32 %v1536, %v1764
      %v1843 = vadd.f32 %v1537, %v1769
      %v1844 = vadd.f32 %v1538, %v1774
      %v1845 = vadd.f32 %v1539, %v1779
      %v1846 = vadd.f32 %v1540, %v1784
      %v1847 = vadd.f32 %v1541, %v1789
      %v1848 = vadd.f32 %v1542, %v1794
      %v1849 = vadd.f32 %v1543, %v1799
      %v1850 = vadd.f32 %v1544, %v1804
      %v1851 = vadd.f32 %v1545, %v1809
      %v1852 = vadd.f32 %v1546, %v1814
      %v1853 = vadd.f32 %v1547, %v1819
      %v1854 = vld [vmem:[%s356 + $0x2] sm:$0xff]
      %v1855 = vld [vmem:[%s356 + $0xa] sm:$0xff]
      %v1856 = vld [vmem:[%s356 + $0x1a] sm:$0xff]
      %v1857 = vld [vmem:[%s356 + $0x22] sm:$0xff]
      %v1858 = vld [vmem:[%s356 + $0x32] sm:$0xff]
      %v1859 = vld [vmem:[%s356 + $0x3a] sm:$0xff]
      %v1860 = vld [vmem:[%s356 + $0x4a] sm:$0xff]
      %v1861 = vld [vmem:[%s356 + $0x52] sm:$0xff]
      %v1862 = vld [vmem:[%s356 + $0x62] sm:$0xff]
      %v1863 = vld [vmem:[%s356 + $0x6a] sm:$0xff]
      %v1864 = vld [vmem:[%s356 + $0x7a] sm:$0xff]
      %v1865 = vld [vmem:[%s356 + $0x82] sm:$0xff]
      %v1866 = vld [vmem:[%s356 + $0x92] sm:$0xff]
      %v1867 = vld [vmem:[%s356 + $0x9a] sm:$0xff]
      %v1868 = vld [vmem:[%s356 + $0xaa] sm:$0xff]
      %v1869 = vld [vmem:[%s356 + $0xb2] sm:$0xff]
      %v1870 = vld [vmem:[%s356 + $0xc2] sm:$0xff]
      %v1871 = vld [vmem:[%s356 + $0xca] sm:$0xff]
      %v1872 = vld [vmem:[%s356 + $0xda] sm:$0xff]
      %v1873 = vld [vmem:[%s356 + $0xe2] sm:$0xff]
      %v1874 = vld [vmem:[%s356 + $0xf2] sm:$0xff]
      %v1875 = vld [vmem:[%s356 + $0xfa] sm:$0xff]
      %v1876 = vld [vmem:[%s356 + $0x10a] sm:$0xff]
      %v1877 = vld [vmem:[%s356 + $0x112] sm:$0xff]
      %v1878 = vld [vmem:[%s356 + $0x122] sm:$0xff]
      %v1879 = vld [vmem:[%s356 + $0x12a] sm:$0xff]
      %v1880 = vld [vmem:[%s356 + $0x13a] sm:$0xff]
      %v1881 = vld [vmem:[%s356 + $0x142] sm:$0xff]
      %v1882 = vld [vmem:[%s356 + $0x152] sm:$0xff]
      %v1883 = vld [vmem:[%s356 + $0x15a] sm:$0xff]
      %v1884 = vld [vmem:[%s356 + $0x16a] sm:$0xff]
      %v1885 = vld [vmem:[%s356 + $0x172] sm:$0xff]
      %s1886 = scalar_lea.vmem %s265, 640
      %v1887 = vld [vmem:[%s1886] sm:$0xff]
      %v1888 = vld [vmem:[%s1886 + $0x8] sm:$0xff]
      %v1889 = vld [vmem:[%s1886 + $0x10] sm:$0xff]
      %v1890 = vld [vmem:[%s1886 + $0x18] sm:$0xff]
      %v1891 = vld [vmem:[%s1886 + $0x20] sm:$0xff]
      %v1892 = vld [vmem:[%s1886 + $0x28] sm:$0xff]
      %v1893 = vld [vmem:[%s1886 + $0x30] sm:$0xff]
      %v1894 = vld [vmem:[%s1886 + $0x38] sm:$0xff]
      %v1895 = vld [vmem:[%s1886 + $0x40] sm:$0xff]
      %v1896 = vld [vmem:[%s1886 + $0x48] sm:$0xff]
      %v1897 = vld [vmem:[%s1886 + $0x50] sm:$0xff]
      %v1898 = vld [vmem:[%s1886 + $0x58] sm:$0xff]
      %v1899 = vld [vmem:[%s1886 + $0x60] sm:$0xff]
      %v1900 = vld [vmem:[%s1886 + $0x68] sm:$0xff]
      %v1901 = vld [vmem:[%s1886 + $0x70] sm:$0xff]
      %v1902 = vld [vmem:[%s1886 + $0x78] sm:$0xff]
      %1903 = vmatprep.subr.mxu0 0.0
      %1904 = vmatpush1.msra.mxu0 %v1887
      %1905 = vmatprep.subr.mxu0 0.0
      %1906 = vmatpush1.msra.mxu0 %v1888
      %1907 = vmatprep.subr.mxu0 0.0
      %1908 = vmatpush1.msra.mxu0 %v1889
      %1909 = vmatprep.subr.mxu0 0.0
      %1910 = vmatpush1.msra.mxu0 %v1890
      %1911 = vmatprep.subr.mxu0 0.0
      %1912 = vmatpush1.msra.mxu0 %v1891
      %1913 = vmatprep.subr.mxu0 0.0
      %1914 = vmatpush1.msra.mxu0 %v1892
      %1915 = vmatprep.subr.mxu0 0.0
      %1916 = vmatpush1.msra.mxu0 %v1893
      %1917 = vmatprep.subr.mxu0 0.0
      %1918 = vmatpush1.msra.mxu0 %v1894
      %1919 = vmatprep.subr.mxu0 0.0
      %1920 = vmatpush1.msra.mxu0 %v1895
      %1921 = vmatprep.subr.mxu0 0.0
      %1922 = vmatpush1.msra.mxu0 %v1896
      %1923 = vmatprep.subr.mxu0 0.0
      %1924 = vmatpush1.msra.mxu0 %v1897
      %1925 = vmatprep.subr.mxu0 0.0
      %1926 = vmatpush1.msra.mxu0 %v1898
      %1927 = vmatprep.subr.mxu0 0.0
      %1928 = vmatpush1.msra.mxu0 %v1899
      %1929 = vmatprep.subr.mxu0 0.0
      %1930 = vmatpush1.msra.mxu0 %v1900
      %1931 = vmatprep.subr.mxu0 0.0
      %1932 = vmatpush1.msra.mxu0 %v1901
      %1933 = vmatprep.subr.mxu0 0.0
      %1934 = vmatpush1.msra.mxu0 %v1902
      %1935 = vmatprep.subr.mxu0 0.0
      %1936 = vmatpush1.msra.mxu0 0.0
      %1937 = vmatprep.subr.mxu0 0.0
      %1938 = vmatpush1.msra.mxu0 0.0
      %1939 = vmatprep.subr.mxu0 0.0
      %1940 = vmatpush1.msra.mxu0 0.0
      %1941 = vmatprep.subr.mxu0 0.0
      %1942 = vmatpush1.msra.mxu0 0.0
      %1943 = vmatprep.subr.mxu0 0.0
      %1944 = vmatpush1.msra.mxu0 0.0
      %1945 = vmatprep.subr.mxu0 0.0
      %1946 = vmatpush1.msra.mxu0 0.0
      %1947 = vmatprep.subr.mxu0 0.0
      %1948 = vmatpush1.msra.mxu0 0.0
      %1949 = vmatprep.subr.mxu0 0.0
      %1950 = vmatpush1.msra.mxu0 0.0
      %1951 = vmatprep.subr.mxu0 0.0
      %1952 = vmatpush1.msra.mxu0 0.0
      %1953 = vmatprep.subr.mxu0 0.0
      %1954 = vmatpush1.msra.mxu0 0.0
      %1955 = vmatprep.subr.mxu0 0.0
      %1956 = vmatpush1.msra.mxu0 0.0
      %1957 = vmatprep.subr.mxu0 0.0
      %1958 = vmatpush1.msra.mxu0 0.0
      %1959 = vmatprep.subr.mxu0 0.0
      %1960 = vmatpush1.msra.mxu0 0.0
      %1961 = vmatprep.subr.mxu0 0.0
      %1962 = vmatpush1.msra.mxu0 0.0
      %1963 = vmatprep.subr.mxu0 0.0
      %1964 = vmatpush1.msra.mxu0 0.0
      %1965 = vmatprep.subr.mxu0 0.0
      %1966 = vmatpush1.msra.mxu0 0.0
      %1967 = vmatprep.mubr.f32.mxu0 0.0
      %1968 = vmatmul.mubr.f32.gmra.mrb[0].mxu0 %v1854
      %v1969 = vpop.f32.mrb[0].mxu0
      %v1970 = vadd.f32 0.0, %v1969
      %v1971 = vpop.f32.mrb[0].mxu0
      %1972 = vmatprep.mubr.f32.mxu0 0.0
      %1973 = vmatmul.mubr.f32.gmra.mrb[0].mxu0 %v1855
      %v1974 = vpop.f32.mrb[0].mxu0
      %v1975 = vadd.f32 0.0, %v1974
      %v1976 = vpop.f32.mrb[0].mxu0
      %1977 = vmatprep.mubr.f32.mxu0 0.0
      %1978 = vmatmul.mubr.f32.gmra.mrb[0].mxu0 %v1856
      %v1979 = vpop.f32.mrb[0].mxu0
      %v1980 = vadd.f32 0.0, %v1979
      %v1981 = vpop.f32.mrb[0].mxu0
      %1982 = vmatprep.mubr.f32.mxu0 0.0
      %1983 = vmatmul.mubr.f32.gmra.mrb[0].mxu0 %v1857
      %v1984 = vpop.f32.mrb[0].mxu0
      %v1985 = vadd.f32 0.0, %v1984
      %v1986 = vpop.f32.mrb[0].mxu0
      %1987 = vmatprep.mubr.f32.mxu0 0.0
      %1988 = vmatmul.mubr.f32.gmra.mrb[0].mxu0 %v1858
      %v1989 = vpop.f32.mrb[0].mxu0
      %v1990 = vadd.f32 0.0, %v1989
      %v1991 = vpop.f32.mrb[0].mxu0
      %1992 = vmatprep.mubr.f32.mxu0 0.0
      %1993 = vmatmul.mubr.f32.gmra.mrb[0].mxu0 %v1859
      %v1994 = vpop.f32.mrb[0].mxu0
      %v1995 = vadd.f32 0.0, %v1994
      %v1996 = vpop.f32.mrb[0].mxu0
      %1997 = vmatprep.mubr.f32.mxu0 0.0
      %1998 = vmatmul.mubr.f32.gmra.mrb[0].mxu0 %v1860
      %v1999 = vpop.f32.mrb[0].mxu0
      %v2000 = vadd.f32 0.0, %v1999
      %v2001 = vpop.f32.mrb[0].mxu0
      %2002 = vmatprep.mubr.f32.mxu0 0.0
      %2003 = vmatmul.mubr.f32.gmra.mrb[0].mxu0 %v1861
      %v2004 = vpop.f32.mrb[0].mxu0
      %v2005 = vadd.f32 0.0, %v2004
      %v2006 = vpop.f32.mrb[0].mxu0
      %2007 = vmatprep.mubr.f32.mxu0 0.0
      %2008 = vmatmul.mubr.f32.gmra.mrb[0].mxu0 %v1862
      %v2009 = vpop.f32.mrb[0].mxu0
      %v2010 = vadd.f32 0.0, %v2009
      %v2011 = vpop.f32.mrb[0].mxu0
      %2012 = vmatprep.mubr.f32.mxu0 0.0
      %2013 = vmatmul.mubr.f32.gmra.mrb[0].mxu0 %v1863
      %v2014 = vpop.f32.mrb[0].mxu0
      %v2015 = vadd.f32 0.0, %v2014
      %v2016 = vpop.f32.mrb[0].mxu0
      %2017 = vmatprep.mubr.f32.mxu0 0.0
      %2018 = vmatmul.mubr.f32.gmra.mrb[0].mxu0 %v1864
      %v2019 = vpop.f32.mrb[0].mxu0
      %v2020 = vadd.f32 0.0, %v2019
      %v2021 = vpop.f32.mrb[0].mxu0
      %2022 = vmatprep.mubr.f32.mxu0 0.0
      %2023 = vmatmul.mubr.f32.gmra.mrb[0].mxu0 %v1865
      %v2024 = vpop.f32.mrb[0].mxu0
      %v2025 = vadd.f32 0.0, %v2024
      %v2026 = vpop.f32.mrb[0].mxu0
      %2027 = vmatprep.mubr.f32.mxu0 0.0
      %2028 = vmatmul.mubr.f32.gmra.mrb[0].mxu0 %v1866
      %v2029 = vpop.f32.mrb[0].mxu0
      %v2030 = vadd.f32 0.0, %v2029
      %v2031 = vpop.f32.mrb[0].mxu0
      %2032 = vmatprep.mubr.f32.mxu0 0.0
      %2033 = vmatmul.mubr.f32.gmra.mrb[0].mxu0 %v1867
      %v2034 = vpop.f32.mrb[0].mxu0
      %v2035 = vadd.f32 0.0, %v2034
      %v2036 = vpop.f32.mrb[0].mxu0
      %2037 = vmatprep.mubr.f32.mxu0 0.0
      %2038 = vmatmul.mubr.f32.gmra.mrb[0].mxu0 %v1868
      %v2039 = vpop.f32.mrb[0].mxu0
      %v2040 = vadd.f32 0.0, %v2039
      %v2041 = vpop.f32.mrb[0].mxu0
      %2042 = vmatprep.mubr.f32.mxu0 0.0
      %2043 = vmatmul.mubr.f32.gmra.mrb[0].mxu0 %v1869
      %v2044 = vpop.f32.mrb[0].mxu0
      %v2045 = vadd.f32 0.0, %v2044
      %v2046 = vpop.f32.mrb[0].mxu0
      %2047 = vmatprep.mubr.f32.mxu0 0.0
      %2048 = vmatmul.mubr.f32.gmra.mrb[0].mxu0 %v1870
      %v2049 = vpop.f32.mrb[0].mxu0
      %v2050 = vadd.f32 0.0, %v2049
      %v2051 = vpop.f32.mrb[0].mxu0
      %2052 = vmatprep.mubr.f32.mxu0 0.0
      %2053 = vmatmul.mubr.f32.gmra.mrb[0].mxu0 %v1871
      %v2054 = vpop.f32.mrb[0].mxu0
      %v2055 = vadd.f32 0.0, %v2054
      %v2056 = vpop.f32.mrb[0].mxu0
      %2057 = vmatprep.mubr.f32.mxu0 0.0
      %2058 = vmatmul.mubr.f32.gmra.mrb[0].mxu0 %v1872
      %v2059 = vpop.f32.mrb[0].mxu0
      %v2060 = vadd.f32 0.0, %v2059
      %v2061 = vpop.f32.mrb[0].mxu0
      %2062 = vmatprep.mubr.f32.mxu0 0.0
      %2063 = vmatmul.mubr.f32.gmra.mrb[0].mxu0 %v1873
      %v2064 = vpop.f32.mrb[0].mxu0
      %v2065 = vadd.f32 0.0, %v2064
      %v2066 = vpop.f32.mrb[0].mxu0
      %2067 = vmatprep.mubr.f32.mxu0 0.0
      %2068 = vmatmul.mubr.f32.gmra.mrb[0].mxu0 %v1874
      %v2069 = vpop.f32.mrb[0].mxu0
      %v2070 = vadd.f32 0.0, %v2069
      %v2071 = vpop.f32.mrb[0].mxu0
      %2072 = vmatprep.mubr.f32.mxu0 0.0
      %2073 = vmatmul.mubr.f32.gmra.mrb[0].mxu0 %v1875
      %v2074 = vpop.f32.mrb[0].mxu0
      %v2075 = vadd.f32 0.0, %v2074
      %v2076 = vpop.f32.mrb[0].mxu0
      %2077 = vmatprep.mubr.f32.mxu0 0.0
      %2078 = vmatmul.mubr.f32.gmra.mrb[0].mxu0 %v1876
      %v2079 = vpop.f32.mrb[0].mxu0
      %v2080 = vadd.f32 0.0, %v2079
      %v2081 = vpop.f32.mrb[0].mxu0
      %2082 = vmatprep.mubr.f32.mxu0 0.0
      %2083 = vmatmul.mubr.f32.gmra.mrb[0].mxu0 %v1877
      %v2084 = vpop.f32.mrb[0].mxu0
      %v2085 = vadd.f32 0.0, %v2084
      %v2086 = vpop.f32.mrb[0].mxu0
      %2087 = vmatprep.mubr.f32.mxu0 0.0
      %2088 = vmatmul.mubr.f32.gmra.mrb[0].mxu0 %v1878
      %v2089 = vpop.f32.mrb[0].mxu0
      %v2090 = vadd.f32 0.0, %v2089
      %v2091 = vpop.f32.mrb[0].mxu0
      %2092 = vmatprep.mubr.f32.mxu0 0.0
      %2093 = vmatmul.mubr.f32.gmra.mrb[0].mxu0 %v1879
      %v2094 = vpop.f32.mrb[0].mxu0
      %v2095 = vadd.f32 0.0, %v2094
      %v2096 = vpop.f32.mrb[0].mxu0
      %2097 = vmatprep.mubr.f32.mxu0 0.0
      %2098 = vmatmul.mubr.f32.gmra.mrb[0].mxu0 %v1880
      %v2099 = vpop.f32.mrb[0].mxu0
      %v2100 = vadd.f32 0.0, %v2099
      %v2101 = vpop.f32.mrb[0].mxu0
      %2102 = vmatprep.mubr.f32.mxu0 0.0
      %2103 = vmatmul.mubr.f32.gmra.mrb[0].mxu0 %v1881
      %v2104 = vpop.f32.mrb[0].mxu0
      %v2105 = vadd.f32 0.0, %v2104
      %v2106 = vpop.f32.mrb[0].mxu0
      %2107 = vmatprep.mubr.f32.mxu0 0.0
      %2108 = vmatmul.mubr.f32.gmra.mrb[0].mxu0 %v1882
      %v2109 = vpop.f32.mrb[0].mxu0
      %v2110 = vadd.f32 0.0, %v2109
      %v2111 = vpop.f32.mrb[0].mxu0
      %2112 = vmatprep.mubr.f32.mxu0 0.0
      %2113 = vmatmul.mubr.f32.gmra.mrb[0].mxu0 %v1883
      %v2114 = vpop.f32.mrb[0].mxu0
      %v2115 = vadd.f32 0.0, %v2114
      %v2116 = vpop.f32.mrb[0].mxu0
      %2117 = vmatprep.mubr.f32.mxu0 0.0
      %2118 = vmatmul.mubr.f32.gmra.mrb[0].mxu0 %v1884
      %v2119 = vpop.f32.mrb[0].mxu0
      %v2120 = vadd.f32 0.0, %v2119
      %v2121 = vpop.f32.mrb[0].mxu0
      %2122 = vmatprep.mubr.f32.mxu0 0.0
      %2123 = vmatmul.mubr.f32.gmra.mrb[0].mxu0 %v1885
      %v2124 = vpop.f32.mrb[0].mxu0
      %v2125 = vadd.f32 0.0, %v2124
      %v2126 = vpop.f32.mrb[0].mxu0
      %2127 = vdwg.mxu0
      %v2128 = vadd.f32 %v1822, %v1970
      %v2129 = vadd.f32 %v1823, %v1975
      %v2130 = vadd.f32 %v1824, %v1980
      %v2131 = vadd.f32 %v1825, %v1985
      %v2132 = vadd.f32 %v1826, %v1990
      %v2133 = vadd.f32 %v1827, %v1995
      %v2134 = vadd.f32 %v1828, %v2000
      %v2135 = vadd.f32 %v1829, %v2005
      %v2136 = vadd.f32 %v1830, %v2010
      %v2137 = vadd.f32 %v1831, %v2015
      %v2138 = vadd.f32 %v1832, %v2020
      %v2139 = vadd.f32 %v1833, %v2025
      %v2140 = vadd.f32 %v1834, %v2030
      %v2141 = vadd.f32 %v1835, %v2035
      %v2142 = vadd.f32 %v1836, %v2040
      %v2143 = vadd.f32 %v1837, %v2045
      %v2144 = vadd.f32 %v1838, %v2050
      %v2145 = vadd.f32 %v1839, %v2055
      %v2146 = vadd.f32 %v1840, %v2060
      %v2147 = vadd.f32 %v1841, %v2065
      %v2148 = vadd.f32 %v1842, %v2070
      %v2149 = vadd.f32 %v1843, %v2075
      %v2150 = vadd.f32 %v1844, %v2080
      %v2151 = vadd.f32 %v1845, %v2085
      %v2152 = vadd.f32 %v1846, %v2090
      %v2153 = vadd.f32 %v1847, %v2095
      %v2154 = vadd.f32 %v1848, %v2100
      %v2155 = vadd.f32 %v1849, %v2105
      %v2156 = vadd.f32 %v1850, %v2110
      %v2157 = vadd.f32 %v1851, %v2115
      %v2158 = vadd.f32 %v1852, %v2120
      %v2159 = vadd.f32 %v1853, %v2125
      %s2160 = scalar_lea.vmem [#allocation2], 48
      %v2161 = vld [vmem:[%s2160] sm:$0xff]
      %v2162 = vld [vmem:[%s2160 + $0x8] sm:$0xff]
      %v2163 = vld [vmem:[%s2160 + $0x18] sm:$0xff]
      %v2164 = vld [vmem:[%s2160 + $0x20] sm:$0xff]
      %v2165 = vld [vmem:[%s2160 + $0x30] sm:$0xff]
      %v2166 = vld [vmem:[%s2160 + $0x38] sm:$0xff]
      %v2167 = vld [vmem:[%s2160 + $0x48] sm:$0xff]
      %v2168 = vld [vmem:[%s2160 + $0x50] sm:$0xff]
      %v2169 = vld [vmem:[%s2160 + $0x60] sm:$0xff]
      %v2170 = vld [vmem:[%s2160 + $0x68] sm:$0xff]
      %v2171 = vld [vmem:[%s2160 + $0x78] sm:$0xff]
      %v2172 = vld [vmem:[%s2160 + $0x80] sm:$0xff]
      %v2173 = vld [vmem:[%s2160 + $0x90] sm:$0xff]
      %v2174 = vld [vmem:[%s2160 + $0x98] sm:$0xff]
      %v2175 = vld [vmem:[%s2160 + $0xa8] sm:$0xff]
      %v2176 = vld [vmem:[%s2160 + $0xb0] sm:$0xff]
      %v2177 = vld [vmem:[%s2160 + $0xc0] sm:$0xff]
      %v2178 = vld [vmem:[%s2160 + $0xc8] sm:$0xff]
      %v2179 = vld [vmem:[%s2160 + $0xd8] sm:$0xff]
      %v2180 = vld [vmem:[%s2160 + $0xe0] sm:$0xff]
      %v2181 = vld [vmem:[%s2160 + $0xf0] sm:$0xff]
      %v2182 = vld [vmem:[%s2160 + $0xf8] sm:$0xff]
      %v2183 = vld [vmem:[%s2160 + $0x108] sm:$0xff]
      %v2184 = vld [vmem:[%s2160 + $0x110] sm:$0xff]
      %v2185 = vld [vmem:[%s2160 + $0x120] sm:$0xff]
      %v2186 = vld [vmem:[%s2160 + $0x128] sm:$0xff]
      %v2187 = vld [vmem:[%s2160 + $0x138] sm:$0xff]
      %v2188 = vld [vmem:[%s2160 + $0x140] sm:$0xff]
      %v2189 = vld [vmem:[%s2160 + $0x150] sm:$0xff]
      %v2190 = vld [vmem:[%s2160 + $0x158] sm:$0xff]
      %v2191 = vld [vmem:[%s2160 + $0x168] sm:$0xff]
      %v2192 = vld [vmem:[%s2160 + $0x170] sm:$0xff]
      %s2193 = scalar_lea.vmem %s265, 768
      %v2194 = vld [vmem:[%s2193] sm:$0xff]
      %v2195 = vld [vmem:[%s2193 + $0x8] sm:$0xff]
      %v2196 = vld [vmem:[%s2193 + $0x10] sm:$0xff]
      %v2197 = vld [vmem:[%s2193 + $0x18] sm:$0xff]
      %v2198 = vld [vmem:[%s2193 + $0x20] sm:$0xff]
      %v2199 = vld [vmem:[%s2193 + $0x28] sm:$0xff]
      %v2200 = vld [vmem:[%s2193 + $0x30] sm:$0xff]
      %v2201 = vld [vmem:[%s2193 + $0x38] sm:$0xff]
      %v2202 = vld [vmem:[%s2193 + $0x40] sm:$0xff]
      %v2203 = vld [vmem:[%s2193 + $0x48] sm:$0xff]
      %v2204 = vld [vmem:[%s2193 + $0x50] sm:$0xff]
      %v2205 = vld [vmem:[%s2193 + $0x58] sm:$0xff]
      %v2206 = vld [vmem:[%s2193 + $0x60] sm:$0xff]
      %v2207 = vld [vmem:[%s2193 + $0x68] sm:$0xff]
      %v2208 = vld [vmem:[%s2193 + $0x70] sm:$0xff]
      %v2209 = vld [vmem:[%s2193 + $0x78] sm:$0xff]
      %2210 = vmatprep.subr.mxu0 0.0
      %2211 = vmatpush1.msra.mxu0 %v2194
      %2212 = vmatprep.subr.mxu0 0.0
      %2213 = vmatpush1.msra.mxu0 %v2195
      %2214 = vmatprep.subr.mxu0 0.0
      %2215 = vmatpush1.msra.mxu0 %v2196
      %2216 = vmatprep.subr.mxu0 0.0
      %2217 = vmatpush1.msra.mxu0 %v2197
      %2218 = vmatprep.subr.mxu0 0.0
      %2219 = vmatpush1.msra.mxu0 %v2198
      %2220 = vmatprep.subr.mxu0 0.0
      %2221 = vmatpush1.msra.mxu0 %v2199
      %2222 = vmatprep.subr.mxu0 0.0
      %2223 = vmatpush1.msra.mxu0 %v2200
      %2224 = vmatprep.subr.mxu0 0.0
      %2225 = vmatpush1.msra.mxu0 %v2201
      %2226 = vmatprep.subr.mxu0 0.0
      %2227 = vmatpush1.msra.mxu0 %v2202
      %2228 = vmatprep.subr.mxu0 0.0
      %2229 = vmatpush1.msra.mxu0 %v2203
      %2230 = vmatprep.subr.mxu0 0.0
      %2231 = vmatpush1.msra.mxu0 %v2204
      %2232 = vmatprep.subr.mxu0 0.0
      %2233 = vmatpush1.msra.mxu0 %v2205
      %2234 = vmatprep.subr.mxu0 0.0
      %2235 = vmatpush1.msra.mxu0 %v2206
      %2236 = vmatprep.subr.mxu0 0.0
      %2237 = vmatpush1.msra.mxu0 %v2207
      %2238 = vmatprep.subr.mxu0 0.0
      %2239 = vmatpush1.msra.mxu0 %v2208
      %2240 = vmatprep.subr.mxu0 0.0
      %2241 = vmatpush1.msra.mxu0 %v2209
      %2242 = vmatprep.subr.mxu0 0.0
      %2243 = vmatpush1.msra.mxu0 0.0
      %2244 = vmatprep.subr.mxu0 0.0
      %2245 = vmatpush1.msra.mxu0 0.0
      %2246 = vmatprep.subr.mxu0 0.0
      %2247 = vmatpush1.msra.mxu0 0.0
      %2248 = vmatprep.subr.mxu0 0.0
      %2249 = vmatpush1.msra.mxu0 0.0
      %2250 = vmatprep.subr.mxu0 0.0
      %2251 = vmatpush1.msra.mxu0 0.0
      %2252 = vmatprep.subr.mxu0 0.0
      %2253 = vmatpush1.msra.mxu0 0.0
      %2254 = vmatprep.subr.mxu0 0.0
      %2255 = vmatpush1.msra.mxu0 0.0
      %2256 = vmatprep.subr.mxu0 0.0
      %2257 = vmatpush1.msra.mxu0 0.0
      %2258 = vmatprep.subr.mxu0 0.0
      %2259 = vmatpush1.msra.mxu0 0.0
      %2260 = vmatprep.subr.mxu0 0.0
      %2261 = vmatpush1.msra.mxu0 0.0
      %2262 = vmatprep.subr.mxu0 0.0
      %2263 = vmatpush1.msra.mxu0 0.0
      %2264 = vmatprep.subr.mxu0 0.0
      %2265 = vmatpush1.msra.mxu0 0.0
      %2266 = vmatprep.subr.mxu0 0.0
      %2267 = vmatpush1.msra.mxu0 0.0
      %2268 = vmatprep.subr.mxu0 0.0
      %2269 = vmatpush1.msra.mxu0 0.0
      %2270 = vmatprep.subr.mxu0 0.0
      %2271 = vmatpush1.msra.mxu0 0.0
      %2272 = vmatprep.subr.mxu0 0.0
      %2273 = vmatpush1.msra.mxu0 0.0
      %2274 = vmatprep.mubr.f32.mxu0 0.0
      %2275 = vmatmul.mubr.f32.gmra.mrb[0].mxu0 %v2161
      %v2276 = vpop.f32.mrb[0].mxu0
      %v2277 = vadd.f32 0.0, %v2276
      %v2278 = vpop.f32.mrb[0].mxu0
      %2279 = vmatprep.mubr.f32.mxu0 0.0
      %2280 = vmatmul.mubr.f32.gmra.mrb[0].mxu0 %v2162
      %v2281 = vpop.f32.mrb[0].mxu0
      %v2282 = vadd.f32 0.0, %v2281
      %v2283 = vpop.f32.mrb[0].mxu0
      %2284 = vmatprep.mubr.f32.mxu0 0.0
      %2285 = vmatmul.mubr.f32.gmra.mrb[0].mxu0 %v2163
      %v2286 = vpop.f32.mrb[0].mxu0
      %v2287 = vadd.f32 0.0, %v2286
      %v2288 = vpop.f32.mrb[0].mxu0
      %2289 = vmatprep.mubr.f32.mxu0 0.0
      %2290 = vmatmul.mubr.f32.gmra.mrb[0].mxu0 %v2164
      %v2291 = vpop.f32.mrb[0].mxu0
      %v2292 = vadd.f32 0.0, %v2291
      %v2293 = vpop.f32.mrb[0].mxu0
      %2294 = vmatprep.mubr.f32.mxu0 0.0
      %2295 = vmatmul.mubr.f32.gmra.mrb[0].mxu0 %v2165
      %v2296 = vpop.f32.mrb[0].mxu0
      %v2297 = vadd.f32 0.0, %v2296
      %v2298 = vpop.f32.mrb[0].mxu0
      %2299 = vmatprep.mubr.f32.mxu0 0.0
      %2300 = vmatmul.mubr.f32.gmra.mrb[0].mxu0 %v2166
      %v2301 = vpop.f32.mrb[0].mxu0
      %v2302 = vadd.f32 0.0, %v2301
      %v2303 = vpop.f32.mrb[0].mxu0
      %2304 = vmatprep.mubr.f32.mxu0 0.0
      %2305 = vmatmul.mubr.f32.gmra.mrb[0].mxu0 %v2167
      %v2306 = vpop.f32.mrb[0].mxu0
      %v2307 = vadd.f32 0.0, %v2306
      %v2308 = vpop.f32.mrb[0].mxu0
      %2309 = vmatprep.mubr.f32.mxu0 0.0
      %2310 = vmatmul.mubr.f32.gmra.mrb[0].mxu0 %v2168
      %v2311 = vpop.f32.mrb[0].mxu0
      %v2312 = vadd.f32 0.0, %v2311
      %v2313 = vpop.f32.mrb[0].mxu0
      %2314 = vmatprep.mubr.f32.mxu0 0.0
      %2315 = vmatmul.mubr.f32.gmra.mrb[0].mxu0 %v2169
      %v2316 = vpop.f32.mrb[0].mxu0
      %v2317 = vadd.f32 0.0, %v2316
      %v2318 = vpop.f32.mrb[0].mxu0
      %2319 = vmatprep.mubr.f32.mxu0 0.0
      %2320 = vmatmul.mubr.f32.gmra.mrb[0].mxu0 %v2170
      %v2321 = vpop.f32.mrb[0].mxu0
      %v2322 = vadd.f32 0.0, %v2321
      %v2323 = vpop.f32.mrb[0].mxu0
      %2324 = vmatprep.mubr.f32.mxu0 0.0
      %2325 = vmatmul.mubr.f32.gmra.mrb[0].mxu0 %v2171
      %v2326 = vpop.f32.mrb[0].mxu0
      %v2327 = vadd.f32 0.0, %v2326
      %v2328 = vpop.f32.mrb[0].mxu0
      %2329 = vmatprep.mubr.f32.mxu0 0.0
      %2330 = vmatmul.mubr.f32.gmra.mrb[0].mxu0 %v2172
      %v2331 = vpop.f32.mrb[0].mxu0
      %v2332 = vadd.f32 0.0, %v2331
      %v2333 = vpop.f32.mrb[0].mxu0
      %2334 = vmatprep.mubr.f32.mxu0 0.0
      %2335 = vmatmul.mubr.f32.gmra.mrb[0].mxu0 %v2173
      %v2336 = vpop.f32.mrb[0].mxu0
      %v2337 = vadd.f32 0.0, %v2336
      %v2338 = vpop.f32.mrb[0].mxu0
      %2339 = vmatprep.mubr.f32.mxu0 0.0
      %2340 = vmatmul.mubr.f32.gmra.mrb[0].mxu0 %v2174
      %v2341 = vpop.f32.mrb[0].mxu0
      %v2342 = vadd.f32 0.0, %v2341
      %v2343 = vpop.f32.mrb[0].mxu0
      %2344 = vmatprep.mubr.f32.mxu0 0.0
      %2345 = vmatmul.mubr.f32.gmra.mrb[0].mxu0 %v2175
      %v2346 = vpop.f32.mrb[0].mxu0
      %v2347 = vadd.f32 0.0, %v2346
      %v2348 = vpop.f32.mrb[0].mxu0
      %2349 = vmatprep.mubr.f32.mxu0 0.0
      %2350 = vmatmul.mubr.f32.gmra.mrb[0].mxu0 %v2176
      %v2351 = vpop.f32.mrb[0].mxu0
      %v2352 = vadd.f32 0.0, %v2351
      %v2353 = vpop.f32.mrb[0].mxu0
      %2354 = vmatprep.mubr.f32.mxu0 0.0
      %2355 = vmatmul.mubr.f32.gmra.mrb[0].mxu0 %v2177
      %v2356 = vpop.f32.mrb[0].mxu0
      %v2357 = vadd.f32 0.0, %v2356
      %v2358 = vpop.f32.mrb[0].mxu0
      %2359 = vmatprep.mubr.f32.mxu0 0.0
      %2360 = vmatmul.mubr.f32.gmra.mrb[0].mxu0 %v2178
      %v2361 = vpop.f32.mrb[0].mxu0
      %v2362 = vadd.f32 0.0, %v2361
      %v2363 = vpop.f32.mrb[0].mxu0
      %2364 = vmatprep.mubr.f32.mxu0 0.0
      %2365 = vmatmul.mubr.f32.gmra.mrb[0].mxu0 %v2179
      %v2366 = vpop.f32.mrb[0].mxu0
      %v2367 = vadd.f32 0.0, %v2366
      %v2368 = vpop.f32.mrb[0].mxu0
      %2369 = vmatprep.mubr.f32.mxu0 0.0
      %2370 = vmatmul.mubr.f32.gmra.mrb[0].mxu0 %v2180
      %v2371 = vpop.f32.mrb[0].mxu0
      %v2372 = vadd.f32 0.0, %v2371
      %v2373 = vpop.f32.mrb[0].mxu0
      %2374 = vmatprep.mubr.f32.mxu0 0.0
      %2375 = vmatmul.mubr.f32.gmra.mrb[0].mxu0 %v2181
      %v2376 = vpop.f32.mrb[0].mxu0
      %v2377 = vadd.f32 0.0, %v2376
      %v2378 = vpop.f32.mrb[0].mxu0
      %2379 = vmatprep.mubr.f32.mxu0 0.0
      %2380 = vmatmul.mubr.f32.gmra.mrb[0].mxu0 %v2182
      %v2381 = vpop.f32.mrb[0].mxu0
      %v2382 = vadd.f32 0.0, %v2381
      %v2383 = vpop.f32.mrb[0].mxu0
      %2384 = vmatprep.mubr.f32.mxu0 0.0
      %2385 = vmatmul.mubr.f32.gmra.mrb[0].mxu0 %v2183
      %v2386 = vpop.f32.mrb[0].mxu0
      %v2387 = vadd.f32 0.0, %v2386
      %v2388 = vpop.f32.mrb[0].mxu0
      %2389 = vmatprep.mubr.f32.mxu0 0.0
      %2390 = vmatmul.mubr.f32.gmra.mrb[0].mxu0 %v2184
      %v2391 = vpop.f32.mrb[0].mxu0
      %v2392 = vadd.f32 0.0, %v2391
      %v2393 = vpop.f32.mrb[0].mxu0
      %2394 = vmatprep.mubr.f32.mxu0 0.0
      %2395 = vmatmul.mubr.f32.gmra.mrb[0].mxu0 %v2185
      %v2396 = vpop.f32.mrb[0].mxu0
      %v2397 = vadd.f32 0.0, %v2396
      %v2398 = vpop.f32.mrb[0].mxu0
      %2399 = vmatprep.mubr.f32.mxu0 0.0
      %2400 = vmatmul.mubr.f32.gmra.mrb[0].mxu0 %v2186
      %v2401 = vpop.f32.mrb[0].mxu0
      %v2402 = vadd.f32 0.0, %v2401
      %v2403 = vpop.f32.mrb[0].mxu0
      %2404 = vmatprep.mubr.f32.mxu0 0.0
      %2405 = vmatmul.mubr.f32.gmra.mrb[0].mxu0 %v2187
      %v2406 = vpop.f32.mrb[0].mxu0
      %v2407 = vadd.f32 0.0, %v2406
      %v2408 = vpop.f32.mrb[0].mxu0
      %2409 = vmatprep.mubr.f32.mxu0 0.0
      %2410 = vmatmul.mubr.f32.gmra.mrb[0].mxu0 %v2188
      %v2411 = vpop.f32.mrb[0].mxu0
      %v2412 = vadd.f32 0.0, %v2411
      %v2413 = vpop.f32.mrb[0].mxu0
      %2414 = vmatprep.mubr.f32.mxu0 0.0
      %2415 = vmatmul.mubr.f32.gmra.mrb[0].mxu0 %v2189
      %v2416 = vpop.f32.mrb[0].mxu0
      %v2417 = vadd.f32 0.0, %v2416
      %v2418 = vpop.f32.mrb[0].mxu0
      %2419 = vmatprep.mubr.f32.mxu0 0.0
      %2420 = vmatmul.mubr.f32.gmra.mrb[0].mxu0 %v2190
      %v2421 = vpop.f32.mrb[0].mxu0
      %v2422 = vadd.f32 0.0, %v2421
      %v2423 = vpop.f32.mrb[0].mxu0
      %2424 = vmatprep.mubr.f32.mxu0 0.0
      %2425 = vmatmul.mubr.f32.gmra.mrb[0].mxu0 %v2191
      %v2426 = vpop.f32.mrb[0].mxu0
      %v2427 = vadd.f32 0.0, %v2426
      %v2428 = vpop.f32.mrb[0].mxu0
      %2429 = vmatprep.mubr.f32.mxu0 0.0
      %2430 = vmatmul.mubr.f32.gmra.mrb[0].mxu0 %v2192
      %v2431 = vpop.f32.mrb[0].mxu0
      %v2432 = vadd.f32 0.0, %v2431
      %v2433 = vpop.f32.mrb[0].mxu0
      %2434 = vdwg.mxu0
      %v2435 = vadd.f32 %v2128, %v2277
      %v2436 = vadd.f32 %v2129, %v2282
      %v2437 = vadd.f32 %v2130, %v2287
      %v2438 = vadd.f32 %v2131, %v2292
      %v2439 = vadd.f32 %v2132, %v2297
      %v2440 = vadd.f32 %v2133, %v2302
      %v2441 = vadd.f32 %v2134, %v2307
      %v2442 = vadd.f32 %v2135, %v2312
      %v2443 = vadd.f32 %v2136, %v2317
      %v2444 = vadd.f32 %v2137, %v2322
      %v2445 = vadd.f32 %v2138, %v2327
      %v2446 = vadd.f32 %v2139, %v2332
      %v2447 = vadd.f32 %v2140, %v2337
      %v2448 = vadd.f32 %v2141, %v2342
      %v2449 = vadd.f32 %v2142, %v2347
      %v2450 = vadd.f32 %v2143, %v2352
      %v2451 = vadd.f32 %v2144, %v2357
      %v2452 = vadd.f32 %v2145, %v2362
      %v2453 = vadd.f32 %v2146, %v2367
      %v2454 = vadd.f32 %v2147, %v2372
      %v2455 = vadd.f32 %v2148, %v2377
      %v2456 = vadd.f32 %v2149, %v2382
      %v2457 = vadd.f32 %v2150, %v2387
      %v2458 = vadd.f32 %v2151, %v2392
      %v2459 = vadd.f32 %v2152, %v2397
      %v2460 = vadd.f32 %v2153, %v2402
      %v2461 = vadd.f32 %v2154, %v2407
      %v2462 = vadd.f32 %v2155, %v2412
      %v2463 = vadd.f32 %v2156, %v2417
      %v2464 = vadd.f32 %v2157, %v2422
      %v2465 = vadd.f32 %v2158, %v2427
      %v2466 = vadd.f32 %v2159, %v2432
      %v2467 = vld [vmem:[%s2160 + $0x1] sm:$0xff]
      %v2468 = vld [vmem:[%s2160 + $0x9] sm:$0xff]
      %v2469 = vld [vmem:[%s2160 + $0x19] sm:$0xff]
      %v2470 = vld [vmem:[%s2160 + $0x21] sm:$0xff]
      %v2471 = vld [vmem:[%s2160 + $0x31] sm:$0xff]
      %v2472 = vld [vmem:[%s2160 + $0x39] sm:$0xff]
      %v2473 = vld [vmem:[%s2160 + $0x49] sm:$0xff]
      %v2474 = vld [vmem:[%s2160 + $0x51] sm:$0xff]
      %v2475 = vld [vmem:[%s2160 + $0x61] sm:$0xff]
      %v2476 = vld [vmem:[%s2160 + $0x69] sm:$0xff]
      %v2477 = vld [vmem:[%s2160 + $0x79] sm:$0xff]
      %v2478 = vld [vmem:[%s2160 + $0x81] sm:$0xff]
      %v2479 = vld [vmem:[%s2160 + $0x91] sm:$0xff]
      %v2480 = vld [vmem:[%s2160 + $0x99] sm:$0xff]
      %v2481 = vld [vmem:[%s2160 + $0xa9] sm:$0xff]
      %v2482 = vld [vmem:[%s2160 + $0xb1] sm:$0xff]
      %v2483 = vld [vmem:[%s2160 + $0xc1] sm:$0xff]
      %v2484 = vld [vmem:[%s2160 + $0xc9] sm:$0xff]
      %v2485 = vld [vmem:[%s2160 + $0xd9] sm:$0xff]
      %v2486 = vld [vmem:[%s2160 + $0xe1] sm:$0xff]
      %v2487 = vld [vmem:[%s2160 + $0xf1] sm:$0xff]
      %v2488 = vld [vmem:[%s2160 + $0xf9] sm:$0xff]
      %v2489 = vld [vmem:[%s2160 + $0x109] sm:$0xff]
      %v2490 = vld [vmem:[%s2160 + $0x111] sm:$0xff]
      %v2491 = vld [vmem:[%s2160 + $0x121] sm:$0xff]
      %v2492 = vld [vmem:[%s2160 + $0x129] sm:$0xff]
      %v2493 = vld [vmem:[%s2160 + $0x139] sm:$0xff]
      %v2494 = vld [vmem:[%s2160 + $0x141] sm:$0xff]
      %v2495 = vld [vmem:[%s2160 + $0x151] sm:$0xff]
      %v2496 = vld [vmem:[%s2160 + $0x159] sm:$0xff]
      %v2497 = vld [vmem:[%s2160 + $0x169] sm:$0xff]
      %v2498 = vld [vmem:[%s2160 + $0x171] sm:$0xff]
      %s2499 = scalar_lea.vmem %s265, 896
      %v2500 = vld [vmem:[%s2499] sm:$0xff]
      %v2501 = vld [vmem:[%s2499 + $0x8] sm:$0xff]
      %v2502 = vld [vmem:[%s2499 + $0x10] sm:$0xff]
      %v2503 = vld [vmem:[%s2499 + $0x18] sm:$0xff]
      %v2504 = vld [vmem:[%s2499 + $0x20] sm:$0xff]
      %v2505 = vld [vmem:[%s2499 + $0x28] sm:$0xff]
      %v2506 = vld [vmem:[%s2499 + $0x30] sm:$0xff]
      %v2507 = vld [vmem:[%s2499 + $0x38] sm:$0xff]
      %v2508 = vld [vmem:[%s2499 + $0x40] sm:$0xff]
      %v2509 = vld [vmem:[%s2499 + $0x48] sm:$0xff]
      %v2510 = vld [vmem:[%s2499 + $0x50] sm:$0xff]
      %v2511 = vld [vmem:[%s2499 + $0x58] sm:$0xff]
      %v2512 = vld [vmem:[%s2499 + $0x60] sm:$0xff]
      %v2513 = vld [vmem:[%s2499 + $0x68] sm:$0xff]
      %v2514 = vld [vmem:[%s2499 + $0x70] sm:$0xff]
      %v2515 = vld [vmem:[%s2499 + $0x78] sm:$0xff]
      %2516 = vmatprep.subr.mxu0 0.0
      %2517 = vmatpush1.msra.mxu0 %v2500
      %2518 = vmatprep.subr.mxu0 0.0
      %2519 = vmatpush1.msra.mxu0 %v2501
      %2520 = vmatprep.subr.mxu0 0.0
      %2521 = vmatpush1.msra.mxu0 %v2502
      %2522 = vmatprep.subr.mxu0 0.0
      %2523 = vmatpush1.msra.mxu0 %v2503
      %2524 = vmatprep.subr.mxu0 0.0
      %2525 = vmatpush1.msra.mxu0 %v2504
      %2526 = vmatprep.subr.mxu0 0.0
      %2527 = vmatpush1.msra.mxu0 %v2505
      %2528 = vmatprep.subr.mxu0 0.0
      %2529 = vmatpush1.msra.mxu0 %v2506
      %2530 = vmatprep.subr.mxu0 0.0
      %2531 = vmatpush1.msra.mxu0 %v2507
      %2532 = vmatprep.subr.mxu0 0.0
      %2533 = vmatpush1.msra.mxu0 %v2508
      %2534 = vmatprep.subr.mxu0 0.0
      %2535 = vmatpush1.msra.mxu0 %v2509
      %2536 = vmatprep.subr.mxu0 0.0
      %2537 = vmatpush1.msra.mxu0 %v2510
      %2538 = vmatprep.subr.mxu0 0.0
      %2539 = vmatpush1.msra.mxu0 %v2511
      %2540 = vmatprep.subr.mxu0 0.0
      %2541 = vmatpush1.msra.mxu0 %v2512
      %2542 = vmatprep.subr.mxu0 0.0
      %2543 = vmatpush1.msra.mxu0 %v2513
      %2544 = vmatprep.subr.mxu0 0.0
      %2545 = vmatpush1.msra.mxu0 %v2514
      %2546 = vmatprep.subr.mxu0 0.0
      %2547 = vmatpush1.msra.mxu0 %v2515
      %2548 = vmatprep.subr.mxu0 0.0
      %2549 = vmatpush1.msra.mxu0 0.0
      %2550 = vmatprep.subr.mxu0 0.0
      %2551 = vmatpush1.msra.mxu0 0.0
      %2552 = vmatprep.subr.mxu0 0.0
      %2553 = vmatpush1.msra.mxu0 0.0
      %2554 = vmatprep.subr.mxu0 0.0
      %2555 = vmatpush1.msra.mxu0 0.0
      %2556 = vmatprep.subr.mxu0 0.0
      %2557 = vmatpush1.msra.mxu0 0.0
      %2558 = vmatprep.subr.mxu0 0.0
      %2559 = vmatpush1.msra.mxu0 0.0
      %2560 = vmatprep.subr.mxu0 0.0
      %2561 = vmatpush1.msra.mxu0 0.0
      %2562 = vmatprep.subr.mxu0 0.0
      %2563 = vmatpush1.msra.mxu0 0.0
      %2564 = vmatprep.subr.mxu0 0.0
      %2565 = vmatpush1.msra.mxu0 0.0
      %2566 = vmatprep.subr.mxu0 0.0
      %2567 = vmatpush1.msra.mxu0 0.0
      %2568 = vmatprep.subr.mxu0 0.0
      %2569 = vmatpush1.msra.mxu0 0.0
      %2570 = vmatprep.subr.mxu0 0.0
      %2571 = vmatpush1.msra.mxu0 0.0
      %2572 = vmatprep.subr.mxu0 0.0
      %2573 = vmatpush1.msra.mxu0 0.0
      %2574 = vmatprep.subr.mxu0 0.0
      %2575 = vmatpush1.msra.mxu0 0.0
      %2576 = vmatprep.subr.mxu0 0.0
      %2577 = vmatpush1.msra.mxu0 0.0
      %2578 = vmatprep.subr.mxu0 0.0
      %2579 = vmatpush1.msra.mxu0 0.0
      %2580 = vmatprep.mubr.f32.mxu0 0.0
      %2581 = vmatmul.mubr.f32.gmra.mrb[0].mxu0 %v2467
      %v2582 = vpop.f32.mrb[0].mxu0
      %v2583 = vadd.f32 0.0, %v2582
      %v2584 = vpop.f32.mrb[0].mxu0
      %2585 = vmatprep.mubr.f32.mxu0 0.0
      %2586 = vmatmul.mubr.f32.gmra.mrb[0].mxu0 %v2468
      %v2587 = vpop.f32.mrb[0].mxu0
      %v2588 = vadd.f32 0.0, %v2587
      %v2589 = vpop.f32.mrb[0].mxu0
      %2590 = vmatprep.mubr.f32.mxu0 0.0
      %2591 = vmatmul.mubr.f32.gmra.mrb[0].mxu0 %v2469
      %v2592 = vpop.f32.mrb[0].mxu0
      %v2593 = vadd.f32 0.0, %v2592
      %v2594 = vpop.f32.mrb[0].mxu0
      %2595 = vmatprep.mubr.f32.mxu0 0.0
      %2596 = vmatmul.mubr.f32.gmra.mrb[0].mxu0 %v2470
      %v2597 = vpop.f32.mrb[0].mxu0
      %v2598 = vadd.f32 0.0, %v2597
      %v2599 = vpop.f32.mrb[0].mxu0
      %2600 = vmatprep.mubr.f32.mxu0 0.0
      %2601 = vmatmul.mubr.f32.gmra.mrb[0].mxu0 %v2471
      %v2602 = vpop.f32.mrb[0].mxu0
      %v2603 = vadd.f32 0.0, %v2602
      %v2604 = vpop.f32.mrb[0].mxu0
      %2605 = vmatprep.mubr.f32.mxu0 0.0
      %2606 = vmatmul.mubr.f32.gmra.mrb[0].mxu0 %v2472
      %v2607 = vpop.f32.mrb[0].mxu0
      %v2608 = vadd.f32 0.0, %v2607
      %v2609 = vpop.f32.mrb[0].mxu0
      %2610 = vmatprep.mubr.f32.mxu0 0.0
      %2611 = vmatmul.mubr.f32.gmra.mrb[0].mxu0 %v2473
      %v2612 = vpop.f32.mrb[0].mxu0
      %v2613 = vadd.f32 0.0, %v2612
      %v2614 = vpop.f32.mrb[0].mxu0
      %2615 = vmatprep.mubr.f32.mxu0 0.0
      %2616 = vmatmul.mubr.f32.gmra.mrb[0].mxu0 %v2474
      %v2617 = vpop.f32.mrb[0].mxu0
      %v2618 = vadd.f32 0.0, %v2617
      %v2619 = vpop.f32.mrb[0].mxu0
      %2620 = vmatprep.mubr.f32.mxu0 0.0
      %2621 = vmatmul.mubr.f32.gmra.mrb[0].mxu0 %v2475
      %v2622 = vpop.f32.mrb[0].mxu0
      %v2623 = vadd.f32 0.0, %v2622
      %v2624 = vpop.f32.mrb[0].mxu0
      %2625 = vmatprep.mubr.f32.mxu0 0.0
      %2626 = vmatmul.mubr.f32.gmra.mrb[0].mxu0 %v2476
      %v2627 = vpop.f32.mrb[0].mxu0
      %v2628 = vadd.f32 0.0, %v2627
      %v2629 = vpop.f32.mrb[0].mxu0
      %2630 = vmatprep.mubr.f32.mxu0 0.0
      %2631 = vmatmul.mubr.f32.gmra.mrb[0].mxu0 %v2477
      %v2632 = vpop.f32.mrb[0].mxu0
      %v2633 = vadd.f32 0.0, %v2632
      %v2634 = vpop.f32.mrb[0].mxu0
      %2635 = vmatprep.mubr.f32.mxu0 0.0
      %2636 = vmatmul.mubr.f32.gmra.mrb[0].mxu0 %v2478
      %v2637 = vpop.f32.mrb[0].mxu0
      %v2638 = vadd.f32 0.0, %v2637
      %v2639 = vpop.f32.mrb[0].mxu0
      %2640 = vmatprep.mubr.f32.mxu0 0.0
      %2641 = vmatmul.mubr.f32.gmra.mrb[0].mxu0 %v2479
      %v2642 = vpop.f32.mrb[0].mxu0
      %v2643 = vadd.f32 0.0, %v2642
      %v2644 = vpop.f32.mrb[0].mxu0
      %2645 = vmatprep.mubr.f32.mxu0 0.0
      %2646 = vmatmul.mubr.f32.gmra.mrb[0].mxu0 %v2480
      %v2647 = vpop.f32.mrb[0].mxu0
      %v2648 = vadd.f32 0.0, %v2647
      %v2649 = vpop.f32.mrb[0].mxu0
      %2650 = vmatprep.mubr.f32.mxu0 0.0
      %2651 = vmatmul.mubr.f32.gmra.mrb[0].mxu0 %v2481
      %v2652 = vpop.f32.mrb[0].mxu0
      %v2653 = vadd.f32 0.0, %v2652
      %v2654 = vpop.f32.mrb[0].mxu0
      %2655 = vmatprep.mubr.f32.mxu0 0.0
      %2656 = vmatmul.mubr.f32.gmra.mrb[0].mxu0 %v2482
      %v2657 = vpop.f32.mrb[0].mxu0
      %v2658 = vadd.f32 0.0, %v2657
      %v2659 = vpop.f32.mrb[0].mxu0
      %2660 = vmatprep.mubr.f32.mxu0 0.0
      %2661 = vmatmul.mubr.f32.gmra.mrb[0].mxu0 %v2483
      %v2662 = vpop.f32.mrb[0].mxu0
      %v2663 = vadd.f32 0.0, %v2662
      %v2664 = vpop.f32.mrb[0].mxu0
      %2665 = vmatprep.mubr.f32.mxu0 0.0
      %2666 = vmatmul.mubr.f32.gmra.mrb[0].mxu0 %v2484
      %v2667 = vpop.f32.mrb[0].mxu0
      %v2668 = vadd.f32 0.0, %v2667
      %v2669 = vpop.f32.mrb[0].mxu0
      %2670 = vmatprep.mubr.f32.mxu0 0.0
      %2671 = vmatmul.mubr.f32.gmra.mrb[0].mxu0 %v2485
      %v2672 = vpop.f32.mrb[0].mxu0
      %v2673 = vadd.f32 0.0, %v2672
      %v2674 = vpop.f32.mrb[0].mxu0
      %2675 = vmatprep.mubr.f32.mxu0 0.0
      %2676 = vmatmul.mubr.f32.gmra.mrb[0].mxu0 %v2486
      %v2677 = vpop.f32.mrb[0].mxu0
      %v2678 = vadd.f32 0.0, %v2677
      %v2679 = vpop.f32.mrb[0].mxu0
      %2680 = vmatprep.mubr.f32.mxu0 0.0
      %2681 = vmatmul.mubr.f32.gmra.mrb[0].mxu0 %v2487
      %v2682 = vpop.f32.mrb[0].mxu0
      %v2683 = vadd.f32 0.0, %v2682
      %v2684 = vpop.f32.mrb[0].mxu0
      %2685 = vmatprep.mubr.f32.mxu0 0.0
      %2686 = vmatmul.mubr.f32.gmra.mrb[0].mxu0 %v2488
      %v2687 = vpop.f32.mrb[0].mxu0
      %v2688 = vadd.f32 0.0, %v2687
      %v2689 = vpop.f32.mrb[0].mxu0
      %2690 = vmatprep.mubr.f32.mxu0 0.0
      %2691 = vmatmul.mubr.f32.gmra.mrb[0].mxu0 %v2489
      %v2692 = vpop.f32.mrb[0].mxu0
      %v2693 = vadd.f32 0.0, %v2692
      %v2694 = vpop.f32.mrb[0].mxu0
      %2695 = vmatprep.mubr.f32.mxu0 0.0
      %2696 = vmatmul.mubr.f32.gmra.mrb[0].mxu0 %v2490
      %v2697 = vpop.f32.mrb[0].mxu0
      %v2698 = vadd.f32 0.0, %v2697
      %v2699 = vpop.f32.mrb[0].mxu0
      %2700 = vmatprep.mubr.f32.mxu0 0.0
      %2701 = vmatmul.mubr.f32.gmra.mrb[0].mxu0 %v2491
      %v2702 = vpop.f32.mrb[0].mxu0
      %v2703 = vadd.f32 0.0, %v2702
      %v2704 = vpop.f32.mrb[0].mxu0
      %2705 = vmatprep.mubr.f32.mxu0 0.0
      %2706 = vmatmul.mubr.f32.gmra.mrb[0].mxu0 %v2492
      %v2707 = vpop.f32.mrb[0].mxu0
      %v2708 = vadd.f32 0.0, %v2707
      %v2709 = vpop.f32.mrb[0].mxu0
      %2710 = vmatprep.mubr.f32.mxu0 0.0
      %2711 = vmatmul.mubr.f32.gmra.mrb[0].mxu0 %v2493
      %v2712 = vpop.f32.mrb[0].mxu0
      %v2713 = vadd.f32 0.0, %v2712
      %v2714 = vpop.f32.mrb[0].mxu0
      %2715 = vmatprep.mubr.f32.mxu0 0.0
      %2716 = vmatmul.mubr.f32.gmra.mrb[0].mxu0 %v2494
      %v2717 = vpop.f32.mrb[0].mxu0
      %v2718 = vadd.f32 0.0, %v2717
      %v2719 = vpop.f32.mrb[0].mxu0
      %2720 = vmatprep.mubr.f32.mxu0 0.0
      %2721 = vmatmul.mubr.f32.gmra.mrb[0].mxu0 %v2495
      %v2722 = vpop.f32.mrb[0].mxu0
      %v2723 = vadd.f32 0.0, %v2722
      %v2724 = vpop.f32.mrb[0].mxu0
      %2725 = vmatprep.mubr.f32.mxu0 0.0
      %2726 = vmatmul.mubr.f32.gmra.mrb[0].mxu0 %v2496
      %v2727 = vpop.f32.mrb[0].mxu0
      %v2728 = vadd.f32 0.0, %v2727
      %v2729 = vpop.f32.mrb[0].mxu0
      %2730 = vmatprep.mubr.f32.mxu0 0.0
      %2731 = vmatmul.mubr.f32.gmra.mrb[0].mxu0 %v2497
      %v2732 = vpop.f32.mrb[0].mxu0
      %v2733 = vadd.f32 0.0, %v2732
      %v2734 = vpop.f32.mrb[0].mxu0
      %2735 = vmatprep.mubr.f32.mxu0 0.0
      %2736 = vmatmul.mubr.f32.gmra.mrb[0].mxu0 %v2498
      %v2737 = vpop.f32.mrb[0].mxu0
      %v2738 = vadd.f32 0.0, %v2737
      %v2739 = vpop.f32.mrb[0].mxu0
      %2740 = vdwg.mxu0
      %v2741 = vadd.f32 %v2435, %v2583
      %v2742 = vadd.f32 %v2436, %v2588
      %v2743 = vadd.f32 %v2437, %v2593
      %v2744 = vadd.f32 %v2438, %v2598
      %v2745 = vadd.f32 %v2439, %v2603
      %v2746 = vadd.f32 %v2440, %v2608
      %v2747 = vadd.f32 %v2441, %v2613
      %v2748 = vadd.f32 %v2442, %v2618
      %v2749 = vadd.f32 %v2443, %v2623
      %v2750 = vadd.f32 %v2444, %v2628
      %v2751 = vadd.f32 %v2445, %v2633
      %v2752 = vadd.f32 %v2446, %v2638
      %v2753 = vadd.f32 %v2447, %v2643
      %v2754 = vadd.f32 %v2448, %v2648
      %v2755 = vadd.f32 %v2449, %v2653
      %v2756 = vadd.f32 %v2450, %v2658
      %v2757 = vadd.f32 %v2451, %v2663
      %v2758 = vadd.f32 %v2452, %v2668
      %v2759 = vadd.f32 %v2453, %v2673
      %v2760 = vadd.f32 %v2454, %v2678
      %v2761 = vadd.f32 %v2455, %v2683
      %v2762 = vadd.f32 %v2456, %v2688
      %v2763 = vadd.f32 %v2457, %v2693
      %v2764 = vadd.f32 %v2458, %v2698
      %v2765 = vadd.f32 %v2459, %v2703
      %v2766 = vadd.f32 %v2460, %v2708
      %v2767 = vadd.f32 %v2461, %v2713
      %v2768 = vadd.f32 %v2462, %v2718
      %v2769 = vadd.f32 %v2463, %v2723
      %v2770 = vadd.f32 %v2464, %v2728
      %v2771 = vadd.f32 %v2465, %v2733
      %v2772 = vadd.f32 %v2466, %v2738
      %v2773 = vld [vmem:[%s2160 + $0x2] sm:$0xff]
      %v2774 = vld [vmem:[%s2160 + $0xa] sm:$0xff]
      %v2775 = vld [vmem:[%s2160 + $0x1a] sm:$0xff]
      %v2776 = vld [vmem:[%s2160 + $0x22] sm:$0xff]
      %v2777 = vld [vmem:[%s2160 + $0x32] sm:$0xff]
      %v2778 = vld [vmem:[%s2160 + $0x3a] sm:$0xff]
      %v2779 = vld [vmem:[%s2160 + $0x4a] sm:$0xff]
      %v2780 = vld [vmem:[%s2160 + $0x52] sm:$0xff]
      %v2781 = vld [vmem:[%s2160 + $0x62] sm:$0xff]
      %v2782 = vld [vmem:[%s2160 + $0x6a] sm:$0xff]
      %v2783 = vld [vmem:[%s2160 + $0x7a] sm:$0xff]
      %v2784 = vld [vmem:[%s2160 + $0x82] sm:$0xff]
      %v2785 = vld [vmem:[%s2160 + $0x92] sm:$0xff]
      %v2786 = vld [vmem:[%s2160 + $0x9a] sm:$0xff]
      %v2787 = vld [vmem:[%s2160 + $0xaa] sm:$0xff]
      %v2788 = vld [vmem:[%s2160 + $0xb2] sm:$0xff]
      %v2789 = vld [vmem:[%s2160 + $0xc2] sm:$0xff]
      %v2790 = vld [vmem:[%s2160 + $0xca] sm:$0xff]
      %v2791 = vld [vmem:[%s2160 + $0xda] sm:$0xff]
      %v2792 = vld [vmem:[%s2160 + $0xe2] sm:$0xff]
      %v2793 = vld [vmem:[%s2160 + $0xf2] sm:$0xff]
      %v2794 = vld [vmem:[%s2160 + $0xfa] sm:$0xff]
      %v2795 = vld [vmem:[%s2160 + $0x10a] sm:$0xff]
      %v2796 = vld [vmem:[%s2160 + $0x112] sm:$0xff]
      %v2797 = vld [vmem:[%s2160 + $0x122] sm:$0xff]
      %v2798 = vld [vmem:[%s2160 + $0x12a] sm:$0xff]
      %v2799 = vld [vmem:[%s2160 + $0x13a] sm:$0xff]
      %v2800 = vld [vmem:[%s2160 + $0x142] sm:$0xff]
      %v2801 = vld [vmem:[%s2160 + $0x152] sm:$0xff]
      %v2802 = vld [vmem:[%s2160 + $0x15a] sm:$0xff]
      %v2803 = vld [vmem:[%s2160 + $0x16a] sm:$0xff]
      %v2804 = vld [vmem:[%s2160 + $0x172] sm:$0xff]
      %s2805 = scalar_lea.vmem %s265, 1024
      %v2806 = vld [vmem:[%s2805] sm:$0xff]
      %v2807 = vld [vmem:[%s2805 + $0x8] sm:$0xff]
      %v2808 = vld [vmem:[%s2805 + $0x10] sm:$0xff]
      %v2809 = vld [vmem:[%s2805 + $0x18] sm:$0xff]
      %v2810 = vld [vmem:[%s2805 + $0x20] sm:$0xff]
      %v2811 = vld [vmem:[%s2805 + $0x28] sm:$0xff]
      %v2812 = vld [vmem:[%s2805 + $0x30] sm:$0xff]
      %v2813 = vld [vmem:[%s2805 + $0x38] sm:$0xff]
      %v2814 = vld [vmem:[%s2805 + $0x40] sm:$0xff]
      %v2815 = vld [vmem:[%s2805 + $0x48] sm:$0xff]
      %v2816 = vld [vmem:[%s2805 + $0x50] sm:$0xff]
      %v2817 = vld [vmem:[%s2805 + $0x58] sm:$0xff]
      %v2818 = vld [vmem:[%s2805 + $0x60] sm:$0xff]
      %v2819 = vld [vmem:[%s2805 + $0x68] sm:$0xff]
      %v2820 = vld [vmem:[%s2805 + $0x70] sm:$0xff]
      %v2821 = vld [vmem:[%s2805 + $0x78] sm:$0xff]
      %2822 = vmatprep.subr.mxu0 0.0
      %2823 = vmatpush1.msra.mxu0 %v2806
      %2824 = vmatprep.subr.mxu0 0.0
      %2825 = vmatpush1.msra.mxu0 %v2807
      %2826 = vmatprep.subr.mxu0 0.0
      %2827 = vmatpush1.msra.mxu0 %v2808
      %2828 = vmatprep.subr.mxu0 0.0
      %2829 = vmatpush1.msra.mxu0 %v2809
      %2830 = vmatprep.subr.mxu0 0.0
      %2831 = vmatpush1.msra.mxu0 %v2810
      %2832 = vmatprep.subr.mxu0 0.0
      %2833 = vmatpush1.msra.mxu0 %v2811
      %2834 = vmatprep.subr.mxu0 0.0
      %2835 = vmatpush1.msra.mxu0 %v2812
      %2836 = vmatprep.subr.mxu0 0.0
      %2837 = vmatpush1.msra.mxu0 %v2813
      %2838 = vmatprep.subr.mxu0 0.0
      %2839 = vmatpush1.msra.mxu0 %v2814
      %2840 = vmatprep.subr.mxu0 0.0
      %2841 = vmatpush1.msra.mxu0 %v2815
      %2842 = vmatprep.subr.mxu0 0.0
      %2843 = vmatpush1.msra.mxu0 %v2816
      %2844 = vmatprep.subr.mxu0 0.0
      %2845 = vmatpush1.msra.mxu0 %v2817
      %2846 = vmatprep.subr.mxu0 0.0
      %2847 = vmatpush1.msra.mxu0 %v2818
      %2848 = vmatprep.subr.mxu0 0.0
      %2849 = vmatpush1.msra.mxu0 %v2819
      %2850 = vmatprep.subr.mxu0 0.0
      %2851 = vmatpush1.msra.mxu0 %v2820
      %2852 = vmatprep.subr.mxu0 0.0
      %2853 = vmatpush1.msra.mxu0 %v2821
      %2854 = vmatprep.subr.mxu0 0.0
      %2855 = vmatpush1.msra.mxu0 0.0
      %2856 = vmatprep.subr.mxu0 0.0
      %2857 = vmatpush1.msra.mxu0 0.0
      %2858 = vmatprep.subr.mxu0 0.0
      %2859 = vmatpush1.msra.mxu0 0.0
      %2860 = vmatprep.subr.mxu0 0.0
      %2861 = vmatpush1.msra.mxu0 0.0
      %2862 = vmatprep.subr.mxu0 0.0
      %2863 = vmatpush1.msra.mxu0 0.0
      %2864 = vmatprep.subr.mxu0 0.0
      %2865 = vmatpush1.msra.mxu0 0.0
      %2866 = vmatprep.subr.mxu0 0.0
      %2867 = vmatpush1.msra.mxu0 0.0
      %2868 = vmatprep.subr.mxu0 0.0
      %2869 = vmatpush1.msra.mxu0 0.0
      %2870 = vmatprep.subr.mxu0 0.0
      %2871 = vmatpush1.msra.mxu0 0.0
      %2872 = vmatprep.subr.mxu0 0.0
      %2873 = vmatpush1.msra.mxu0 0.0
      %2874 = vmatprep.subr.mxu0 0.0
      %2875 = vmatpush1.msra.mxu0 0.0
      %2876 = vmatprep.subr.mxu0 0.0
      %2877 = vmatpush1.msra.mxu0 0.0
      %2878 = vmatprep.subr.mxu0 0.0
      %2879 = vmatpush1.msra.mxu0 0.0
      %2880 = vmatprep.subr.mxu0 0.0
      %2881 = vmatpush1.msra.mxu0 0.0
      %2882 = vmatprep.subr.mxu0 0.0
      %2883 = vmatpush1.msra.mxu0 0.0
      %2884 = vmatprep.subr.mxu0 0.0
      %2885 = vmatpush1.msra.mxu0 0.0
      %2886 = vmatprep.mubr.f32.mxu0 0.0
      %2887 = vmatmul.mubr.f32.gmra.mrb[0].mxu0 %v2773
      %v2888 = vpop.f32.mrb[0].mxu0
      %v2889 = vadd.f32 0.0, %v2888
      %v2890 = vpop.f32.mrb[0].mxu0
      %2891 = vmatprep.mubr.f32.mxu0 0.0
      %2892 = vmatmul.mubr.f32.gmra.mrb[0].mxu0 %v2774
      %v2893 = vpop.f32.mrb[0].mxu0
      %v2894 = vadd.f32 0.0, %v2893
      %v2895 = vpop.f32.mrb[0].mxu0
      %2896 = vmatprep.mubr.f32.mxu0 0.0
      %2897 = vmatmul.mubr.f32.gmra.mrb[0].mxu0 %v2775
      %v2898 = vpop.f32.mrb[0].mxu0
      %v2899 = vadd.f32 0.0, %v2898
      %v2900 = vpop.f32.mrb[0].mxu0
      %2901 = vmatprep.mubr.f32.mxu0 0.0
      %2902 = vmatmul.mubr.f32.gmra.mrb[0].mxu0 %v2776
      %v2903 = vpop.f32.mrb[0].mxu0
      %v2904 = vadd.f32 0.0, %v2903
      %v2905 = vpop.f32.mrb[0].mxu0
      %2906 = vmatprep.mubr.f32.mxu0 0.0
      %2907 = vmatmul.mubr.f32.gmra.mrb[0].mxu0 %v2777
      %v2908 = vpop.f32.mrb[0].mxu0
      %v2909 = vadd.f32 0.0, %v2908
      %v2910 = vpop.f32.mrb[0].mxu0
      %2911 = vmatprep.mubr.f32.mxu0 0.0
      %2912 = vmatmul.mubr.f32.gmra.mrb[0].mxu0 %v2778
      %v2913 = vpop.f32.mrb[0].mxu0
      %v2914 = vadd.f32 0.0, %v2913
      %v2915 = vpop.f32.mrb[0].mxu0
      %2916 = vmatprep.mubr.f32.mxu0 0.0
      %2917 = vmatmul.mubr.f32.gmra.mrb[0].mxu0 %v2779
      %v2918 = vpop.f32.mrb[0].mxu0
      %v2919 = vadd.f32 0.0, %v2918
      %v2920 = vpop.f32.mrb[0].mxu0
      %2921 = vmatprep.mubr.f32.mxu0 0.0
      %2922 = vmatmul.mubr.f32.gmra.mrb[0].mxu0 %v2780
      %v2923 = vpop.f32.mrb[0].mxu0
      %v2924 = vadd.f32 0.0, %v2923
      %v2925 = vpop.f32.mrb[0].mxu0
      %2926 = vmatprep.mubr.f32.mxu0 0.0
      %2927 = vmatmul.mubr.f32.gmra.mrb[0].mxu0 %v2781
      %v2928 = vpop.f32.mrb[0].mxu0
      %v2929 = vadd.f32 0.0, %v2928
      %v2930 = vpop.f32.mrb[0].mxu0
      %2931 = vmatprep.mubr.f32.mxu0 0.0
      %2932 = vmatmul.mubr.f32.gmra.mrb[0].mxu0 %v2782
      %v2933 = vpop.f32.mrb[0].mxu0
      %v2934 = vadd.f32 0.0, %v2933
      %v2935 = vpop.f32.mrb[0].mxu0
      %2936 = vmatprep.mubr.f32.mxu0 0.0
      %2937 = vmatmul.mubr.f32.gmra.mrb[0].mxu0 %v2783
      %v2938 = vpop.f32.mrb[0].mxu0
      %v2939 = vadd.f32 0.0, %v2938
      %v2940 = vpop.f32.mrb[0].mxu0
      %2941 = vmatprep.mubr.f32.mxu0 0.0
      %2942 = vmatmul.mubr.f32.gmra.mrb[0].mxu0 %v2784
      %v2943 = vpop.f32.mrb[0].mxu0
      %v2944 = vadd.f32 0.0, %v2943
      %v2945 = vpop.f32.mrb[0].mxu0
      %2946 = vmatprep.mubr.f32.mxu0 0.0
      %2947 = vmatmul.mubr.f32.gmra.mrb[0].mxu0 %v2785
      %v2948 = vpop.f32.mrb[0].mxu0
      %v2949 = vadd.f32 0.0, %v2948
      %v2950 = vpop.f32.mrb[0].mxu0
      %2951 = vmatprep.mubr.f32.mxu0 0.0
      %2952 = vmatmul.mubr.f32.gmra.mrb[0].mxu0 %v2786
      %v2953 = vpop.f32.mrb[0].mxu0
      %v2954 = vadd.f32 0.0, %v2953
      %v2955 = vpop.f32.mrb[0].mxu0
      %2956 = vmatprep.mubr.f32.mxu0 0.0
      %2957 = vmatmul.mubr.f32.gmra.mrb[0].mxu0 %v2787
      %v2958 = vpop.f32.mrb[0].mxu0
      %v2959 = vadd.f32 0.0, %v2958
      %v2960 = vpop.f32.mrb[0].mxu0
      %2961 = vmatprep.mubr.f32.mxu0 0.0
      %2962 = vmatmul.mubr.f32.gmra.mrb[0].mxu0 %v2788
      %v2963 = vpop.f32.mrb[0].mxu0
      %v2964 = vadd.f32 0.0, %v2963
      %v2965 = vpop.f32.mrb[0].mxu0
      %2966 = vmatprep.mubr.f32.mxu0 0.0
      %2967 = vmatmul.mubr.f32.gmra.mrb[0].mxu0 %v2789
      %v2968 = vpop.f32.mrb[0].mxu0
      %v2969 = vadd.f32 0.0, %v2968
      %v2970 = vpop.f32.mrb[0].mxu0
      %2971 = vmatprep.mubr.f32.mxu0 0.0
      %2972 = vmatmul.mubr.f32.gmra.mrb[0].mxu0 %v2790
      %v2973 = vpop.f32.mrb[0].mxu0
      %v2974 = vadd.f32 0.0, %v2973
      %v2975 = vpop.f32.mrb[0].mxu0
      %2976 = vmatprep.mubr.f32.mxu0 0.0
      %2977 = vmatmul.mubr.f32.gmra.mrb[0].mxu0 %v2791
      %v2978 = vpop.f32.mrb[0].mxu0
      %v2979 = vadd.f32 0.0, %v2978
      %v2980 = vpop.f32.mrb[0].mxu0
      %2981 = vmatprep.mubr.f32.mxu0 0.0
      %2982 = vmatmul.mubr.f32.gmra.mrb[0].mxu0 %v2792
      %v2983 = vpop.f32.mrb[0].mxu0
      %v2984 = vadd.f32 0.0, %v2983
      %v2985 = vpop.f32.mrb[0].mxu0
      %2986 = vmatprep.mubr.f32.mxu0 0.0
      %2987 = vmatmul.mubr.f32.gmra.mrb[0].mxu0 %v2793
      %v2988 = vpop.f32.mrb[0].mxu0
      %v2989 = vadd.f32 0.0, %v2988
      %v2990 = vpop.f32.mrb[0].mxu0
      %2991 = vmatprep.mubr.f32.mxu0 0.0
      %2992 = vmatmul.mubr.f32.gmra.mrb[0].mxu0 %v2794
      %v2993 = vpop.f32.mrb[0].mxu0
      %v2994 = vadd.f32 0.0, %v2993
      %v2995 = vpop.f32.mrb[0].mxu0
      %2996 = vmatprep.mubr.f32.mxu0 0.0
      %2997 = vmatmul.mubr.f32.gmra.mrb[0].mxu0 %v2795
      %v2998 = vpop.f32.mrb[0].mxu0
      %v2999 = vadd.f32 0.0, %v2998
      %v3000 = vpop.f32.mrb[0].mxu0
      %3001 = vmatprep.mubr.f32.mxu0 0.0
      %3002 = vmatmul.mubr.f32.gmra.mrb[0].mxu0 %v2796
      %v3003 = vpop.f32.mrb[0].mxu0
      %v3004 = vadd.f32 0.0, %v3003
      %v3005 = vpop.f32.mrb[0].mxu0
      %3006 = vmatprep.mubr.f32.mxu0 0.0
      %3007 = vmatmul.mubr.f32.gmra.mrb[0].mxu0 %v2797
      %v3008 = vpop.f32.mrb[0].mxu0
      %v3009 = vadd.f32 0.0, %v3008
      %v3010 = vpop.f32.mrb[0].mxu0
      %3011 = vmatprep.mubr.f32.mxu0 0.0
      %3012 = vmatmul.mubr.f32.gmra.mrb[0].mxu0 %v2798
      %v3013 = vpop.f32.mrb[0].mxu0
      %v3014 = vadd.f32 0.0, %v3013
      %v3015 = vpop.f32.mrb[0].mxu0
      %3016 = vmatprep.mubr.f32.mxu0 0.0
      %3017 = vmatmul.mubr.f32.gmra.mrb[0].mxu0 %v2799
      %v3018 = vpop.f32.mrb[0].mxu0
      %v3019 = vadd.f32 0.0, %v3018
      %v3020 = vpop.f32.mrb[0].mxu0
      %3021 = vmatprep.mubr.f32.mxu0 0.0
      %3022 = vmatmul.mubr.f32.gmra.mrb[0].mxu0 %v2800
      %v3023 = vpop.f32.mrb[0].mxu0
      %v3024 = vadd.f32 0.0, %v3023
      %v3025 = vpop.f32.mrb[0].mxu0
      %3026 = vmatprep.mubr.f32.mxu0 0.0
      %3027 = vmatmul.mubr.f32.gmra.mrb[0].mxu0 %v2801
      %v3028 = vpop.f32.mrb[0].mxu0
      %v3029 = vadd.f32 0.0, %v3028
      %v3030 = vpop.f32.mrb[0].mxu0
      %3031 = vmatprep.mubr.f32.mxu0 0.0
      %3032 = vmatmul.mubr.f32.gmra.mrb[0].mxu0 %v2802
      %v3033 = vpop.f32.mrb[0].mxu0
      %v3034 = vadd.f32 0.0, %v3033
      %v3035 = vpop.f32.mrb[0].mxu0
      %3036 = vmatprep.mubr.f32.mxu0 0.0
      %3037 = vmatmul.mubr.f32.gmra.mrb[0].mxu0 %v2803
      %v3038 = vpop.f32.mrb[0].mxu0
      %v3039 = vadd.f32 0.0, %v3038
      %v3040 = vpop.f32.mrb[0].mxu0
      %3041 = vmatprep.mubr.f32.mxu0 0.0
      %3042 = vmatmul.mubr.f32.gmra.mrb[0].mxu0 %v2804
      %v3043 = vpop.f32.mrb[0].mxu0
      %v3044 = vadd.f32 0.0, %v3043
      %v3045 = vpop.f32.mrb[0].mxu0
      %3046 = vdwg.mxu0
      %v3047 = vadd.f32 %v2741, %v2889
      %v3048 = vadd.f32 %v2742, %v2894
      %v3049 = vadd.f32 %v2743, %v2899
      %v3050 = vadd.f32 %v2744, %v2904
      %v3051 = vadd.f32 %v2745, %v2909
      %v3052 = vadd.f32 %v2746, %v2914
      %v3053 = vadd.f32 %v2747, %v2919
      %v3054 = vadd.f32 %v2748, %v2924
      %v3055 = vadd.f32 %v2749, %v2929
      %v3056 = vadd.f32 %v2750, %v2934
      %v3057 = vadd.f32 %v2751, %v2939
      %v3058 = vadd.f32 %v2752, %v2944
      %v3059 = vadd.f32 %v2753, %v2949
      %v3060 = vadd.f32 %v2754, %v2954
      %v3061 = vadd.f32 %v2755, %v2959
      %v3062 = vadd.f32 %v2756, %v2964
      %v3063 = vadd.f32 %v2757, %v2969
      %v3064 = vadd.f32 %v2758, %v2974
      %v3065 = vadd.f32 %v2759, %v2979
      %v3066 = vadd.f32 %v2760, %v2984
      %v3067 = vadd.f32 %v2761, %v2989
      %v3068 = vadd.f32 %v2762, %v2994
      %v3069 = vadd.f32 %v2763, %v2999
      %v3070 = vadd.f32 %v2764, %v3004
      %v3071 = vadd.f32 %v2765, %v3009
      %v3072 = vadd.f32 %v2766, %v3014
      %v3073 = vadd.f32 %v2767, %v3019
      %v3074 = vadd.f32 %v2768, %v3024
      %v3075 = vadd.f32 %v2769, %v3029
      %v3076 = vadd.f32 %v2770, %v3034
      %v3077 = vadd.f32 %v2771, %v3039
      %v3078 = vadd.f32 %v2772, %v3044
      %v3079 = vadd.f32 %v3047, %v3048
      %v3080 = vadd.f32 %v3079, %v3049
      %v3081 = vadd.f32 %v3080, %v3050
      %v3082 = vadd.f32 %v3081, %v3051
      %v3083 = vadd.f32 %v3082, %v3052
      %v3084 = vadd.f32 %v3083, %v3053
      %v3085 = vadd.f32 %v3084, %v3054
      %v3086 = vadd.f32 %v3085, %v3055
      %v3087 = vadd.f32 %v3086, %v3056
      %v3088 = vadd.f32 %v3087, %v3057
      %v3089 = vadd.f32 %v3088, %v3058
      %v3090 = vadd.f32 %v3089, %v3059
      %v3091 = vadd.f32 %v3090, %v3060
      %v3092 = vadd.f32 %v3091, %v3061
      %v3093 = vadd.f32 %v3092, %v3062
      %v3094 = vadd.f32 %v3093, %v3063
      %v3095 = vadd.f32 %v3094, %v3064
      %v3096 = vadd.f32 %v3095, %v3065
      %v3097 = vadd.f32 %v3096, %v3066
      %v3098 = vadd.f32 %v3097, %v3067
      %v3099 = vadd.f32 %v3098, %v3068
      %v3100 = vadd.f32 %v3099, %v3069
      %v3101 = vadd.f32 %v3100, %v3070
      %v3102 = vadd.f32 %v3101, %v3071
      %v3103 = vadd.f32 %v3102, %v3072
      %v3104 = vadd.f32 %v3103, %v3073
      %v3105 = vadd.f32 %v3104, %v3074
      %v3106 = vadd.f32 %v3105, %v3075
      %v3107 = vadd.f32 %v3106, %v3076
      %v3108 = vadd.f32 %v3107, %v3077
      %v3109 = vadd.f32 %v3108, %v3078
      %v3110 = vrot.slane %v3109, 4
      %v3111 = vadd.f32 %v3109, %v3110
      %v3112 = vrot.slane %v3111, 2
      %v3113 = vadd.f32 %v3111, %v3112
      %v3114 = vrot.slane %v3113, 1
      %v3115 = vadd.f32 %v3113, %v3114
      %v3116 = vmul.f32 %v3047, %v3047
      %v3117 = vmul.f32 %v3048, %v3048
      %v3118 = vmul.f32 %v3049, %v3049
      %v3119 = vmul.f32 %v3050, %v3050
      %v3120 = vmul.f32 %v3051, %v3051
      %v3121 = vmul.f32 %v3052, %v3052
      %v3122 = vmul.f32 %v3053, %v3053
      %v3123 = vmul.f32 %v3054, %v3054
      %v3124 = vmul.f32 %v3055, %v3055
      %v3125 = vmul.f32 %v3056, %v3056
      %v3126 = vmul.f32 %v3057, %v3057
      %v3127 = vmul.f32 %v3058, %v3058
      %v3128 = vmul.f32 %v3059, %v3059
      %v3129 = vmul.f32 %v3060, %v3060
      %v3130 = vmul.f32 %v3061, %v3061
      %v3131 = vmul.f32 %v3062, %v3062
      %v3132 = vmul.f32 %v3063, %v3063
      %v3133 = vmul.f32 %v3064, %v3064
      %v3134 = vmul.f32 %v3065, %v3065
      %v3135 = vmul.f32 %v3066, %v3066
      %v3136 = vmul.f32 %v3067, %v3067
      %v3137 = vmul.f32 %v3068, %v3068
      %v3138 = vmul.f32 %v3069, %v3069
      %v3139 = vmul.f32 %v3070, %v3070
      %v3140 = vmul.f32 %v3071, %v3071
      %v3141 = vmul.f32 %v3072, %v3072
      %v3142 = vmul.f32 %v3073, %v3073
      %v3143 = vmul.f32 %v3074, %v3074
      %v3144 = vmul.f32 %v3075, %v3075
      %v3145 = vmul.f32 %v3076, %v3076
      %v3146 = vmul.f32 %v3077, %v3077
      %v3147 = vmul.f32 %v3078, %v3078
      %v3148 = vadd.f32 %v3116, %v3117
      %v3149 = vadd.f32 %v3148, %v3118
      %v3150 = vadd.f32 %v3149, %v3119
      %v3151 = vadd.f32 %v3150, %v3120
      %v3152 = vadd.f32 %v3151, %v3121
      %v3153 = vadd.f32 %v3152, %v3122
      %v3154 = vadd.f32 %v3153, %v3123
      %v3155 = vadd.f32 %v3154, %v3124
      %v3156 = vadd.f32 %v3155, %v3125
      %v3157 = vadd.f32 %v3156, %v3126
      %v3158 = vadd.f32 %v3157, %v3127
      %v3159 = vadd.f32 %v3158, %v3128
      %v3160 = vadd.f32 %v3159, %v3129
      %v3161 = vadd.f32 %v3160, %v3130
      %v3162 = vadd.f32 %v3161, %v3131
      %v3163 = vadd.f32 %v3162, %v3132
      %v3164 = vadd.f32 %v3163, %v3133
      %v3165 = vadd.f32 %v3164, %v3134
      %v3166 = vadd.f32 %v3165, %v3135
      %v3167 = vadd.f32 %v3166, %v3136
      %v3168 = vadd.f32 %v3167, %v3137
      %v3169 = vadd.f32 %v3168, %v3138
      %v3170 = vadd.f32 %v3169, %v3139
      %v3171 = vadd.f32 %v3170, %v3140
      %v3172 = vadd.f32 %v3171, %v3141
      %v3173 = vadd.f32 %v3172, %v3142
      %v3174 = vadd.f32 %v3173, %v3143
      %v3175 = vadd.f32 %v3174, %v3144
      %v3176 = vadd.f32 %v3175, %v3145
      %v3177 = vadd.f32 %v3176, %v3146
      %v3178 = vadd.f32 %v3177, %v3147
      %v3179 = vrot.slane %v3178, 4
      %v3180 = vadd.f32 %v3178, %v3179
      %v3181 = vrot.slane %v3180, 2
      %v3182 = vadd.f32 %v3180, %v3181
      %v3183 = vrot.slane %v3182, 1
      %v3184 = vadd.f32 %v3182, %v3183
      %vm3185 = vcmask 1040384
      %v3186 = vsel %vm3185, %v3115, %v3184
      %3187 = vst [vmem:[%s280] sm:$0x3] %v3186
      %3188 = vst [vmem:[%s273] sm:$0xff] %v3047
      %3189 = vst [vmem:[%s273 + $0x8] sm:$0xff] %v3048
      %3190 = vst [vmem:[%s273 + $0x10] sm:$0xff] %v3049
      %3191 = vst [vmem:[%s273 + $0x18] sm:$0xff] %v3050
      %3192 = vst [vmem:[%s273 + $0x20] sm:$0xff] %v3051
      %3193 = vst [vmem:[%s273 + $0x28] sm:$0xff] %v3052
      %3194 = vst [vmem:[%s273 + $0x30] sm:$0xff] %v3053
      %3195 = vst [vmem:[%s273 + $0x38] sm:$0xff] %v3054
      %3196 = vst [vmem:[%s273 + $0x40] sm:$0xff] %v3055
      %3197 = vst [vmem:[%s273 + $0x48] sm:$0xff] %v3056
      %3198 = vst [vmem:[%s273 + $0x50] sm:$0xff] %v3057
      %3199 = vst [vmem:[%s273 + $0x58] sm:$0xff] %v3058
      %3200 = vst [vmem:[%s273 + $0x60] sm:$0xff] %v3059
      %3201 = vst [vmem:[%s273 + $0x68] sm:$0xff] %v3060
      %3202 = vst [vmem:[%s273 + $0x70] sm:$0xff] %v3061
      %3203 = vst [vmem:[%s273 + $0x78] sm:$0xff] %v3062
      %3204 = vst [vmem:[%s273 + $0x80] sm:$0xff] %v3063
      %3205 = vst [vmem:[%s273 + $0x88] sm:$0xff] %v3064
      %3206 = vst [vmem:[%s273 + $0x90] sm:$0xff] %v3065
      %3207 = vst [vmem:[%s273 + $0x98] sm:$0xff] %v3066
      %3208 = vst [vmem:[%s273 + $0xa0] sm:$0xff] %v3067
      %3209 = vst [vmem:[%s273 + $0xa8] sm:$0xff] %v3068
      %3210 = vst [vmem:[%s273 + $0xb0] sm:$0xff] %v3069
      %3211 = vst [vmem:[%s273 + $0xb8] sm:$0xff] %v3070
      %3212 = vst [vmem:[%s273 + $0xc0] sm:$0xff] %v3071
      %3213 = vst [vmem:[%s273 + $0xc8] sm:$0xff] %v3072
      %3214 = vst [vmem:[%s273 + $0xd0] sm:$0xff] %v3073
      %3215 = vst [vmem:[%s273 + $0xd8] sm:$0xff] %v3074
      %3216 = vst [vmem:[%s273 + $0xe0] sm:$0xff] %v3075
      %3217 = vst [vmem:[%s273 + $0xe8] sm:$0xff] %v3076
      %3218 = vst [vmem:[%s273 + $0xf0] sm:$0xff] %v3077
      %3219 = vst [vmem:[%s273 + $0xf8] sm:$0xff] %v3078
      %p3220 = scmp.lt.s32.totalorder %s21, 1
      %s3221 = scalar_select %p3220, %s21, 1
      %p3222 = scmp.lt.s32.totalorder %s22, 0
      %s3223 = scalar_select %p3222, %s22, 0
      %s3224 = smul.addr %s3221, 32
      %s3225 = sadd.s32 %s3223, %s3224
      %s3226 = smul.addr %s3225, 8
      %s3227 = scalar_lea.vmem %s4, %s3226
      %p3228 = scmp.lt.s32.totalorder %s21, 1
      %s3229 = scalar_select %p3228, %s21, 1
      %p3230 = scmp.lt.s32.totalorder %s22, 0
      %s3231 = scalar_select %p3230, %s22, 0
      %s3232 = sadd.s32 %s3231, %s3229
      %s3233 = smul.addr %s3232, 2
      %s3234 = scalar_lea.vmem %s5, %s3233
      // Predicated region
      $region37: #{double_conv.3} parent=35 // pred_check
        %p3235 = pneg %p143
      $region38: #{double_conv.3} parent=35 // pred_check_branch
        %3237 = sbr.rel (%p3235) target = $region40
      $region39: #{double_conv.3} parent=35 // pred_region
        _
      $region40: #{double_conv.3} parent=35 // pred_fallthru
        _
      // Predicated region
      $region41: #{double_conv.3} parent=35 // pred_check
        %p3238 = pneg %p171
      $region42: #{double_conv.3} parent=35 // pred_check_branch
        %3240 = sbr.rel (%p3238) target = $region44
      $region43: #{double_conv.3} parent=35 // pred_region
        _
      $region44: #{double_conv.3} parent=35 // pred_fallthru
        _
    $region36: #{double_conv.3} parent=5 // pred_fallthru
      _
    %p3241 = scmp.le.s32.totalorder 2, %s12
    // Predicated region
    $region45: #{double_conv.3} parent=5 // pred_check
      %p3242 = pneg %p3241
    $region46: #{double_conv.3} parent=5 // pred_check_branch
      %3244 = sbr.rel (%p3242) target = $region48
    $region47: #{double_conv.3} parent=5 // pred_region
      %s3245 = ssub.s32 %s12, 2
      // Predicated region
      $region49: #{double_conv.3} parent=47 // pred_check
        %p3246 = pneg %p149
      $region50: #{double_conv.3} parent=47 // pred_check_branch
        %3248 = sbr.rel (%p3246) target = $region52
      $region51: #{double_conv.3} parent=47 // pred_region
        %p3249 = scmp.lt.s32.totalorder %s23, 1
        %s3250 = scalar_select %p3249, %s23, 1
        %p3251 = scmp.lt.s32.totalorder %s24, 0
        %s3252 = scalar_select %p3251, %s24, 0
        %s3253 = smul.addr %s3250, 32
        %s3254 = sadd.s32 %s3252, %s3253
        %s3255 = smul.addr %s3254, 8
        %s3256 = scalar_lea.vmem %s4, %s3255
      $region52: #{double_conv.3} parent=47 // pred_fallthru
        _
      // Predicated region
      $region53: #{double_conv.3} parent=47 // pred_check
        %p3257 = pneg %p177
      $region54: #{double_conv.3} parent=47 // pred_check_branch
        %3259 = sbr.rel (%p3257) target = $region56
      $region55: #{double_conv.3} parent=47 // pred_region
        %p3260 = scmp.lt.s32.totalorder %s23, 1
        %s3261 = scalar_select %p3260, %s23, 1
        %p3262 = scmp.lt.s32.totalorder %s24, 0
        %s3263 = scalar_select %p3262, %s24, 0
        %s3264 = sadd.s32 %s3263, %s3261
        %s3265 = smul.addr %s3264, 2
        %s3266 = scalar_lea.vmem %s5, %s3265
      $region56: #{double_conv.3} parent=47 // pred_fallthru
        _
    $region48: #{double_conv.3} parent=5 // pred_fallthru
      _
  $region6: #{double_conv.3} parent=0 // loop_footer
    %s16 = sadd.s32 1, %s12
  $region7: #{double_conv.3} parent=0 // loop_footer_branch
    %11 = sbr.rel target = $region3
  $region8: #{double_conv.3} parent=0 // loop_exit
    _

// kernel: double_conv.4
$region0: #{double_conv.4}
  #allocation0 [shape = 'u32[]', space=smem, size = 0x4, offset = 0x4, fixed_abs, tag = 'smem constant byte address 0x4 - core index']
  #allocation1 [shape = 'u32[144,128]{1,0:T(1,128)}', space=vmem, size = 0x12000, scoped, tag = 'internal scratch']
  #allocation2 [shape = 'f32[18,18,128]{2,1,0:T(8,128)}', space=vmem, size = 0x36000, scoped, tag = 'scratch operand']
  %s0 = inlined_call_operand.vmem [shape: f32[2,16,16,128], index: 0, kind: input, shape index: {}]
  %s1 = inlined_call_operand.vmem [shape: f32[3,3,128,128], index: 1, kind: input, shape index: {}]
  %s2 = inlined_call_operand.vmem [shape: f32[1,128], index: 2, kind: input, shape index: {}]
  %s3 = inlined_call_operand.vmem [shape: f32[1,128], index: 3, kind: input, shape index: {}]
  %s4 = inlined_call_operand.vmem [shape: f32[2,16,16,128], index: 4, kind: output, shape index: {0}]
  %s5 = inlined_call_operand.vmem [shape: f32[2,2,128], index: 5, kind: output, shape index: {1}]
  %6 = xla_tuple %s4, %s5
  %s7 = sld [smem:[#allocation0]]
  $region57: #{double_conv.4} parent=0
    _
  %s9 = ssub.s32 1, %s7
  %s10 = scalar_select 0, %s9, %s7
  loop: start=0, step=1, limit=4
  $region2: #{double_conv.4} parent=0 // loop_pre_header
    _
  $region3: #{double_conv.4} parent=0 // loop_header
    %s12 = sphi 0, %s16
    %p13 = scmp.ge.s32.totalorder %s12, 4
    %s19 = sphi 0, %s31
    %s20 = sphi 0, %s27
    %s21 = sphi 0, %s19
    %s22 = sphi 0, %s20
    %s23 = sphi 0, %s21
    %s24 = sphi 0, %s22
    %s34 = sphi 0, %s36
    %s37 = sphi 0, %s34
    %s38 = sphi 0, %s37
    %s54 = sphi 0, %s38
    %s60 = sphi 0, %s62
    %s63 = sphi 0, %s60
    %s64 = sphi 0, %s63
    %s80 = sphi 0, %s64
    %s84 = sphi 0, %s84
    %s86 = sphi 0, %s84
    %s87 = sphi 0, %s86
    %s101 = sphi 0, %s87
    %s105 = sphi 0, %s105
    %s107 = sphi 0, %s105
    %s108 = sphi 0, %s107
    %s122 = sphi 0, %s108
    %s130 = sphi 0, %s132
    %s133 = sphi 0, %s130
    %s134 = sphi 0, %s133
    %s150 = sphi 0, %s134
    %s158 = sphi 0, %s160
    %s161 = sphi 0, %s158
    %s162 = sphi 0, %s161
    %s178 = sphi 0, %s162
  $region4: #{double_conv.4} parent=0 // loop_header_branch
    %15 = sbr.rel (%p13) target = $region8
  $region5: #{double_conv.4} parent=0 // loop_body
    %s17 = ssub.s32 %s12, 1
    %s18 = ssub.s32 %s12, 2
    %s25 = sadd.s32 1, %s20
    %p26 = scmp.ge.s32.totalorder %s25, 1
    %s27 = scalar_select %p26, 0, %s25
    %s28 = sadd.s32 1, %s19
    %s29 = scalar_select %p26, %s28, %s19
    %p30 = scmp.ge.s32.totalorder %s29, 2
    %s31 = scalar_select %p30, 0, %s29
    %s32 = ssub.s32 %s19, %s31
    %p33 = scmp.eq.s32.totalorder %s32, 0
    %s35 = sadd.s32 %s34, 1
    %s36 = scalar_select %p33, %s34, %s35
    %p39 = pneg %p33
    %p40 = scmp.eq.s32.totalorder %s12, 1
    %p41 = por %p39, %p40
    %p42 = scmp.ne.s32.totalorder %s34, %s37
    %p43 = scmp.eq.s32.totalorder %s12, 0
    %p44 = por %p42, %p43
    %p45 = scmp.ne.s32.totalorder %s34, %s37
    %p46 = scmp.eq.s32.totalorder %s17, 1
    %p47 = por %p45, %p46
    %p48 = scmp.ne.s32.totalorder %s37, %s38
    %p49 = scmp.eq.s32.totalorder %s17, 0
    %p50 = por %p48, %p49
    %p51 = scmp.ne.s32.totalorder %s37, %s38
    %p52 = scmp.eq.s32.totalorder %s18, 1
    %p53 = por %p51, %p52
    %p55 = scmp.ne.s32.totalorder %s38, %s54
    %p56 = scmp.eq.s32.totalorder %s18, 0
    %p57 = por %p55, %p56
    %s58 = ssub.s32 %s20, %s27
    %p59 = scmp.eq.s32.totalorder %s58, 0
    %s61 = sadd.s32 %s60, 1
    %s62 = scalar_select %p59, %s60, %s61
    %p65 = pneg %p59
    %p66 = scmp.eq.s32.totalorder %s12, 1
    %p67 = por %p65, %p66
    %p68 = scmp.ne.s32.totalorder %s60, %s63
    %p69 = scmp.eq.s32.totalorder %s12, 0
    %p70 = por %p68, %p69
    %p71 = scmp.ne.s32.totalorder %s60, %s63
    %p72 = scmp.eq.s32.totalorder %s17, 1
    %p73 = por %p71, %p72
    %p74 = scmp.ne.s32.totalorder %s63, %s64
    %p75 = scmp.eq.s32.totalorder %s17, 0
    %p76 = por %p74, %p75
    %p77 = scmp.ne.s32.totalorder %s63, %s64
    %p78 = scmp.eq.s32.totalorder %s18, 1
    %p79 = por %p77, %p78
    %p81 = scmp.ne.s32.totalorder %s64, %s80
    %p82 = scmp.eq.s32.totalorder %s18, 0
    %p83 = por %p81, %p82
    %s85 = sadd.s32 %s84, 1
    %p88 = scmp.eq.s32.totalorder %s12, 1
    %p89 = scmp.ne.s32.totalorder %s84, %s86
    %p90 = scmp.eq.s32.totalorder %s12, 0
    %p91 = por %p89, %p90
    %p92 = scmp.ne.s32.totalorder %s84, %s86
    %p93 = scmp.eq.s32.totalorder %s17, 1
    %p94 = por %p92, %p93
    %p95 = scmp.ne.s32.totalorder %s86, %s87
    %p96 = scmp.eq.s32.totalorder %s17, 0
    %p97 = por %p95, %p96
    %p98 = scmp.ne.s32.totalorder %s86, %s87
    %p99 = scmp.eq.s32.totalorder %s18, 1
    %p100 = por %p98, %p99
    %p102 = scmp.ne.s32.totalorder %s87, %s101
    %p103 = scmp.eq.s32.totalorder %s18, 0
    %p104 = por %p102, %p103
    %s106 = sadd.s32 %s105, 1
    %p109 = scmp.eq.s32.totalorder %s12, 1
    %p110 = scmp.ne.s32.totalorder %s105, %s107
    %p111 = scmp.eq.s32.totalorder %s12, 0
    %p112 = por %p110, %p111
    %p113 = scmp.ne.s32.totalorder %s105, %s107
    %p114 = scmp.eq.s32.totalorder %s17, 1
    %p115 = por %p113, %p114
    %p116 = scmp.ne.s32.totalorder %s107, %s108
    %p117 = scmp.eq.s32.totalorder %s17, 0
    %p118 = por %p116, %p117
    %p119 = scmp.ne.s32.totalorder %s107, %s108
    %p120 = scmp.eq.s32.totalorder %s18, 1
    %p121 = por %p119, %p120
    %p123 = scmp.ne.s32.totalorder %s108, %s122
    %p124 = scmp.eq.s32.totalorder %s18, 0
    %p125 = por %p123, %p124
    %s126 = ssub.s32 %s19, %s31
    %s127 = ssub.s32 %s20, %s27
    %s128 = sor.u32 %s126, %s127
    %p129 = scmp.eq.s32.totalorder %s128, 0
    %s131 = sadd.s32 %s130, 1
    %s132 = scalar_select %p129, %s130, %s131
    %p135 = pneg %p129
    %p136 = scmp.eq.s32.totalorder %s12, 1
    %p137 = por %p135, %p136
    %p138 = scmp.ne.s32.totalorder %s130, %s133
    %p139 = scmp.eq.s32.totalorder %s12, 0
    %p140 = por %p138, %p139
    %p141 = scmp.ne.s32.totalorder %s130, %s133
    %p142 = scmp.eq.s32.totalorder %s17, 1
    %p143 = por %p141, %p142
    %p144 = scmp.ne.s32.totalorder %s133, %s134
    %p145 = scmp.eq.s32.totalorder %s17, 0
    %p146 = por %p144, %p145
    %p147 = scmp.ne.s32.totalorder %s133, %s134
    %p148 = scmp.eq.s32.totalorder %s18, 1
    %p149 = por %p147, %p148
    %p151 = scmp.ne.s32.totalorder %s134, %s150
    %p152 = scmp.eq.s32.totalorder %s18, 0
    %p153 = por %p151, %p152
    %s154 = ssub.s32 %s19, %s31
    %s155 = ssub.s32 %s20, %s27
    %s156 = sor.u32 %s154, %s155
    %p157 = scmp.eq.s32.totalorder %s156, 0
    %s159 = sadd.s32 %s158, 1
    %s160 = scalar_select %p157, %s158, %s159
    %p163 = pneg %p157
    %p164 = scmp.eq.s32.totalorder %s12, 1
    %p165 = por %p163, %p164
    %p166 = scmp.ne.s32.totalorder %s158, %s161
    %p167 = scmp.eq.s32.totalorder %s12, 0
    %p168 = por %p166, %p167
    %p169 = scmp.ne.s32.totalorder %s158, %s161
    %p170 = scmp.eq.s32.totalorder %s17, 1
    %p171 = por %p169, %p170
    %p172 = scmp.ne.s32.totalorder %s161, %s162
    %p173 = scmp.eq.s32.totalorder %s17, 0
    %p174 = por %p172, %p173
    %p175 = scmp.ne.s32.totalorder %s161, %s162
    %p176 = scmp.eq.s32.totalorder %s18, 1
    %p177 = por %p175, %p176
    %p179 = scmp.ne.s32.totalorder %s162, %s178
    %p180 = scmp.eq.s32.totalorder %s18, 0
    %p181 = por %p179, %p180
    %p182 = scmp.le.s32.totalorder 1, %s12
    %p183 = scmp.lt.s32.totalorder %s12, 3
    %p184 = pnand %p182, %p183
    %p185 = pneg %p184
    // Predicated region
    $region9: #{double_conv.4} parent=5 // pred_check
      _
    $region10: #{double_conv.4} parent=5 // pred_check_branch
      %187 = sbr.rel (%p184) target = $region12
    $region11: #{double_conv.4} parent=5 // pred_region
      %s188 = ssub.s32 %s12, 1
      // Predicated region
      $region13: #{double_conv.4} parent=11 // pred_check
        %p189 = pneg %p76
      $region14: #{double_conv.4} parent=11 // pred_check_branch
        %191 = sbr.rel (%p189) target = $region16
      $region15: #{double_conv.4} parent=11 // pred_region
        %p192 = scmp.lt.s32.totalorder %s22, 0
        %s193 = scalar_select %p192, %s22, 0
        %s194 = smul.addr %s193, 8
        %s195 = scalar_lea.vmem %s1, %s194
      $region16: #{double_conv.4} parent=11 // pred_fallthru
        _
      // Predicated region
      $region17: #{double_conv.4} parent=11 // pred_check
        %p196 = pneg %p97
      $region18: #{double_conv.4} parent=11 // pred_check_branch
        %198 = sbr.rel (%p196) target = $region20
      $region19: #{double_conv.4} parent=11 // pred_region
        _
      $region20: #{double_conv.4} parent=11 // pred_fallthru
        _
      // Predicated region
      $region21: #{double_conv.4} parent=11 // pred_check
        %p199 = pneg %p118
      $region22: #{double_conv.4} parent=11 // pred_check_branch
        %201 = sbr.rel (%p199) target = $region24
      $region23: #{double_conv.4} parent=11 // pred_region
        _
      $region24: #{double_conv.4} parent=11 // pred_fallthru
        _
    $region12: #{double_conv.4} parent=5 // pred_fallthru
      _
    %p202 = scmp.lt.s32.totalorder %s12, 2
    // Predicated region
    $region25: #{double_conv.4} parent=5 // pred_check
      %p203 = pneg %p202
    $region26: #{double_conv.4} parent=5 // pred_check_branch
      %205 = sbr.rel (%p203) target = $region28
    $region27: #{double_conv.4} parent=5 // pred_region
      // Predicated region
      $region29: #{double_conv.4} parent=27 // pred_check
        %p206 = pneg %p44
      $region30: #{double_conv.4} parent=27 // pred_check_branch
        %208 = sbr.rel (%p206) target = $region32
      $region31: #{double_conv.4} parent=27 // pred_region
        %p209 = scmp.lt.s32.totalorder %s19, 1
        %s210 = scalar_select %p209, %s19, 1
        %s211 = smul.addr %s210, 32
        %s212 = smul.addr %s211, 8
        %s213 = scalar_lea.vmem %s0, %s212
      $region32: #{double_conv.4} parent=27 // pred_fallthru
        _
    $region28: #{double_conv.4} parent=5 // pred_fallthru
      _
    %p214 = scmp.le.s32.totalorder 1, %s12
    %p215 = scmp.lt.s32.totalorder %s12, 3
    %p216 = pnand %p214, %p215
    %p217 = pneg %p216
    // Predicated region
    $region33: #{double_conv.4} parent=5 // pred_check
      _
    $region34: #{double_conv.4} parent=5 // pred_check_branch
      %219 = sbr.rel (%p216) target = $region36
    $region35: #{double_conv.4} parent=5 // pred_region
      %s220 = ssub.s32 %s12, 1
      %p221 = scmp.lt.s32.totalorder %s21, 1
      %s222 = scalar_select %p221, %s21, 1
      %s223 = smul.addr %s222, 32
      %s224 = smul.addr %s223, 8
      %s225 = scalar_lea.vmem %s0, %s224
      %p226 = pneg %p50
      %p227 = pneg %p47
      %p228 = scmp.lt.s32.totalorder %s22, 0
      %s229 = scalar_select %p228, %s22, 0
      %s230 = smul.addr %s229, 8
      %s231 = scalar_lea.vmem %s1, %s230
      %p232 = pneg %p76
      %p233 = pneg %p73
      %p234 = pneg %p97
      %p235 = pneg %p94
      %p236 = pneg %p118
      %p237 = pneg %p115
      %p238 = pneg %p146
      %p239 = pneg %p143
      %p240 = scmp.lt.s32.totalorder %s21, 1
      %s241 = scalar_select %p240, %s21, 1
      %p242 = scmp.lt.s32.totalorder %s22, 0
      %s243 = scalar_select %p242, %s22, 0
      %s244 = smul.addr %s241, 32
      %s245 = sadd.s32 %s243, %s244
      %s246 = smul.addr %s245, 8
      %s247 = scalar_lea.vmem %s4, %s246
      %p248 = pneg %p174
      %p249 = pneg %p171
      %p250 = scmp.lt.s32.totalorder %s21, 1
      %s251 = scalar_select %p250, %s21, 1
      %p252 = scmp.lt.s32.totalorder %s22, 0
      %s253 = scalar_select %p252, %s22, 0
      %s254 = sadd.s32 %s253, %s251
      %s255 = smul.addr %s254, 2
      %s256 = scalar_lea.vmem %s5, %s255
      %p257 = scmp.lt.s32.totalorder %s21, 1
      %s258 = scalar_select %p257, %s21, 1
      %s259 = smul.addr %s258, 32
      %s260 = smul.addr %s259, 8
      %s261 = scalar_lea.vmem %s0, %s260
      %p262 = scmp.lt.s32.totalorder %s22, 0
      %s263 = scalar_select %p262, %s22, 0
      %s264 = smul.addr %s263, 8
      %s265 = scalar_lea.vmem %s1, %s264
      %p266 = scmp.lt.s32.totalorder %s21, 1
      %s267 = scalar_select %p266, %s21, 1
      %p268 = scmp.lt.s32.totalorder %s22, 0
      %s269 = scalar_select %p268, %s22, 0
      %s270 = smul.addr %s267, 32
      %s271 = sadd.s32 %s269, %s270
      %s272 = smul.addr %s271, 8
      %s273 = scalar_lea.vmem %s4, %s272
      %p274 = scmp.lt.s32.totalorder %s21, 1
      %s275 = scalar_select %p274, %s21, 1
      %p276 = scmp.lt.s32.totalorder %s22, 0
      %s277 = scalar_select %p276, %s22, 0
      %s278 = sadd.s32 %s277, %s275
      %s279 = smul.addr %s278, 2
      %s280 = scalar_lea.vmem %s5, %s279
      %v281 = vld [vmem:[%s261] sm:$0xff]
      %v282 = vld [vmem:[%s261 + $0x8] sm:$0xff]
      %v283 = vld [vmem:[%s261 + $0x10] sm:$0xff]
      %v284 = vld [vmem:[%s261 + $0x18] sm:$0xff]
      %v285 = vld [vmem:[%s261 + $0x20] sm:$0xff]
      %v286 = vld [vmem:[%s261 + $0x28] sm:$0xff]
      %v287 = vld [vmem:[%s261 + $0x30] sm:$0xff]
      %v288 = vld [vmem:[%s261 + $0x38] sm:$0xff]
      %v289 = vld [vmem:[%s261 + $0x40] sm:$0xff]
      %v290 = vld [vmem:[%s261 + $0x48] sm:$0xff]
      %v291 = vld [vmem:[%s261 + $0x50] sm:$0xff]
      %v292 = vld [vmem:[%s261 + $0x58] sm:$0xff]
      %v293 = vld [vmem:[%s261 + $0x60] sm:$0xff]
      %v294 = vld [vmem:[%s261 + $0x68] sm:$0xff]
      %v295 = vld [vmem:[%s261 + $0x70] sm:$0xff]
      %v296 = vld [vmem:[%s261 + $0x78] sm:$0xff]
      %v297 = vld [vmem:[%s261 + $0x80] sm:$0xff]
      %v298 = vld [vmem:[%s261 + $0x88] sm:$0xff]
      %v299 = vld [vmem:[%s261 + $0x90] sm:$0xff]
      %v300 = vld [vmem:[%s261 + $0x98] sm:$0xff]
      %v301 = vld [vmem:[%s261 + $0xa0] sm:$0xff]
      %v302 = vld [vmem:[%s261 + $0xa8] sm:$0xff]
      %v303 = vld [vmem:[%s261 + $0xb0] sm:$0xff]
      %v304 = vld [vmem:[%s261 + $0xb8] sm:$0xff]
      %v305 = vld [vmem:[%s261 + $0xc0] sm:$0xff]
      %v306 = vld [vmem:[%s261 + $0xc8] sm:$0xff]
      %v307 = vld [vmem:[%s261 + $0xd0] sm:$0xff]
      %v308 = vld [vmem:[%s261 + $0xd8] sm:$0xff]
      %v309 = vld [vmem:[%s261 + $0xe0] sm:$0xff]
      %v310 = vld [vmem:[%s261 + $0xe8] sm:$0xff]
      %v311 = vld [vmem:[%s261 + $0xf0] sm:$0xff]
      %v312 = vld [vmem:[%s261 + $0xf8] sm:$0xff]
      %v313 = vld [vmem:[%s2] sm:$0x1]
      %v315 = vlaneseq
      %v316 = vshrl.u32 %v315, 7
      %v317 = vsub.s32 0, %v316
      %v318 = vrot.slane %v313, %v317
      %v320 = vmul.f32 %v281, %v318
      %v321 = vmul.f32 %v282, %v318
      %v322 = vmul.f32 %v283, %v318
      %v323 = vmul.f32 %v284, %v318
      %v324 = vmul.f32 %v285, %v318
      %v325 = vmul.f32 %v286, %v318
      %v326 = vmul.f32 %v287, %v318
      %v327 = vmul.f32 %v288, %v318
      %v328 = vmul.f32 %v289, %v318
      %v329 = vmul.f32 %v290, %v318
      %v330 = vmul.f32 %v291, %v318
      %v331 = vmul.f32 %v292, %v318
      %v332 = vmul.f32 %v293, %v318
      %v333 = vmul.f32 %v294, %v318
      %v334 = vmul.f32 %v295, %v318
      %v335 = vmul.f32 %v296, %v318
      %v336 = vmul.f32 %v297, %v318
      %v337 = vmul.f32 %v298, %v318
      %v338 = vmul.f32 %v299, %v318
      %v339 = vmul.f32 %v300, %v318
      %v340 = vmul.f32 %v301, %v318
      %v341 = vmul.f32 %v302, %v318
      %v342 = vmul.f32 %v303, %v318
      %v343 = vmul.f32 %v304, %v318
      %v344 = vmul.f32 %v305, %v318
      %v345 = vmul.f32 %v306, %v318
      %v346 = vmul.f32 %v307, %v318
      %v347 = vmul.f32 %v308, %v318
      %v348 = vmul.f32 %v309, %v318
      %v349 = vmul.f32 %v310, %v318
      %v350 = vmul.f32 %v311, %v318
      %v351 = vmul.f32 %v312, %v318
      %v352 = vld [vmem:[%s3] sm:$0x1]
      %v354 = vlaneseq
      %v355 = vshrl.u32 %v354, 7
      %v356 = vsub.s32 0, %v355
      %v357 = vrot.slane %v352, %v356
      %v359 = vadd.f32 %v320, %v357
      %v360 = vadd.f32 %v321, %v357
      %v361 = vadd.f32 %v322, %v357
      %v362 = vadd.f32 %v323, %v357
      %v363 = vadd.f32 %v324, %v357
      %v364 = vadd.f32 %v325, %v357
      %v365 = vadd.f32 %v326, %v357
      %v366 = vadd.f32 %v327, %v357
      %v367 = vadd.f32 %v328, %v357
      %v368 = vadd.f32 %v329, %v357
      %v369 = vadd.f32 %v330, %v357
      %v370 = vadd.f32 %v331, %v357
      %v371 = vadd.f32 %v332, %v357
      %v372 = vadd.f32 %v333, %v357
      %v373 = vadd.f32 %v334, %v357
      %v374 = vadd.f32 %v335, %v357
      %v375 = vadd.f32 %v336, %v357
      %v376 = vadd.f32 %v337, %v357
      %v377 = vadd.f32 %v338, %v357
      %v378 = vadd.f32 %v339, %v357
      %v379 = vadd.f32 %v340, %v357
      %v380 = vadd.f32 %v341, %v357
      %v381 = vadd.f32 %v342, %v357
      %v382 = vadd.f32 %v343, %v357
      %v383 = vadd.f32 %v344, %v357
      %v384 = vadd.f32 %v345, %v357
      %v385 = vadd.f32 %v346, %v357
      %v386 = vadd.f32 %v347, %v357
      %v387 = vadd.f32 %v348, %v357
      %v388 = vadd.f32 %v349, %v357
      %v389 = vadd.f32 %v350, %v357
      %v390 = vadd.f32 %v351, %v357
      %v391 = vmax.f32 %v359, 0.0
      %v392 = vmax.f32 %v360, 0.0
      %v393 = vmax.f32 %v361, 0.0
      %v394 = vmax.f32 %v362, 0.0
      %v395 = vmax.f32 %v363, 0.0
      %v396 = vmax.f32 %v364, 0.0
      %v397 = vmax.f32 %v365, 0.0
      %v398 = vmax.f32 %v366, 0.0
      %v399 = vmax.f32 %v367, 0.0
      %v400 = vmax.f32 %v368, 0.0
      %v401 = vmax.f32 %v369, 0.0
      %v402 = vmax.f32 %v370, 0.0
      %v403 = vmax.f32 %v371, 0.0
      %v404 = vmax.f32 %v372, 0.0
      %v405 = vmax.f32 %v373, 0.0
      %v406 = vmax.f32 %v374, 0.0
      %v407 = vmax.f32 %v375, 0.0
      %v408 = vmax.f32 %v376, 0.0
      %v409 = vmax.f32 %v377, 0.0
      %v410 = vmax.f32 %v378, 0.0
      %v411 = vmax.f32 %v379, 0.0
      %v412 = vmax.f32 %v380, 0.0
      %v413 = vmax.f32 %v381, 0.0
      %v414 = vmax.f32 %v382, 0.0
      %v415 = vmax.f32 %v383, 0.0
      %v416 = vmax.f32 %v384, 0.0
      %v417 = vmax.f32 %v385, 0.0
      %v418 = vmax.f32 %v386, 0.0
      %v419 = vmax.f32 %v387, 0.0
      %v420 = vmax.f32 %v388, 0.0
      %v421 = vmax.f32 %v389, 0.0
      %v422 = vmax.f32 %v390, 0.0
      %423 = vst [vmem:[#allocation2] sm:$0xff] 0.0
      %424 = vst [vmem:[#allocation2 + $0x8] sm:$0xff] 0.0
      %425 = vst [vmem:[#allocation2 + $0x10] sm:$0x3] 0.0
      %s426 = scalar_lea.vmem [#allocation2], 408
      %427 = vst [vmem:[%s426] sm:$0xff] 0.0
      %428 = vst [vmem:[%s426 + $0x8] sm:$0xff] 0.0
      %429 = vst [vmem:[%s426 + $0x10] sm:$0x3] 0.0
      %430 = vst [vmem:[#allocation2] sm:$0x1] 0.0
      %431 = vst [vmem:[#allocation2 + $0x18] sm:$0x1] 0.0
      %432 = vst [vmem:[#allocation2 + $0x30] sm:$0x1] 0.0
      %433 = vst [vmem:[#allocation2 + $0x48] sm:$0x1] 0.0
      %434 = vst [vmem:[#allocation2 + $0x60] sm:$0x1] 0.0
      %435 = vst [vmem:[#allocation2 + $0x78] sm:$0x1] 0.0
      %436 = vst [vmem:[#allocation2 + $0x90] sm:$0x1] 0.0
      %437 = vst [vmem:[#allocation2 + $0xa8] sm:$0x1] 0.0
      %438 = vst [vmem:[#allocation2 + $0xc0] sm:$0x1] 0.0
      %439 = vst [vmem:[#allocation2 + $0xd8] sm:$0x1] 0.0
      %440 = vst [vmem:[#allocation2 + $0xf0] sm:$0x1] 0.0
      %441 = vst [vmem:[#allocation2 + $0x108] sm:$0x1] 0.0
      %442 = vst [vmem:[#allocation2 + $0x120] sm:$0x1] 0.0
      %443 = vst [vmem:[#allocation2 + $0x138] sm:$0x1] 0.0
      %444 = vst [vmem:[#allocation2 + $0x150] sm:$0x1] 0.0
      %445 = vst [vmem:[#allocation2 + $0x168] sm:$0x1] 0.0
      %446 = vst [vmem:[#allocation2 + $0x180] sm:$0x1] 0.0
      %447 = vst [vmem:[#allocation2 + $0x198] sm:$0x1] 0.0
      %448 = vst [vmem:[#allocation2 + $0x11] sm:$0x1] 0.0
      %449 = vst [vmem:[#allocation2 + $0x29] sm:$0x1] 0.0
      %450 = vst [vmem:[#allocation2 + $0x41] sm:$0x1] 0.0
      %451 = vst [vmem:[#allocation2 + $0x59] sm:$0x1] 0.0
      %452 = vst [vmem:[#allocation2 + $0x71] sm:$0x1] 0.0
      %453 = vst [vmem:[#allocation2 + $0x89] sm:$0x1] 0.0
      %454 = vst [vmem:[#allocation2 + $0xa1] sm:$0x1] 0.0
      %455 = vst [vmem:[#allocation2 + $0xb9] sm:$0x1] 0.0
      %456 = vst [vmem:[#allocation2 + $0xd1] sm:$0x1] 0.0
      %457 = vst [vmem:[#allocation2 + $0xe9] sm:$0x1] 0.0
      %458 = vst [vmem:[#allocation2 + $0x101] sm:$0x1] 0.0
      %459 = vst [vmem:[#allocation2 + $0x119] sm:$0x1] 0.0
      %460 = vst [vmem:[#allocation2 + $0x131] sm:$0x1] 0.0
      %461 = vst [vmem:[#allocation2 + $0x149] sm:$0x1] 0.0
      %462 = vst [vmem:[#allocation2 + $0x161] sm:$0x1] 0.0
      %463 = vst [vmem:[#allocation2 + $0x179] sm:$0x1] 0.0
      %464 = vst [vmem:[#allocation2 + $0x191] sm:$0x1] 0.0
      %465 = vst [vmem:[#allocation2 + $0x1a9] sm:$0x1] 0.0
      %s466 = scalar_lea.vmem [#allocation2], 24
      %467 = vst [vmem:[%s466 + $0x1] sm:$0xff] %v391
      %468 = vst [vmem:[%s466 + $0x9] sm:$0xff] %v392
      %469 = vst [vmem:[%s466 + $0x19] sm:$0xff] %v393
      %470 = vst [vmem:[%s466 + $0x21] sm:$0xff] %v394
      %471 = vst [vmem:[%s466 + $0x31] sm:$0xff] %v395
      %472 = vst [vmem:[%s466 + $0x39] sm:$0xff] %v396
      %473 = vst [vmem:[%s466 + $0x49] sm:$0xff] %v397
      %474 = vst [vmem:[%s466 + $0x51] sm:$0xff] %v398
      %475 = vst [vmem:[%s466 + $0x61] sm:$0xff] %v399
      %476 = vst [vmem:[%s466 + $0x69] sm:$0xff] %v400
      %477 = vst [vmem:[%s466 + $0x79] sm:$0xff] %v401
      %478 = vst [vmem:[%s466 + $0x81] sm:$0xff] %v402
      %479 = vst [vmem:[%s466 + $0x91] sm:$0xff] %v403
      %480 = vst [vmem:[%s466 + $0x99] sm:$0xff] %v404
      %481 = vst [vmem:[%s466 + $0xa9] sm:$0xff] %v405
      %482 = vst [vmem:[%s466 + $0xb1] sm:$0xff] %v406
      %483 = vst [vmem:[%s466 + $0xc1] sm:$0xff] %v407
      %484 = vst [vmem:[%s466 + $0xc9] sm:$0xff] %v408
      %485 = vst [vmem:[%s466 + $0xd9] sm:$0xff] %v409
      %486 = vst [vmem:[%s466 + $0xe1] sm:$0xff] %v410
      %487 = vst [vmem:[%s466 + $0xf1] sm:$0xff] %v411
      %488 = vst [vmem:[%s466 + $0xf9] sm:$0xff] %v412
      %489 = vst [vmem:[%s466 + $0x109] sm:$0xff] %v413
      %490 = vst [vmem:[%s466 + $0x111] sm:$0xff] %v414
      %491 = vst [vmem:[%s466 + $0x121] sm:$0xff] %v415
      %492 = vst [vmem:[%s466 + $0x129] sm:$0xff] %v416
      %493 = vst [vmem:[%s466 + $0x139] sm:$0xff] %v417
      %494 = vst [vmem:[%s466 + $0x141] sm:$0xff] %v418
      %495 = vst [vmem:[%s466 + $0x151] sm:$0xff] %v419
      %496 = vst [vmem:[%s466 + $0x159] sm:$0xff] %v420
      %497 = vst [vmem:[%s466 + $0x169] sm:$0xff] %v421
      %498 = vst [vmem:[%s466 + $0x171] sm:$0xff] %v422
      %v499 = vld [vmem:[#allocation2] sm:$0xff]
      %v500 = vld [vmem:[#allocation2 + $0x8] sm:$0xff]
      %v501 = vld [vmem:[#allocation2 + $0x18] sm:$0xff]
      %v502 = vld [vmem:[#allocation2 + $0x20] sm:$0xff]
      %v503 = vld [vmem:[#allocation2 + $0x30] sm:$0xff]
      %v504 = vld [vmem:[#allocation2 + $0x38] sm:$0xff]
      %v505 = vld [vmem:[#allocation2 + $0x48] sm:$0xff]
      %v506 = vld [vmem:[#allocation2 + $0x50] sm:$0xff]
      %v507 = vld [vmem:[#allocation2 + $0x60] sm:$0xff]
      %v508 = vld [vmem:[#allocation2 + $0x68] sm:$0xff]
      %v509 = vld [vmem:[#allocation2 + $0x78] sm:$0xff]
      %v510 = vld [vmem:[#allocation2 + $0x80] sm:$0xff]
      %v511 = vld [vmem:[#allocation2 + $0x90] sm:$0xff]
      %v512 = vld [vmem:[#allocation2 + $0x98] sm:$0xff]
      %v513 = vld [vmem:[#allocation2 + $0xa8] sm:$0xff]
      %v514 = vld [vmem:[#allocation2 + $0xb0] sm:$0xff]
      %v515 = vld [vmem:[#allocation2 + $0xc0] sm:$0xff]
      %v516 = vld [vmem:[#allocation2 + $0xc8] sm:$0xff]
      %v517 = vld [vmem:[#allocation2 + $0xd8] sm:$0xff]
      %v518 = vld [vmem:[#allocation2 + $0xe0] sm:$0xff]
      %v519 = vld [vmem:[#allocation2 + $0xf0] sm:$0xff]
      %v520 = vld [vmem:[#allocation2 + $0xf8] sm:$0xff]
      %v521 = vld [vmem:[#allocation2 + $0x108] sm:$0xff]
      %v522 = vld [vmem:[#allocation2 + $0x110] sm:$0xff]
      %v523 = vld [vmem:[#allocation2 + $0x120] sm:$0xff]
      %v524 = vld [vmem:[#allocation2 + $0x128] sm:$0xff]
      %v525 = vld [vmem:[#allocation2 + $0x138] sm:$0xff]
      %v526 = vld [vmem:[#allocation2 + $0x140] sm:$0xff]
      %v527 = vld [vmem:[#allocation2 + $0x150] sm:$0xff]
      %v528 = vld [vmem:[#allocation2 + $0x158] sm:$0xff]
      %v529 = vld [vmem:[#allocation2 + $0x168] sm:$0xff]
      %v530 = vld [vmem:[#allocation2 + $0x170] sm:$0xff]
      %v531 = vld [vmem:[%s265] sm:$0xff]
      %v532 = vld [vmem:[%s265 + $0x8] sm:$0xff]
      %v533 = vld [vmem:[%s265 + $0x10] sm:$0xff]
      %v534 = vld [vmem:[%s265 + $0x18] sm:$0xff]
      %v535 = vld [vmem:[%s265 + $0x20] sm:$0xff]
      %v536 = vld [vmem:[%s265 + $0x28] sm:$0xff]
      %v537 = vld [vmem:[%s265 + $0x30] sm:$0xff]
      %v538 = vld [vmem:[%s265 + $0x38] sm:$0xff]
      %v539 = vld [vmem:[%s265 + $0x40] sm:$0xff]
      %v540 = vld [vmem:[%s265 + $0x48] sm:$0xff]
      %v541 = vld [vmem:[%s265 + $0x50] sm:$0xff]
      %v542 = vld [vmem:[%s265 + $0x58] sm:$0xff]
      %v543 = vld [vmem:[%s265 + $0x60] sm:$0xff]
      %v544 = vld [vmem:[%s265 + $0x68] sm:$0xff]
      %v545 = vld [vmem:[%s265 + $0x70] sm:$0xff]
      %v546 = vld [vmem:[%s265 + $0x78] sm:$0xff]
      %v547 = vld [vmem:[#allocation2 + $0x1] sm:$0xff]
      %v548 = vld [vmem:[#allocation2 + $0x9] sm:$0xff]
      %v549 = vld [vmem:[#allocation2 + $0x19] sm:$0xff]
      %v550 = vld [vmem:[#allocation2 + $0x21] sm:$0xff]
      %v551 = vld [vmem:[#allocation2 + $0x31] sm:$0xff]
      %v552 = vld [vmem:[#allocation2 + $0x39] sm:$0xff]
      %v553 = vld [vmem:[#allocation2 + $0x49] sm:$0xff]
      %v554 = vld [vmem:[#allocation2 + $0x51] sm:$0xff]
      %v555 = vld [vmem:[#allocation2 + $0x61] sm:$0xff]
      %v556 = vld [vmem:[#allocation2 + $0x69] sm:$0xff]
      %v557 = vld [vmem:[#allocation2 + $0x79] sm:$0xff]
      %v558 = vld [vmem:[#allocation2 + $0x81] sm:$0xff]
      %v559 = vld [vmem:[#allocation2 + $0x91] sm:$0xff]
      %v560 = vld [vmem:[#allocation2 + $0x99] sm:$0xff]
      %v561 = vld [vmem:[#allocation2 + $0xa9] sm:$0xff]
      %v562 = vld [vmem:[#allocation2 + $0xb1] sm:$0xff]
      %v563 = vld [vmem:[#allocation2 + $0xc1] sm:$0xff]
      %v564 = vld [vmem:[#allocation2 + $0xc9] sm:$0xff]
      %v565 = vld [vmem:[#allocation2 + $0xd9] sm:$0xff]
      %v566 = vld [vmem:[#allocation2 + $0xe1] sm:$0xff]
      %v567 = vld [vmem:[#allocation2 + $0xf1] sm:$0xff]
      %v568 = vld [vmem:[#allocation2 + $0xf9] sm:$0xff]
      %v569 = vld [vmem:[#allocation2 + $0x109] sm:$0xff]
      %v570 = vld [vmem:[#allocation2 + $0x111] sm:$0xff]
      %v571 = vld [vmem:[#allocation2 + $0x121] sm:$0xff]
      %v572 = vld [vmem:[#allocation2 + $0x129] sm:$0xff]
      %v573 = vld [vmem:[#allocation2 + $0x139] sm:$0xff]
      %v574 = vld [vmem:[#allocation2 + $0x141] sm:$0xff]
      %v575 = vld [vmem:[#allocation2 + $0x151] sm:$0xff]
      %v576 = vld [vmem:[#allocation2 + $0x159] sm:$0xff]
      %v577 = vld [vmem:[#allocation2 + $0x169] sm:$0xff]
      %v578 = vld [vmem:[#allocation2 + $0x171] sm:$0xff]
      %s579 = scalar_lea.vmem %s265, 128
      %v580 = vld [vmem:[%s579] sm:$0xff]
      %v581 = vld [vmem:[%s579 + $0x8] sm:$0xff]
      %v582 = vld [vmem:[%s579 + $0x10] sm:$0xff]
      %v583 = vld [vmem:[%s579 + $0x18] sm:$0xff]
      %v584 = vld [vmem:[%s579 + $0x20] sm:$0xff]
      %v585 = vld [vmem:[%s579 + $0x28] sm:$0xff]
      %v586 = vld [vmem:[%s579 + $0x30] sm:$0xff]
      %v587 = vld [vmem:[%s579 + $0x38] sm:$0xff]
      %v588 = vld [vmem:[%s579 + $0x40] sm:$0xff]
      %v589 = vld [vmem:[%s579 + $0x48] sm:$0xff]
      %v590 = vld [vmem:[%s579 + $0x50] sm:$0xff]
      %v591 = vld [vmem:[%s579 + $0x58] sm:$0xff]
      %v592 = vld [vmem:[%s579 + $0x60] sm:$0xff]
      %v593 = vld [vmem:[%s579 + $0x68] sm:$0xff]
      %v594 = vld [vmem:[%s579 + $0x70] sm:$0xff]
      %v595 = vld [vmem:[%s579 + $0x78] sm:$0xff]
      %596 = vmatprep.subr.mxu0 0.0
      %597 = vmatpush1.msra.mxu0 %v580
      %598 = vmatprep.subr.mxu0 0.0
      %599 = vmatpush1.msra.mxu0 %v581
      %600 = vmatprep.subr.mxu0 0.0
      %601 = vmatpush1.msra.mxu0 %v582
      %602 = vmatprep.subr.mxu0 0.0
      %603 = vmatpush1.msra.mxu0 %v583
      %604 = vmatprep.subr.mxu0 0.0
      %605 = vmatpush1.msra.mxu0 %v584
      %606 = vmatprep.subr.mxu0 0.0
      %607 = vmatpush1.msra.mxu0 %v585
      %608 = vmatprep.subr.mxu0 0.0
      %609 = vmatpush1.msra.mxu0 %v586
      %610 = vmatprep.subr.mxu0 0.0
      %611 = vmatpush1.msra.mxu0 %v587
      %612 = vmatprep.subr.mxu0 0.0
      %613 = vmatpush1.msra.mxu0 %v588
      %614 = vmatprep.subr.mxu0 0.0
      %615 = vmatpush1.msra.mxu0 %v589
      %616 = vmatprep.subr.mxu0 0.0
      %617 = vmatpush1.msra.mxu0 %v590
      %618 = vmatprep.subr.mxu0 0.0
      %619 = vmatpush1.msra.mxu0 %v591
      %620 = vmatprep.subr.mxu0 0.0
      %621 = vmatpush1.msra.mxu0 %v592
      %622 = vmatprep.subr.mxu0 0.0
      %623 = vmatpush1.msra.mxu0 %v593
      %624 = vmatprep.subr.mxu0 0.0
      %625 = vmatpush1.msra.mxu0 %v594
      %626 = vmatprep.subr.mxu0 0.0
      %627 = vmatpush1.msra.mxu0 %v595
      %628 = vmatprep.subr.mxu0 0.0
      %629 = vmatpush1.msra.mxu0 0.0
      %630 = vmatprep.subr.mxu0 0.0
      %631 = vmatpush1.msra.mxu0 0.0
      %632 = vmatprep.subr.mxu0 0.0
      %633 = vmatpush1.msra.mxu0 0.0
      %634 = vmatprep.subr.mxu0 0.0
      %635 = vmatpush1.msra.mxu0 0.0
      %636 = vmatprep.subr.mxu0 0.0
      %637 = vmatpush1.msra.mxu0 0.0
      %638 = vmatprep.subr.mxu0 0.0
      %639 = vmatpush1.msra.mxu0 0.0
      %640 = vmatprep.subr.mxu0 0.0
      %641 = vmatpush1.msra.mxu0 0.0
      %642 = vmatprep.subr.mxu0 0.0
      %643 = vmatpush1.msra.mxu0 0.0
      %644 = vmatprep.subr.mxu0 0.0
      %645 = vmatpush1.msra.mxu0 0.0
      %646 = vmatprep.subr.mxu0 0.0
      %647 = vmatpush1.msra.mxu0 0.0
      %648 = vmatprep.subr.mxu0 0.0
      %649 = vmatpush1.msra.mxu0 0.0
      %650 = vmatprep.subr.mxu0 0.0
      %651 = vmatpush1.msra.mxu0 0.0
      %652 = vmatprep.subr.mxu0 0.0
      %653 = vmatpush1.msra.mxu0 0.0
      %654 = vmatprep.subr.mxu0 0.0
      %655 = vmatpush1.msra.mxu0 0.0
      %656 = vmatprep.subr.mxu0 0.0
      %657 = vmatpush1.msra.mxu0 0.0
      %658 = vmatprep.subr.mxu0 0.0
      %659 = vmatpush1.msra.mxu0 0.0
      %660 = vmatprep.mubr.f32.mxu0 0.0
      %661 = vmatmul.mubr.f32.gmra.mrb[0].mxu0 %v547
      %v662 = vpop.f32.mrb[0].mxu0
      %v663 = vadd.f32 0.0, %v662
      %v664 = vpop.f32.mrb[0].mxu0
      %665 = vmatprep.mubr.f32.mxu0 0.0
      %666 = vmatmul.mubr.f32.gmra.mrb[0].mxu0 %v548
      %v667 = vpop.f32.mrb[0].mxu0
      %v668 = vadd.f32 0.0, %v667
      %v669 = vpop.f32.mrb[0].mxu0
      %670 = vmatprep.mubr.f32.mxu0 0.0
      %671 = vmatmul.mubr.f32.gmra.mrb[0].mxu0 %v549
      %v672 = vpop.f32.mrb[0].mxu0
      %v673 = vadd.f32 0.0, %v672
      %v674 = vpop.f32.mrb[0].mxu0
      %675 = vmatprep.mubr.f32.mxu0 0.0
      %676 = vmatmul.mubr.f32.gmra.mrb[0].mxu0 %v550
      %v677 = vpop.f32.mrb[0].mxu0
      %v678 = vadd.f32 0.0, %v677
      %v679 = vpop.f32.mrb[0].mxu0
      %680 = vmatprep.mubr.f32.mxu0 0.0
      %681 = vmatmul.mubr.f32.gmra.mrb[0].mxu0 %v551
      %v682 = vpop.f32.mrb[0].mxu0
      %v683 = vadd.f32 0.0, %v682
      %v684 = vpop.f32.mrb[0].mxu0
      %685 = vmatprep.mubr.f32.mxu0 0.0
      %686 = vmatmul.mubr.f32.gmra.mrb[0].mxu0 %v552
      %v687 = vpop.f32.mrb[0].mxu0
      %v688 = vadd.f32 0.0, %v687
      %v689 = vpop.f32.mrb[0].mxu0
      %690 = vmatprep.mubr.f32.mxu0 0.0
      %691 = vmatmul.mubr.f32.gmra.mrb[0].mxu0 %v553
      %v692 = vpop.f32.mrb[0].mxu0
      %v693 = vadd.f32 0.0, %v692
      %v694 = vpop.f32.mrb[0].mxu0
      %695 = vmatprep.mubr.f32.mxu0 0.0
      %696 = vmatmul.mubr.f32.gmra.mrb[0].mxu0 %v554
      %v697 = vpop.f32.mrb[0].mxu0
      %v698 = vadd.f32 0.0, %v697
      %v699 = vpop.f32.mrb[0].mxu0
      %700 = vmatprep.mubr.f32.mxu0 0.0
      %701 = vmatmul.mubr.f32.gmra.mrb[0].mxu0 %v555
      %v702 = vpop.f32.mrb[0].mxu0
      %v703 = vadd.f32 0.0, %v702
      %v704 = vpop.f32.mrb[0].mxu0
      %705 = vmatprep.mubr.f32.mxu0 0.0
      %706 = vmatmul.mubr.f32.gmra.mrb[0].mxu0 %v556
      %v707 = vpop.f32.mrb[0].mxu0
      %v708 = vadd.f32 0.0, %v707
      %v709 = vpop.f32.mrb[0].mxu0
      %710 = vmatprep.mubr.f32.mxu0 0.0
      %711 = vmatmul.mubr.f32.gmra.mrb[0].mxu0 %v557
      %v712 = vpop.f32.mrb[0].mxu0
      %v713 = vadd.f32 0.0, %v712
      %v714 = vpop.f32.mrb[0].mxu0
      %715 = vmatprep.mubr.f32.mxu0 0.0
      %716 = vmatmul.mubr.f32.gmra.mrb[0].mxu0 %v558
      %v717 = vpop.f32.mrb[0].mxu0
      %v718 = vadd.f32 0.0, %v717
      %v719 = vpop.f32.mrb[0].mxu0
      %720 = vmatprep.mubr.f32.mxu0 0.0
      %721 = vmatmul.mubr.f32.gmra.mrb[0].mxu0 %v559
      %v722 = vpop.f32.mrb[0].mxu0
      %v723 = vadd.f32 0.0, %v722
      %v724 = vpop.f32.mrb[0].mxu0
      %725 = vmatprep.mubr.f32.mxu0 0.0
      %726 = vmatmul.mubr.f32.gmra.mrb[0].mxu0 %v560
      %v727 = vpop.f32.mrb[0].mxu0
      %v728 = vadd.f32 0.0, %v727
      %v729 = vpop.f32.mrb[0].mxu0
      %730 = vmatprep.mubr.f32.mxu0 0.0
      %731 = vmatmul.mubr.f32.gmra.mrb[0].mxu0 %v561
      %v732 = vpop.f32.mrb[0].mxu0
      %v733 = vadd.f32 0.0, %v732
      %v734 = vpop.f32.mrb[0].mxu0
      %735 = vmatprep.mubr.f32.mxu0 0.0
      %736 = vmatmul.mubr.f32.gmra.mrb[0].mxu0 %v562
      %v737 = vpop.f32.mrb[0].mxu0
      %v738 = vadd.f32 0.0, %v737
      %v739 = vpop.f32.mrb[0].mxu0
      %740 = vmatprep.mubr.f32.mxu0 0.0
      %741 = vmatmul.mubr.f32.gmra.mrb[0].mxu0 %v563
      %v742 = vpop.f32.mrb[0].mxu0
      %v743 = vadd.f32 0.0, %v742
      %v744 = vpop.f32.mrb[0].mxu0
      %745 = vmatprep.mubr.f32.mxu0 0.0
      %746 = vmatmul.mubr.f32.gmra.mrb[0].mxu0 %v564
      %v747 = vpop.f32.mrb[0].mxu0
      %v748 = vadd.f32 0.0, %v747
      %v749 = vpop.f32.mrb[0].mxu0
      %750 = vmatprep.mubr.f32.mxu0 0.0
      %751 = vmatmul.mubr.f32.gmra.mrb[0].mxu0 %v565
      %v752 = vpop.f32.mrb[0].mxu0
      %v753 = vadd.f32 0.0, %v752
      %v754 = vpop.f32.mrb[0].mxu0
      %755 = vmatprep.mubr.f32.mxu0 0.0
      %756 = vmatmul.mubr.f32.gmra.mrb[0].mxu0 %v566
      %v757 = vpop.f32.mrb[0].mxu0
      %v758 = vadd.f32 0.0, %v757
      %v759 = vpop.f32.mrb[0].mxu0
      %760 = vmatprep.mubr.f32.mxu0 0.0
      %761 = vmatmul.mubr.f32.gmra.mrb[0].mxu0 %v567
      %v762 = vpop.f32.mrb[0].mxu0
      %v763 = vadd.f32 0.0, %v762
      %v764 = vpop.f32.mrb[0].mxu0
      %765 = vmatprep.mubr.f32.mxu0 0.0
      %766 = vmatmul.mubr.f32.gmra.mrb[0].mxu0 %v568
      %v767 = vpop.f32.mrb[0].mxu0
      %v768 = vadd.f32 0.0, %v767
      %v769 = vpop.f32.mrb[0].mxu0
      %770 = vmatprep.mubr.f32.mxu0 0.0
      %771 = vmatmul.mubr.f32.gmra.mrb[0].mxu0 %v569
      %v772 = vpop.f32.mrb[0].mxu0
      %v773 = vadd.f32 0.0, %v772
      %v774 = vpop.f32.mrb[0].mxu0
      %775 = vmatprep.mubr.f32.mxu0 0.0
      %776 = vmatmul.mubr.f32.gmra.mrb[0].mxu0 %v570
      %v777 = vpop.f32.mrb[0].mxu0
      %v778 = vadd.f32 0.0, %v777
      %v779 = vpop.f32.mrb[0].mxu0
      %780 = vmatprep.mubr.f32.mxu0 0.0
      %781 = vmatmul.mubr.f32.gmra.mrb[0].mxu0 %v571
      %v782 = vpop.f32.mrb[0].mxu0
      %v783 = vadd.f32 0.0, %v782
      %v784 = vpop.f32.mrb[0].mxu0
      %785 = vmatprep.mubr.f32.mxu0 0.0
      %786 = vmatmul.mubr.f32.gmra.mrb[0].mxu0 %v572
      %v787 = vpop.f32.mrb[0].mxu0
      %v788 = vadd.f32 0.0, %v787
      %v789 = vpop.f32.mrb[0].mxu0
      %790 = vmatprep.mubr.f32.mxu0 0.0
      %791 = vmatmul.mubr.f32.gmra.mrb[0].mxu0 %v573
      %v792 = vpop.f32.mrb[0].mxu0
      %v793 = vadd.f32 0.0, %v792
      %v794 = vpop.f32.mrb[0].mxu0
      %795 = vmatprep.mubr.f32.mxu0 0.0
      %796 = vmatmul.mubr.f32.gmra.mrb[0].mxu0 %v574
      %v797 = vpop.f32.mrb[0].mxu0
      %v798 = vadd.f32 0.0, %v797
      %v799 = vpop.f32.mrb[0].mxu0
      %800 = vmatprep.mubr.f32.mxu0 0.0
      %801 = vmatmul.mubr.f32.gmra.mrb[0].mxu0 %v575
      %v802 = vpop.f32.mrb[0].mxu0
      %v803 = vadd.f32 0.0, %v802
      %v804 = vpop.f32.mrb[0].mxu0
      %805 = vmatprep.mubr.f32.mxu0 0.0
      %806 = vmatmul.mubr.f32.gmra.mrb[0].mxu0 %v576
      %v807 = vpop.f32.mrb[0].mxu0
      %v808 = vadd.f32 0.0, %v807
      %v809 = vpop.f32.mrb[0].mxu0
      %810 = vmatprep.mubr.f32.mxu0 0.0
      %811 = vmatmul.mubr.f32.gmra.mrb[0].mxu0 %v577
      %v812 = vpop.f32.mrb[0].mxu0
      %v813 = vadd.f32 0.0, %v812
      %v814 = vpop.f32.mrb[0].mxu0
      %815 = vmatprep.mubr.f32.mxu0 0.0
      %816 = vmatmul.mubr.f32.gmra.mrb[0].mxu0 %v578
      %v817 = vpop.f32.mrb[0].mxu0
      %v818 = vadd.f32 0.0, %v817
      %v819 = vpop.f32.mrb[0].mxu0
      %820 = vdwg.mxu0
      %821 = vmatprep.subr.mxu0 0.0
      %822 = vmatpush1.msra.mxu0 %v531
      %823 = vmatprep.subr.mxu0 0.0
      %824 = vmatpush1.msra.mxu0 %v532
      %825 = vmatprep.subr.mxu0 0.0
      %826 = vmatpush1.msra.mxu0 %v533
      %827 = vmatprep.subr.mxu0 0.0
      %828 = vmatpush1.msra.mxu0 %v534
      %829 = vmatprep.subr.mxu0 0.0
      %830 = vmatpush1.msra.mxu0 %v535
      %831 = vmatprep.subr.mxu0 0.0
      %832 = vmatpush1.msra.mxu0 %v536
      %833 = vmatprep.subr.mxu0 0.0
      %834 = vmatpush1.msra.mxu0 %v537
      %835 = vmatprep.subr.mxu0 0.0
      %836 = vmatpush1.msra.mxu0 %v538
      %837 = vmatprep.subr.mxu0 0.0
      %838 = vmatpush1.msra.mxu0 %v539
      %839 = vmatprep.subr.mxu0 0.0
      %840 = vmatpush1.msra.mxu0 %v540
      %841 = vmatprep.subr.mxu0 0.0
      %842 = vmatpush1.msra.mxu0 %v541
      %843 = vmatprep.subr.mxu0 0.0
      %844 = vmatpush1.msra.mxu0 %v542
      %845 = vmatprep.subr.mxu0 0.0
      %846 = vmatpush1.msra.mxu0 %v543
      %847 = vmatprep.subr.mxu0 0.0
      %848 = vmatpush1.msra.mxu0 %v544
      %849 = vmatprep.subr.mxu0 0.0
      %850 = vmatpush1.msra.mxu0 %v545
      %851 = vmatprep.subr.mxu0 0.0
      %852 = vmatpush1.msra.mxu0 %v546
      %853 = vmatprep.subr.mxu0 0.0
      %854 = vmatpush1.msra.mxu0 0.0
      %855 = vmatprep.subr.mxu0 0.0
      %856 = vmatpush1.msra.mxu0 0.0
      %857 = vmatprep.subr.mxu0 0.0
      %858 = vmatpush1.msra.mxu0 0.0
      %859 = vmatprep.subr.mxu0 0.0
      %860 = vmatpush1.msra.mxu0 0.0
      %861 = vmatprep.subr.mxu0 0.0
      %862 = vmatpush1.msra.mxu0 0.0
      %863 = vmatprep.subr.mxu0 0.0
      %864 = vmatpush1.msra.mxu0 0.0
      %865 = vmatprep.subr.mxu0 0.0
      %866 = vmatpush1.msra.mxu0 0.0
      %867 = vmatprep.subr.mxu0 0.0
      %868 = vmatpush1.msra.mxu0 0.0
      %869 = vmatprep.subr.mxu0 0.0
      %870 = vmatpush1.msra.mxu0 0.0
      %871 = vmatprep.subr.mxu0 0.0
      %872 = vmatpush1.msra.mxu0 0.0
      %873 = vmatprep.subr.mxu0 0.0
      %874 = vmatpush1.msra.mxu0 0.0
      %875 = vmatprep.subr.mxu0 0.0
      %876 = vmatpush1.msra.mxu0 0.0
      %877 = vmatprep.subr.mxu0 0.0
      %878 = vmatpush1.msra.mxu0 0.0
      %879 = vmatprep.subr.mxu0 0.0
      %880 = vmatpush1.msra.mxu0 0.0
      %881 = vmatprep.subr.mxu0 0.0
      %882 = vmatpush1.msra.mxu0 0.0
      %883 = vmatprep.subr.mxu0 0.0
      %884 = vmatpush1.msra.mxu0 0.0
      %885 = vmatprep.mubr.f32.mxu0 0.0
      %886 = vmatmul.mubr.f32.gmra.mrb[0].mxu0 %v499
      %v887 = vpop.f32.mrb[0].mxu0
      %v888 = vadd.f32 %v663, %v887
      %v889 = vpop.f32.mrb[0].mxu0
      %890 = vmatprep.mubr.f32.mxu0 0.0
      %891 = vmatmul.mubr.f32.gmra.mrb[0].mxu0 %v500
      %v892 = vpop.f32.mrb[0].mxu0
      %v893 = vadd.f32 %v668, %v892
      %v894 = vpop.f32.mrb[0].mxu0
      %895 = vmatprep.mubr.f32.mxu0 0.0
      %896 = vmatmul.mubr.f32.gmra.mrb[0].mxu0 %v501
      %v897 = vpop.f32.mrb[0].mxu0
      %v898 = vadd.f32 %v673, %v897
      %v899 = vpop.f32.mrb[0].mxu0
      %900 = vmatprep.mubr.f32.mxu0 0.0
      %901 = vmatmul.mubr.f32.gmra.mrb[0].mxu0 %v502
      %v902 = vpop.f32.mrb[0].mxu0
      %v903 = vadd.f32 %v678, %v902
      %v904 = vpop.f32.mrb[0].mxu0
      %905 = vmatprep.mubr.f32.mxu0 0.0
      %906 = vmatmul.mubr.f32.gmra.mrb[0].mxu0 %v503
      %v907 = vpop.f32.mrb[0].mxu0
      %v908 = vadd.f32 %v683, %v907
      %v909 = vpop.f32.mrb[0].mxu0
      %910 = vmatprep.mubr.f32.mxu0 0.0
      %911 = vmatmul.mubr.f32.gmra.mrb[0].mxu0 %v504
      %v912 = vpop.f32.mrb[0].mxu0
      %v913 = vadd.f32 %v688, %v912
      %v914 = vpop.f32.mrb[0].mxu0
      %915 = vmatprep.mubr.f32.mxu0 0.0
      %916 = vmatmul.mubr.f32.gmra.mrb[0].mxu0 %v505
      %v917 = vpop.f32.mrb[0].mxu0
      %v918 = vadd.f32 %v693, %v917
      %v919 = vpop.f32.mrb[0].mxu0
      %920 = vmatprep.mubr.f32.mxu0 0.0
      %921 = vmatmul.mubr.f32.gmra.mrb[0].mxu0 %v506
      %v922 = vpop.f32.mrb[0].mxu0
      %v923 = vadd.f32 %v698, %v922
      %v924 = vpop.f32.mrb[0].mxu0
      %925 = vmatprep.mubr.f32.mxu0 0.0
      %926 = vmatmul.mubr.f32.gmra.mrb[0].mxu0 %v507
      %v927 = vpop.f32.mrb[0].mxu0
      %v928 = vadd.f32 %v703, %v927
      %v929 = vpop.f32.mrb[0].mxu0
      %930 = vmatprep.mubr.f32.mxu0 0.0
      %931 = vmatmul.mubr.f32.gmra.mrb[0].mxu0 %v508
      %v932 = vpop.f32.mrb[0].mxu0
      %v933 = vadd.f32 %v708, %v932
      %v934 = vpop.f32.mrb[0].mxu0
      %935 = vmatprep.mubr.f32.mxu0 0.0
      %936 = vmatmul.mubr.f32.gmra.mrb[0].mxu0 %v509
      %v937 = vpop.f32.mrb[0].mxu0
      %v938 = vadd.f32 %v713, %v937
      %v939 = vpop.f32.mrb[0].mxu0
      %940 = vmatprep.mubr.f32.mxu0 0.0
      %941 = vmatmul.mubr.f32.gmra.mrb[0].mxu0 %v510
      %v942 = vpop.f32.mrb[0].mxu0
      %v943 = vadd.f32 %v718, %v942
      %v944 = vpop.f32.mrb[0].mxu0
      %945 = vmatprep.mubr.f32.mxu0 0.0
      %946 = vmatmul.mubr.f32.gmra.mrb[0].mxu0 %v511
      %v947 = vpop.f32.mrb[0].mxu0
      %v948 = vadd.f32 %v723, %v947
      %v949 = vpop.f32.mrb[0].mxu0
      %950 = vmatprep.mubr.f32.mxu0 0.0
      %951 = vmatmul.mubr.f32.gmra.mrb[0].mxu0 %v512
      %v952 = vpop.f32.mrb[0].mxu0
      %v953 = vadd.f32 %v728, %v952
      %v954 = vpop.f32.mrb[0].mxu0
      %955 = vmatprep.mubr.f32.mxu0 0.0
      %956 = vmatmul.mubr.f32.gmra.mrb[0].mxu0 %v513
      %v957 = vpop.f32.mrb[0].mxu0
      %v958 = vadd.f32 %v733, %v957
      %v959 = vpop.f32.mrb[0].mxu0
      %960 = vmatprep.mubr.f32.mxu0 0.0
      %961 = vmatmul.mubr.f32.gmra.mrb[0].mxu0 %v514
      %v962 = vpop.f32.mrb[0].mxu0
      %v963 = vadd.f32 %v738, %v962
      %v964 = vpop.f32.mrb[0].mxu0
      %965 = vmatprep.mubr.f32.mxu0 0.0
      %966 = vmatmul.mubr.f32.gmra.mrb[0].mxu0 %v515
      %v967 = vpop.f32.mrb[0].mxu0
      %v968 = vadd.f32 %v743, %v967
      %v969 = vpop.f32.mrb[0].mxu0
      %970 = vmatprep.mubr.f32.mxu0 0.0
      %971 = vmatmul.mubr.f32.gmra.mrb[0].mxu0 %v516
      %v972 = vpop.f32.mrb[0].mxu0
      %v973 = vadd.f32 %v748, %v972
      %v974 = vpop.f32.mrb[0].mxu0
      %975 = vmatprep.mubr.f32.mxu0 0.0
      %976 = vmatmul.mubr.f32.gmra.mrb[0].mxu0 %v517
      %v977 = vpop.f32.mrb[0].mxu0
      %v978 = vadd.f32 %v753, %v977
      %v979 = vpop.f32.mrb[0].mxu0
      %980 = vmatprep.mubr.f32.mxu0 0.0
      %981 = vmatmul.mubr.f32.gmra.mrb[0].mxu0 %v518
      %v982 = vpop.f32.mrb[0].mxu0
      %v983 = vadd.f32 %v758, %v982
      %v984 = vpop.f32.mrb[0].mxu0
      %985 = vmatprep.mubr.f32.mxu0 0.0
      %986 = vmatmul.mubr.f32.gmra.mrb[0].mxu0 %v519
      %v987 = vpop.f32.mrb[0].mxu0
      %v988 = vadd.f32 %v763, %v987
      %v989 = vpop.f32.mrb[0].mxu0
      %990 = vmatprep.mubr.f32.mxu0 0.0
      %991 = vmatmul.mubr.f32.gmra.mrb[0].mxu0 %v520
      %v992 = vpop.f32.mrb[0].mxu0
      %v993 = vadd.f32 %v768, %v992
      %v994 = vpop.f32.mrb[0].mxu0
      %995 = vmatprep.mubr.f32.mxu0 0.0
      %996 = vmatmul.mubr.f32.gmra.mrb[0].mxu0 %v521
      %v997 = vpop.f32.mrb[0].mxu0
      %v998 = vadd.f32 %v773, %v997
      %v999 = vpop.f32.mrb[0].mxu0
      %1000 = vmatprep.mubr.f32.mxu0 0.0
      %1001 = vmatmul.mubr.f32.gmra.mrb[0].mxu0 %v522
      %v1002 = vpop.f32.mrb[0].mxu0
      %v1003 = vadd.f32 %v778, %v1002
      %v1004 = vpop.f32.mrb[0].mxu0
      %1005 = vmatprep.mubr.f32.mxu0 0.0
      %1006 = vmatmul.mubr.f32.gmra.mrb[0].mxu0 %v523
      %v1007 = vpop.f32.mrb[0].mxu0
      %v1008 = vadd.f32 %v783, %v1007
      %v1009 = vpop.f32.mrb[0].mxu0
      %1010 = vmatprep.mubr.f32.mxu0 0.0
      %1011 = vmatmul.mubr.f32.gmra.mrb[0].mxu0 %v524
      %v1012 = vpop.f32.mrb[0].mxu0
      %v1013 = vadd.f32 %v788, %v1012
      %v1014 = vpop.f32.mrb[0].mxu0
      %1015 = vmatprep.mubr.f32.mxu0 0.0
      %1016 = vmatmul.mubr.f32.gmra.mrb[0].mxu0 %v525
      %v1017 = vpop.f32.mrb[0].mxu0
      %v1018 = vadd.f32 %v793, %v1017
      %v1019 = vpop.f32.mrb[0].mxu0
      %1020 = vmatprep.mubr.f32.mxu0 0.0
      %1021 = vmatmul.mubr.f32.gmra.mrb[0].mxu0 %v526
      %v1022 = vpop.f32.mrb[0].mxu0
      %v1023 = vadd.f32 %v798, %v1022
      %v1024 = vpop.f32.mrb[0].mxu0
      %1025 = vmatprep.mubr.f32.mxu0 0.0
      %1026 = vmatmul.mubr.f32.gmra.mrb[0].mxu0 %v527
      %v1027 = vpop.f32.mrb[0].mxu0
      %v1028 = vadd.f32 %v803, %v1027
      %v1029 = vpop.f32.mrb[0].mxu0
      %1030 = vmatprep.mubr.f32.mxu0 0.0
      %1031 = vmatmul.mubr.f32.gmra.mrb[0].mxu0 %v528
      %v1032 = vpop.f32.mrb[0].mxu0
      %v1033 = vadd.f32 %v808, %v1032
      %v1034 = vpop.f32.mrb[0].mxu0
      %1035 = vmatprep.mubr.f32.mxu0 0.0
      %1036 = vmatmul.mubr.f32.gmra.mrb[0].mxu0 %v529
      %v1037 = vpop.f32.mrb[0].mxu0
      %v1038 = vadd.f32 %v813, %v1037
      %v1039 = vpop.f32.mrb[0].mxu0
      %1040 = vmatprep.mubr.f32.mxu0 0.0
      %1041 = vmatmul.mubr.f32.gmra.mrb[0].mxu0 %v530
      %v1042 = vpop.f32.mrb[0].mxu0
      %v1043 = vadd.f32 %v818, %v1042
      %v1044 = vpop.f32.mrb[0].mxu0
      %1045 = vdwg.mxu0
      %v1046 = vld [vmem:[#allocation2 + $0x2] sm:$0xff]
      %v1047 = vld [vmem:[#allocation2 + $0xa] sm:$0xff]
      %v1048 = vld [vmem:[#allocation2 + $0x1a] sm:$0xff]
      %v1049 = vld [vmem:[#allocation2 + $0x22] sm:$0xff]
      %v1050 = vld [vmem:[#allocation2 + $0x32] sm:$0xff]
      %v1051 = vld [vmem:[#allocation2 + $0x3a] sm:$0xff]
      %v1052 = vld [vmem:[#allocation2 + $0x4a] sm:$0xff]
      %v1053 = vld [vmem:[#allocation2 + $0x52] sm:$0xff]
      %v1054 = vld [vmem:[#allocation2 + $0x62] sm:$0xff]
      %v1055 = vld [vmem:[#allocation2 + $0x6a] sm:$0xff]
      %v1056 = vld [vmem:[#allocation2 + $0x7a] sm:$0xff]
      %v1057 = vld [vmem:[#allocation2 + $0x82] sm:$0xff]
      %v1058 = vld [vmem:[#allocation2 + $0x92] sm:$0xff]
      %v1059 = vld [vmem:[#allocation2 + $0x9a] sm:$0xff]
      %v1060 = vld [vmem:[#allocation2 + $0xaa] sm:$0xff]
      %v1061 = vld [vmem:[#allocation2 + $0xb2] sm:$0xff]
      %v1062 = vld [vmem:[#allocation2 + $0xc2] sm:$0xff]
      %v1063 = vld [vmem:[#allocation2 + $0xca] sm:$0xff]
      %v1064 = vld [vmem:[#allocation2 + $0xda] sm:$0xff]
      %v1065 = vld [vmem:[#allocation2 + $0xe2] sm:$0xff]
      %v1066 = vld [vmem:[#allocation2 + $0xf2] sm:$0xff]
      %v1067 = vld [vmem:[#allocation2 + $0xfa] sm:$0xff]
      %v1068 = vld [vmem:[#allocation2 + $0x10a] sm:$0xff]
      %v1069 = vld [vmem:[#allocation2 + $0x112] sm:$0xff]
      %v1070 = vld [vmem:[#allocation2 + $0x122] sm:$0xff]
      %v1071 = vld [vmem:[#allocation2 + $0x12a] sm:$0xff]
      %v1072 = vld [vmem:[#allocation2 + $0x13a] sm:$0xff]
      %v1073 = vld [vmem:[#allocation2 + $0x142] sm:$0xff]
      %v1074 = vld [vmem:[#allocation2 + $0x152] sm:$0xff]
      %v1075 = vld [vmem:[#allocation2 + $0x15a] sm:$0xff]
      %v1076 = vld [vmem:[#allocation2 + $0x16a] sm:$0xff]
      %v1077 = vld [vmem:[#allocation2 + $0x172] sm:$0xff]
      %s1078 = scalar_lea.vmem %s265, 256
      %v1079 = vld [vmem:[%s1078] sm:$0xff]
      %v1080 = vld [vmem:[%s1078 + $0x8] sm:$0xff]
      %v1081 = vld [vmem:[%s1078 + $0x10] sm:$0xff]
      %v1082 = vld [vmem:[%s1078 + $0x18] sm:$0xff]
      %v1083 = vld [vmem:[%s1078 + $0x20] sm:$0xff]
      %v1084 = vld [vmem:[%s1078 + $0x28] sm:$0xff]
      %v1085 = vld [vmem:[%s1078 + $0x30] sm:$0xff]
      %v1086 = vld [vmem:[%s1078 + $0x38] sm:$0xff]
      %v1087 = vld [vmem:[%s1078 + $0x40] sm:$0xff]
      %v1088 = vld [vmem:[%s1078 + $0x48] sm:$0xff]
      %v1089 = vld [vmem:[%s1078 + $0x50] sm:$0xff]
      %v1090 = vld [vmem:[%s1078 + $0x58] sm:$0xff]
      %v1091 = vld [vmem:[%s1078 + $0x60] sm:$0xff]
      %v1092 = vld [vmem:[%s1078 + $0x68] sm:$0xff]
      %v1093 = vld [vmem:[%s1078 + $0x70] sm:$0xff]
      %v1094 = vld [vmem:[%s1078 + $0x78] sm:$0xff]
      %1095 = vmatprep.subr.mxu0 0.0
      %1096 = vmatpush1.msra.mxu0 %v1079
      %1097 = vmatprep.subr.mxu0 0.0
      %1098 = vmatpush1.msra.mxu0 %v1080
      %1099 = vmatprep.subr.mxu0 0.0
      %1100 = vmatpush1.msra.mxu0 %v1081
      %1101 = vmatprep.subr.mxu0 0.0
      %1102 = vmatpush1.msra.mxu0 %v1082
      %1103 = vmatprep.subr.mxu0 0.0
      %1104 = vmatpush1.msra.mxu0 %v1083
      %1105 = vmatprep.subr.mxu0 0.0
      %1106 = vmatpush1.msra.mxu0 %v1084
      %1107 = vmatprep.subr.mxu0 0.0
      %1108 = vmatpush1.msra.mxu0 %v1085
      %1109 = vmatprep.subr.mxu0 0.0
      %1110 = vmatpush1.msra.mxu0 %v1086
      %1111 = vmatprep.subr.mxu0 0.0
      %1112 = vmatpush1.msra.mxu0 %v1087
      %1113 = vmatprep.subr.mxu0 0.0
      %1114 = vmatpush1.msra.mxu0 %v1088
      %1115 = vmatprep.subr.mxu0 0.0
      %1116 = vmatpush1.msra.mxu0 %v1089
      %1117 = vmatprep.subr.mxu0 0.0
      %1118 = vmatpush1.msra.mxu0 %v1090
      %1119 = vmatprep.subr.mxu0 0.0
      %1120 = vmatpush1.msra.mxu0 %v1091
      %1121 = vmatprep.subr.mxu0 0.0
      %1122 = vmatpush1.msra.mxu0 %v1092
      %1123 = vmatprep.subr.mxu0 0.0
      %1124 = vmatpush1.msra.mxu0 %v1093
      %1125 = vmatprep.subr.mxu0 0.0
      %1126 = vmatpush1.msra.mxu0 %v1094
      %1127 = vmatprep.subr.mxu0 0.0
      %1128 = vmatpush1.msra.mxu0 0.0
      %1129 = vmatprep.subr.mxu0 0.0
      %1130 = vmatpush1.msra.mxu0 0.0
      %1131 = vmatprep.subr.mxu0 0.0
      %1132 = vmatpush1.msra.mxu0 0.0
      %1133 = vmatprep.subr.mxu0 0.0
      %1134 = vmatpush1.msra.mxu0 0.0
      %1135 = vmatprep.subr.mxu0 0.0
      %1136 = vmatpush1.msra.mxu0 0.0
      %1137 = vmatprep.subr.mxu0 0.0
      %1138 = vmatpush1.msra.mxu0 0.0
      %1139 = vmatprep.subr.mxu0 0.0
      %1140 = vmatpush1.msra.mxu0 0.0
      %1141 = vmatprep.subr.mxu0 0.0
      %1142 = vmatpush1.msra.mxu0 0.0
      %1143 = vmatprep.subr.mxu0 0.0
      %1144 = vmatpush1.msra.mxu0 0.0
      %1145 = vmatprep.subr.mxu0 0.0
      %1146 = vmatpush1.msra.mxu0 0.0
      %1147 = vmatprep.subr.mxu0 0.0
      %1148 = vmatpush1.msra.mxu0 0.0
      %1149 = vmatprep.subr.mxu0 0.0
      %1150 = vmatpush1.msra.mxu0 0.0
      %1151 = vmatprep.subr.mxu0 0.0
      %1152 = vmatpush1.msra.mxu0 0.0
      %1153 = vmatprep.subr.mxu0 0.0
      %1154 = vmatpush1.msra.mxu0 0.0
      %1155 = vmatprep.subr.mxu0 0.0
      %1156 = vmatpush1.msra.mxu0 0.0
      %1157 = vmatprep.subr.mxu0 0.0
      %1158 = vmatpush1.msra.mxu0 0.0
      %1159 = vmatprep.mubr.f32.mxu0 0.0
      %1160 = vmatmul.mubr.f32.gmra.mrb[0].mxu0 %v1046
      %v1161 = vpop.f32.mrb[0].mxu0
      %v1162 = vadd.f32 0.0, %v1161
      %v1163 = vpop.f32.mrb[0].mxu0
      %1164 = vmatprep.mubr.f32.mxu0 0.0
      %1165 = vmatmul.mubr.f32.gmra.mrb[0].mxu0 %v1047
      %v1166 = vpop.f32.mrb[0].mxu0
      %v1167 = vadd.f32 0.0, %v1166
      %v1168 = vpop.f32.mrb[0].mxu0
      %1169 = vmatprep.mubr.f32.mxu0 0.0
      %1170 = vmatmul.mubr.f32.gmra.mrb[0].mxu0 %v1048
      %v1171 = vpop.f32.mrb[0].mxu0
      %v1172 = vadd.f32 0.0, %v1171
      %v1173 = vpop.f32.mrb[0].mxu0
      %1174 = vmatprep.mubr.f32.mxu0 0.0
      %1175 = vmatmul.mubr.f32.gmra.mrb[0].mxu0 %v1049
      %v1176 = vpop.f32.mrb[0].mxu0
      %v1177 = vadd.f32 0.0, %v1176
      %v1178 = vpop.f32.mrb[0].mxu0
      %1179 = vmatprep.mubr.f32.mxu0 0.0
      %1180 = vmatmul.mubr.f32.gmra.mrb[0].mxu0 %v1050
      %v1181 = vpop.f32.mrb[0].mxu0
      %v1182 = vadd.f32 0.0, %v1181
      %v1183 = vpop.f32.mrb[0].mxu0
      %1184 = vmatprep.mubr.f32.mxu0 0.0
      %1185 = vmatmul.mubr.f32.gmra.mrb[0].mxu0 %v1051
      %v1186 = vpop.f32.mrb[0].mxu0
      %v1187 = vadd.f32 0.0, %v1186
      %v1188 = vpop.f32.mrb[0].mxu0
      %1189 = vmatprep.mubr.f32.mxu0 0.0
      %1190 = vmatmul.mubr.f32.gmra.mrb[0].mxu0 %v1052
      %v1191 = vpop.f32.mrb[0].mxu0
      %v1192 = vadd.f32 0.0, %v1191
      %v1193 = vpop.f32.mrb[0].mxu0
      %1194 = vmatprep.mubr.f32.mxu0 0.0
      %1195 = vmatmul.mubr.f32.gmra.mrb[0].mxu0 %v1053
      %v1196 = vpop.f32.mrb[0].mxu0
      %v1197 = vadd.f32 0.0, %v1196
      %v1198 = vpop.f32.mrb[0].mxu0
      %1199 = vmatprep.mubr.f32.mxu0 0.0
      %1200 = vmatmul.mubr.f32.gmra.mrb[0].mxu0 %v1054
      %v1201 = vpop.f32.mrb[0].mxu0
      %v1202 = vadd.f32 0.0, %v1201
      %v1203 = vpop.f32.mrb[0].mxu0
      %1204 = vmatprep.mubr.f32.mxu0 0.0
      %1205 = vmatmul.mubr.f32.gmra.mrb[0].mxu0 %v1055
      %v1206 = vpop.f32.mrb[0].mxu0
      %v1207 = vadd.f32 0.0, %v1206
      %v1208 = vpop.f32.mrb[0].mxu0
      %1209 = vmatprep.mubr.f32.mxu0 0.0
      %1210 = vmatmul.mubr.f32.gmra.mrb[0].mxu0 %v1056
      %v1211 = vpop.f32.mrb[0].mxu0
      %v1212 = vadd.f32 0.0, %v1211
      %v1213 = vpop.f32.mrb[0].mxu0
      %1214 = vmatprep.mubr.f32.mxu0 0.0
      %1215 = vmatmul.mubr.f32.gmra.mrb[0].mxu0 %v1057
      %v1216 = vpop.f32.mrb[0].mxu0
      %v1217 = vadd.f32 0.0, %v1216
      %v1218 = vpop.f32.mrb[0].mxu0
      %1219 = vmatprep.mubr.f32.mxu0 0.0
      %1220 = vmatmul.mubr.f32.gmra.mrb[0].mxu0 %v1058
      %v1221 = vpop.f32.mrb[0].mxu0
      %v1222 = vadd.f32 0.0, %v1221
      %v1223 = vpop.f32.mrb[0].mxu0
      %1224 = vmatprep.mubr.f32.mxu0 0.0
      %1225 = vmatmul.mubr.f32.gmra.mrb[0].mxu0 %v1059
      %v1226 = vpop.f32.mrb[0].mxu0
      %v1227 = vadd.f32 0.0, %v1226
      %v1228 = vpop.f32.mrb[0].mxu0
      %1229 = vmatprep.mubr.f32.mxu0 0.0
      %1230 = vmatmul.mubr.f32.gmra.mrb[0].mxu0 %v1060
      %v1231 = vpop.f32.mrb[0].mxu0
      %v1232 = vadd.f32 0.0, %v1231
      %v1233 = vpop.f32.mrb[0].mxu0
      %1234 = vmatprep.mubr.f32.mxu0 0.0
      %1235 = vmatmul.mubr.f32.gmra.mrb[0].mxu0 %v1061
      %v1236 = vpop.f32.mrb[0].mxu0
      %v1237 = vadd.f32 0.0, %v1236
      %v1238 = vpop.f32.mrb[0].mxu0
      %1239 = vmatprep.mubr.f32.mxu0 0.0
      %1240 = vmatmul.mubr.f32.gmra.mrb[0].mxu0 %v1062
      %v1241 = vpop.f32.mrb[0].mxu0
      %v1242 = vadd.f32 0.0, %v1241
      %v1243 = vpop.f32.mrb[0].mxu0
      %1244 = vmatprep.mubr.f32.mxu0 0.0
      %1245 = vmatmul.mubr.f32.gmra.mrb[0].mxu0 %v1063
      %v1246 = vpop.f32.mrb[0].mxu0
      %v1247 = vadd.f32 0.0, %v1246
      %v1248 = vpop.f32.mrb[0].mxu0
      %1249 = vmatprep.mubr.f32.mxu0 0.0
      %1250 = vmatmul.mubr.f32.gmra.mrb[0].mxu0 %v1064
      %v1251 = vpop.f32.mrb[0].mxu0
      %v1252 = vadd.f32 0.0, %v1251
      %v1253 = vpop.f32.mrb[0].mxu0
      %1254 = vmatprep.mubr.f32.mxu0 0.0
      %1255 = vmatmul.mubr.f32.gmra.mrb[0].mxu0 %v1065
      %v1256 = vpop.f32.mrb[0].mxu0
      %v1257 = vadd.f32 0.0, %v1256
      %v1258 = vpop.f32.mrb[0].mxu0
      %1259 = vmatprep.mubr.f32.mxu0 0.0
      %1260 = vmatmul.mubr.f32.gmra.mrb[0].mxu0 %v1066
      %v1261 = vpop.f32.mrb[0].mxu0
      %v1262 = vadd.f32 0.0, %v1261
      %v1263 = vpop.f32.mrb[0].mxu0
      %1264 = vmatprep.mubr.f32.mxu0 0.0
      %1265 = vmatmul.mubr.f32.gmra.mrb[0].mxu0 %v1067
      %v1266 = vpop.f32.mrb[0].mxu0
      %v1267 = vadd.f32 0.0, %v1266
      %v1268 = vpop.f32.mrb[0].mxu0
      %1269 = vmatprep.mubr.f32.mxu0 0.0
      %1270 = vmatmul.mubr.f32.gmra.mrb[0].mxu0 %v1068
      %v1271 = vpop.f32.mrb[0].mxu0
      %v1272 = vadd.f32 0.0, %v1271
      %v1273 = vpop.f32.mrb[0].mxu0
      %1274 = vmatprep.mubr.f32.mxu0 0.0
      %1275 = vmatmul.mubr.f32.gmra.mrb[0].mxu0 %v1069
      %v1276 = vpop.f32.mrb[0].mxu0
      %v1277 = vadd.f32 0.0, %v1276
      %v1278 = vpop.f32.mrb[0].mxu0
      %1279 = vmatprep.mubr.f32.mxu0 0.0
      %1280 = vmatmul.mubr.f32.gmra.mrb[0].mxu0 %v1070
      %v1281 = vpop.f32.mrb[0].mxu0
      %v1282 = vadd.f32 0.0, %v1281
      %v1283 = vpop.f32.mrb[0].mxu0
      %1284 = vmatprep.mubr.f32.mxu0 0.0
      %1285 = vmatmul.mubr.f32.gmra.mrb[0].mxu0 %v1071
      %v1286 = vpop.f32.mrb[0].mxu0
      %v1287 = vadd.f32 0.0, %v1286
      %v1288 = vpop.f32.mrb[0].mxu0
      %1289 = vmatprep.mubr.f32.mxu0 0.0
      %1290 = vmatmul.mubr.f32.gmra.mrb[0].mxu0 %v1072
      %v1291 = vpop.f32.mrb[0].mxu0
      %v1292 = vadd.f32 0.0, %v1291
      %v1293 = vpop.f32.mrb[0].mxu0
      %1294 = vmatprep.mubr.f32.mxu0 0.0
      %1295 = vmatmul.mubr.f32.gmra.mrb[0].mxu0 %v1073
      %v1296 = vpop.f32.mrb[0].mxu0
      %v1297 = vadd.f32 0.0, %v1296
      %v1298 = vpop.f32.mrb[0].mxu0
      %1299 = vmatprep.mubr.f32.mxu0 0.0
      %1300 = vmatmul.mubr.f32.gmra.mrb[0].mxu0 %v1074
      %v1301 = vpop.f32.mrb[0].mxu0
      %v1302 = vadd.f32 0.0, %v1301
      %v1303 = vpop.f32.mrb[0].mxu0
      %1304 = vmatprep.mubr.f32.mxu0 0.0
      %1305 = vmatmul.mubr.f32.gmra.mrb[0].mxu0 %v1075
      %v1306 = vpop.f32.mrb[0].mxu0
      %v1307 = vadd.f32 0.0, %v1306
      %v1308 = vpop.f32.mrb[0].mxu0
      %1309 = vmatprep.mubr.f32.mxu0 0.0
      %1310 = vmatmul.mubr.f32.gmra.mrb[0].mxu0 %v1076
      %v1311 = vpop.f32.mrb[0].mxu0
      %v1312 = vadd.f32 0.0, %v1311
      %v1313 = vpop.f32.mrb[0].mxu0
      %1314 = vmatprep.mubr.f32.mxu0 0.0
      %1315 = vmatmul.mubr.f32.gmra.mrb[0].mxu0 %v1077
      %v1316 = vpop.f32.mrb[0].mxu0
      %v1317 = vadd.f32 0.0, %v1316
      %v1318 = vpop.f32.mrb[0].mxu0
      %1319 = vdwg.mxu0
      %v1320 = vadd.f32 %v888, %v1162
      %v1321 = vadd.f32 %v893, %v1167
      %v1322 = vadd.f32 %v898, %v1172
      %v1323 = vadd.f32 %v903, %v1177
      %v1324 = vadd.f32 %v908, %v1182
      %v1325 = vadd.f32 %v913, %v1187
      %v1326 = vadd.f32 %v918, %v1192
      %v1327 = vadd.f32 %v923, %v1197
      %v1328 = vadd.f32 %v928, %v1202
      %v1329 = vadd.f32 %v933, %v1207
      %v1330 = vadd.f32 %v938, %v1212
      %v1331 = vadd.f32 %v943, %v1217
      %v1332 = vadd.f32 %v948, %v1222
      %v1333 = vadd.f32 %v953, %v1227
      %v1334 = vadd.f32 %v958, %v1232
      %v1335 = vadd.f32 %v963, %v1237
      %v1336 = vadd.f32 %v968, %v1242
      %v1337 = vadd.f32 %v973, %v1247
      %v1338 = vadd.f32 %v978, %v1252
      %v1339 = vadd.f32 %v983, %v1257
      %v1340 = vadd.f32 %v988, %v1262
      %v1341 = vadd.f32 %v993, %v1267
      %v1342 = vadd.f32 %v998, %v1272
      %v1343 = vadd.f32 %v1003, %v1277
      %v1344 = vadd.f32 %v1008, %v1282
      %v1345 = vadd.f32 %v1013, %v1287
      %v1346 = vadd.f32 %v1018, %v1292
      %v1347 = vadd.f32 %v1023, %v1297
      %v1348 = vadd.f32 %v1028, %v1302
      %v1349 = vadd.f32 %v1033, %v1307
      %v1350 = vadd.f32 %v1038, %v1312
      %v1351 = vadd.f32 %v1043, %v1317
      %v1352 = vld [vmem:[%s466] sm:$0xff]
      %v1353 = vld [vmem:[%s466 + $0x8] sm:$0xff]
      %v1354 = vld [vmem:[%s466 + $0x18] sm:$0xff]
      %v1355 = vld [vmem:[%s466 + $0x20] sm:$0xff]
      %v1356 = vld [vmem:[%s466 + $0x30] sm:$0xff]
      %v1357 = vld [vmem:[%s466 + $0x38] sm:$0xff]
      %v1358 = vld [vmem:[%s466 + $0x48] sm:$0xff]
      %v1359 = vld [vmem:[%s466 + $0x50] sm:$0xff]
      %v1360 = vld [vmem:[%s466 + $0x60] sm:$0xff]
      %v1361 = vld [vmem:[%s466 + $0x68] sm:$0xff]
      %v1362 = vld [vmem:[%s466 + $0x78] sm:$0xff]
      %v1363 = vld [vmem:[%s466 + $0x80] sm:$0xff]
      %v1364 = vld [vmem:[%s466 + $0x90] sm:$0xff]
      %v1365 = vld [vmem:[%s466 + $0x98] sm:$0xff]
      %v1366 = vld [vmem:[%s466 + $0xa8] sm:$0xff]
      %v1367 = vld [vmem:[%s466 + $0xb0] sm:$0xff]
      %v1368 = vld [vmem:[%s466 + $0xc0] sm:$0xff]
      %v1369 = vld [vmem:[%s466 + $0xc8] sm:$0xff]
      %v1370 = vld [vmem:[%s466 + $0xd8] sm:$0xff]
      %v1371 = vld [vmem:[%s466 + $0xe0] sm:$0xff]
      %v1372 = vld [vmem:[%s466 + $0xf0] sm:$0xff]
      %v1373 = vld [vmem:[%s466 + $0xf8] sm:$0xff]
      %v1374 = vld [vmem:[%s466 + $0x108] sm:$0xff]
      %v1375 = vld [vmem:[%s466 + $0x110] sm:$0xff]
      %v1376 = vld [vmem:[%s466 + $0x120] sm:$0xff]
      %v1377 = vld [vmem:[%s466 + $0x128] sm:$0xff]
      %v1378 = vld [vmem:[%s466 + $0x138] sm:$0xff]
      %v1379 = vld [vmem:[%s466 + $0x140] sm:$0xff]
      %v1380 = vld [vmem:[%s466 + $0x150] sm:$0xff]
      %v1381 = vld [vmem:[%s466 + $0x158] sm:$0xff]
      %v1382 = vld [vmem:[%s466 + $0x168] sm:$0xff]
      %v1383 = vld [vmem:[%s466 + $0x170] sm:$0xff]
      %s1384 = scalar_lea.vmem %s265, 384
      %v1385 = vld [vmem:[%s1384] sm:$0xff]
      %v1386 = vld [vmem:[%s1384 + $0x8] sm:$0xff]
      %v1387 = vld [vmem:[%s1384 + $0x10] sm:$0xff]
      %v1388 = vld [vmem:[%s1384 + $0x18] sm:$0xff]
      %v1389 = vld [vmem:[%s1384 + $0x20] sm:$0xff]
      %v1390 = vld [vmem:[%s1384 + $0x28] sm:$0xff]
      %v1391 = vld [vmem:[%s1384 + $0x30] sm:$0xff]
      %v1392 = vld [vmem:[%s1384 + $0x38] sm:$0xff]
      %v1393 = vld [vmem:[%s1384 + $0x40] sm:$0xff]
      %v1394 = vld [vmem:[%s1384 + $0x48] sm:$0xff]
      %v1395 = vld [vmem:[%s1384 + $0x50] sm:$0xff]
      %v1396 = vld [vmem:[%s1384 + $0x58] sm:$0xff]
      %v1397 = vld [vmem:[%s1384 + $0x60] sm:$0xff]
      %v1398 = vld [vmem:[%s1384 + $0x68] sm:$0xff]
      %v1399 = vld [vmem:[%s1384 + $0x70] sm:$0xff]
      %v1400 = vld [vmem:[%s1384 + $0x78] sm:$0xff]
      %1401 = vmatprep.subr.mxu0 0.0
      %1402 = vmatpush1.msra.mxu0 %v1385
      %1403 = vmatprep.subr.mxu0 0.0
      %1404 = vmatpush1.msra.mxu0 %v1386
      %1405 = vmatprep.subr.mxu0 0.0
      %1406 = vmatpush1.msra.mxu0 %v1387
      %1407 = vmatprep.subr.mxu0 0.0
      %1408 = vmatpush1.msra.mxu0 %v1388
      %1409 = vmatprep.subr.mxu0 0.0
      %1410 = vmatpush1.msra.mxu0 %v1389
      %1411 = vmatprep.subr.mxu0 0.0
      %1412 = vmatpush1.msra.mxu0 %v1390
      %1413 = vmatprep.subr.mxu0 0.0
      %1414 = vmatpush1.msra.mxu0 %v1391
      %1415 = vmatprep.subr.mxu0 0.0
      %1416 = vmatpush1.msra.mxu0 %v1392
      %1417 = vmatprep.subr.mxu0 0.0
      %1418 = vmatpush1.msra.mxu0 %v1393
      %1419 = vmatprep.subr.mxu0 0.0
      %1420 = vmatpush1.msra.mxu0 %v1394
      %1421 = vmatprep.subr.mxu0 0.0
      %1422 = vmatpush1.msra.mxu0 %v1395
      %1423 = vmatprep.subr.mxu0 0.0
      %1424 = vmatpush1.msra.mxu0 %v1396
      %1425 = vmatprep.subr.mxu0 0.0
      %1426 = vmatpush1.msra.mxu0 %v1397
      %1427 = vmatprep.subr.mxu0 0.0
      %1428 = vmatpush1.msra.mxu0 %v1398
      %1429 = vmatprep.subr.mxu0 0.0
      %1430 = vmatpush1.msra.mxu0 %v1399
      %1431 = vmatprep.subr.mxu0 0.0
      %1432 = vmatpush1.msra.mxu0 %v1400
      %1433 = vmatprep.subr.mxu0 0.0
      %1434 = vmatpush1.msra.mxu0 0.0
      %1435 = vmatprep.subr.mxu0 0.0
      %1436 = vmatpush1.msra.mxu0 0.0
      %1437 = vmatprep.subr.mxu0 0.0
      %1438 = vmatpush1.msra.mxu0 0.0
      %1439 = vmatprep.subr.mxu0 0.0
      %1440 = vmatpush1.msra.mxu0 0.0
      %1441 = vmatprep.subr.mxu0 0.0
      %1442 = vmatpush1.msra.mxu0 0.0
      %1443 = vmatprep.subr.mxu0 0.0
      %1444 = vmatpush1.msra.mxu0 0.0
      %1445 = vmatprep.subr.mxu0 0.0
      %1446 = vmatpush1.msra.mxu0 0.0
      %1447 = vmatprep.subr.mxu0 0.0
      %1448 = vmatpush1.msra.mxu0 0.0
      %1449 = vmatprep.subr.mxu0 0.0
      %1450 = vmatpush1.msra.mxu0 0.0
      %1451 = vmatprep.subr.mxu0 0.0
      %1452 = vmatpush1.msra.mxu0 0.0
      %1453 = vmatprep.subr.mxu0 0.0
      %1454 = vmatpush1.msra.mxu0 0.0
      %1455 = vmatprep.subr.mxu0 0.0
      %1456 = vmatpush1.msra.mxu0 0.0
      %1457 = vmatprep.subr.mxu0 0.0
      %1458 = vmatpush1.msra.mxu0 0.0
      %1459 = vmatprep.subr.mxu0 0.0
      %1460 = vmatpush1.msra.mxu0 0.0
      %1461 = vmatprep.subr.mxu0 0.0
      %1462 = vmatpush1.msra.mxu0 0.0
      %1463 = vmatprep.subr.mxu0 0.0
      %1464 = vmatpush1.msra.mxu0 0.0
      %1465 = vmatprep.mubr.f32.mxu0 0.0
      %1466 = vmatmul.mubr.f32.gmra.mrb[0].mxu0 %v1352
      %v1467 = vpop.f32.mrb[0].mxu0
      %v1468 = vadd.f32 0.0, %v1467
      %v1469 = vpop.f32.mrb[0].mxu0
      %1470 = vmatprep.mubr.f32.mxu0 0.0
      %1471 = vmatmul.mubr.f32.gmra.mrb[0].mxu0 %v1353
      %v1472 = vpop.f32.mrb[0].mxu0
      %v1473 = vadd.f32 0.0, %v1472
      %v1474 = vpop.f32.mrb[0].mxu0
      %1475 = vmatprep.mubr.f32.mxu0 0.0
      %1476 = vmatmul.mubr.f32.gmra.mrb[0].mxu0 %v1354
      %v1477 = vpop.f32.mrb[0].mxu0
      %v1478 = vadd.f32 0.0, %v1477
      %v1479 = vpop.f32.mrb[0].mxu0
      %1480 = vmatprep.mubr.f32.mxu0 0.0
      %1481 = vmatmul.mubr.f32.gmra.mrb[0].mxu0 %v1355
      %v1482 = vpop.f32.mrb[0].mxu0
      %v1483 = vadd.f32 0.0, %v1482
      %v1484 = vpop.f32.mrb[0].mxu0
      %1485 = vmatprep.mubr.f32.mxu0 0.0
      %1486 = vmatmul.mubr.f32.gmra.mrb[0].mxu0 %v1356
      %v1487 = vpop.f32.mrb[0].mxu0
      %v1488 = vadd.f32 0.0, %v1487
      %v1489 = vpop.f32.mrb[0].mxu0
      %1490 = vmatprep.mubr.f32.mxu0 0.0
      %1491 = vmatmul.mubr.f32.gmra.mrb[0].mxu0 %v1357
      %v1492 = vpop.f32.mrb[0].mxu0
      %v1493 = vadd.f32 0.0, %v1492
      %v1494 = vpop.f32.mrb[0].mxu0
      %1495 = vmatprep.mubr.f32.mxu0 0.0
      %1496 = vmatmul.mubr.f32.gmra.mrb[0].mxu0 %v1358
      %v1497 = vpop.f32.mrb[0].mxu0
      %v1498 = vadd.f32 0.0, %v1497
      %v1499 = vpop.f32.mrb[0].mxu0
      %1500 = vmatprep.mubr.f32.mxu0 0.0
      %1501 = vmatmul.mubr.f32.gmra.mrb[0].mxu0 %v1359
      %v1502 = vpop.f32.mrb[0].mxu0
      %v1503 = vadd.f32 0.0, %v1502
      %v1504 = vpop.f32.mrb[0].mxu0
      %1505 = vmatprep.mubr.f32.mxu0 0.0
      %1506 = vmatmul.mubr.f32.gmra.mrb[0].mxu0 %v1360
      %v1507 = vpop.f32.mrb[0].mxu0
      %v1508 = vadd.f32 0.0, %v1507
      %v1509 = vpop.f32.mrb[0].mxu0
      %1510 = vmatprep.mubr.f32.mxu0 0.0
      %1511 = vmatmul.mubr.f32.gmra.mrb[0].mxu0 %v1361
      %v1512 = vpop.f32.mrb[0].mxu0
      %v1513 = vadd.f32 0.0, %v1512
      %v1514 = vpop.f32.mrb[0].mxu0
      %1515 = vmatprep.mubr.f32.mxu0 0.0
      %1516 = vmatmul.mubr.f32.gmra.mrb[0].mxu0 %v1362
      %v1517 = vpop.f32.mrb[0].mxu0
      %v1518 = vadd.f32 0.0, %v1517
      %v1519 = vpop.f32.mrb[0].mxu0
      %1520 = vmatprep.mubr.f32.mxu0 0.0
      %1521 = vmatmul.mubr.f32.gmra.mrb[0].mxu0 %v1363
      %v1522 = vpop.f32.mrb[0].mxu0
      %v1523 = vadd.f32 0.0, %v1522
      %v1524 = vpop.f32.mrb[0].mxu0
      %1525 = vmatprep.mubr.f32.mxu0 0.0
      %1526 = vmatmul.mubr.f32.gmra.mrb[0].mxu0 %v1364
      %v1527 = vpop.f32.mrb[0].mxu0
      %v1528 = vadd.f32 0.0, %v1527
      %v1529 = vpop.f32.mrb[0].mxu0
      %1530 = vmatprep.mubr.f32.mxu0 0.0
      %1531 = vmatmul.mubr.f32.gmra.mrb[0].mxu0 %v1365
      %v1532 = vpop.f32.mrb[0].mxu0
      %v1533 = vadd.f32 0.0, %v1532
      %v1534 = vpop.f32.mrb[0].mxu0
      %1535 = vmatprep.mubr.f32.mxu0 0.0
      %1536 = vmatmul.mubr.f32.gmra.mrb[0].mxu0 %v1366
      %v1537 = vpop.f32.mrb[0].mxu0
      %v1538 = vadd.f32 0.0, %v1537
      %v1539 = vpop.f32.mrb[0].mxu0
      %1540 = vmatprep.mubr.f32.mxu0 0.0
      %1541 = vmatmul.mubr.f32.gmra.mrb[0].mxu0 %v1367
      %v1542 = vpop.f32.mrb[0].mxu0
      %v1543 = vadd.f32 0.0, %v1542
      %v1544 = vpop.f32.mrb[0].mxu0
      %1545 = vmatprep.mubr.f32.mxu0 0.0
      %1546 = vmatmul.mubr.f32.gmra.mrb[0].mxu0 %v1368
      %v1547 = vpop.f32.mrb[0].mxu0
      %v1548 = vadd.f32 0.0, %v1547
      %v1549 = vpop.f32.mrb[0].mxu0
      %1550 = vmatprep.mubr.f32.mxu0 0.0
      %1551 = vmatmul.mubr.f32.gmra.mrb[0].mxu0 %v1369
      %v1552 = vpop.f32.mrb[0].mxu0
      %v1553 = vadd.f32 0.0, %v1552
      %v1554 = vpop.f32.mrb[0].mxu0
      %1555 = vmatprep.mubr.f32.mxu0 0.0
      %1556 = vmatmul.mubr.f32.gmra.mrb[0].mxu0 %v1370
      %v1557 = vpop.f32.mrb[0].mxu0
      %v1558 = vadd.f32 0.0, %v1557
      %v1559 = vpop.f32.mrb[0].mxu0
      %1560 = vmatprep.mubr.f32.mxu0 0.0
      %1561 = vmatmul.mubr.f32.gmra.mrb[0].mxu0 %v1371
      %v1562 = vpop.f32.mrb[0].mxu0
      %v1563 = vadd.f32 0.0, %v1562
      %v1564 = vpop.f32.mrb[0].mxu0
      %1565 = vmatprep.mubr.f32.mxu0 0.0
      %1566 = vmatmul.mubr.f32.gmra.mrb[0].mxu0 %v1372
      %v1567 = vpop.f32.mrb[0].mxu0
      %v1568 = vadd.f32 0.0, %v1567
      %v1569 = vpop.f32.mrb[0].mxu0
      %1570 = vmatprep.mubr.f32.mxu0 0.0
      %1571 = vmatmul.mubr.f32.gmra.mrb[0].mxu0 %v1373
      %v1572 = vpop.f32.mrb[0].mxu0
      %v1573 = vadd.f32 0.0, %v1572
      %v1574 = vpop.f32.mrb[0].mxu0
      %1575 = vmatprep.mubr.f32.mxu0 0.0
      %1576 = vmatmul.mubr.f32.gmra.mrb[0].mxu0 %v1374
      %v1577 = vpop.f32.mrb[0].mxu0
      %v1578 = vadd.f32 0.0, %v1577
      %v1579 = vpop.f32.mrb[0].mxu0
      %1580 = vmatprep.mubr.f32.mxu0 0.0
      %1581 = vmatmul.mubr.f32.gmra.mrb[0].mxu0 %v1375
      %v1582 = vpop.f32.mrb[0].mxu0
      %v1583 = vadd.f32 0.0, %v1582
      %v1584 = vpop.f32.mrb[0].mxu0
      %1585 = vmatprep.mubr.f32.mxu0 0.0
      %1586 = vmatmul.mubr.f32.gmra.mrb[0].mxu0 %v1376
      %v1587 = vpop.f32.mrb[0].mxu0
      %v1588 = vadd.f32 0.0, %v1587
      %v1589 = vpop.f32.mrb[0].mxu0
      %1590 = vmatprep.mubr.f32.mxu0 0.0
      %1591 = vmatmul.mubr.f32.gmra.mrb[0].mxu0 %v1377
      %v1592 = vpop.f32.mrb[0].mxu0
      %v1593 = vadd.f32 0.0, %v1592
      %v1594 = vpop.f32.mrb[0].mxu0
      %1595 = vmatprep.mubr.f32.mxu0 0.0
      %1596 = vmatmul.mubr.f32.gmra.mrb[0].mxu0 %v1378
      %v1597 = vpop.f32.mrb[0].mxu0
      %v1598 = vadd.f32 0.0, %v1597
      %v1599 = vpop.f32.mrb[0].mxu0
      %1600 = vmatprep.mubr.f32.mxu0 0.0
      %1601 = vmatmul.mubr.f32.gmra.mrb[0].mxu0 %v1379
      %v1602 = vpop.f32.mrb[0].mxu0
      %v1603 = vadd.f32 0.0, %v1602
      %v1604 = vpop.f32.mrb[0].mxu0
      %1605 = vmatprep.mubr.f32.mxu0 0.0
      %1606 = vmatmul.mubr.f32.gmra.mrb[0].mxu0 %v1380
      %v1607 = vpop.f32.mrb[0].mxu0
      %v1608 = vadd.f32 0.0, %v1607
      %v1609 = vpop.f32.mrb[0].mxu0
      %1610 = vmatprep.mubr.f32.mxu0 0.0
      %1611 = vmatmul.mubr.f32.gmra.mrb[0].mxu0 %v1381
      %v1612 = vpop.f32.mrb[0].mxu0
      %v1613 = vadd.f32 0.0, %v1612
      %v1614 = vpop.f32.mrb[0].mxu0
      %1615 = vmatprep.mubr.f32.mxu0 0.0
      %1616 = vmatmul.mubr.f32.gmra.mrb[0].mxu0 %v1382
      %v1617 = vpop.f32.mrb[0].mxu0
      %v1618 = vadd.f32 0.0, %v1617
      %v1619 = vpop.f32.mrb[0].mxu0
      %1620 = vmatprep.mubr.f32.mxu0 0.0
      %1621 = vmatmul.mubr.f32.gmra.mrb[0].mxu0 %v1383
      %v1622 = vpop.f32.mrb[0].mxu0
      %v1623 = vadd.f32 0.0, %v1622
      %v1624 = vpop.f32.mrb[0].mxu0
      %1625 = vdwg.mxu0
      %v1626 = vadd.f32 %v1320, %v1468
      %v1627 = vadd.f32 %v1321, %v1473
      %v1628 = vadd.f32 %v1322, %v1478
      %v1629 = vadd.f32 %v1323, %v1483
      %v1630 = vadd.f32 %v1324, %v1488
      %v1631 = vadd.f32 %v1325, %v1493
      %v1632 = vadd.f32 %v1326, %v1498
      %v1633 = vadd.f32 %v1327, %v1503
      %v1634 = vadd.f32 %v1328, %v1508
      %v1635 = vadd.f32 %v1329, %v1513
      %v1636 = vadd.f32 %v1330, %v1518
      %v1637 = vadd.f32 %v1331, %v1523
      %v1638 = vadd.f32 %v1332, %v1528
      %v1639 = vadd.f32 %v1333, %v1533
      %v1640 = vadd.f32 %v1334, %v1538
      %v1641 = vadd.f32 %v1335, %v1543
      %v1642 = vadd.f32 %v1336, %v1548
      %v1643 = vadd.f32 %v1337, %v1553
      %v1644 = vadd.f32 %v1338, %v1558
      %v1645 = vadd.f32 %v1339, %v1563
      %v1646 = vadd.f32 %v1340, %v1568
      %v1647 = vadd.f32 %v1341, %v1573
      %v1648 = vadd.f32 %v1342, %v1578
      %v1649 = vadd.f32 %v1343, %v1583
      %v1650 = vadd.f32 %v1344, %v1588
      %v1651 = vadd.f32 %v1345, %v1593
      %v1652 = vadd.f32 %v1346, %v1598
      %v1653 = vadd.f32 %v1347, %v1603
      %v1654 = vadd.f32 %v1348, %v1608
      %v1655 = vadd.f32 %v1349, %v1613
      %v1656 = vadd.f32 %v1350, %v1618
      %v1657 = vadd.f32 %v1351, %v1623
      %v1658 = vld [vmem:[%s466 + $0x1] sm:$0xff]
      %v1659 = vld [vmem:[%s466 + $0x9] sm:$0xff]
      %v1660 = vld [vmem:[%s466 + $0x19] sm:$0xff]
      %v1661 = vld [vmem:[%s466 + $0x21] sm:$0xff]
      %v1662 = vld [vmem:[%s466 + $0x31] sm:$0xff]
      %v1663 = vld [vmem:[%s466 + $0x39] sm:$0xff]
      %v1664 = vld [vmem:[%s466 + $0x49] sm:$0xff]
      %v1665 = vld [vmem:[%s466 + $0x51] sm:$0xff]
      %v1666 = vld [vmem:[%s466 + $0x61] sm:$0xff]
      %v1667 = vld [vmem:[%s466 + $0x69] sm:$0xff]
      %v1668 = vld [vmem:[%s466 + $0x79] sm:$0xff]
      %v1669 = vld [vmem:[%s466 + $0x81] sm:$0xff]
      %v1670 = vld [vmem:[%s466 + $0x91] sm:$0xff]
      %v1671 = vld [vmem:[%s466 + $0x99] sm:$0xff]
      %v1672 = vld [vmem:[%s466 + $0xa9] sm:$0xff]
      %v1673 = vld [vmem:[%s466 + $0xb1] sm:$0xff]
      %v1674 = vld [vmem:[%s466 + $0xc1] sm:$0xff]
      %v1675 = vld [vmem:[%s466 + $0xc9] sm:$0xff]
      %v1676 = vld [vmem:[%s466 + $0xd9] sm:$0xff]
      %v1677 = vld [vmem:[%s466 + $0xe1] sm:$0xff]
      %v1678 = vld [vmem:[%s466 + $0xf1] sm:$0xff]
      %v1679 = vld [vmem:[%s466 + $0xf9] sm:$0xff]
      %v1680 = vld [vmem:[%s466 + $0x109] sm:$0xff]
      %v1681 = vld [vmem:[%s466 + $0x111] sm:$0xff]
      %v1682 = vld [vmem:[%s466 + $0x121] sm:$0xff]
      %v1683 = vld [vmem:[%s466 + $0x129] sm:$0xff]
      %v1684 = vld [vmem:[%s466 + $0x139] sm:$0xff]
      %v1685 = vld [vmem:[%s466 + $0x141] sm:$0xff]
      %v1686 = vld [vmem:[%s466 + $0x151] sm:$0xff]
      %v1687 = vld [vmem:[%s466 + $0x159] sm:$0xff]
      %v1688 = vld [vmem:[%s466 + $0x169] sm:$0xff]
      %v1689 = vld [vmem:[%s466 + $0x171] sm:$0xff]
      %s1690 = scalar_lea.vmem %s265, 512
      %v1691 = vld [vmem:[%s1690] sm:$0xff]
      %v1692 = vld [vmem:[%s1690 + $0x8] sm:$0xff]
      %v1693 = vld [vmem:[%s1690 + $0x10] sm:$0xff]
      %v1694 = vld [vmem:[%s1690 + $0x18] sm:$0xff]
      %v1695 = vld [vmem:[%s1690 + $0x20] sm:$0xff]
      %v1696 = vld [vmem:[%s1690 + $0x28] sm:$0xff]
      %v1697 = vld [vmem:[%s1690 + $0x30] sm:$0xff]
      %v1698 = vld [vmem:[%s1690 + $0x38] sm:$0xff]
      %v1699 = vld [vmem:[%s1690 + $0x40] sm:$0xff]
      %v1700 = vld [vmem:[%s1690 + $0x48] sm:$0xff]
      %v1701 = vld [vmem:[%s1690 + $0x50] sm:$0xff]
      %v1702 = vld [vmem:[%s1690 + $0x58] sm:$0xff]
      %v1703 = vld [vmem:[%s1690 + $0x60] sm:$0xff]
      %v1704 = vld [vmem:[%s1690 + $0x68] sm:$0xff]
      %v1705 = vld [vmem:[%s1690 + $0x70] sm:$0xff]
      %v1706 = vld [vmem:[%s1690 + $0x78] sm:$0xff]
      %1707 = vmatprep.subr.mxu0 0.0
      %1708 = vmatpush1.msra.mxu0 %v1691
      %1709 = vmatprep.subr.mxu0 0.0
      %1710 = vmatpush1.msra.mxu0 %v1692
      %1711 = vmatprep.subr.mxu0 0.0
      %1712 = vmatpush1.msra.mxu0 %v1693
      %1713 = vmatprep.subr.mxu0 0.0
      %1714 = vmatpush1.msra.mxu0 %v1694
      %1715 = vmatprep.subr.mxu0 0.0
      %1716 = vmatpush1.msra.mxu0 %v1695
      %1717 = vmatprep.subr.mxu0 0.0
      %1718 = vmatpush1.msra.mxu0 %v1696
      %1719 = vmatprep.subr.mxu0 0.0
      %1720 = vmatpush1.msra.mxu0 %v1697
      %1721 = vmatprep.subr.mxu0 0.0
      %1722 = vmatpush1.msra.mxu0 %v1698
      %1723 = vmatprep.subr.mxu0 0.0
      %1724 = vmatpush1.msra.mxu0 %v1699
      %1725 = vmatprep.subr.mxu0 0.0
      %1726 = vmatpush1.msra.mxu0 %v1700
      %1727 = vmatprep.subr.mxu0 0.0
      %1728 = vmatpush1.msra.mxu0 %v1701
      %1729 = vmatprep.subr.mxu0 0.0
      %1730 = vmatpush1.msra.mxu0 %v1702
      %1731 = vmatprep.subr.mxu0 0.0
      %1732 = vmatpush1.msra.mxu0 %v1703
      %1733 = vmatprep.subr.mxu0 0.0
      %1734 = vmatpush1.msra.mxu0 %v1704
      %1735 = vmatprep.subr.mxu0 0.0
      %1736 = vmatpush1.msra.mxu0 %v1705
      %1737 = vmatprep.subr.mxu0 0.0
      %1738 = vmatpush1.msra.mxu0 %v1706
      %1739 = vmatprep.subr.mxu0 0.0
      %1740 = vmatpush1.msra.mxu0 0.0
      %1741 = vmatprep.subr.mxu0 0.0
      %1742 = vmatpush1.msra.mxu0 0.0
      %1743 = vmatprep.subr.mxu0 0.0
      %1744 = vmatpush1.msra.mxu0 0.0
      %1745 = vmatprep.subr.mxu0 0.0
      %1746 = vmatpush1.msra.mxu0 0.0
      %1747 = vmatprep.subr.mxu0 0.0
      %1748 = vmatpush1.msra.mxu0 0.0
      %1749 = vmatprep.subr.mxu0 0.0
      %1750 = vmatpush1.msra.mxu0 0.0
      %1751 = vmatprep.subr.mxu0 0.0
      %1752 = vmatpush1.msra.mxu0 0.0
      %1753 = vmatprep.subr.mxu0 0.0
      %1754 = vmatpush1.msra.mxu0 0.0
      %1755 = vmatprep.subr.mxu0 0.0
      %1756 = vmatpush1.msra.mxu0 0.0
      %1757 = vmatprep.subr.mxu0 0.0
      %1758 = vmatpush1.msra.mxu0 0.0
      %1759 = vmatprep.subr.mxu0 0.0
      %1760 = vmatpush1.msra.mxu0 0.0
      %1761 = vmatprep.subr.mxu0 0.0
      %1762 = vmatpush1.msra.mxu0 0.0
      %1763 = vmatprep.subr.mxu0 0.0
      %1764 = vmatpush1.msra.mxu0 0.0
      %1765 = vmatprep.subr.mxu0 0.0
      %1766 = vmatpush1.msra.mxu0 0.0
      %1767 = vmatprep.subr.mxu0 0.0
      %1768 = vmatpush1.msra.mxu0 0.0
      %1769 = vmatprep.subr.mxu0 0.0
      %1770 = vmatpush1.msra.mxu0 0.0
      %1771 = vmatprep.mubr.f32.mxu0 0.0
      %1772 = vmatmul.mubr.f32.gmra.mrb[0].mxu0 %v1658
      %v1773 = vpop.f32.mrb[0].mxu0
      %v1774 = vadd.f32 0.0, %v1773
      %v1775 = vpop.f32.mrb[0].mxu0
      %1776 = vmatprep.mubr.f32.mxu0 0.0
      %1777 = vmatmul.mubr.f32.gmra.mrb[0].mxu0 %v1659
      %v1778 = vpop.f32.mrb[0].mxu0
      %v1779 = vadd.f32 0.0, %v1778
      %v1780 = vpop.f32.mrb[0].mxu0
      %1781 = vmatprep.mubr.f32.mxu0 0.0
      %1782 = vmatmul.mubr.f32.gmra.mrb[0].mxu0 %v1660
      %v1783 = vpop.f32.mrb[0].mxu0
      %v1784 = vadd.f32 0.0, %v1783
      %v1785 = vpop.f32.mrb[0].mxu0
      %1786 = vmatprep.mubr.f32.mxu0 0.0
      %1787 = vmatmul.mubr.f32.gmra.mrb[0].mxu0 %v1661
      %v1788 = vpop.f32.mrb[0].mxu0
      %v1789 = vadd.f32 0.0, %v1788
      %v1790 = vpop.f32.mrb[0].mxu0
      %1791 = vmatprep.mubr.f32.mxu0 0.0
      %1792 = vmatmul.mubr.f32.gmra.mrb[0].mxu0 %v1662
      %v1793 = vpop.f32.mrb[0].mxu0
      %v1794 = vadd.f32 0.0, %v1793
      %v1795 = vpop.f32.mrb[0].mxu0
      %1796 = vmatprep.mubr.f32.mxu0 0.0
      %1797 = vmatmul.mubr.f32.gmra.mrb[0].mxu0 %v1663
      %v1798 = vpop.f32.mrb[0].mxu0
      %v1799 = vadd.f32 0.0, %v1798
      %v1800 = vpop.f32.mrb[0].mxu0
      %1801 = vmatprep.mubr.f32.mxu0 0.0
      %1802 = vmatmul.mubr.f32.gmra.mrb[0].mxu0 %v1664
      %v1803 = vpop.f32.mrb[0].mxu0
      %v1804 = vadd.f32 0.0, %v1803
      %v1805 = vpop.f32.mrb[0].mxu0
      %1806 = vmatprep.mubr.f32.mxu0 0.0
      %1807 = vmatmul.mubr.f32.gmra.mrb[0].mxu0 %v1665
      %v1808 = vpop.f32.mrb[0].mxu0
      %v1809 = vadd.f32 0.0, %v1808
      %v1810 = vpop.f32.mrb[0].mxu0
      %1811 = vmatprep.mubr.f32.mxu0 0.0
      %1812 = vmatmul.mubr.f32.gmra.mrb[0].mxu0 %v1666
      %v1813 = vpop.f32.mrb[0].mxu0
      %v1814 = vadd.f32 0.0, %v1813
      %v1815 = vpop.f32.mrb[0].mxu0
      %1816 = vmatprep.mubr.f32.mxu0 0.0
      %1817 = vmatmul.mubr.f32.gmra.mrb[0].mxu0 %v1667
      %v1818 = vpop.f32.mrb[0].mxu0
      %v1819 = vadd.f32 0.0, %v1818
      %v1820 = vpop.f32.mrb[0].mxu0
      %1821 = vmatprep.mubr.f32.mxu0 0.0
      %1822 = vmatmul.mubr.f32.gmra.mrb[0].mxu0 %v1668
      %v1823 = vpop.f32.mrb[0].mxu0
      %v1824 = vadd.f32 0.0, %v1823
      %v1825 = vpop.f32.mrb[0].mxu0
      %1826 = vmatprep.mubr.f32.mxu0 0.0
      %1827 = vmatmul.mubr.f32.gmra.mrb[0].mxu0 %v1669
      %v1828 = vpop.f32.mrb[0].mxu0
      %v1829 = vadd.f32 0.0, %v1828
      %v1830 = vpop.f32.mrb[0].mxu0
      %1831 = vmatprep.mubr.f32.mxu0 0.0
      %1832 = vmatmul.mubr.f32.gmra.mrb[0].mxu0 %v1670
      %v1833 = vpop.f32.mrb[0].mxu0
      %v1834 = vadd.f32 0.0, %v1833
      %v1835 = vpop.f32.mrb[0].mxu0
      %1836 = vmatprep.mubr.f32.mxu0 0.0
      %1837 = vmatmul.mubr.f32.gmra.mrb[0].mxu0 %v1671
      %v1838 = vpop.f32.mrb[0].mxu0
      %v1839 = vadd.f32 0.0, %v1838
      %v1840 = vpop.f32.mrb[0].mxu0
      %1841 = vmatprep.mubr.f32.mxu0 0.0
      %1842 = vmatmul.mubr.f32.gmra.mrb[0].mxu0 %v1672
      %v1843 = vpop.f32.mrb[0].mxu0
      %v1844 = vadd.f32 0.0, %v1843
      %v1845 = vpop.f32.mrb[0].mxu0
      %1846 = vmatprep.mubr.f32.mxu0 0.0
      %1847 = vmatmul.mubr.f32.gmra.mrb[0].mxu0 %v1673
      %v1848 = vpop.f32.mrb[0].mxu0
      %v1849 = vadd.f32 0.0, %v1848
      %v1850 = vpop.f32.mrb[0].mxu0
      %1851 = vmatprep.mubr.f32.mxu0 0.0
      %1852 = vmatmul.mubr.f32.gmra.mrb[0].mxu0 %v1674
      %v1853 = vpop.f32.mrb[0].mxu0
      %v1854 = vadd.f32 0.0, %v1853
      %v1855 = vpop.f32.mrb[0].mxu0
      %1856 = vmatprep.mubr.f32.mxu0 0.0
      %1857 = vmatmul.mubr.f32.gmra.mrb[0].mxu0 %v1675
      %v1858 = vpop.f32.mrb[0].mxu0
      %v1859 = vadd.f32 0.0, %v1858
      %v1860 = vpop.f32.mrb[0].mxu0
      %1861 = vmatprep.mubr.f32.mxu0 0.0
      %1862 = vmatmul.mubr.f32.gmra.mrb[0].mxu0 %v1676
      %v1863 = vpop.f32.mrb[0].mxu0
      %v1864 = vadd.f32 0.0, %v1863
      %v1865 = vpop.f32.mrb[0].mxu0
      %1866 = vmatprep.mubr.f32.mxu0 0.0
      %1867 = vmatmul.mubr.f32.gmra.mrb[0].mxu0 %v1677
      %v1868 = vpop.f32.mrb[0].mxu0
      %v1869 = vadd.f32 0.0, %v1868
      %v1870 = vpop.f32.mrb[0].mxu0
      %1871 = vmatprep.mubr.f32.mxu0 0.0
      %1872 = vmatmul.mubr.f32.gmra.mrb[0].mxu0 %v1678
      %v1873 = vpop.f32.mrb[0].mxu0
      %v1874 = vadd.f32 0.0, %v1873
      %v1875 = vpop.f32.mrb[0].mxu0
      %1876 = vmatprep.mubr.f32.mxu0 0.0
      %1877 = vmatmul.mubr.f32.gmra.mrb[0].mxu0 %v1679
      %v1878 = vpop.f32.mrb[0].mxu0
      %v1879 = vadd.f32 0.0, %v1878
      %v1880 = vpop.f32.mrb[0].mxu0
      %1881 = vmatprep.mubr.f32.mxu0 0.0
      %1882 = vmatmul.mubr.f32.gmra.mrb[0].mxu0 %v1680
      %v1883 = vpop.f32.mrb[0].mxu0
      %v1884 = vadd.f32 0.0, %v1883
      %v1885 = vpop.f32.mrb[0].mxu0
      %1886 = vmatprep.mubr.f32.mxu0 0.0
      %1887 = vmatmul.mubr.f32.gmra.mrb[0].mxu0 %v1681
      %v1888 = vpop.f32.mrb[0].mxu0
      %v1889 = vadd.f32 0.0, %v1888
      %v1890 = vpop.f32.mrb[0].mxu0
      %1891 = vmatprep.mubr.f32.mxu0 0.0
      %1892 = vmatmul.mubr.f32.gmra.mrb[0].mxu0 %v1682
      %v1893 = vpop.f32.mrb[0].mxu0
      %v1894 = vadd.f32 0.0, %v1893
      %v1895 = vpop.f32.mrb[0].mxu0
      %1896 = vmatprep.mubr.f32.mxu0 0.0
      %1897 = vmatmul.mubr.f32.gmra.mrb[0].mxu0 %v1683
      %v1898 = vpop.f32.mrb[0].mxu0
      %v1899 = vadd.f32 0.0, %v1898
      %v1900 = vpop.f32.mrb[0].mxu0
      %1901 = vmatprep.mubr.f32.mxu0 0.0
      %1902 = vmatmul.mubr.f32.gmra.mrb[0].mxu0 %v1684
      %v1903 = vpop.f32.mrb[0].mxu0
      %v1904 = vadd.f32 0.0, %v1903
      %v1905 = vpop.f32.mrb[0].mxu0
      %1906 = vmatprep.mubr.f32.mxu0 0.0
      %1907 = vmatmul.mubr.f32.gmra.mrb[0].mxu0 %v1685
      %v1908 = vpop.f32.mrb[0].mxu0
      %v1909 = vadd.f32 0.0, %v1908
      %v1910 = vpop.f32.mrb[0].mxu0
      %1911 = vmatprep.mubr.f32.mxu0 0.0
      %1912 = vmatmul.mubr.f32.gmra.mrb[0].mxu0 %v1686
      %v1913 = vpop.f32.mrb[0].mxu0
      %v1914 = vadd.f32 0.0, %v1913
      %v1915 = vpop.f32.mrb[0].mxu0
      %1916 = vmatprep.mubr.f32.mxu0 0.0
      %1917 = vmatmul.mubr.f32.gmra.mrb[0].mxu0 %v1687
      %v1918 = vpop.f32.mrb[0].mxu0
      %v1919 = vadd.f32 0.0, %v1918
      %v1920 = vpop.f32.mrb[0].mxu0
      %1921 = vmatprep.mubr.f32.mxu0 0.0
      %1922 = vmatmul.mubr.f32.gmra.mrb[0].mxu0 %v1688
      %v1923 = vpop.f32.mrb[0].mxu0
      %v1924 = vadd.f32 0.0, %v1923
      %v1925 = vpop.f32.mrb[0].mxu0
      %1926 = vmatprep.mubr.f32.mxu0 0.0
      %1927 = vmatmul.mubr.f32.gmra.mrb[0].mxu0 %v1689
      %v1928 = vpop.f32.mrb[0].mxu0
      %v1929 = vadd.f32 0.0, %v1928
      %v1930 = vpop.f32.mrb[0].mxu0
      %1931 = vdwg.mxu0
      %v1932 = vadd.f32 %v1626, %v1774
      %v1933 = vadd.f32 %v1627, %v1779
      %v1934 = vadd.f32 %v1628, %v1784
      %v1935 = vadd.f32 %v1629, %v1789
      %v1936 = vadd.f32 %v1630, %v1794
      %v1937 = vadd.f32 %v1631, %v1799
      %v1938 = vadd.f32 %v1632, %v1804
      %v1939 = vadd.f32 %v1633, %v1809
      %v1940 = vadd.f32 %v1634, %v1814
      %v1941 = vadd.f32 %v1635, %v1819
      %v1942 = vadd.f32 %v1636, %v1824
      %v1943 = vadd.f32 %v1637, %v1829
      %v1944 = vadd.f32 %v1638, %v1834
      %v1945 = vadd.f32 %v1639, %v1839
      %v1946 = vadd.f32 %v1640, %v1844
      %v1947 = vadd.f32 %v1641, %v1849
      %v1948 = vadd.f32 %v1642, %v1854
      %v1949 = vadd.f32 %v1643, %v1859
      %v1950 = vadd.f32 %v1644, %v1864
      %v1951 = vadd.f32 %v1645, %v1869
      %v1952 = vadd.f32 %v1646, %v1874
      %v1953 = vadd.f32 %v1647, %v1879
      %v1954 = vadd.f32 %v1648, %v1884
      %v1955 = vadd.f32 %v1649, %v1889
      %v1956 = vadd.f32 %v1650, %v1894
      %v1957 = vadd.f32 %v1651, %v1899
      %v1958 = vadd.f32 %v1652, %v1904
      %v1959 = vadd.f32 %v1653, %v1909
      %v1960 = vadd.f32 %v1654, %v1914
      %v1961 = vadd.f32 %v1655, %v1919
      %v1962 = vadd.f32 %v1656, %v1924
      %v1963 = vadd.f32 %v1657, %v1929
      %v1964 = vld [vmem:[%s466 + $0x2] sm:$0xff]
      %v1965 = vld [vmem:[%s466 + $0xa] sm:$0xff]
      %v1966 = vld [vmem:[%s466 + $0x1a] sm:$0xff]
      %v1967 = vld [vmem:[%s466 + $0x22] sm:$0xff]
      %v1968 = vld [vmem:[%s466 + $0x32] sm:$0xff]
      %v1969 = vld [vmem:[%s466 + $0x3a] sm:$0xff]
      %v1970 = vld [vmem:[%s466 + $0x4a] sm:$0xff]
      %v1971 = vld [vmem:[%s466 + $0x52] sm:$0xff]
      %v1972 = vld [vmem:[%s466 + $0x62] sm:$0xff]
      %v1973 = vld [vmem:[%s466 + $0x6a] sm:$0xff]
      %v1974 = vld [vmem:[%s466 + $0x7a] sm:$0xff]
      %v1975 = vld [vmem:[%s466 + $0x82] sm:$0xff]
      %v1976 = vld [vmem:[%s466 + $0x92] sm:$0xff]
      %v1977 = vld [vmem:[%s466 + $0x9a] sm:$0xff]
      %v1978 = vld [vmem:[%s466 + $0xaa] sm:$0xff]
      %v1979 = vld [vmem:[%s466 + $0xb2] sm:$0xff]
      %v1980 = vld [vmem:[%s466 + $0xc2] sm:$0xff]
      %v1981 = vld [vmem:[%s466 + $0xca] sm:$0xff]
      %v1982 = vld [vmem:[%s466 + $0xda] sm:$0xff]
      %v1983 = vld [vmem:[%s466 + $0xe2] sm:$0xff]
      %v1984 = vld [vmem:[%s466 + $0xf2] sm:$0xff]
      %v1985 = vld [vmem:[%s466 + $0xfa] sm:$0xff]
      %v1986 = vld [vmem:[%s466 + $0x10a] sm:$0xff]
      %v1987 = vld [vmem:[%s466 + $0x112] sm:$0xff]
      %v1988 = vld [vmem:[%s466 + $0x122] sm:$0xff]
      %v1989 = vld [vmem:[%s466 + $0x12a] sm:$0xff]
      %v1990 = vld [vmem:[%s466 + $0x13a] sm:$0xff]
      %v1991 = vld [vmem:[%s466 + $0x142] sm:$0xff]
      %v1992 = vld [vmem:[%s466 + $0x152] sm:$0xff]
      %v1993 = vld [vmem:[%s466 + $0x15a] sm:$0xff]
      %v1994 = vld [vmem:[%s466 + $0x16a] sm:$0xff]
      %v1995 = vld [vmem:[%s466 + $0x172] sm:$0xff]
      %s1996 = scalar_lea.vmem %s265, 640
      %v1997 = vld [vmem:[%s1996] sm:$0xff]
      %v1998 = vld [vmem:[%s1996 + $0x8] sm:$0xff]
      %v1999 = vld [vmem:[%s1996 + $0x10] sm:$0xff]
      %v2000 = vld [vmem:[%s1996 + $0x18] sm:$0xff]
      %v2001 = vld [vmem:[%s1996 + $0x20] sm:$0xff]
      %v2002 = vld [vmem:[%s1996 + $0x28] sm:$0xff]
      %v2003 = vld [vmem:[%s1996 + $0x30] sm:$0xff]
      %v2004 = vld [vmem:[%s1996 + $0x38] sm:$0xff]
      %v2005 = vld [vmem:[%s1996 + $0x40] sm:$0xff]
      %v2006 = vld [vmem:[%s1996 + $0x48] sm:$0xff]
      %v2007 = vld [vmem:[%s1996 + $0x50] sm:$0xff]
      %v2008 = vld [vmem:[%s1996 + $0x58] sm:$0xff]
      %v2009 = vld [vmem:[%s1996 + $0x60] sm:$0xff]
      %v2010 = vld [vmem:[%s1996 + $0x68] sm:$0xff]
      %v2011 = vld [vmem:[%s1996 + $0x70] sm:$0xff]
      %v2012 = vld [vmem:[%s1996 + $0x78] sm:$0xff]
      %2013 = vmatprep.subr.mxu0 0.0
      %2014 = vmatpush1.msra.mxu0 %v1997
      %2015 = vmatprep.subr.mxu0 0.0
      %2016 = vmatpush1.msra.mxu0 %v1998
      %2017 = vmatprep.subr.mxu0 0.0
      %2018 = vmatpush1.msra.mxu0 %v1999
      %2019 = vmatprep.subr.mxu0 0.0
      %2020 = vmatpush1.msra.mxu0 %v2000
      %2021 = vmatprep.subr.mxu0 0.0
      %2022 = vmatpush1.msra.mxu0 %v2001
      %2023 = vmatprep.subr.mxu0 0.0
      %2024 = vmatpush1.msra.mxu0 %v2002
      %2025 = vmatprep.subr.mxu0 0.0
      %2026 = vmatpush1.msra.mxu0 %v2003
      %2027 = vmatprep.subr.mxu0 0.0
      %2028 = vmatpush1.msra.mxu0 %v2004
      %2029 = vmatprep.subr.mxu0 0.0
      %2030 = vmatpush1.msra.mxu0 %v2005
      %2031 = vmatprep.subr.mxu0 0.0
      %2032 = vmatpush1.msra.mxu0 %v2006
      %2033 = vmatprep.subr.mxu0 0.0
      %2034 = vmatpush1.msra.mxu0 %v2007
      %2035 = vmatprep.subr.mxu0 0.0
      %2036 = vmatpush1.msra.mxu0 %v2008
      %2037 = vmatprep.subr.mxu0 0.0
      %2038 = vmatpush1.msra.mxu0 %v2009
      %2039 = vmatprep.subr.mxu0 0.0
      %2040 = vmatpush1.msra.mxu0 %v2010
      %2041 = vmatprep.subr.mxu0 0.0
      %2042 = vmatpush1.msra.mxu0 %v2011
      %2043 = vmatprep.subr.mxu0 0.0
      %2044 = vmatpush1.msra.mxu0 %v2012
      %2045 = vmatprep.subr.mxu0 0.0
      %2046 = vmatpush1.msra.mxu0 0.0
      %2047 = vmatprep.subr.mxu0 0.0
      %2048 = vmatpush1.msra.mxu0 0.0
      %2049 = vmatprep.subr.mxu0 0.0
      %2050 = vmatpush1.msra.mxu0 0.0
      %2051 = vmatprep.subr.mxu0 0.0
      %2052 = vmatpush1.msra.mxu0 0.0
      %2053 = vmatprep.subr.mxu0 0.0
      %2054 = vmatpush1.msra.mxu0 0.0
      %2055 = vmatprep.subr.mxu0 0.0
      %2056 = vmatpush1.msra.mxu0 0.0
      %2057 = vmatprep.subr.mxu0 0.0
      %2058 = vmatpush1.msra.mxu0 0.0
      %2059 = vmatprep.subr.mxu0 0.0
      %2060 = vmatpush1.msra.mxu0 0.0
      %2061 = vmatprep.subr.mxu0 0.0
      %2062 = vmatpush1.msra.mxu0 0.0
      %2063 = vmatprep.subr.mxu0 0.0
      %2064 = vmatpush1.msra.mxu0 0.0
      %2065 = vmatprep.subr.mxu0 0.0
      %2066 = vmatpush1.msra.mxu0 0.0
      %2067 = vmatprep.subr.mxu0 0.0
      %2068 = vmatpush1.msra.mxu0 0.0
      %2069 = vmatprep.subr.mxu0 0.0
      %2070 = vmatpush1.msra.mxu0 0.0
      %2071 = vmatprep.subr.mxu0 0.0
      %2072 = vmatpush1.msra.mxu0 0.0
      %2073 = vmatprep.subr.mxu0 0.0
      %2074 = vmatpush1.msra.mxu0 0.0
      %2075 = vmatprep.subr.mxu0 0.0
      %2076 = vmatpush1.msra.mxu0 0.0
      %2077 = vmatprep.mubr.f32.mxu0 0.0
      %2078 = vmatmul.mubr.f32.gmra.mrb[0].mxu0 %v1964
      %v2079 = vpop.f32.mrb[0].mxu0
      %v2080 = vadd.f32 0.0, %v2079
      %v2081 = vpop.f32.mrb[0].mxu0
      %2082 = vmatprep.mubr.f32.mxu0 0.0
      %2083 = vmatmul.mubr.f32.gmra.mrb[0].mxu0 %v1965
      %v2084 = vpop.f32.mrb[0].mxu0
      %v2085 = vadd.f32 0.0, %v2084
      %v2086 = vpop.f32.mrb[0].mxu0
      %2087 = vmatprep.mubr.f32.mxu0 0.0
      %2088 = vmatmul.mubr.f32.gmra.mrb[0].mxu0 %v1966
      %v2089 = vpop.f32.mrb[0].mxu0
      %v2090 = vadd.f32 0.0, %v2089
      %v2091 = vpop.f32.mrb[0].mxu0
      %2092 = vmatprep.mubr.f32.mxu0 0.0
      %2093 = vmatmul.mubr.f32.gmra.mrb[0].mxu0 %v1967
      %v2094 = vpop.f32.mrb[0].mxu0
      %v2095 = vadd.f32 0.0, %v2094
      %v2096 = vpop.f32.mrb[0].mxu0
      %2097 = vmatprep.mubr.f32.mxu0 0.0
      %2098 = vmatmul.mubr.f32.gmra.mrb[0].mxu0 %v1968
      %v2099 = vpop.f32.mrb[0].mxu0
      %v2100 = vadd.f32 0.0, %v2099
      %v2101 = vpop.f32.mrb[0].mxu0
      %2102 = vmatprep.mubr.f32.mxu0 0.0
      %2103 = vmatmul.mubr.f32.gmra.mrb[0].mxu0 %v1969
      %v2104 = vpop.f32.mrb[0].mxu0
      %v2105 = vadd.f32 0.0, %v2104
      %v2106 = vpop.f32.mrb[0].mxu0
      %2107 = vmatprep.mubr.f32.mxu0 0.0
      %2108 = vmatmul.mubr.f32.gmra.mrb[0].mxu0 %v1970
      %v2109 = vpop.f32.mrb[0].mxu0
      %v2110 = vadd.f32 0.0, %v2109
      %v2111 = vpop.f32.mrb[0].mxu0
      %2112 = vmatprep.mubr.f32.mxu0 0.0
      %2113 = vmatmul.mubr.f32.gmra.mrb[0].mxu0 %v1971
      %v2114 = vpop.f32.mrb[0].mxu0
      %v2115 = vadd.f32 0.0, %v2114
      %v2116 = vpop.f32.mrb[0].mxu0
      %2117 = vmatprep.mubr.f32.mxu0 0.0
      %2118 = vmatmul.mubr.f32.gmra.mrb[0].mxu0 %v1972
      %v2119 = vpop.f32.mrb[0].mxu0
      %v2120 = vadd.f32 0.0, %v2119
      %v2121 = vpop.f32.mrb[0].mxu0
      %2122 = vmatprep.mubr.f32.mxu0 0.0
      %2123 = vmatmul.mubr.f32.gmra.mrb[0].mxu0 %v1973
      %v2124 = vpop.f32.mrb[0].mxu0
      %v2125 = vadd.f32 0.0, %v2124
      %v2126 = vpop.f32.mrb[0].mxu0
      %2127 = vmatprep.mubr.f32.mxu0 0.0
      %2128 = vmatmul.mubr.f32.gmra.mrb[0].mxu0 %v1974
      %v2129 = vpop.f32.mrb[0].mxu0
      %v2130 = vadd.f32 0.0, %v2129
      %v2131 = vpop.f32.mrb[0].mxu0
      %2132 = vmatprep.mubr.f32.mxu0 0.0
      %2133 = vmatmul.mubr.f32.gmra.mrb[0].mxu0 %v1975
      %v2134 = vpop.f32.mrb[0].mxu0
      %v2135 = vadd.f32 0.0, %v2134
      %v2136 = vpop.f32.mrb[0].mxu0
      %2137 = vmatprep.mubr.f32.mxu0 0.0
      %2138 = vmatmul.mubr.f32.gmra.mrb[0].mxu0 %v1976
      %v2139 = vpop.f32.mrb[0].mxu0
      %v2140 = vadd.f32 0.0, %v2139
      %v2141 = vpop.f32.mrb[0].mxu0
      %2142 = vmatprep.mubr.f32.mxu0 0.0
      %2143 = vmatmul.mubr.f32.gmra.mrb[0].mxu0 %v1977
      %v2144 = vpop.f32.mrb[0].mxu0
      %v2145 = vadd.f32 0.0, %v2144
      %v2146 = vpop.f32.mrb[0].mxu0
      %2147 = vmatprep.mubr.f32.mxu0 0.0
      %2148 = vmatmul.mubr.f32.gmra.mrb[0].mxu0 %v1978
      %v2149 = vpop.f32.mrb[0].mxu0
      %v2150 = vadd.f32 0.0, %v2149
      %v2151 = vpop.f32.mrb[0].mxu0
      %2152 = vmatprep.mubr.f32.mxu0 0.0
      %2153 = vmatmul.mubr.f32.gmra.mrb[0].mxu0 %v1979
      %v2154 = vpop.f32.mrb[0].mxu0
      %v2155 = vadd.f32 0.0, %v2154
      %v2156 = vpop.f32.mrb[0].mxu0
      %2157 = vmatprep.mubr.f32.mxu0 0.0
      %2158 = vmatmul.mubr.f32.gmra.mrb[0].mxu0 %v1980
      %v2159 = vpop.f32.mrb[0].mxu0
      %v2160 = vadd.f32 0.0, %v2159
      %v2161 = vpop.f32.mrb[0].mxu0
      %2162 = vmatprep.mubr.f32.mxu0 0.0
      %2163 = vmatmul.mubr.f32.gmra.mrb[0].mxu0 %v1981
      %v2164 = vpop.f32.mrb[0].mxu0
      %v2165 = vadd.f32 0.0, %v2164
      %v2166 = vpop.f32.mrb[0].mxu0
      %2167 = vmatprep.mubr.f32.mxu0 0.0
      %2168 = vmatmul.mubr.f32.gmra.mrb[0].mxu0 %v1982
      %v2169 = vpop.f32.mrb[0].mxu0
      %v2170 = vadd.f32 0.0, %v2169
      %v2171 = vpop.f32.mrb[0].mxu0
      %2172 = vmatprep.mubr.f32.mxu0 0.0
      %2173 = vmatmul.mubr.f32.gmra.mrb[0].mxu0 %v1983
      %v2174 = vpop.f32.mrb[0].mxu0
      %v2175 = vadd.f32 0.0, %v2174
      %v2176 = vpop.f32.mrb[0].mxu0
      %2177 = vmatprep.mubr.f32.mxu0 0.0
      %2178 = vmatmul.mubr.f32.gmra.mrb[0].mxu0 %v1984
      %v2179 = vpop.f32.mrb[0].mxu0
      %v2180 = vadd.f32 0.0, %v2179
      %v2181 = vpop.f32.mrb[0].mxu0
      %2182 = vmatprep.mubr.f32.mxu0 0.0
      %2183 = vmatmul.mubr.f32.gmra.mrb[0].mxu0 %v1985
      %v2184 = vpop.f32.mrb[0].mxu0
      %v2185 = vadd.f32 0.0, %v2184
      %v2186 = vpop.f32.mrb[0].mxu0
      %2187 = vmatprep.mubr.f32.mxu0 0.0
      %2188 = vmatmul.mubr.f32.gmra.mrb[0].mxu0 %v1986
      %v2189 = vpop.f32.mrb[0].mxu0
      %v2190 = vadd.f32 0.0, %v2189
      %v2191 = vpop.f32.mrb[0].mxu0
      %2192 = vmatprep.mubr.f32.mxu0 0.0
      %2193 = vmatmul.mubr.f32.gmra.mrb[0].mxu0 %v1987
      %v2194 = vpop.f32.mrb[0].mxu0
      %v2195 = vadd.f32 0.0, %v2194
      %v2196 = vpop.f32.mrb[0].mxu0
      %2197 = vmatprep.mubr.f32.mxu0 0.0
      %2198 = vmatmul.mubr.f32.gmra.mrb[0].mxu0 %v1988
      %v2199 = vpop.f32.mrb[0].mxu0
      %v2200 = vadd.f32 0.0, %v2199
      %v2201 = vpop.f32.mrb[0].mxu0
      %2202 = vmatprep.mubr.f32.mxu0 0.0
      %2203 = vmatmul.mubr.f32.gmra.mrb[0].mxu0 %v1989
      %v2204 = vpop.f32.mrb[0].mxu0
      %v2205 = vadd.f32 0.0, %v2204
      %v2206 = vpop.f32.mrb[0].mxu0
      %2207 = vmatprep.mubr.f32.mxu0 0.0
      %2208 = vmatmul.mubr.f32.gmra.mrb[0].mxu0 %v1990
      %v2209 = vpop.f32.mrb[0].mxu0
      %v2210 = vadd.f32 0.0, %v2209
      %v2211 = vpop.f32.mrb[0].mxu0
      %2212 = vmatprep.mubr.f32.mxu0 0.0
      %2213 = vmatmul.mubr.f32.gmra.mrb[0].mxu0 %v1991
      %v2214 = vpop.f32.mrb[0].mxu0
      %v2215 = vadd.f32 0.0, %v2214
      %v2216 = vpop.f32.mrb[0].mxu0
      %2217 = vmatprep.mubr.f32.mxu0 0.0
      %2218 = vmatmul.mubr.f32.gmra.mrb[0].mxu0 %v1992
      %v2219 = vpop.f32.mrb[0].mxu0
      %v2220 = vadd.f32 0.0, %v2219
      %v2221 = vpop.f32.mrb[0].mxu0
      %2222 = vmatprep.mubr.f32.mxu0 0.0
      %2223 = vmatmul.mubr.f32.gmra.mrb[0].mxu0 %v1993
      %v2224 = vpop.f32.mrb[0].mxu0
      %v2225 = vadd.f32 0.0, %v2224
      %v2226 = vpop.f32.mrb[0].mxu0
      %2227 = vmatprep.mubr.f32.mxu0 0.0
      %2228 = vmatmul.mubr.f32.gmra.mrb[0].mxu0 %v1994
      %v2229 = vpop.f32.mrb[0].mxu0
      %v2230 = vadd.f32 0.0, %v2229
      %v2231 = vpop.f32.mrb[0].mxu0
      %2232 = vmatprep.mubr.f32.mxu0 0.0
      %2233 = vmatmul.mubr.f32.gmra.mrb[0].mxu0 %v1995
      %v2234 = vpop.f32.mrb[0].mxu0
      %v2235 = vadd.f32 0.0, %v2234
      %v2236 = vpop.f32.mrb[0].mxu0
      %2237 = vdwg.mxu0
      %v2238 = vadd.f32 %v1932, %v2080
      %v2239 = vadd.f32 %v1933, %v2085
      %v2240 = vadd.f32 %v1934, %v2090
      %v2241 = vadd.f32 %v1935, %v2095
      %v2242 = vadd.f32 %v1936, %v2100
      %v2243 = vadd.f32 %v1937, %v2105
      %v2244 = vadd.f32 %v1938, %v2110
      %v2245 = vadd.f32 %v1939, %v2115
      %v2246 = vadd.f32 %v1940, %v2120
      %v2247 = vadd.f32 %v1941, %v2125
      %v2248 = vadd.f32 %v1942, %v2130
      %v2249 = vadd.f32 %v1943, %v2135
      %v2250 = vadd.f32 %v1944, %v2140
      %v2251 = vadd.f32 %v1945, %v2145
      %v2252 = vadd.f32 %v1946, %v2150
      %v2253 = vadd.f32 %v1947, %v2155
      %v2254 = vadd.f32 %v1948, %v2160
      %v2255 = vadd.f32 %v1949, %v2165
      %v2256 = vadd.f32 %v1950, %v2170
      %v2257 = vadd.f32 %v1951, %v2175
      %v2258 = vadd.f32 %v1952, %v2180
      %v2259 = vadd.f32 %v1953, %v2185
      %v2260 = vadd.f32 %v1954, %v2190
      %v2261 = vadd.f32 %v1955, %v2195
      %v2262 = vadd.f32 %v1956, %v2200
      %v2263 = vadd.f32 %v1957, %v2205
      %v2264 = vadd.f32 %v1958, %v2210
      %v2265 = vadd.f32 %v1959, %v2215
      %v2266 = vadd.f32 %v1960, %v2220
      %v2267 = vadd.f32 %v1961, %v2225
      %v2268 = vadd.f32 %v1962, %v2230
      %v2269 = vadd.f32 %v1963, %v2235
      %s2270 = scalar_lea.vmem [#allocation2], 48
      %v2271 = vld [vmem:[%s2270] sm:$0xff]
      %v2272 = vld [vmem:[%s2270 + $0x8] sm:$0xff]
      %v2273 = vld [vmem:[%s2270 + $0x18] sm:$0xff]
      %v2274 = vld [vmem:[%s2270 + $0x20] sm:$0xff]
      %v2275 = vld [vmem:[%s2270 + $0x30] sm:$0xff]
      %v2276 = vld [vmem:[%s2270 + $0x38] sm:$0xff]
      %v2277 = vld [vmem:[%s2270 + $0x48] sm:$0xff]
      %v2278 = vld [vmem:[%s2270 + $0x50] sm:$0xff]
      %v2279 = vld [vmem:[%s2270 + $0x60] sm:$0xff]
      %v2280 = vld [vmem:[%s2270 + $0x68] sm:$0xff]
      %v2281 = vld [vmem:[%s2270 + $0x78] sm:$0xff]
      %v2282 = vld [vmem:[%s2270 + $0x80] sm:$0xff]
      %v2283 = vld [vmem:[%s2270 + $0x90] sm:$0xff]
      %v2284 = vld [vmem:[%s2270 + $0x98] sm:$0xff]
      %v2285 = vld [vmem:[%s2270 + $0xa8] sm:$0xff]
      %v2286 = vld [vmem:[%s2270 + $0xb0] sm:$0xff]
      %v2287 = vld [vmem:[%s2270 + $0xc0] sm:$0xff]
      %v2288 = vld [vmem:[%s2270 + $0xc8] sm:$0xff]
      %v2289 = vld [vmem:[%s2270 + $0xd8] sm:$0xff]
      %v2290 = vld [vmem:[%s2270 + $0xe0] sm:$0xff]
      %v2291 = vld [vmem:[%s2270 + $0xf0] sm:$0xff]
      %v2292 = vld [vmem:[%s2270 + $0xf8] sm:$0xff]
      %v2293 = vld [vmem:[%s2270 + $0x108] sm:$0xff]
      %v2294 = vld [vmem:[%s2270 + $0x110] sm:$0xff]
      %v2295 = vld [vmem:[%s2270 + $0x120] sm:$0xff]
      %v2296 = vld [vmem:[%s2270 + $0x128] sm:$0xff]
      %v2297 = vld [vmem:[%s2270 + $0x138] sm:$0xff]
      %v2298 = vld [vmem:[%s2270 + $0x140] sm:$0xff]
      %v2299 = vld [vmem:[%s2270 + $0x150] sm:$0xff]
      %v2300 = vld [vmem:[%s2270 + $0x158] sm:$0xff]
      %v2301 = vld [vmem:[%s2270 + $0x168] sm:$0xff]
      %v2302 = vld [vmem:[%s2270 + $0x170] sm:$0xff]
      %s2303 = scalar_lea.vmem %s265, 768
      %v2304 = vld [vmem:[%s2303] sm:$0xff]
      %v2305 = vld [vmem:[%s2303 + $0x8] sm:$0xff]
      %v2306 = vld [vmem:[%s2303 + $0x10] sm:$0xff]
      %v2307 = vld [vmem:[%s2303 + $0x18] sm:$0xff]
      %v2308 = vld [vmem:[%s2303 + $0x20] sm:$0xff]
      %v2309 = vld [vmem:[%s2303 + $0x28] sm:$0xff]
      %v2310 = vld [vmem:[%s2303 + $0x30] sm:$0xff]
      %v2311 = vld [vmem:[%s2303 + $0x38] sm:$0xff]
      %v2312 = vld [vmem:[%s2303 + $0x40] sm:$0xff]
      %v2313 = vld [vmem:[%s2303 + $0x48] sm:$0xff]
      %v2314 = vld [vmem:[%s2303 + $0x50] sm:$0xff]
      %v2315 = vld [vmem:[%s2303 + $0x58] sm:$0xff]
      %v2316 = vld [vmem:[%s2303 + $0x60] sm:$0xff]
      %v2317 = vld [vmem:[%s2303 + $0x68] sm:$0xff]
      %v2318 = vld [vmem:[%s2303 + $0x70] sm:$0xff]
      %v2319 = vld [vmem:[%s2303 + $0x78] sm:$0xff]
      %2320 = vmatprep.subr.mxu0 0.0
      %2321 = vmatpush1.msra.mxu0 %v2304
      %2322 = vmatprep.subr.mxu0 0.0
      %2323 = vmatpush1.msra.mxu0 %v2305
      %2324 = vmatprep.subr.mxu0 0.0
      %2325 = vmatpush1.msra.mxu0 %v2306
      %2326 = vmatprep.subr.mxu0 0.0
      %2327 = vmatpush1.msra.mxu0 %v2307
      %2328 = vmatprep.subr.mxu0 0.0
      %2329 = vmatpush1.msra.mxu0 %v2308
      %2330 = vmatprep.subr.mxu0 0.0
      %2331 = vmatpush1.msra.mxu0 %v2309
      %2332 = vmatprep.subr.mxu0 0.0
      %2333 = vmatpush1.msra.mxu0 %v2310
      %2334 = vmatprep.subr.mxu0 0.0
      %2335 = vmatpush1.msra.mxu0 %v2311
      %2336 = vmatprep.subr.mxu0 0.0
      %2337 = vmatpush1.msra.mxu0 %v2312
      %2338 = vmatprep.subr.mxu0 0.0
      %2339 = vmatpush1.msra.mxu0 %v2313
      %2340 = vmatprep.subr.mxu0 0.0
      %2341 = vmatpush1.msra.mxu0 %v2314
      %2342 = vmatprep.subr.mxu0 0.0
      %2343 = vmatpush1.msra.mxu0 %v2315
      %2344 = vmatprep.subr.mxu0 0.0
      %2345 = vmatpush1.msra.mxu0 %v2316
      %2346 = vmatprep.subr.mxu0 0.0
      %2347 = vmatpush1.msra.mxu0 %v2317
      %2348 = vmatprep.subr.mxu0 0.0
      %2349 = vmatpush1.msra.mxu0 %v2318
      %2350 = vmatprep.subr.mxu0 0.0
      %2351 = vmatpush1.msra.mxu0 %v2319
      %2352 = vmatprep.subr.mxu0 0.0
      %2353 = vmatpush1.msra.mxu0 0.0
      %2354 = vmatprep.subr.mxu0 0.0
      %2355 = vmatpush1.msra.mxu0 0.0
      %2356 = vmatprep.subr.mxu0 0.0
      %2357 = vmatpush1.msra.mxu0 0.0
      %2358 = vmatprep.subr.mxu0 0.0
      %2359 = vmatpush1.msra.mxu0 0.0
      %2360 = vmatprep.subr.mxu0 0.0
      %2361 = vmatpush1.msra.mxu0 0.0
      %2362 = vmatprep.subr.mxu0 0.0
      %2363 = vmatpush1.msra.mxu0 0.0
      %2364 = vmatprep.subr.mxu0 0.0
      %2365 = vmatpush1.msra.mxu0 0.0
      %2366 = vmatprep.subr.mxu0 0.0
      %2367 = vmatpush1.msra.mxu0 0.0
      %2368 = vmatprep.subr.mxu0 0.0
      %2369 = vmatpush1.msra.mxu0 0.0
      %2370 = vmatprep.subr.mxu0 0.0
      %2371 = vmatpush1.msra.mxu0 0.0
      %2372 = vmatprep.subr.mxu0 0.0
      %2373 = vmatpush1.msra.mxu0 0.0
      %2374 = vmatprep.subr.mxu0 0.0
      %2375 = vmatpush1.msra.mxu0 0.0
      %2376 = vmatprep.subr.mxu0 0.0
      %2377 = vmatpush1.msra.mxu0 0.0
      %2378 = vmatprep.subr.mxu0 0.0
      %2379 = vmatpush1.msra.mxu0 0.0
      %2380 = vmatprep.subr.mxu0 0.0
      %2381 = vmatpush1.msra.mxu0 0.0
      %2382 = vmatprep.subr.mxu0 0.0
      %2383 = vmatpush1.msra.mxu0 0.0
      %2384 = vmatprep.mubr.f32.mxu0 0.0
      %2385 = vmatmul.mubr.f32.gmra.mrb[0].mxu0 %v2271
      %v2386 = vpop.f32.mrb[0].mxu0
      %v2387 = vadd.f32 0.0, %v2386
      %v2388 = vpop.f32.mrb[0].mxu0
      %2389 = vmatprep.mubr.f32.mxu0 0.0
      %2390 = vmatmul.mubr.f32.gmra.mrb[0].mxu0 %v2272
      %v2391 = vpop.f32.mrb[0].mxu0
      %v2392 = vadd.f32 0.0, %v2391
      %v2393 = vpop.f32.mrb[0].mxu0
      %2394 = vmatprep.mubr.f32.mxu0 0.0
      %2395 = vmatmul.mubr.f32.gmra.mrb[0].mxu0 %v2273
      %v2396 = vpop.f32.mrb[0].mxu0
      %v2397 = vadd.f32 0.0, %v2396
      %v2398 = vpop.f32.mrb[0].mxu0
      %2399 = vmatprep.mubr.f32.mxu0 0.0
      %2400 = vmatmul.mubr.f32.gmra.mrb[0].mxu0 %v2274
      %v2401 = vpop.f32.mrb[0].mxu0
      %v2402 = vadd.f32 0.0, %v2401
      %v2403 = vpop.f32.mrb[0].mxu0
      %2404 = vmatprep.mubr.f32.mxu0 0.0
      %2405 = vmatmul.mubr.f32.gmra.mrb[0].mxu0 %v2275
      %v2406 = vpop.f32.mrb[0].mxu0
      %v2407 = vadd.f32 0.0, %v2406
      %v2408 = vpop.f32.mrb[0].mxu0
      %2409 = vmatprep.mubr.f32.mxu0 0.0
      %2410 = vmatmul.mubr.f32.gmra.mrb[0].mxu0 %v2276
      %v2411 = vpop.f32.mrb[0].mxu0
      %v2412 = vadd.f32 0.0, %v2411
      %v2413 = vpop.f32.mrb[0].mxu0
      %2414 = vmatprep.mubr.f32.mxu0 0.0
      %2415 = vmatmul.mubr.f32.gmra.mrb[0].mxu0 %v2277
      %v2416 = vpop.f32.mrb[0].mxu0
      %v2417 = vadd.f32 0.0, %v2416
      %v2418 = vpop.f32.mrb[0].mxu0
      %2419 = vmatprep.mubr.f32.mxu0 0.0
      %2420 = vmatmul.mubr.f32.gmra.mrb[0].mxu0 %v2278
      %v2421 = vpop.f32.mrb[0].mxu0
      %v2422 = vadd.f32 0.0, %v2421
      %v2423 = vpop.f32.mrb[0].mxu0
      %2424 = vmatprep.mubr.f32.mxu0 0.0
      %2425 = vmatmul.mubr.f32.gmra.mrb[0].mxu0 %v2279
      %v2426 = vpop.f32.mrb[0].mxu0
      %v2427 = vadd.f32 0.0, %v2426
      %v2428 = vpop.f32.mrb[0].mxu0
      %2429 = vmatprep.mubr.f32.mxu0 0.0
      %2430 = vmatmul.mubr.f32.gmra.mrb[0].mxu0 %v2280
      %v2431 = vpop.f32.mrb[0].mxu0
      %v2432 = vadd.f32 0.0, %v2431
      %v2433 = vpop.f32.mrb[0].mxu0
      %2434 = vmatprep.mubr.f32.mxu0 0.0
      %2435 = vmatmul.mubr.f32.gmra.mrb[0].mxu0 %v2281
      %v2436 = vpop.f32.mrb[0].mxu0
      %v2437 = vadd.f32 0.0, %v2436
      %v2438 = vpop.f32.mrb[0].mxu0
      %2439 = vmatprep.mubr.f32.mxu0 0.0
      %2440 = vmatmul.mubr.f32.gmra.mrb[0].mxu0 %v2282
      %v2441 = vpop.f32.mrb[0].mxu0
      %v2442 = vadd.f32 0.0, %v2441
      %v2443 = vpop.f32.mrb[0].mxu0
      %2444 = vmatprep.mubr.f32.mxu0 0.0
      %2445 = vmatmul.mubr.f32.gmra.mrb[0].mxu0 %v2283
      %v2446 = vpop.f32.mrb[0].mxu0
      %v2447 = vadd.f32 0.0, %v2446
      %v2448 = vpop.f32.mrb[0].mxu0
      %2449 = vmatprep.mubr.f32.mxu0 0.0
      %2450 = vmatmul.mubr.f32.gmra.mrb[0].mxu0 %v2284
      %v2451 = vpop.f32.mrb[0].mxu0
      %v2452 = vadd.f32 0.0, %v2451
      %v2453 = vpop.f32.mrb[0].mxu0
      %2454 = vmatprep.mubr.f32.mxu0 0.0
      %2455 = vmatmul.mubr.f32.gmra.mrb[0].mxu0 %v2285
      %v2456 = vpop.f32.mrb[0].mxu0
      %v2457 = vadd.f32 0.0, %v2456
      %v2458 = vpop.f32.mrb[0].mxu0
      %2459 = vmatprep.mubr.f32.mxu0 0.0
      %2460 = vmatmul.mubr.f32.gmra.mrb[0].mxu0 %v2286
      %v2461 = vpop.f32.mrb[0].mxu0
      %v2462 = vadd.f32 0.0, %v2461
      %v2463 = vpop.f32.mrb[0].mxu0
      %2464 = vmatprep.mubr.f32.mxu0 0.0
      %2465 = vmatmul.mubr.f32.gmra.mrb[0].mxu0 %v2287
      %v2466 = vpop.f32.mrb[0].mxu0
      %v2467 = vadd.f32 0.0, %v2466
      %v2468 = vpop.f32.mrb[0].mxu0
      %2469 = vmatprep.mubr.f32.mxu0 0.0
      %2470 = vmatmul.mubr.f32.gmra.mrb[0].mxu0 %v2288
      %v2471 = vpop.f32.mrb[0].mxu0
      %v2472 = vadd.f32 0.0, %v2471
      %v2473 = vpop.f32.mrb[0].mxu0
      %2474 = vmatprep.mubr.f32.mxu0 0.0
      %2475 = vmatmul.mubr.f32.gmra.mrb[0].mxu0 %v2289
      %v2476 = vpop.f32.mrb[0].mxu0
      %v2477 = vadd.f32 0.0, %v2476
      %v2478 = vpop.f32.mrb[0].mxu0
      %2479 = vmatprep.mubr.f32.mxu0 0.0
      %2480 = vmatmul.mubr.f32.gmra.mrb[0].mxu0 %v2290
      %v2481 = vpop.f32.mrb[0].mxu0
      %v2482 = vadd.f32 0.0, %v2481
      %v2483 = vpop.f32.mrb[0].mxu0
      %2484 = vmatprep.mubr.f32.mxu0 0.0
      %2485 = vmatmul.mubr.f32.gmra.mrb[0].mxu0 %v2291
      %v2486 = vpop.f32.mrb[0].mxu0
      %v2487 = vadd.f32 0.0, %v2486
      %v2488 = vpop.f32.mrb[0].mxu0
      %2489 = vmatprep.mubr.f32.mxu0 0.0
      %2490 = vmatmul.mubr.f32.gmra.mrb[0].mxu0 %v2292
      %v2491 = vpop.f32.mrb[0].mxu0
      %v2492 = vadd.f32 0.0, %v2491
      %v2493 = vpop.f32.mrb[0].mxu0
      %2494 = vmatprep.mubr.f32.mxu0 0.0
      %2495 = vmatmul.mubr.f32.gmra.mrb[0].mxu0 %v2293
      %v2496 = vpop.f32.mrb[0].mxu0
      %v2497 = vadd.f32 0.0, %v2496
      %v2498 = vpop.f32.mrb[0].mxu0
      %2499 = vmatprep.mubr.f32.mxu0 0.0
      %2500 = vmatmul.mubr.f32.gmra.mrb[0].mxu0 %v2294
      %v2501 = vpop.f32.mrb[0].mxu0
      %v2502 = vadd.f32 0.0, %v2501
      %v2503 = vpop.f32.mrb[0].mxu0
      %2504 = vmatprep.mubr.f32.mxu0 0.0
      %2505 = vmatmul.mubr.f32.gmra.mrb[0].mxu0 %v2295
      %v2506 = vpop.f32.mrb[0].mxu0
      %v2507 = vadd.f32 0.0, %v2506
      %v2508 = vpop.f32.mrb[0].mxu0
      %2509 = vmatprep.mubr.f32.mxu0 0.0
      %2510 = vmatmul.mubr.f32.gmra.mrb[0].mxu0 %v2296
      %v2511 = vpop.f32.mrb[0].mxu0
      %v2512 = vadd.f32 0.0, %v2511
      %v2513 = vpop.f32.mrb[0].mxu0
      %2514 = vmatprep.mubr.f32.mxu0 0.0
      %2515 = vmatmul.mubr.f32.gmra.mrb[0].mxu0 %v2297
      %v2516 = vpop.f32.mrb[0].mxu0
      %v2517 = vadd.f32 0.0, %v2516
      %v2518 = vpop.f32.mrb[0].mxu0
      %2519 = vmatprep.mubr.f32.mxu0 0.0
      %2520 = vmatmul.mubr.f32.gmra.mrb[0].mxu0 %v2298
      %v2521 = vpop.f32.mrb[0].mxu0
      %v2522 = vadd.f32 0.0, %v2521
      %v2523 = vpop.f32.mrb[0].mxu0
      %2524 = vmatprep.mubr.f32.mxu0 0.0
      %2525 = vmatmul.mubr.f32.gmra.mrb[0].mxu0 %v2299
      %v2526 = vpop.f32.mrb[0].mxu0
      %v2527 = vadd.f32 0.0, %v2526
      %v2528 = vpop.f32.mrb[0].mxu0
      %2529 = vmatprep.mubr.f32.mxu0 0.0
      %2530 = vmatmul.mubr.f32.gmra.mrb[0].mxu0 %v2300
      %v2531 = vpop.f32.mrb[0].mxu0
      %v2532 = vadd.f32 0.0, %v2531
      %v2533 = vpop.f32.mrb[0].mxu0
      %2534 = vmatprep.mubr.f32.mxu0 0.0
      %2535 = vmatmul.mubr.f32.gmra.mrb[0].mxu0 %v2301
      %v2536 = vpop.f32.mrb[0].mxu0
      %v2537 = vadd.f32 0.0, %v2536
      %v2538 = vpop.f32.mrb[0].mxu0
      %2539 = vmatprep.mubr.f32.mxu0 0.0
      %2540 = vmatmul.mubr.f32.gmra.mrb[0].mxu0 %v2302
      %v2541 = vpop.f32.mrb[0].mxu0
      %v2542 = vadd.f32 0.0, %v2541
      %v2543 = vpop.f32.mrb[0].mxu0
      %2544 = vdwg.mxu0
      %v2545 = vadd.f32 %v2238, %v2387
      %v2546 = vadd.f32 %v2239, %v2392
      %v2547 = vadd.f32 %v2240, %v2397
      %v2548 = vadd.f32 %v2241, %v2402
      %v2549 = vadd.f32 %v2242, %v2407
      %v2550 = vadd.f32 %v2243, %v2412
      %v2551 = vadd.f32 %v2244, %v2417
      %v2552 = vadd.f32 %v2245, %v2422
      %v2553 = vadd.f32 %v2246, %v2427
      %v2554 = vadd.f32 %v2247, %v2432
      %v2555 = vadd.f32 %v2248, %v2437
      %v2556 = vadd.f32 %v2249, %v2442
      %v2557 = vadd.f32 %v2250, %v2447
      %v2558 = vadd.f32 %v2251, %v2452
      %v2559 = vadd.f32 %v2252, %v2457
      %v2560 = vadd.f32 %v2253, %v2462
      %v2561 = vadd.f32 %v2254, %v2467
      %v2562 = vadd.f32 %v2255, %v2472
      %v2563 = vadd.f32 %v2256, %v2477
      %v2564 = vadd.f32 %v2257, %v2482
      %v2565 = vadd.f32 %v2258, %v2487
      %v2566 = vadd.f32 %v2259, %v2492
      %v2567 = vadd.f32 %v2260, %v2497
      %v2568 = vadd.f32 %v2261, %v2502
      %v2569 = vadd.f32 %v2262, %v2507
      %v2570 = vadd.f32 %v2263, %v2512
      %v2571 = vadd.f32 %v2264, %v2517
      %v2572 = vadd.f32 %v2265, %v2522
      %v2573 = vadd.f32 %v2266, %v2527
      %v2574 = vadd.f32 %v2267, %v2532
      %v2575 = vadd.f32 %v2268, %v2537
      %v2576 = vadd.f32 %v2269, %v2542
      %v2577 = vld [vmem:[%s2270 + $0x1] sm:$0xff]
      %v2578 = vld [vmem:[%s2270 + $0x9] sm:$0xff]
      %v2579 = vld [vmem:[%s2270 + $0x19] sm:$0xff]
      %v2580 = vld [vmem:[%s2270 + $0x21] sm:$0xff]
      %v2581 = vld [vmem:[%s2270 + $0x31] sm:$0xff]
      %v2582 = vld [vmem:[%s2270 + $0x39] sm:$0xff]
      %v2583 = vld [vmem:[%s2270 + $0x49] sm:$0xff]
      %v2584 = vld [vmem:[%s2270 + $0x51] sm:$0xff]
      %v2585 = vld [vmem:[%s2270 + $0x61] sm:$0xff]
      %v2586 = vld [vmem:[%s2270 + $0x69] sm:$0xff]
      %v2587 = vld [vmem:[%s2270 + $0x79] sm:$0xff]
      %v2588 = vld [vmem:[%s2270 + $0x81] sm:$0xff]
      %v2589 = vld [vmem:[%s2270 + $0x91] sm:$0xff]
      %v2590 = vld [vmem:[%s2270 + $0x99] sm:$0xff]
      %v2591 = vld [vmem:[%s2270 + $0xa9] sm:$0xff]
      %v2592 = vld [vmem:[%s2270 + $0xb1] sm:$0xff]
      %v2593 = vld [vmem:[%s2270 + $0xc1] sm:$0xff]
      %v2594 = vld [vmem:[%s2270 + $0xc9] sm:$0xff]
      %v2595 = vld [vmem:[%s2270 + $0xd9] sm:$0xff]
      %v2596 = vld [vmem:[%s2270 + $0xe1] sm:$0xff]
      %v2597 = vld [vmem:[%s2270 + $0xf1] sm:$0xff]
      %v2598 = vld [vmem:[%s2270 + $0xf9] sm:$0xff]
      %v2599 = vld [vmem:[%s2270 + $0x109] sm:$0xff]
      %v2600 = vld [vmem:[%s2270 + $0x111] sm:$0xff]
      %v2601 = vld [vmem:[%s2270 + $0x121] sm:$0xff]
      %v2602 = vld [vmem:[%s2270 + $0x129] sm:$0xff]
      %v2603 = vld [vmem:[%s2270 + $0x139] sm:$0xff]
      %v2604 = vld [vmem:[%s2270 + $0x141] sm:$0xff]
      %v2605 = vld [vmem:[%s2270 + $0x151] sm:$0xff]
      %v2606 = vld [vmem:[%s2270 + $0x159] sm:$0xff]
      %v2607 = vld [vmem:[%s2270 + $0x169] sm:$0xff]
      %v2608 = vld [vmem:[%s2270 + $0x171] sm:$0xff]
      %s2609 = scalar_lea.vmem %s265, 896
      %v2610 = vld [vmem:[%s2609] sm:$0xff]
      %v2611 = vld [vmem:[%s2609 + $0x8] sm:$0xff]
      %v2612 = vld [vmem:[%s2609 + $0x10] sm:$0xff]
      %v2613 = vld [vmem:[%s2609 + $0x18] sm:$0xff]
      %v2614 = vld [vmem:[%s2609 + $0x20] sm:$0xff]
      %v2615 = vld [vmem:[%s2609 + $0x28] sm:$0xff]
      %v2616 = vld [vmem:[%s2609 + $0x30] sm:$0xff]
      %v2617 = vld [vmem:[%s2609 + $0x38] sm:$0xff]
      %v2618 = vld [vmem:[%s2609 + $0x40] sm:$0xff]
      %v2619 = vld [vmem:[%s2609 + $0x48] sm:$0xff]
      %v2620 = vld [vmem:[%s2609 + $0x50] sm:$0xff]
      %v2621 = vld [vmem:[%s2609 + $0x58] sm:$0xff]
      %v2622 = vld [vmem:[%s2609 + $0x60] sm:$0xff]
      %v2623 = vld [vmem:[%s2609 + $0x68] sm:$0xff]
      %v2624 = vld [vmem:[%s2609 + $0x70] sm:$0xff]
      %v2625 = vld [vmem:[%s2609 + $0x78] sm:$0xff]
      %2626 = vmatprep.subr.mxu0 0.0
      %2627 = vmatpush1.msra.mxu0 %v2610
      %2628 = vmatprep.subr.mxu0 0.0
      %2629 = vmatpush1.msra.mxu0 %v2611
      %2630 = vmatprep.subr.mxu0 0.0
      %2631 = vmatpush1.msra.mxu0 %v2612
      %2632 = vmatprep.subr.mxu0 0.0
      %2633 = vmatpush1.msra.mxu0 %v2613
      %2634 = vmatprep.subr.mxu0 0.0
      %2635 = vmatpush1.msra.mxu0 %v2614
      %2636 = vmatprep.subr.mxu0 0.0
      %2637 = vmatpush1.msra.mxu0 %v2615
      %2638 = vmatprep.subr.mxu0 0.0
      %2639 = vmatpush1.msra.mxu0 %v2616
      %2640 = vmatprep.subr.mxu0 0.0
      %2641 = vmatpush1.msra.mxu0 %v2617
      %2642 = vmatprep.subr.mxu0 0.0
      %2643 = vmatpush1.msra.mxu0 %v2618
      %2644 = vmatprep.subr.mxu0 0.0
      %2645 = vmatpush1.msra.mxu0 %v2619
      %2646 = vmatprep.subr.mxu0 0.0
      %2647 = vmatpush1.msra.mxu0 %v2620
      %2648 = vmatprep.subr.mxu0 0.0
      %2649 = vmatpush1.msra.mxu0 %v2621
      %2650 = vmatprep.subr.mxu0 0.0
      %2651 = vmatpush1.msra.mxu0 %v2622
      %2652 = vmatprep.subr.mxu0 0.0
      %2653 = vmatpush1.msra.mxu0 %v2623
      %2654 = vmatprep.subr.mxu0 0.0
      %2655 = vmatpush1.msra.mxu0 %v2624
      %2656 = vmatprep.subr.mxu0 0.0
      %2657 = vmatpush1.msra.mxu0 %v2625
      %2658 = vmatprep.subr.mxu0 0.0
      %2659 = vmatpush1.msra.mxu0 0.0
      %2660 = vmatprep.subr.mxu0 0.0
      %2661 = vmatpush1.msra.mxu0 0.0
      %2662 = vmatprep.subr.mxu0 0.0
      %2663 = vmatpush1.msra.mxu0 0.0
      %2664 = vmatprep.subr.mxu0 0.0
      %2665 = vmatpush1.msra.mxu0 0.0
      %2666 = vmatprep.subr.mxu0 0.0
      %2667 = vmatpush1.msra.mxu0 0.0
      %2668 = vmatprep.subr.mxu0 0.0
      %2669 = vmatpush1.msra.mxu0 0.0
      %2670 = vmatprep.subr.mxu0 0.0
      %2671 = vmatpush1.msra.mxu0 0.0
      %2672 = vmatprep.subr.mxu0 0.0
      %2673 = vmatpush1.msra.mxu0 0.0
      %2674 = vmatprep.subr.mxu0 0.0
      %2675 = vmatpush1.msra.mxu0 0.0
      %2676 = vmatprep.subr.mxu0 0.0
      %2677 = vmatpush1.msra.mxu0 0.0
      %2678 = vmatprep.subr.mxu0 0.0
      %2679 = vmatpush1.msra.mxu0 0.0
      %2680 = vmatprep.subr.mxu0 0.0
      %2681 = vmatpush1.msra.mxu0 0.0
      %2682 = vmatprep.subr.mxu0 0.0
      %2683 = vmatpush1.msra.mxu0 0.0
      %2684 = vmatprep.subr.mxu0 0.0
      %2685 = vmatpush1.msra.mxu0 0.0
      %2686 = vmatprep.subr.mxu0 0.0
      %2687 = vmatpush1.msra.mxu0 0.0
      %2688 = vmatprep.subr.mxu0 0.0
      %2689 = vmatpush1.msra.mxu0 0.0
      %2690 = vmatprep.mubr.f32.mxu0 0.0
      %2691 = vmatmul.mubr.f32.gmra.mrb[0].mxu0 %v2577
      %v2692 = vpop.f32.mrb[0].mxu0
      %v2693 = vadd.f32 0.0, %v2692
      %v2694 = vpop.f32.mrb[0].mxu0
      %2695 = vmatprep.mubr.f32.mxu0 0.0
      %2696 = vmatmul.mubr.f32.gmra.mrb[0].mxu0 %v2578
      %v2697 = vpop.f32.mrb[0].mxu0
      %v2698 = vadd.f32 0.0, %v2697
      %v2699 = vpop.f32.mrb[0].mxu0
      %2700 = vmatprep.mubr.f32.mxu0 0.0
      %2701 = vmatmul.mubr.f32.gmra.mrb[0].mxu0 %v2579
      %v2702 = vpop.f32.mrb[0].mxu0
      %v2703 = vadd.f32 0.0, %v2702
      %v2704 = vpop.f32.mrb[0].mxu0
      %2705 = vmatprep.mubr.f32.mxu0 0.0
      %2706 = vmatmul.mubr.f32.gmra.mrb[0].mxu0 %v2580
      %v2707 = vpop.f32.mrb[0].mxu0
      %v2708 = vadd.f32 0.0, %v2707
      %v2709 = vpop.f32.mrb[0].mxu0
      %2710 = vmatprep.mubr.f32.mxu0 0.0
      %2711 = vmatmul.mubr.f32.gmra.mrb[0].mxu0 %v2581
      %v2712 = vpop.f32.mrb[0].mxu0
      %v2713 = vadd.f32 0.0, %v2712
      %v2714 = vpop.f32.mrb[0].mxu0
      %2715 = vmatprep.mubr.f32.mxu0 0.0
      %2716 = vmatmul.mubr.f32.gmra.mrb[0].mxu0 %v2582
      %v2717 = vpop.f32.mrb[0].mxu0
      %v2718 = vadd.f32 0.0, %v2717
      %v2719 = vpop.f32.mrb[0].mxu0
      %2720 = vmatprep.mubr.f32.mxu0 0.0
      %2721 = vmatmul.mubr.f32.gmra.mrb[0].mxu0 %v2583
      %v2722 = vpop.f32.mrb[0].mxu0
      %v2723 = vadd.f32 0.0, %v2722
      %v2724 = vpop.f32.mrb[0].mxu0
      %2725 = vmatprep.mubr.f32.mxu0 0.0
      %2726 = vmatmul.mubr.f32.gmra.mrb[0].mxu0 %v2584
      %v2727 = vpop.f32.mrb[0].mxu0
      %v2728 = vadd.f32 0.0, %v2727
      %v2729 = vpop.f32.mrb[0].mxu0
      %2730 = vmatprep.mubr.f32.mxu0 0.0
      %2731 = vmatmul.mubr.f32.gmra.mrb[0].mxu0 %v2585
      %v2732 = vpop.f32.mrb[0].mxu0
      %v2733 = vadd.f32 0.0, %v2732
      %v2734 = vpop.f32.mrb[0].mxu0
      %2735 = vmatprep.mubr.f32.mxu0 0.0
      %2736 = vmatmul.mubr.f32.gmra.mrb[0].mxu0 %v2586
      %v2737 = vpop.f32.mrb[0].mxu0
      %v2738 = vadd.f32 0.0, %v2737
      %v2739 = vpop.f32.mrb[0].mxu0
      %2740 = vmatprep.mubr.f32.mxu0 0.0
      %2741 = vmatmul.mubr.f32.gmra.mrb[0].mxu0 %v2587
      %v2742 = vpop.f32.mrb[0].mxu0
      %v2743 = vadd.f32 0.0, %v2742
      %v2744 = vpop.f32.mrb[0].mxu0
      %2745 = vmatprep.mubr.f32.mxu0 0.0
      %2746 = vmatmul.mubr.f32.gmra.mrb[0].mxu0 %v2588
      %v2747 = vpop.f32.mrb[0].mxu0
      %v2748 = vadd.f32 0.0, %v2747
      %v2749 = vpop.f32.mrb[0].mxu0
      %2750 = vmatprep.mubr.f32.mxu0 0.0
      %2751 = vmatmul.mubr.f32.gmra.mrb[0].mxu0 %v2589
      %v2752 = vpop.f32.mrb[0].mxu0
      %v2753 = vadd.f32 0.0, %v2752
      %v2754 = vpop.f32.mrb[0].mxu0
      %2755 = vmatprep.mubr.f32.mxu0 0.0
      %2756 = vmatmul.mubr.f32.gmra.mrb[0].mxu0 %v2590
      %v2757 = vpop.f32.mrb[0].mxu0
      %v2758 = vadd.f32 0.0, %v2757
      %v2759 = vpop.f32.mrb[0].mxu0
      %2760 = vmatprep.mubr.f32.mxu0 0.0
      %2761 = vmatmul.mubr.f32.gmra.mrb[0].mxu0 %v2591
      %v2762 = vpop.f32.mrb[0].mxu0
      %v2763 = vadd.f32 0.0, %v2762
      %v2764 = vpop.f32.mrb[0].mxu0
      %2765 = vmatprep.mubr.f32.mxu0 0.0
      %2766 = vmatmul.mubr.f32.gmra.mrb[0].mxu0 %v2592
      %v2767 = vpop.f32.mrb[0].mxu0
      %v2768 = vadd.f32 0.0, %v2767
      %v2769 = vpop.f32.mrb[0].mxu0
      %2770 = vmatprep.mubr.f32.mxu0 0.0
      %2771 = vmatmul.mubr.f32.gmra.mrb[0].mxu0 %v2593
      %v2772 = vpop.f32.mrb[0].mxu0
      %v2773 = vadd.f32 0.0, %v2772
      %v2774 = vpop.f32.mrb[0].mxu0
      %2775 = vmatprep.mubr.f32.mxu0 0.0
      %2776 = vmatmul.mubr.f32.gmra.mrb[0].mxu0 %v2594
      %v2777 = vpop.f32.mrb[0].mxu0
      %v2778 = vadd.f32 0.0, %v2777
      %v2779 = vpop.f32.mrb[0].mxu0
      %2780 = vmatprep.mubr.f32.mxu0 0.0
      %2781 = vmatmul.mubr.f32.gmra.mrb[0].mxu0 %v2595
      %v2782 = vpop.f32.mrb[0].mxu0
      %v2783 = vadd.f32 0.0, %v2782
      %v2784 = vpop.f32.mrb[0].mxu0
      %2785 = vmatprep.mubr.f32.mxu0 0.0
      %2786 = vmatmul.mubr.f32.gmra.mrb[0].mxu0 %v2596
      %v2787 = vpop.f32.mrb[0].mxu0
      %v2788 = vadd.f32 0.0, %v2787
      %v2789 = vpop.f32.mrb[0].mxu0
      %2790 = vmatprep.mubr.f32.mxu0 0.0
      %2791 = vmatmul.mubr.f32.gmra.mrb[0].mxu0 %v2597
      %v2792 = vpop.f32.mrb[0].mxu0
      %v2793 = vadd.f32 0.0, %v2792
      %v2794 = vpop.f32.mrb[0].mxu0
      %2795 = vmatprep.mubr.f32.mxu0 0.0
      %2796 = vmatmul.mubr.f32.gmra.mrb[0].mxu0 %v2598
      %v2797 = vpop.f32.mrb[0].mxu0
      %v2798 = vadd.f32 0.0, %v2797
      %v2799 = vpop.f32.mrb[0].mxu0
      %2800 = vmatprep.mubr.f32.mxu0 0.0
      %2801 = vmatmul.mubr.f32.gmra.mrb[0].mxu0 %v2599
      %v2802 = vpop.f32.mrb[0].mxu0
      %v2803 = vadd.f32 0.0, %v2802
      %v2804 = vpop.f32.mrb[0].mxu0
      %2805 = vmatprep.mubr.f32.mxu0 0.0
      %2806 = vmatmul.mubr.f32.gmra.mrb[0].mxu0 %v2600
      %v2807 = vpop.f32.mrb[0].mxu0
      %v2808 = vadd.f32 0.0, %v2807
      %v2809 = vpop.f32.mrb[0].mxu0
      %2810 = vmatprep.mubr.f32.mxu0 0.0
      %2811 = vmatmul.mubr.f32.gmra.mrb[0].mxu0 %v2601
      %v2812 = vpop.f32.mrb[0].mxu0
      %v2813 = vadd.f32 0.0, %v2812
      %v2814 = vpop.f32.mrb[0].mxu0
      %2815 = vmatprep.mubr.f32.mxu0 0.0
      %2816 = vmatmul.mubr.f32.gmra.mrb[0].mxu0 %v2602
      %v2817 = vpop.f32.mrb[0].mxu0
      %v2818 = vadd.f32 0.0, %v2817
      %v2819 = vpop.f32.mrb[0].mxu0
      %2820 = vmatprep.mubr.f32.mxu0 0.0
      %2821 = vmatmul.mubr.f32.gmra.mrb[0].mxu0 %v2603
      %v2822 = vpop.f32.mrb[0].mxu0
      %v2823 = vadd.f32 0.0, %v2822
      %v2824 = vpop.f32.mrb[0].mxu0
      %2825 = vmatprep.mubr.f32.mxu0 0.0
      %2826 = vmatmul.mubr.f32.gmra.mrb[0].mxu0 %v2604
      %v2827 = vpop.f32.mrb[0].mxu0
      %v2828 = vadd.f32 0.0, %v2827
      %v2829 = vpop.f32.mrb[0].mxu0
      %2830 = vmatprep.mubr.f32.mxu0 0.0
      %2831 = vmatmul.mubr.f32.gmra.mrb[0].mxu0 %v2605
      %v2832 = vpop.f32.mrb[0].mxu0
      %v2833 = vadd.f32 0.0, %v2832
      %v2834 = vpop.f32.mrb[0].mxu0
      %2835 = vmatprep.mubr.f32.mxu0 0.0
      %2836 = vmatmul.mubr.f32.gmra.mrb[0].mxu0 %v2606
      %v2837 = vpop.f32.mrb[0].mxu0
      %v2838 = vadd.f32 0.0, %v2837
      %v2839 = vpop.f32.mrb[0].mxu0
      %2840 = vmatprep.mubr.f32.mxu0 0.0
      %2841 = vmatmul.mubr.f32.gmra.mrb[0].mxu0 %v2607
      %v2842 = vpop.f32.mrb[0].mxu0
      %v2843 = vadd.f32 0.0, %v2842
      %v2844 = vpop.f32.mrb[0].mxu0
      %2845 = vmatprep.mubr.f32.mxu0 0.0
      %2846 = vmatmul.mubr.f32.gmra.mrb[0].mxu0 %v2608
      %v2847 = vpop.f32.mrb[0].mxu0
      %v2848 = vadd.f32 0.0, %v2847
      %v2849 = vpop.f32.mrb[0].mxu0
      %2850 = vdwg.mxu0
      %v2851 = vadd.f32 %v2545, %v2693
      %v2852 = vadd.f32 %v2546, %v2698
      %v2853 = vadd.f32 %v2547, %v2703
      %v2854 = vadd.f32 %v2548, %v2708
      %v2855 = vadd.f32 %v2549, %v2713
      %v2856 = vadd.f32 %v2550, %v2718
      %v2857 = vadd.f32 %v2551, %v2723
      %v2858 = vadd.f32 %v2552, %v2728
      %v2859 = vadd.f32 %v2553, %v2733
      %v2860 = vadd.f32 %v2554, %v2738
      %v2861 = vadd.f32 %v2555, %v2743
      %v2862 = vadd.f32 %v2556, %v2748
      %v2863 = vadd.f32 %v2557, %v2753
      %v2864 = vadd.f32 %v2558, %v2758
      %v2865 = vadd.f32 %v2559, %v2763
      %v2866 = vadd.f32 %v2560, %v2768
      %v2867 = vadd.f32 %v2561, %v2773
      %v2868 = vadd.f32 %v2562, %v2778
      %v2869 = vadd.f32 %v2563, %v2783
      %v2870 = vadd.f32 %v2564, %v2788
      %v2871 = vadd.f32 %v2565, %v2793
      %v2872 = vadd.f32 %v2566, %v2798
      %v2873 = vadd.f32 %v2567, %v2803
      %v2874 = vadd.f32 %v2568, %v2808
      %v2875 = vadd.f32 %v2569, %v2813
      %v2876 = vadd.f32 %v2570, %v2818
      %v2877 = vadd.f32 %v2571, %v2823
      %v2878 = vadd.f32 %v2572, %v2828
      %v2879 = vadd.f32 %v2573, %v2833
      %v2880 = vadd.f32 %v2574, %v2838
      %v2881 = vadd.f32 %v2575, %v2843
      %v2882 = vadd.f32 %v2576, %v2848
      %v2883 = vld [vmem:[%s2270 + $0x2] sm:$0xff]
      %v2884 = vld [vmem:[%s2270 + $0xa] sm:$0xff]
      %v2885 = vld [vmem:[%s2270 + $0x1a] sm:$0xff]
      %v2886 = vld [vmem:[%s2270 + $0x22] sm:$0xff]
      %v2887 = vld [vmem:[%s2270 + $0x32] sm:$0xff]
      %v2888 = vld [vmem:[%s2270 + $0x3a] sm:$0xff]
      %v2889 = vld [vmem:[%s2270 + $0x4a] sm:$0xff]
      %v2890 = vld [vmem:[%s2270 + $0x52] sm:$0xff]
      %v2891 = vld [vmem:[%s2270 + $0x62] sm:$0xff]
      %v2892 = vld [vmem:[%s2270 + $0x6a] sm:$0xff]
      %v2893 = vld [vmem:[%s2270 + $0x7a] sm:$0xff]
      %v2894 = vld [vmem:[%s2270 + $0x82] sm:$0xff]
      %v2895 = vld [vmem:[%s2270 + $0x92] sm:$0xff]
      %v2896 = vld [vmem:[%s2270 + $0x9a] sm:$0xff]
      %v2897 = vld [vmem:[%s2270 + $0xaa] sm:$0xff]
      %v2898 = vld [vmem:[%s2270 + $0xb2] sm:$0xff]
      %v2899 = vld [vmem:[%s2270 + $0xc2] sm:$0xff]
      %v2900 = vld [vmem:[%s2270 + $0xca] sm:$0xff]
      %v2901 = vld [vmem:[%s2270 + $0xda] sm:$0xff]
      %v2902 = vld [vmem:[%s2270 + $0xe2] sm:$0xff]
      %v2903 = vld [vmem:[%s2270 + $0xf2] sm:$0xff]
      %v2904 = vld [vmem:[%s2270 + $0xfa] sm:$0xff]
      %v2905 = vld [vmem:[%s2270 + $0x10a] sm:$0xff]
      %v2906 = vld [vmem:[%s2270 + $0x112] sm:$0xff]
      %v2907 = vld [vmem:[%s2270 + $0x122] sm:$0xff]
      %v2908 = vld [vmem:[%s2270 + $0x12a] sm:$0xff]
      %v2909 = vld [vmem:[%s2270 + $0x13a] sm:$0xff]
      %v2910 = vld [vmem:[%s2270 + $0x142] sm:$0xff]
      %v2911 = vld [vmem:[%s2270 + $0x152] sm:$0xff]
      %v2912 = vld [vmem:[%s2270 + $0x15a] sm:$0xff]
      %v2913 = vld [vmem:[%s2270 + $0x16a] sm:$0xff]
      %v2914 = vld [vmem:[%s2270 + $0x172] sm:$0xff]
      %s2915 = scalar_lea.vmem %s265, 1024
      %v2916 = vld [vmem:[%s2915] sm:$0xff]
      %v2917 = vld [vmem:[%s2915 + $0x8] sm:$0xff]
      %v2918 = vld [vmem:[%s2915 + $0x10] sm:$0xff]
      %v2919 = vld [vmem:[%s2915 + $0x18] sm:$0xff]
      %v2920 = vld [vmem:[%s2915 + $0x20] sm:$0xff]
      %v2921 = vld [vmem:[%s2915 + $0x28] sm:$0xff]
      %v2922 = vld [vmem:[%s2915 + $0x30] sm:$0xff]
      %v2923 = vld [vmem:[%s2915 + $0x38] sm:$0xff]
      %v2924 = vld [vmem:[%s2915 + $0x40] sm:$0xff]
      %v2925 = vld [vmem:[%s2915 + $0x48] sm:$0xff]
      %v2926 = vld [vmem:[%s2915 + $0x50] sm:$0xff]
      %v2927 = vld [vmem:[%s2915 + $0x58] sm:$0xff]
      %v2928 = vld [vmem:[%s2915 + $0x60] sm:$0xff]
      %v2929 = vld [vmem:[%s2915 + $0x68] sm:$0xff]
      %v2930 = vld [vmem:[%s2915 + $0x70] sm:$0xff]
      %v2931 = vld [vmem:[%s2915 + $0x78] sm:$0xff]
      %2932 = vmatprep.subr.mxu0 0.0
      %2933 = vmatpush1.msra.mxu0 %v2916
      %2934 = vmatprep.subr.mxu0 0.0
      %2935 = vmatpush1.msra.mxu0 %v2917
      %2936 = vmatprep.subr.mxu0 0.0
      %2937 = vmatpush1.msra.mxu0 %v2918
      %2938 = vmatprep.subr.mxu0 0.0
      %2939 = vmatpush1.msra.mxu0 %v2919
      %2940 = vmatprep.subr.mxu0 0.0
      %2941 = vmatpush1.msra.mxu0 %v2920
      %2942 = vmatprep.subr.mxu0 0.0
      %2943 = vmatpush1.msra.mxu0 %v2921
      %2944 = vmatprep.subr.mxu0 0.0
      %2945 = vmatpush1.msra.mxu0 %v2922
      %2946 = vmatprep.subr.mxu0 0.0
      %2947 = vmatpush1.msra.mxu0 %v2923
      %2948 = vmatprep.subr.mxu0 0.0
      %2949 = vmatpush1.msra.mxu0 %v2924
      %2950 = vmatprep.subr.mxu0 0.0
      %2951 = vmatpush1.msra.mxu0 %v2925
      %2952 = vmatprep.subr.mxu0 0.0
      %2953 = vmatpush1.msra.mxu0 %v2926
      %2954 = vmatprep.subr.mxu0 0.0
      %2955 = vmatpush1.msra.mxu0 %v2927
      %2956 = vmatprep.subr.mxu0 0.0
      %2957 = vmatpush1.msra.mxu0 %v2928
      %2958 = vmatprep.subr.mxu0 0.0
      %2959 = vmatpush1.msra.mxu0 %v2929
      %2960 = vmatprep.subr.mxu0 0.0
      %2961 = vmatpush1.msra.mxu0 %v2930
      %2962 = vmatprep.subr.mxu0 0.0
      %2963 = vmatpush1.msra.mxu0 %v2931
      %2964 = vmatprep.subr.mxu0 0.0
      %2965 = vmatpush1.msra.mxu0 0.0
      %2966 = vmatprep.subr.mxu0 0.0
      %2967 = vmatpush1.msra.mxu0 0.0
      %2968 = vmatprep.subr.mxu0 0.0
      %2969 = vmatpush1.msra.mxu0 0.0
      %2970 = vmatprep.subr.mxu0 0.0
      %2971 = vmatpush1.msra.mxu0 0.0
      %2972 = vmatprep.subr.mxu0 0.0
      %2973 = vmatpush1.msra.mxu0 0.0
      %2974 = vmatprep.subr.mxu0 0.0
      %2975 = vmatpush1.msra.mxu0 0.0
      %2976 = vmatprep.subr.mxu0 0.0
      %2977 = vmatpush1.msra.mxu0 0.0
      %2978 = vmatprep.subr.mxu0 0.0
      %2979 = vmatpush1.msra.mxu0 0.0
      %2980 = vmatprep.subr.mxu0 0.0
      %2981 = vmatpush1.msra.mxu0 0.0
      %2982 = vmatprep.subr.mxu0 0.0
      %2983 = vmatpush1.msra.mxu0 0.0
      %2984 = vmatprep.subr.mxu0 0.0
      %2985 = vmatpush1.msra.mxu0 0.0
      %2986 = vmatprep.subr.mxu0 0.0
      %2987 = vmatpush1.msra.mxu0 0.0
      %2988 = vmatprep.subr.mxu0 0.0
      %2989 = vmatpush1.msra.mxu0 0.0
      %2990 = vmatprep.subr.mxu0 0.0
      %2991 = vmatpush1.msra.mxu0 0.0
      %2992 = vmatprep.subr.mxu0 0.0
      %2993 = vmatpush1.msra.mxu0 0.0
      %2994 = vmatprep.subr.mxu0 0.0
      %2995 = vmatpush1.msra.mxu0 0.0
      %2996 = vmatprep.mubr.f32.mxu0 0.0
      %2997 = vmatmul.mubr.f32.gmra.mrb[0].mxu0 %v2883
      %v2998 = vpop.f32.mrb[0].mxu0
      %v2999 = vadd.f32 0.0, %v2998
      %v3000 = vpop.f32.mrb[0].mxu0
      %3001 = vmatprep.mubr.f32.mxu0 0.0
      %3002 = vmatmul.mubr.f32.gmra.mrb[0].mxu0 %v2884
      %v3003 = vpop.f32.mrb[0].mxu0
      %v3004 = vadd.f32 0.0, %v3003
      %v3005 = vpop.f32.mrb[0].mxu0
      %3006 = vmatprep.mubr.f32.mxu0 0.0
      %3007 = vmatmul.mubr.f32.gmra.mrb[0].mxu0 %v2885
      %v3008 = vpop.f32.mrb[0].mxu0
      %v3009 = vadd.f32 0.0, %v3008
      %v3010 = vpop.f32.mrb[0].mxu0
      %3011 = vmatprep.mubr.f32.mxu0 0.0
      %3012 = vmatmul.mubr.f32.gmra.mrb[0].mxu0 %v2886
      %v3013 = vpop.f32.mrb[0].mxu0
      %v3014 = vadd.f32 0.0, %v3013
      %v3015 = vpop.f32.mrb[0].mxu0
      %3016 = vmatprep.mubr.f32.mxu0 0.0
      %3017 = vmatmul.mubr.f32.gmra.mrb[0].mxu0 %v2887
      %v3018 = vpop.f32.mrb[0].mxu0
      %v3019 = vadd.f32 0.0, %v3018
      %v3020 = vpop.f32.mrb[0].mxu0
      %3021 = vmatprep.mubr.f32.mxu0 0.0
      %3022 = vmatmul.mubr.f32.gmra.mrb[0].mxu0 %v2888
      %v3023 = vpop.f32.mrb[0].mxu0
      %v3024 = vadd.f32 0.0, %v3023
      %v3025 = vpop.f32.mrb[0].mxu0
      %3026 = vmatprep.mubr.f32.mxu0 0.0
      %3027 = vmatmul.mubr.f32.gmra.mrb[0].mxu0 %v2889
      %v3028 = vpop.f32.mrb[0].mxu0
      %v3029 = vadd.f32 0.0, %v3028
      %v3030 = vpop.f32.mrb[0].mxu0
      %3031 = vmatprep.mubr.f32.mxu0 0.0
      %3032 = vmatmul.mubr.f32.gmra.mrb[0].mxu0 %v2890
      %v3033 = vpop.f32.mrb[0].mxu0
      %v3034 = vadd.f32 0.0, %v3033
      %v3035 = vpop.f32.mrb[0].mxu0
      %3036 = vmatprep.mubr.f32.mxu0 0.0
      %3037 = vmatmul.mubr.f32.gmra.mrb[0].mxu0 %v2891
      %v3038 = vpop.f32.mrb[0].mxu0
      %v3039 = vadd.f32 0.0, %v3038
      %v3040 = vpop.f32.mrb[0].mxu0
      %3041 = vmatprep.mubr.f32.mxu0 0.0
      %3042 = vmatmul.mubr.f32.gmra.mrb[0].mxu0 %v2892
      %v3043 = vpop.f32.mrb[0].mxu0
      %v3044 = vadd.f32 0.0, %v3043
      %v3045 = vpop.f32.mrb[0].mxu0
      %3046 = vmatprep.mubr.f32.mxu0 0.0
      %3047 = vmatmul.mubr.f32.gmra.mrb[0].mxu0 %v2893
      %v3048 = vpop.f32.mrb[0].mxu0
      %v3049 = vadd.f32 0.0, %v3048
      %v3050 = vpop.f32.mrb[0].mxu0
      %3051 = vmatprep.mubr.f32.mxu0 0.0
      %3052 = vmatmul.mubr.f32.gmra.mrb[0].mxu0 %v2894
      %v3053 = vpop.f32.mrb[0].mxu0
      %v3054 = vadd.f32 0.0, %v3053
      %v3055 = vpop.f32.mrb[0].mxu0
      %3056 = vmatprep.mubr.f32.mxu0 0.0
      %3057 = vmatmul.mubr.f32.gmra.mrb[0].mxu0 %v2895
      %v3058 = vpop.f32.mrb[0].mxu0
      %v3059 = vadd.f32 0.0, %v3058
      %v3060 = vpop.f32.mrb[0].mxu0
      %3061 = vmatprep.mubr.f32.mxu0 0.0
      %3062 = vmatmul.mubr.f32.gmra.mrb[0].mxu0 %v2896
      %v3063 = vpop.f32.mrb[0].mxu0
      %v3064 = vadd.f32 0.0, %v3063
      %v3065 = vpop.f32.mrb[0].mxu0
      %3066 = vmatprep.mubr.f32.mxu0 0.0
      %3067 = vmatmul.mubr.f32.gmra.mrb[0].mxu0 %v2897
      %v3068 = vpop.f32.mrb[0].mxu0
      %v3069 = vadd.f32 0.0, %v3068
      %v3070 = vpop.f32.mrb[0].mxu0
      %3071 = vmatprep.mubr.f32.mxu0 0.0
      %3072 = vmatmul.mubr.f32.gmra.mrb[0].mxu0 %v2898
      %v3073 = vpop.f32.mrb[0].mxu0
      %v3074 = vadd.f32 0.0, %v3073
      %v3075 = vpop.f32.mrb[0].mxu0
      %3076 = vmatprep.mubr.f32.mxu0 0.0
      %3077 = vmatmul.mubr.f32.gmra.mrb[0].mxu0 %v2899
      %v3078 = vpop.f32.mrb[0].mxu0
      %v3079 = vadd.f32 0.0, %v3078
      %v3080 = vpop.f32.mrb[0].mxu0
      %3081 = vmatprep.mubr.f32.mxu0 0.0
      %3082 = vmatmul.mubr.f32.gmra.mrb[0].mxu0 %v2900
      %v3083 = vpop.f32.mrb[0].mxu0
      %v3084 = vadd.f32 0.0, %v3083
      %v3085 = vpop.f32.mrb[0].mxu0
      %3086 = vmatprep.mubr.f32.mxu0 0.0
      %3087 = vmatmul.mubr.f32.gmra.mrb[0].mxu0 %v2901
      %v3088 = vpop.f32.mrb[0].mxu0
      %v3089 = vadd.f32 0.0, %v3088
      %v3090 = vpop.f32.mrb[0].mxu0
      %3091 = vmatprep.mubr.f32.mxu0 0.0
      %3092 = vmatmul.mubr.f32.gmra.mrb[0].mxu0 %v2902
      %v3093 = vpop.f32.mrb[0].mxu0
      %v3094 = vadd.f32 0.0, %v3093
      %v3095 = vpop.f32.mrb[0].mxu0
      %3096 = vmatprep.mubr.f32.mxu0 0.0
      %3097 = vmatmul.mubr.f32.gmra.mrb[0].mxu0 %v2903
      %v3098 = vpop.f32.mrb[0].mxu0
      %v3099 = vadd.f32 0.0, %v3098
      %v3100 = vpop.f32.mrb[0].mxu0
      %3101 = vmatprep.mubr.f32.mxu0 0.0
      %3102 = vmatmul.mubr.f32.gmra.mrb[0].mxu0 %v2904
      %v3103 = vpop.f32.mrb[0].mxu0
      %v3104 = vadd.f32 0.0, %v3103
      %v3105 = vpop.f32.mrb[0].mxu0
      %3106 = vmatprep.mubr.f32.mxu0 0.0
      %3107 = vmatmul.mubr.f32.gmra.mrb[0].mxu0 %v2905
      %v3108 = vpop.f32.mrb[0].mxu0
      %v3109 = vadd.f32 0.0, %v3108
      %v3110 = vpop.f32.mrb[0].mxu0
      %3111 = vmatprep.mubr.f32.mxu0 0.0
      %3112 = vmatmul.mubr.f32.gmra.mrb[0].mxu0 %v2906
      %v3113 = vpop.f32.mrb[0].mxu0
      %v3114 = vadd.f32 0.0, %v3113
      %v3115 = vpop.f32.mrb[0].mxu0
      %3116 = vmatprep.mubr.f32.mxu0 0.0
      %3117 = vmatmul.mubr.f32.gmra.mrb[0].mxu0 %v2907
      %v3118 = vpop.f32.mrb[0].mxu0
      %v3119 = vadd.f32 0.0, %v3118
      %v3120 = vpop.f32.mrb[0].mxu0
      %3121 = vmatprep.mubr.f32.mxu0 0.0
      %3122 = vmatmul.mubr.f32.gmra.mrb[0].mxu0 %v2908
      %v3123 = vpop.f32.mrb[0].mxu0
      %v3124 = vadd.f32 0.0, %v3123
      %v3125 = vpop.f32.mrb[0].mxu0
      %3126 = vmatprep.mubr.f32.mxu0 0.0
      %3127 = vmatmul.mubr.f32.gmra.mrb[0].mxu0 %v2909
      %v3128 = vpop.f32.mrb[0].mxu0
      %v3129 = vadd.f32 0.0, %v3128
      %v3130 = vpop.f32.mrb[0].mxu0
      %3131 = vmatprep.mubr.f32.mxu0 0.0
      %3132 = vmatmul.mubr.f32.gmra.mrb[0].mxu0 %v2910
      %v3133 = vpop.f32.mrb[0].mxu0
      %v3134 = vadd.f32 0.0, %v3133
      %v3135 = vpop.f32.mrb[0].mxu0
      %3136 = vmatprep.mubr.f32.mxu0 0.0
      %3137 = vmatmul.mubr.f32.gmra.mrb[0].mxu0 %v2911
      %v3138 = vpop.f32.mrb[0].mxu0
      %v3139 = vadd.f32 0.0, %v3138
      %v3140 = vpop.f32.mrb[0].mxu0
      %3141 = vmatprep.mubr.f32.mxu0 0.0
      %3142 = vmatmul.mubr.f32.gmra.mrb[0].mxu0 %v2912
      %v3143 = vpop.f32.mrb[0].mxu0
      %v3144 = vadd.f32 0.0, %v3143
      %v3145 = vpop.f32.mrb[0].mxu0
      %3146 = vmatprep.mubr.f32.mxu0 0.0
      %3147 = vmatmul.mubr.f32.gmra.mrb[0].mxu0 %v2913
      %v3148 = vpop.f32.mrb[0].mxu0
      %v3149 = vadd.f32 0.0, %v3148
      %v3150 = vpop.f32.mrb[0].mxu0
      %3151 = vmatprep.mubr.f32.mxu0 0.0
      %3152 = vmatmul.mubr.f32.gmra.mrb[0].mxu0 %v2914
      %v3153 = vpop.f32.mrb[0].mxu0
      %v3154 = vadd.f32 0.0, %v3153
      %v3155 = vpop.f32.mrb[0].mxu0
      %3156 = vdwg.mxu0
      %v3157 = vadd.f32 %v2851, %v2999
      %v3158 = vadd.f32 %v2852, %v3004
      %v3159 = vadd.f32 %v2853, %v3009
      %v3160 = vadd.f32 %v2854, %v3014
      %v3161 = vadd.f32 %v2855, %v3019
      %v3162 = vadd.f32 %v2856, %v3024
      %v3163 = vadd.f32 %v2857, %v3029
      %v3164 = vadd.f32 %v2858, %v3034
      %v3165 = vadd.f32 %v2859, %v3039
      %v3166 = vadd.f32 %v2860, %v3044
      %v3167 = vadd.f32 %v2861, %v3049
      %v3168 = vadd.f32 %v2862, %v3054
      %v3169 = vadd.f32 %v2863, %v3059
      %v3170 = vadd.f32 %v2864, %v3064
      %v3171 = vadd.f32 %v2865, %v3069
      %v3172 = vadd.f32 %v2866, %v3074
      %v3173 = vadd.f32 %v2867, %v3079
      %v3174 = vadd.f32 %v2868, %v3084
      %v3175 = vadd.f32 %v2869, %v3089
      %v3176 = vadd.f32 %v2870, %v3094
      %v3177 = vadd.f32 %v2871, %v3099
      %v3178 = vadd.f32 %v2872, %v3104
      %v3179 = vadd.f32 %v2873, %v3109
      %v3180 = vadd.f32 %v2874, %v3114
      %v3181 = vadd.f32 %v2875, %v3119
      %v3182 = vadd.f32 %v2876, %v3124
      %v3183 = vadd.f32 %v2877, %v3129
      %v3184 = vadd.f32 %v2878, %v3134
      %v3185 = vadd.f32 %v2879, %v3139
      %v3186 = vadd.f32 %v2880, %v3144
      %v3187 = vadd.f32 %v2881, %v3149
      %v3188 = vadd.f32 %v2882, %v3154
      %v3189 = vadd.f32 %v3157, %v3158
      %v3190 = vadd.f32 %v3189, %v3159
      %v3191 = vadd.f32 %v3190, %v3160
      %v3192 = vadd.f32 %v3191, %v3161
      %v3193 = vadd.f32 %v3192, %v3162
      %v3194 = vadd.f32 %v3193, %v3163
      %v3195 = vadd.f32 %v3194, %v3164
      %v3196 = vadd.f32 %v3195, %v3165
      %v3197 = vadd.f32 %v3196, %v3166
      %v3198 = vadd.f32 %v3197, %v3167
      %v3199 = vadd.f32 %v3198, %v3168
      %v3200 = vadd.f32 %v3199, %v3169
      %v3201 = vadd.f32 %v3200, %v3170
      %v3202 = vadd.f32 %v3201, %v3171
      %v3203 = vadd.f32 %v3202, %v3172
      %v3204 = vadd.f32 %v3203, %v3173
      %v3205 = vadd.f32 %v3204, %v3174
      %v3206 = vadd.f32 %v3205, %v3175
      %v3207 = vadd.f32 %v3206, %v3176
      %v3208 = vadd.f32 %v3207, %v3177
      %v3209 = vadd.f32 %v3208, %v3178
      %v3210 = vadd.f32 %v3209, %v3179
      %v3211 = vadd.f32 %v3210, %v3180
      %v3212 = vadd.f32 %v3211, %v3181
      %v3213 = vadd.f32 %v3212, %v3182
      %v3214 = vadd.f32 %v3213, %v3183
      %v3215 = vadd.f32 %v3214, %v3184
      %v3216 = vadd.f32 %v3215, %v3185
      %v3217 = vadd.f32 %v3216, %v3186
      %v3218 = vadd.f32 %v3217, %v3187
      %v3219 = vadd.f32 %v3218, %v3188
      %v3220 = vrot.slane %v3219, 4
      %v3221 = vadd.f32 %v3219, %v3220
      %v3222 = vrot.slane %v3221, 2
      %v3223 = vadd.f32 %v3221, %v3222
      %v3224 = vrot.slane %v3223, 1
      %v3225 = vadd.f32 %v3223, %v3224
      %v3226 = vmul.f32 %v3157, %v3157
      %v3227 = vmul.f32 %v3158, %v3158
      %v3228 = vmul.f32 %v3159, %v3159
      %v3229 = vmul.f32 %v3160, %v3160
      %v3230 = vmul.f32 %v3161, %v3161
      %v3231 = vmul.f32 %v3162, %v3162
      %v3232 = vmul.f32 %v3163, %v3163
      %v3233 = vmul.f32 %v3164, %v3164
      %v3234 = vmul.f32 %v3165, %v3165
      %v3235 = vmul.f32 %v3166, %v3166
      %v3236 = vmul.f32 %v3167, %v3167
      %v3237 = vmul.f32 %v3168, %v3168
      %v3238 = vmul.f32 %v3169, %v3169
      %v3239 = vmul.f32 %v3170, %v3170
      %v3240 = vmul.f32 %v3171, %v3171
      %v3241 = vmul.f32 %v3172, %v3172
      %v3242 = vmul.f32 %v3173, %v3173
      %v3243 = vmul.f32 %v3174, %v3174
      %v3244 = vmul.f32 %v3175, %v3175
      %v3245 = vmul.f32 %v3176, %v3176
      %v3246 = vmul.f32 %v3177, %v3177
      %v3247 = vmul.f32 %v3178, %v3178
      %v3248 = vmul.f32 %v3179, %v3179
      %v3249 = vmul.f32 %v3180, %v3180
      %v3250 = vmul.f32 %v3181, %v3181
      %v3251 = vmul.f32 %v3182, %v3182
      %v3252 = vmul.f32 %v3183, %v3183
      %v3253 = vmul.f32 %v3184, %v3184
      %v3254 = vmul.f32 %v3185, %v3185
      %v3255 = vmul.f32 %v3186, %v3186
      %v3256 = vmul.f32 %v3187, %v3187
      %v3257 = vmul.f32 %v3188, %v3188
      %v3258 = vadd.f32 %v3226, %v3227
      %v3259 = vadd.f32 %v3258, %v3228
      %v3260 = vadd.f32 %v3259, %v3229
      %v3261 = vadd.f32 %v3260, %v3230
      %v3262 = vadd.f32 %v3261, %v3231
      %v3263 = vadd.f32 %v3262, %v3232
      %v3264 = vadd.f32 %v3263, %v3233
      %v3265 = vadd.f32 %v3264, %v3234
      %v3266 = vadd.f32 %v3265, %v3235
      %v3267 = vadd.f32 %v3266, %v3236
      %v3268 = vadd.f32 %v3267, %v3237
      %v3269 = vadd.f32 %v3268, %v3238
      %v3270 = vadd.f32 %v3269, %v3239
      %v3271 = vadd.f32 %v3270, %v3240
      %v3272 = vadd.f32 %v3271, %v3241
      %v3273 = vadd.f32 %v3272, %v3242
      %v3274 = vadd.f32 %v3273, %v3243
      %v3275 = vadd.f32 %v3274, %v3244
      %v3276 = vadd.f32 %v3275, %v3245
      %v3277 = vadd.f32 %v3276, %v3246
      %v3278 = vadd.f32 %v3277, %v3247
      %v3279 = vadd.f32 %v3278, %v3248
      %v3280 = vadd.f32 %v3279, %v3249
      %v3281 = vadd.f32 %v3280, %v3250
      %v3282 = vadd.f32 %v3281, %v3251
      %v3283 = vadd.f32 %v3282, %v3252
      %v3284 = vadd.f32 %v3283, %v3253
      %v3285 = vadd.f32 %v3284, %v3254
      %v3286 = vadd.f32 %v3285, %v3255
      %v3287 = vadd.f32 %v3286, %v3256
      %v3288 = vadd.f32 %v3287, %v3257
      %v3289 = vrot.slane %v3288, 4
      %v3290 = vadd.f32 %v3288, %v3289
      %v3291 = vrot.slane %v3290, 2
      %v3292 = vadd.f32 %v3290, %v3291
      %v3293 = vrot.slane %v3292, 1
      %v3294 = vadd.f32 %v3292, %v3293
      %vm3295 = vcmask 1040384
      %v3296 = vsel %vm3295, %v3225, %v3294
      %3297 = vst [vmem:[%s280] sm:$0x3] %v3296
      %3298 = vst [vmem:[%s273] sm:$0xff] %v3157
      %3299 = vst [vmem:[%s273 + $0x8] sm:$0xff] %v3158
      %3300 = vst [vmem:[%s273 + $0x10] sm:$0xff] %v3159
      %3301 = vst [vmem:[%s273 + $0x18] sm:$0xff] %v3160
      %3302 = vst [vmem:[%s273 + $0x20] sm:$0xff] %v3161
      %3303 = vst [vmem:[%s273 + $0x28] sm:$0xff] %v3162
      %3304 = vst [vmem:[%s273 + $0x30] sm:$0xff] %v3163
      %3305 = vst [vmem:[%s273 + $0x38] sm:$0xff] %v3164
      %3306 = vst [vmem:[%s273 + $0x40] sm:$0xff] %v3165
      %3307 = vst [vmem:[%s273 + $0x48] sm:$0xff] %v3166
      %3308 = vst [vmem:[%s273 + $0x50] sm:$0xff] %v3167
      %3309 = vst [vmem:[%s273 + $0x58] sm:$0xff] %v3168
      %3310 = vst [vmem:[%s273 + $0x60] sm:$0xff] %v3169
      %3311 = vst [vmem:[%s273 + $0x68] sm:$0xff] %v3170
      %3312 = vst [vmem:[%s273 + $0x70] sm:$0xff] %v3171
      %3313 = vst [vmem:[%s273 + $0x78] sm:$0xff] %v3172
      %3314 = vst [vmem:[%s273 + $0x80] sm:$0xff] %v3173
      %3315 = vst [vmem:[%s273 + $0x88] sm:$0xff] %v3174
      %3316 = vst [vmem:[%s273 + $0x90] sm:$0xff] %v3175
      %3317 = vst [vmem:[%s273 + $0x98] sm:$0xff] %v3176
      %3318 = vst [vmem:[%s273 + $0xa0] sm:$0xff] %v3177
      %3319 = vst [vmem:[%s273 + $0xa8] sm:$0xff] %v3178
      %3320 = vst [vmem:[%s273 + $0xb0] sm:$0xff] %v3179
      %3321 = vst [vmem:[%s273 + $0xb8] sm:$0xff] %v3180
      %3322 = vst [vmem:[%s273 + $0xc0] sm:$0xff] %v3181
      %3323 = vst [vmem:[%s273 + $0xc8] sm:$0xff] %v3182
      %3324 = vst [vmem:[%s273 + $0xd0] sm:$0xff] %v3183
      %3325 = vst [vmem:[%s273 + $0xd8] sm:$0xff] %v3184
      %3326 = vst [vmem:[%s273 + $0xe0] sm:$0xff] %v3185
      %3327 = vst [vmem:[%s273 + $0xe8] sm:$0xff] %v3186
      %3328 = vst [vmem:[%s273 + $0xf0] sm:$0xff] %v3187
      %3329 = vst [vmem:[%s273 + $0xf8] sm:$0xff] %v3188
      %p3330 = scmp.lt.s32.totalorder %s21, 1
      %s3331 = scalar_select %p3330, %s21, 1
      %p3332 = scmp.lt.s32.totalorder %s22, 0
      %s3333 = scalar_select %p3332, %s22, 0
      %s3334 = smul.addr %s3331, 32
      %s3335 = sadd.s32 %s3333, %s3334
      %s3336 = smul.addr %s3335, 8
      %s3337 = scalar_lea.vmem %s4, %s3336
      %p3338 = scmp.lt.s32.totalorder %s21, 1
      %s3339 = scalar_select %p3338, %s21, 1
      %p3340 = scmp.lt.s32.totalorder %s22, 0
      %s3341 = scalar_select %p3340, %s22, 0
      %s3342 = sadd.s32 %s3341, %s3339
      %s3343 = smul.addr %s3342, 2
      %s3344 = scalar_lea.vmem %s5, %s3343
      // Predicated region
      $region37: #{double_conv.4} parent=35 // pred_check
        %p3345 = pneg %p143
      $region38: #{double_conv.4} parent=35 // pred_check_branch
        %3347 = sbr.rel (%p3345) target = $region40
      $region39: #{double_conv.4} parent=35 // pred_region
        _
      $region40: #{double_conv.4} parent=35 // pred_fallthru
        _
      // Predicated region
      $region41: #{double_conv.4} parent=35 // pred_check
        %p3348 = pneg %p171
      $region42: #{double_conv.4} parent=35 // pred_check_branch
        %3350 = sbr.rel (%p3348) target = $region44
      $region43: #{double_conv.4} parent=35 // pred_region
        _
      $region44: #{double_conv.4} parent=35 // pred_fallthru
        _
    $region36: #{double_conv.4} parent=5 // pred_fallthru
      _
    %p3351 = scmp.le.s32.totalorder 2, %s12
    // Predicated region
    $region45: #{double_conv.4} parent=5 // pred_check
      %p3352 = pneg %p3351
    $region46: #{double_conv.4} parent=5 // pred_check_branch
      %3354 = sbr.rel (%p3352) target = $region48
    $region47: #{double_conv.4} parent=5 // pred_region
      %s3355 = ssub.s32 %s12, 2
      // Predicated region
      $region49: #{double_conv.4} parent=47 // pred_check
        %p3356 = pneg %p149
      $region50: #{double_conv.4} parent=47 // pred_check_branch
        %3358 = sbr.rel (%p3356) target = $region52
      $region51: #{double_conv.4} parent=47 // pred_region
        %p3359 = scmp.lt.s32.totalorder %s23, 1
        %s3360 = scalar_select %p3359, %s23, 1
        %p3361 = scmp.lt.s32.totalorder %s24, 0
        %s3362 = scalar_select %p3361, %s24, 0
        %s3363 = smul.addr %s3360, 32
        %s3364 = sadd.s32 %s3362, %s3363
        %s3365 = smul.addr %s3364, 8
        %s3366 = scalar_lea.vmem %s4, %s3365
      $region52: #{double_conv.4} parent=47 // pred_fallthru
        _
      // Predicated region
      $region53: #{double_conv.4} parent=47 // pred_check
        %p3367 = pneg %p177
      $region54: #{double_conv.4} parent=47 // pred_check_branch
        %3369 = sbr.rel (%p3367) target = $region56
      $region55: #{double_conv.4} parent=47 // pred_region
        %p3370 = scmp.lt.s32.totalorder %s23, 1
        %s3371 = scalar_select %p3370, %s23, 1
        %p3372 = scmp.lt.s32.totalorder %s24, 0
        %s3373 = scalar_select %p3372, %s24, 0
        %s3374 = sadd.s32 %s3373, %s3371
        %s3375 = smul.addr %s3374, 2
        %s3376 = scalar_lea.vmem %s5, %s3375
      $region56: #{double_conv.4} parent=47 // pred_fallthru
        _
    $region48: #{double_conv.4} parent=5 // pred_fallthru
      _
  $region6: #{double_conv.4} parent=0 // loop_footer
    %s16 = sadd.s32 1, %s12
  $region7: #{double_conv.4} parent=0 // loop_footer_branch
    %11 = sbr.rel target = $region3
  $region8: #{double_conv.4} parent=0 // loop_exit
    _

</llo_original>
